<compile_context>
chip_gen: v7x
topology: tpu7x:2x2x1
jax: 0.10.0
libtpu: 0.0.40
codegen_flags: <defaults>
</compile_context>

<pallas_src>
import functools

import jax
import jax.numpy as jnp
from jax import lax
from jax.experimental import pallas as pl
from jax.experimental.pallas import tpu as pltpu

LANE = 128     # TPU lane width (channels padded to this)
SUBLANE = 8    # sublane granularity (W padded to this)


def _round_up(x, m):
    return (x + m - 1) // m * m


def _basic_block_kernel(x_ref, w1_ref, b1_ref, w2_ref, b2_ref, out_ref, acc_ref,
                        *, real_w):
    # x_ref  : (1, H, Wp, C) bf16  NHWC image, channel- and W-padded (no halo)
    # w1_ref : (9, C, C)     bf16  conv1 weights (kh*3+kw, Cin, Cout), BN1 scale folded
    # b1_ref : (1, C)        f32   folded BN1 bias
    # w2_ref : (9, C, C)     bf16  conv2 weights, BN2 scale folded
    # b2_ref : (1, C)        f32   folded BN2 bias
    # out_ref: (1, H, Wp, C) bf16
    # acc_ref: (H*Wp, C)     f32   shared conv accumulator (scratch)
    _, H, Wp, C = x_ref.shape
    M = H * Wp

    def conv3x3_accum(a_hwc, w_ref, b_ref):
        """acc_ref <- folded_bias + conv3x3_same(a_hwc), as 9 tap matmuls."""
        acc_ref[...] = jnp.broadcast_to(b_ref[...], (M, C))
        zcol = jnp.zeros((H, 1, C), a_hwc.dtype)
        for dw in (-1, 0, 1):
            # av[h, w] = a[h, w + dw]  (zero where w + dw is out of bounds)
            if dw == -1:
                av = jnp.concatenate([zcol, a_hwc[:, :Wp - 1, :]], axis=1)
            elif dw == 1:
                av = jnp.concatenate([a_hwc[:, 1:, :], zcol], axis=1)
            else:
                av = a_hwc
            af = av.reshape(M, C)                       # Wp % 8 == 0 -> layout no-op
            for kh in range(3):
                dh = kh - 1
                nflat = (H - abs(dh)) * Wp              # rows touched (multiple of 8)
                src = max(0, dh) * Wp                   # aligned flat input offset
                dst = max(0, -dh) * Wp                  # aligned flat output offset
                tap = w_ref[kh * 3 + (dw + 1)]          # (C, C)
                contrib = jnp.dot(af[src:src + nflat, :], tap,
                                  preferred_element_type=jnp.float32)
                acc_ref[dst:dst + nflat, :] += contrib

    x = x_ref[0]                                        # (H, Wp, C) bf16, resident

    # ---- conv1 + bn1 (scale folded, bias in acc init) + relu ----------------------
    conv3x3_accum(x, w1_ref, b1_ref)
    y = jnp.maximum(acc_ref[...], 0.0).astype(x.dtype).reshape(H, Wp, C)
    if real_w < Wp:
        # conv2 must see exact zeros in the W-padding columns (bias + relu made
        # them nonzero); one cheap select restores zero-padding semantics.
        col = lax.broadcasted_iota(jnp.int32, (1, Wp, C), 1)
        y = jnp.where(col < real_w, y, jnp.zeros_like(y))

    # ---- conv2 + bn2 (scale folded, bias in acc init) -----------------------------
    conv3x3_accum(y, w2_ref, b2_ref)

    # ---- residual + relu epilogue (identity re-read from the resident input) ------
    identity = x.reshape(M, C).astype(jnp.float32)
    out = jnp.maximum(acc_ref[...] + identity, 0.0)
    out_ref[...] = out.reshape(1, H, Wp, C).astype(out_ref.dtype)


def basic_block(x_nchw, w1_oihw, w2_oihw,
                gamma1, beta1, mean1, var1,
                gamma2, beta2, mean2, var2,
                eps=1e-5, compute_dtype=jnp.bfloat16):
    """BasicBlock forward. x_nchw: (N, C, H, W), stride=1, downsample=None."""
    N, Cin, H, W = x_nchw.shape
    Cout = w1_oihw.shape[0]
    assert w1_oihw.shape == (Cout, Cin, 3, 3) and w2_oihw.shape == (Cout, Cout, 3, 3)
    assert Cin == Cout, "stride=1 / downsample=None BasicBlock requires Cin == Cout"
    # TODO(synk): stride>1 / downsample / dilation>1 BasicBlock variants not implemented.
    # TODO(synk): on v7x (small batch) add a second 'parallel' row-block grid axis with
    #             a manual 1-row halo DMA to restore pipelining and megacore sharding.
    # TODO(synk): 64-channel blocks pay 4x padded MXU FLOPs (64 -> 128 lanes); a
    #             network-level space-to-depth repack at the stem would recover this.

    C = _round_up(Cout, LANE)      # lane-dense channels
    Wp = _round_up(W, SUBLANE)     # sublane-aligned width

    # ---- wrapper glue: NCHW->NHWC, channel/W pad, bf16 cast (one fused XLA op) ----
    # TODO(synk): in a full network keep activations in padded-NHWC bf16 between
    #             blocks so these transposes/pads/casts disappear entirely.
    x = jnp.transpose(x_nchw, (0, 2, 3, 1))
    x = jnp.pad(x, ((0, 0), (0, 0), (0, Wp - W), (0, C - Cin))).astype(compute_dtype)

    # ---- fold eval-mode BN into conv weights (scale) and a per-channel bias -------
    s1 = gamma1 / jnp.sqrt(var1 + eps)
    s2 = gamma2 / jnp.sqrt(var2 + eps)
    b1 = jnp.pad(beta1 - mean1 * s1, (0, C - Cout)).reshape(1, C).astype(jnp.float32)
    b2 = jnp.pad(beta2 - mean2 * s2, (0, C - Cout)).reshape(1, C).astype(jnp.float32)

    def fold(w_oihw, s):
        # OIHW -> HWIO, fold per-output-channel BN scale, pad channels, (9, C, C).
        w = jnp.transpose(w_oihw, (2, 3, 1, 0)) * s                  # (3, 3, Ci, Co)
        w = jnp.pad(w, ((0, 0), (0, 0), (0, C - w.shape[2]), (0, C - w.shape[3])))
        return w.reshape(9, C, C).astype(compute_dtype)

    w1 = fold(w1_oihw, s1)
    w2 = fold(w2_oihw, s2)

    # ---- generation-aware VMEM budget (v7x has 64 MiB physical; v5e/v6e 128 MiB) --
    try:
        phys_vmem = int(pltpu.get_tpu_info().vmem_capacity_bytes)
    except Exception:
        phys_vmem = 128 * 1024 * 1024
    vmem_limit = min(96 * 1024 * 1024, max(32 * 1024 * 1024, phys_vmem * 3 // 4))

    itemsize = jnp.dtype(compute_dtype).itemsize
    flops = 4 * N * H * Wp * 9 * C * C                  # two convs, ~2*M*K*N each
    bytes_accessed = (x.size * itemsize + (w1.size + w2.size) * itemsize
                      + (b1.size + b2.size) * 4 + N * H * Wp * C * itemsize)

    kernel = functools.partial(_basic_block_kernel, real_w=W)

    out_nhwc = pl.pallas_call(
        kernel,
        out_shape=jax.ShapeDtypeStruct((N, H, Wp, C), compute_dtype),  # bf16 writeback
        grid_spec=pltpu.PrefetchScalarGridSpec(
            num_scalar_prefetch=0,
            grid=(N,),                                   # one image per grid step
            in_specs=[
                pl.BlockSpec((1, H, Wp, C), lambda n: (n, 0, 0, 0)),
                # Constant index maps -> weights/biases fetched once, resident
                # across the batch grid.
                pl.BlockSpec((9, C, C), lambda n: (0, 0, 0)),
                pl.BlockSpec((1, C), lambda n: (0, 0)),
                pl.BlockSpec((9, C, C), lambda n: (0, 0, 0)),
                pl.BlockSpec((1, C), lambda n: (0, 0)),
            ],
            out_specs=pl.BlockSpec((1, H, Wp, C), lambda n: (n, 0, 0, 0)),
            scratch_shapes=[pltpu.VMEM((H * Wp, C), jnp.float32)],
        ),
        compiler_params=pltpu.CompilerParams(
            dimension_semantics=("parallel",),           # shard batch over v7x's 2 TCs
            vmem_limit_bytes=vmem_limit,
        ),
        cost_estimate=pl.CostEstimate(flops=flops, transcendentals=0,
                                      bytes_accessed=bytes_accessed),
    )(x, w1, b1, w2, b2)

    # ---- wrapper glue: drop padding, back to NCHW, caller dtype -------------------
    out = out_nhwc[:, :, :W, :Cout]
    return jnp.transpose(out, (0, 3, 1, 2)).astype(x_nchw.dtype)


# ----------------------------- references ---------------------------------------
def _reference_f32(x, w1, w2, g1, be1, m1, v1, g2, be2, m2, v2, eps=1e-5):
    """Pure f32 reference (exact PyTorch eval-mode semantics)."""
    def conv(a, w):
        return lax.conv_general_dilated(
            a, w, (1, 1), ((1, 1), (1, 1)),
            dimension_numbers=('NCHW', 'OIHW', 'NCHW'))

    def bn(a, g, b, m, v):
        sh = (1, -1, 1, 1)
        return (a - m.reshape(sh)) / jnp.sqrt(v.reshape(sh) + eps) * g.reshape(sh) + b.reshape(sh)

    out = jax.nn.relu(bn(conv(x, w1), g1, be1, m1, v1))
    out = bn(conv(out, w2), g2, be2, m2, v2)
    return jax.nn.relu(out + x)


def _reference_matched(x, w1, w2, g1, be1, m1, v1, g2, be2, m2, v2,
                       eps=1e-5, compute_dtype=jnp.bfloat16):
    """Same math as the kernel: BN scale folded into bf16 weights, bf16 matmul
    operands, f32 accumulation/epilogue, bf16 output rounding."""
    s1 = g1 / jnp.sqrt(v1 + eps)
    s2 = g2 / jnp.sqrt(v2 + eps)
    b1 = (be1 - m1 * s1).reshape(1, -1, 1, 1)
    b2 = (be2 - m2 * s2).reshape(1, -1, 1, 1)
    w1q = (w1 * s1[:, None, None, None]).astype(compute_dtype)
    w2q = (w2 * s2[:, None, None, None]).astype(compute_dtype)
    xq = x.astype(compute_dtype)

    def conv(a, w):
        return lax.conv_general_dilated(
            a, w, (1, 1), ((1, 1), (1, 1)),
            dimension_numbers=('NCHW', 'OIHW', 'NCHW'),
            preferred_element_type=jnp.float32)

    out = jax.nn.relu(conv(xq, w1q) + b1)
    out = conv(out.astype(compute_dtype), w2q) + b2
    out = jax.nn.relu(out + xq.astype(jnp.float32))
    return out.astype(compute_dtype).astype(jnp.float32)   # kernel emits bf16


if __name__ == "__main__":
    key = jax.random.PRNGKey(0)
    # W=12 (not a multiple of 8) deliberately exercises the in-kernel W-padding path.
    N, inplanes, planes, H, W = 2, 4, 4, 16, 12

    ks = jax.random.split(key, 8)
    x = jax.random.normal(ks[0], (N, inplanes, H, W), jnp.float32)
    w1 = jax.random.normal(ks[1], (planes, inplanes, 3, 3), jnp.float32) * 0.1
    w2 = jax.random.normal(ks[2], (planes, planes, 3, 3), jnp.float32) * 0.1

    gamma1 = jnp.ones((planes,), jnp.float32)
    beta1 = jnp.zeros((planes,), jnp.float32)
    mean1 = jax.random.normal(ks[3], (planes,), jnp.float32) * 0.1
    var1 = jax.random.uniform(ks[4], (planes,), jnp.float32, minval=0.5, maxval=1.5)

    gamma2 = jnp.ones((planes,), jnp.float32)
    beta2 = jnp.zeros((planes,), jnp.float32)
    mean2 = jax.random.normal(ks[5], (planes,), jnp.float32) * 0.1
    var2 = jax.random.uniform(ks[6], (planes,), jnp.float32, minval=0.5, maxval=1.5)

    args = (x, w1, w2, gamma1, beta1, mean1, var1, gamma2, beta2, mean2, var2)

    out = jax.block_until_ready(basic_block(*args))
    assert out.shape == (N, planes, H, W)
    assert out.dtype == jnp.float32

    # Tight check vs a reference that quantizes operands/output identically.
    ref_m = _reference_matched(*args)
    err_m = float(jnp.max(jnp.abs(out - ref_m)))
    assert jnp.allclose(out, ref_m, rtol=1e-2, atol=1e-2), f"matched max err {err_m}"

    # Loose sanity check vs the pure-f32 module semantics.
    ref32 = _reference_f32(*args)
    err32 = float(jnp.max(jnp.abs(out - ref32)))
    assert jnp.allclose(out, ref32, rtol=5e-2, atol=2.5e-1), f"f32 max err {err32}"

    print("KERNEL_OK")
</pallas_src>

<mosaic_0001>
module attributes {stable_mosaic.version = 11 : i64} {
  func.func @_basic_block_kernel(%arg0: i32, %arg1: memref<1x16x16x128xbf16, #tpu.memory_space<vmem>>, %arg2: memref<9x128x128xbf16, #tpu.memory_space<vmem>>, %arg3: memref<1x128xf32, #tpu.memory_space<vmem>>, %arg4: memref<9x128x128xbf16, #tpu.memory_space<vmem>>, %arg5: memref<1x128xf32, #tpu.memory_space<vmem>>, %arg6: memref<1x16x16x128xbf16, #tpu.memory_space<vmem>>, %arg7: memref<256x128xf32, #tpu.memory_space<vmem>>) attributes {dimension_semantics = [#tpu.dimension_semantics<parallel>], iteration_bounds = array<i64: 2>, scalar_prefetch = 0 : i64, scratch_operands = 1 : i64, tpu.core_type = #tpu.core_type<tc>, window_params = [{transform_indices = @transform_0, window_bounds = array<i64: 1, 16, 16, 128>}, {pipeline_mode = #tpu.pipeline_mode<synchronous>, transform_indices = @transform_1, window_bounds = array<i64: 9, 128, 128>}, {pipeline_mode = #tpu.pipeline_mode<synchronous>, transform_indices = @transform_2, window_bounds = array<i64: 1, 128>}, {pipeline_mode = #tpu.pipeline_mode<synchronous>, transform_indices = @transform_3, window_bounds = array<i64: 9, 128, 128>}, {pipeline_mode = #tpu.pipeline_mode<synchronous>, transform_indices = @transform_4, window_bounds = array<i64: 1, 128>}, {transform_indices = @transform_5, window_bounds = array<i64: 1, 16, 16, 128>}]} {
    %c0 = arith.constant 0 : index
    %c0_0 = arith.constant 0 : index
    %c0_1 = arith.constant 0 : index
    %c0_2 = arith.constant 0 : index
    %0 = vector.load %arg1[%c0, %c0_0, %c0_1, %c0_2] : memref<1x16x16x128xbf16, #tpu.memory_space<vmem>>, vector<1x16x16x128xbf16>
    %1 = vector.shape_cast %0 : vector<1x16x16x128xbf16> to vector<16x16x128xbf16>
    %c0_3 = arith.constant 0 : index
    %c0_4 = arith.constant 0 : index
    %2 = vector.load %arg3[%c0_3, %c0_4] : memref<1x128xf32, #tpu.memory_space<vmem>>, vector<1x128xf32>
    %3 = vector.shape_cast %2 : vector<1x128xf32> to vector<1x128xf32>
    %4 = vector.broadcast %3 : vector<1x128xf32> to vector<256x128xf32>
    %c0_5 = arith.constant 0 : index
    %c0_6 = arith.constant 0 : index
    %5 = vector.load %arg7[%c0_5, %c0_6] : memref<256x128xf32, #tpu.memory_space<vmem>>, vector<256x128xf32>
    tpu.vector_store %arg7[%c0_5, %c0_6], %4 {strides = array<i32>} : memref<256x128xf32, #tpu.memory_space<vmem>>, vector<256x128xf32>,
    %cst = arith.constant 0.000000e+00 : bf16
    %6 = vector.broadcast %cst : bf16 to vector<16x1x128xbf16>
    %7 = vector.extract_strided_slice %1 {offsets = [0, 0, 0], sizes = [16, 15, 128], strides = [1, 1, 1]} : vector<16x16x128xbf16> to vector<16x15x128xbf16>
    %8 = tpu.concatenate %6, %7 in 1 : vector<16x1x128xbf16>, vector<16x15x128xbf16> -> vector<16x16x128xbf16>
    %9 = vector.shape_cast %8 : vector<16x16x128xbf16> to vector<256x128xbf16>
    %c0_7 = arith.constant 0 : index
    %c0_8 = arith.constant 0 : index
    %c0_9 = arith.constant 0 : index
    %10 = vector.load %arg2[%c0_7, %c0_8, %c0_9] : memref<9x128x128xbf16, #tpu.memory_space<vmem>>, vector<1x128x128xbf16>
    %11 = vector.shape_cast %10 : vector<1x128x128xbf16> to vector<128x128xbf16>
    %12 = vector.extract_strided_slice %9 {offsets = [0, 0], sizes = [240, 128], strides = [1, 1]} : vector<256x128xbf16> to vector<240x128xbf16>
    %cst_10 = arith.constant dense<0.000000e+00> : vector<240x128xf32>
    %13 = tpu.matmul %12, %11, %cst_10 {dimension_numbers = #tpu.dot_dimension_numbers<[1], [0], [0], [1], [0, 0, 1, 1], [], []>} : vector<240x128xbf16>, vector<128x128xbf16>, vector<240x128xf32> -> vector<240x128xf32>
    %c16 = arith.constant 16 : index
    %c0_11 = arith.constant 0 : index
    %14 = vector.load %arg7[%c16, %c0_11] : memref<256x128xf32, #tpu.memory_space<vmem>>, vector<240x128xf32>
    %15 = arith.addf %14, %13 : vector<240x128xf32>
    %c16_12 = arith.constant 16 : index
    %c0_13 = arith.constant 0 : index
    %16 = vector.load %arg7[%c16_12, %c0_13] : memref<256x128xf32, #tpu.memory_space<vmem>>, vector<240x128xf32>
    tpu.vector_store %arg7[%c16_12, %c0_13], %15 {strides = array<i32>} : memref<256x128xf32, #tpu.memory_space<vmem>>, vector<240x128xf32>,
    %c3 = arith.constant 3 : index
    %c0_14 = arith.constant 0 : index
    %c0_15 = arith.constant 0 : index
    %17 = vector.load %arg2[%c3, %c0_14, %c0_15] : memref<9x128x128xbf16, #tpu.memory_space<vmem>>, vector<1x128x128xbf16>
    %18 = vector.shape_cast %17 : vector<1x128x128xbf16> to vector<128x128xbf16>
    %cst_16 = arith.constant dense<0.000000e+00> : vector<256x128xf32>
    %19 = tpu.matmul %9, %18, %cst_16 {dimension_numbers = #tpu.dot_dimension_numbers<[1], [0], [0], [1], [0, 0, 1, 1], [], []>} : vector<256x128xbf16>, vector<128x128xbf16>, vector<256x128xf32> -> vector<256x128xf32>
    %c0_17 = arith.constant 0 : index
    %c0_18 = arith.constant 0 : index
    %20 = vector.load %arg7[%c0_17, %c0_18] : memref<256x128xf32, #tpu.memory_space<vmem>>, vector<256x128xf32>
    %21 = arith.addf %20, %19 : vector<256x128xf32>
    %c0_19 = arith.constant 0 : index
    %c0_20 = arith.constant 0 : index
    %22 = vector.load %arg7[%c0_19, %c0_20] : memref<256x128xf32, #tpu.memory_space<vmem>>, vector<256x128xf32>
    tpu.vector_store %arg7[%c0_19, %c0_20], %21 {strides = array<i32>} : memref<256x128xf32, #tpu.memory_space<vmem>>, vector<256x128xf32>,
    %c6 = arith.constant 6 : index
    %c0_21 = arith.constant 0 : index
    %c0_22 = arith.constant 0 : index
    %23 = vector.load %arg2[%c6, %c0_21, %c0_22] : memref<9x128x128xbf16, #tpu.memory_space<vmem>>, vector<1x128x128xbf16>
    %24 = vector.shape_cast %23 : vector<1x128x128xbf16> to vector<128x128xbf16>
    %25 = vector.extract_strided_slice %9 {offsets = [16, 0], sizes = [240, 128], strides = [1, 1]} : vector<256x128xbf16> to vector<240x128xbf16>
    %cst_23 = arith.constant dense<0.000000e+00> : vector<240x128xf32>
    %26 = tpu.matmul %25, %24, %cst_23 {dimension_numbers = #tpu.dot_dimension_numbers<[1], [0], [0], [1], [0, 0, 1, 1], [], []>} : vector<240x128xbf16>, vector<128x128xbf16>, vector<240x128xf32> -> vector<240x128xf32>
    %c0_24 = arith.constant 0 : index
    %c0_25 = arith.constant 0 : index
    %27 = vector.load %arg7[%c0_24, %c0_25] : memref<256x128xf32, #tpu.memory_space<vmem>>, vector<240x128xf32>
    %28 = arith.addf %27, %26 : vector<240x128xf32>
    %c0_26 = arith.constant 0 : index
    %c0_27 = arith.constant 0 : index
    %29 = vector.load %arg7[%c0_26, %c0_27] : memref<256x128xf32, #tpu.memory_space<vmem>>, vector<240x128xf32>
    tpu.vector_store %arg7[%c0_26, %c0_27], %28 {strides = array<i32>} : memref<256x128xf32, #tpu.memory_space<vmem>>, vector<240x128xf32>,
    %30 = vector.shape_cast %1 : vector<16x16x128xbf16> to vector<256x128xbf16>
    %c1 = arith.constant 1 : index
    %c0_28 = arith.constant 0 : index
    %c0_29 = arith.constant 0 : index
    %31 = vector.load %arg2[%c1, %c0_28, %c0_29] : memref<9x128x128xbf16, #tpu.memory_space<vmem>>, vector<1x128x128xbf16>
    %32 = vector.shape_cast %31 : vector<1x128x128xbf16> to vector<128x128xbf16>
    %33 = vector.extract_strided_slice %30 {offsets = [0, 0], sizes = [240, 128], strides = [1, 1]} : vector<256x128xbf16> to vector<240x128xbf16>
    %cst_30 = arith.constant dense<0.000000e+00> : vector<240x128xf32>
    %34 = tpu.matmul %33, %32, %cst_30 {dimension_numbers = #tpu.dot_dimension_numbers<[1], [0], [0], [1], [0, 0, 1, 1], [], []>} : vector<240x128xbf16>, vector<128x128xbf16>, vector<240x128xf32> -> vector<240x128xf32>
    %c16_31 = arith.constant 16 : index
    %c0_32 = arith.constant 0 : index
    %35 = vector.load %arg7[%c16_31, %c0_32] : memref<256x128xf32, #tpu.memory_space<vmem>>, vector<240x128xf32>
    %36 = arith.addf %35, %34 : vector<240x128xf32>
    %c16_33 = arith.constant 16 : index
    %c0_34 = arith.constant 0 : index
    %37 = vector.load %arg7[%c16_33, %c0_34] : memref<256x128xf32, #tpu.memory_space<vmem>>, vector<240x128xf32>
    tpu.vector_store %arg7[%c16_33, %c0_34], %36 {strides = array<i32>} : memref<256x128xf32, #tpu.memory_space<vmem>>, vector<240x128xf32>,
    %c4 = arith.constant 4 : index
    %c0_35 = arith.constant 0 : index
    %c0_36 = arith.constant 0 : index
    %38 = vector.load %arg2[%c4, %c0_35, %c0_36] : memref<9x128x128xbf16, #tpu.memory_space<vmem>>, vector<1x128x128xbf16>
    %39 = vector.shape_cast %38 : vector<1x128x128xbf16> to vector<128x128xbf16>
    %cst_37 = arith.constant dense<0.000000e+00> : vector<256x128xf32>
    %40 = tpu.matmul %30, %39, %cst_37 {dimension_numbers = #tpu.dot_dimension_numbers<[1], [0], [0], [1], [0, 0, 1, 1], [], []>} : vector<256x128xbf16>, vector<128x128xbf16>, vector<256x128xf32> -> vector<256x128xf32>
    %c0_38 = arith.constant 0 : index
    %c0_39 = arith.constant 0 : index
    %41 = vector.load %arg7[%c0_38, %c0_39] : memref<256x128xf32, #tpu.memory_space<vmem>>, vector<256x128xf32>
    %42 = arith.addf %41, %40 : vector<256x128xf32>
    %c0_40 = arith.constant 0 : index
    %c0_41 = arith.constant 0 : index
    %43 = vector.load %arg7[%c0_40, %c0_41] : memref<256x128xf32, #tpu.memory_space<vmem>>, vector<256x128xf32>
    tpu.vector_store %arg7[%c0_40, %c0_41], %42 {strides = array<i32>} : memref<256x128xf32, #tpu.memory_space<vmem>>, vector<256x128xf32>,
    %c7 = arith.constant 7 : index
    %c0_42 = arith.constant 0 : index
    %c0_43 = arith.constant 0 : index
    %44 = vector.load %arg2[%c7, %c0_42, %c0_43] : memref<9x128x128xbf16, #tpu.memory_space<vmem>>, vector<1x128x128xbf16>
    %45 = vector.shape_cast %44 : vector<1x128x128xbf16> to vector<128x128xbf16>
    %46 = vector.extract_strided_slice %30 {offsets = [16, 0], sizes = [240, 128], strides = [1, 1]} : vector<256x128xbf16> to vector<240x128xbf16>
    %cst_44 = arith.constant dense<0.000000e+00> : vector<240x128xf32>
    %47 = tpu.matmul %46, %45, %cst_44 {dimension_numbers = #tpu.dot_dimension_numbers<[1], [0], [0], [1], [0, 0, 1, 1], [], []>} : vector<240x128xbf16>, vector<128x128xbf16>, vector<240x128xf32> -> vector<240x128xf32>
    %c0_45 = arith.constant 0 : index
    %c0_46 = arith.constant 0 : index
    %48 = vector.load %arg7[%c0_45, %c0_46] : memref<256x128xf32, #tpu.memory_space<vmem>>, vector<240x128xf32>
    %49 = arith.addf %48, %47 : vector<240x128xf32>
    %c0_47 = arith.constant 0 : index
    %c0_48 = arith.constant 0 : index
    %50 = vector.load %arg7[%c0_47, %c0_48] : memref<256x128xf32, #tpu.memory_space<vmem>>, vector<240x128xf32>
    tpu.vector_store %arg7[%c0_47, %c0_48], %49 {strides = array<i32>} : memref<256x128xf32, #tpu.memory_space<vmem>>, vector<240x128xf32>,
    %51 = vector.extract_strided_slice %1 {offsets = [0, 1, 0], sizes = [16, 15, 128], strides = [1, 1, 1]} : vector<16x16x128xbf16> to vector<16x15x128xbf16>
    %52 = tpu.concatenate %51, %6 in 1 : vector<16x15x128xbf16>, vector<16x1x128xbf16> -> vector<16x16x128xbf16>
    %53 = vector.shape_cast %52 : vector<16x16x128xbf16> to vector<256x128xbf16>
    %c2 = arith.constant 2 : index
    %c0_49 = arith.constant 0 : index
    %c0_50 = arith.constant 0 : index
    %54 = vector.load %arg2[%c2, %c0_49, %c0_50] : memref<9x128x128xbf16, #tpu.memory_space<vmem>>, vector<1x128x128xbf16>
    %55 = vector.shape_cast %54 : vector<1x128x128xbf16> to vector<128x128xbf16>
    %56 = vector.extract_strided_slice %53 {offsets = [0, 0], sizes = [240, 128], strides = [1, 1]} : vector<256x128xbf16> to vector<240x128xbf16>
    %cst_51 = arith.constant dense<0.000000e+00> : vector<240x128xf32>
    %57 = tpu.matmul %56, %55, %cst_51 {dimension_numbers = #tpu.dot_dimension_numbers<[1], [0], [0], [1], [0, 0, 1, 1], [], []>} : vector<240x128xbf16>, vector<128x128xbf16>, vector<240x128xf32> -> vector<240x128xf32>
    %c16_52 = arith.constant 16 : index
    %c0_53 = arith.constant 0 : index
    %58 = vector.load %arg7[%c16_52, %c0_53] : memref<256x128xf32, #tpu.memory_space<vmem>>, vector<240x128xf32>
    %59 = arith.addf %58, %57 : vector<240x128xf32>
    %c16_54 = arith.constant 16 : index
    %c0_55 = arith.constant 0 : index
    %60 = vector.load %arg7[%c16_54, %c0_55] : memref<256x128xf32, #tpu.memory_space<vmem>>, vector<240x128xf32>
    tpu.vector_store %arg7[%c16_54, %c0_55], %59 {strides = array<i32>} : memref<256x128xf32, #tpu.memory_space<vmem>>, vector<240x128xf32>,
    %c5 = arith.constant 5 : index
    %c0_56 = arith.constant 0 : index
    %c0_57 = arith.constant 0 : index
    %61 = vector.load %arg2[%c5, %c0_56, %c0_57] : memref<9x128x128xbf16, #tpu.memory_space<vmem>>, vector<1x128x128xbf16>
    %62 = vector.shape_cast %61 : vector<1x128x128xbf16> to vector<128x128xbf16>
    %cst_58 = arith.constant dense<0.000000e+00> : vector<256x128xf32>
    %63 = tpu.matmul %53, %62, %cst_58 {dimension_numbers = #tpu.dot_dimension_numbers<[1], [0], [0], [1], [0, 0, 1, 1], [], []>} : vector<256x128xbf16>, vector<128x128xbf16>, vector<256x128xf32> -> vector<256x128xf32>
    %c0_59 = arith.constant 0 : index
    %c0_60 = arith.constant 0 : index
    %64 = vector.load %arg7[%c0_59, %c0_60] : memref<256x128xf32, #tpu.memory_space<vmem>>, vector<256x128xf32>
    %65 = arith.addf %64, %63 : vector<256x128xf32>
    %c0_61 = arith.constant 0 : index
    %c0_62 = arith.constant 0 : index
    %66 = vector.load %arg7[%c0_61, %c0_62] : memref<256x128xf32, #tpu.memory_space<vmem>>, vector<256x128xf32>
    tpu.vector_store %arg7[%c0_61, %c0_62], %65 {strides = array<i32>} : memref<256x128xf32, #tpu.memory_space<vmem>>, vector<256x128xf32>,
    %c8 = arith.constant 8 : index
    %c0_63 = arith.constant 0 : index
    %c0_64 = arith.constant 0 : index
    %67 = vector.load %arg2[%c8, %c0_63, %c0_64] : memref<9x128x128xbf16, #tpu.memory_space<vmem>>, vector<1x128x128xbf16>
    %68 = vector.shape_cast %67 : vector<1x128x128xbf16> to vector<128x128xbf16>
    %69 = vector.extract_strided_slice %53 {offsets = [16, 0], sizes = [240, 128], strides = [1, 1]} : vector<256x128xbf16> to vector<240x128xbf16>
    %cst_65 = arith.constant dense<0.000000e+00> : vector<240x128xf32>
    %70 = tpu.matmul %69, %68, %cst_65 {dimension_numbers = #tpu.dot_dimension_numbers<[1], [0], [0], [1], [0, 0, 1, 1], [], []>} : vector<240x128xbf16>, vector<128x128xbf16>, vector<240x128xf32> -> vector<240x128xf32>
    %c0_66 = arith.constant 0 : index
    %c0_67 = arith.constant 0 : index
    %71 = vector.load %arg7[%c0_66, %c0_67] : memref<256x128xf32, #tpu.memory_space<vmem>>, vector<240x128xf32>
    %72 = arith.addf %71, %70 : vector<240x128xf32>
    %c0_68 = arith.constant 0 : index
    %c0_69 = arith.constant 0 : index
    %73 = vector.load %arg7[%c0_68, %c0_69] : memref<256x128xf32, #tpu.memory_space<vmem>>, vector<240x128xf32>
    tpu.vector_store %arg7[%c0_68, %c0_69], %72 {strides = array<i32>} : memref<256x128xf32, #tpu.memory_space<vmem>>, vector<240x128xf32>,
    %c0_70 = arith.constant 0 : index
    %c0_71 = arith.constant 0 : index
    %74 = vector.load %arg7[%c0_70, %c0_71] : memref<256x128xf32, #tpu.memory_space<vmem>>, vector<256x128xf32>
    %cst_72 = arith.constant 0.000000e+00 : f32
    %75 = vector.broadcast %cst_72 : f32 to vector<256x128xf32>
    %76 = arith.maximumf %74, %75 : vector<256x128xf32>
    %77 = arith.truncf %76 : vector<256x128xf32> to vector<256x128xbf16>
    %78 = vector.shape_cast %77 : vector<256x128xbf16> to vector<16x16x128xbf16>
    %79 = tpu.iota {dimensions = array<i32: 1>} : vector<1x16x128xi32>
    %c12_i32 = arith.constant 12 : i32
    %80 = vector.broadcast %c12_i32 : i32 to vector<1x16x128xi32>
    %81 = arith.cmpi slt, %79, %80 : vector<1x16x128xi32>
    %cst_73 = arith.constant 0.000000e+00 : bf16
    %82 = vector.broadcast %cst_73 : bf16 to vector<16x16x128xbf16>
    %83 = vector.shape_cast %81 : vector<1x16x128xi1> to vector<1x16x128xi1>
    %84 = vector.broadcast %83 : vector<1x16x128xi1> to vector<16x16x128xi1>
    %85 = arith.select %84, %78, %82 : vector<16x16x128xi1>, vector<16x16x128xbf16>
    %c0_74 = arith.constant 0 : index
    %c0_75 = arith.constant 0 : index
    %86 = vector.load %arg5[%c0_74, %c0_75] : memref<1x128xf32, #tpu.memory_space<vmem>>, vector<1x128xf32>
    %87 = vector.shape_cast %86 : vector<1x128xf32> to vector<1x128xf32>
    %88 = vector.broadcast %87 : vector<1x128xf32> to vector<256x128xf32>
    %c0_76 = arith.constant 0 : index
    %c0_77 = arith.constant 0 : index
    %89 = vector.load %arg7[%c0_76, %c0_77] : memref<256x128xf32, #tpu.memory_space<vmem>>, vector<256x128xf32>
    tpu.vector_store %arg7[%c0_76, %c0_77], %88 {strides = array<i32>} : memref<256x128xf32, #tpu.memory_space<vmem>>, vector<256x128xf32>,
    %cst_78 = arith.constant 0.000000e+00 : bf16
    %90 = vector.broadcast %cst_78 : bf16 to vector<16x1x128xbf16>
    %91 = vector.extract_strided_slice %85 {offsets = [0, 0, 0], sizes = [16, 15, 128], strides = [1, 1, 1]} : vector<16x16x128xbf16> to vector<16x15x128xbf16>
    %92 = tpu.concatenate %90, %91 in 1 : vector<16x1x128xbf16>, vector<16x15x128xbf16> -> vector<16x16x128xbf16>
    %93 = vector.shape_cast %92 : vector<16x16x128xbf16> to vector<256x128xbf16>
    %c0_79 = arith.constant 0 : index
    %c0_80 = arith.constant 0 : index
    %c0_81 = arith.constant 0 : index
    %94 = vector.load %arg4[%c0_79, %c0_80, %c0_81] : memref<9x128x128xbf16, #tpu.memory_space<vmem>>, vector<1x128x128xbf16>
    %95 = vector.shape_cast %94 : vector<1x128x128xbf16> to vector<128x128xbf16>
    %96 = vector.extract_strided_slice %93 {offsets = [0, 0], sizes = [240, 128], strides = [1, 1]} : vector<256x128xbf16> to vector<240x128xbf16>
    %cst_82 = arith.constant dense<0.000000e+00> : vector<240x128xf32>
    %97 = tpu.matmul %96, %95, %cst_82 {dimension_numbers = #tpu.dot_dimension_numbers<[1], [0], [0], [1], [0, 0, 1, 1], [], []>} : vector<240x128xbf16>, vector<128x128xbf16>, vector<240x128xf32> -> vector<240x128xf32>
    %c16_83 = arith.constant 16 : index
    %c0_84 = arith.constant 0 : index
    %98 = vector.load %arg7[%c16_83, %c0_84] : memref<256x128xf32, #tpu.memory_space<vmem>>, vector<240x128xf32>
    %99 = arith.addf %98, %97 : vector<240x128xf32>
    %c16_85 = arith.constant 16 : index
    %c0_86 = arith.constant 0 : index
    %100 = vector.load %arg7[%c16_85, %c0_86] : memref<256x128xf32, #tpu.memory_space<vmem>>, vector<240x128xf32>
    tpu.vector_store %arg7[%c16_85, %c0_86], %99 {strides = array<i32>} : memref<256x128xf32, #tpu.memory_space<vmem>>, vector<240x128xf32>,
    %c3_87 = arith.constant 3 : index
    %c0_88 = arith.constant 0 : index
    %c0_89 = arith.constant 0 : index
    %101 = vector.load %arg4[%c3_87, %c0_88, %c0_89] : memref<9x128x128xbf16, #tpu.memory_space<vmem>>, vector<1x128x128xbf16>
    %102 = vector.shape_cast %101 : vector<1x128x128xbf16> to vector<128x128xbf16>
    %cst_90 = arith.constant dense<0.000000e+00> : vector<256x128xf32>
    %103 = tpu.matmul %93, %102, %cst_90 {dimension_numbers = #tpu.dot_dimension_numbers<[1], [0], [0], [1], [0, 0, 1, 1], [], []>} : vector<256x128xbf16>, vector<128x128xbf16>, vector<256x128xf32> -> vector<256x128xf32>
    %c0_91 = arith.constant 0 : index
    %c0_92 = arith.constant 0 : index
    %104 = vector.load %arg7[%c0_91, %c0_92] : memref<256x128xf32, #tpu.memory_space<vmem>>, vector<256x128xf32>
    %105 = arith.addf %104, %103 : vector<256x128xf32>
    %c0_93 = arith.constant 0 : index
    %c0_94 = arith.constant 0 : index
    %106 = vector.load %arg7[%c0_93, %c0_94] : memref<256x128xf32, #tpu.memory_space<vmem>>, vector<256x128xf32>
    tpu.vector_store %arg7[%c0_93, %c0_94], %105 {strides = array<i32>} : memref<256x128xf32, #tpu.memory_space<vmem>>, vector<256x128xf32>,
    %c6_95 = arith.constant 6 : index
    %c0_96 = arith.constant 0 : index
    %c0_97 = arith.constant 0 : index
    %107 = vector.load %arg4[%c6_95, %c0_96, %c0_97] : memref<9x128x128xbf16, #tpu.memory_space<vmem>>, vector<1x128x128xbf16>
    %108 = vector.shape_cast %107 : vector<1x128x128xbf16> to vector<128x128xbf16>
    %109 = vector.extract_strided_slice %93 {offsets = [16, 0], sizes = [240, 128], strides = [1, 1]} : vector<256x128xbf16> to vector<240x128xbf16>
    %cst_98 = arith.constant dense<0.000000e+00> : vector<240x128xf32>
    %110 = tpu.matmul %109, %108, %cst_98 {dimension_numbers = #tpu.dot_dimension_numbers<[1], [0], [0], [1], [0, 0, 1, 1], [], []>} : vector<240x128xbf16>, vector<128x128xbf16>, vector<240x128xf32> -> vector<240x128xf32>
    %c0_99 = arith.constant 0 : index
    %c0_100 = arith.constant 0 : index
    %111 = vector.load %arg7[%c0_99, %c0_100] : memref<256x128xf32, #tpu.memory_space<vmem>>, vector<240x128xf32>
    %112 = arith.addf %111, %110 : vector<240x128xf32>
    %c0_101 = arith.constant 0 : index
    %c0_102 = arith.constant 0 : index
    %113 = vector.load %arg7[%c0_101, %c0_102] : memref<256x128xf32, #tpu.memory_space<vmem>>, vector<240x128xf32>
    tpu.vector_store %arg7[%c0_101, %c0_102], %112 {strides = array<i32>} : memref<256x128xf32, #tpu.memory_space<vmem>>, vector<240x128xf32>,
    %114 = vector.shape_cast %85 : vector<16x16x128xbf16> to vector<256x128xbf16>
    %c1_103 = arith.constant 1 : index
    %c0_104 = arith.constant 0 : index
    %c0_105 = arith.constant 0 : index
    %115 = vector.load %arg4[%c1_103, %c0_104, %c0_105] : memref<9x128x128xbf16, #tpu.memory_space<vmem>>, vector<1x128x128xbf16>
    %116 = vector.shape_cast %115 : vector<1x128x128xbf16> to vector<128x128xbf16>
    %117 = vector.extract_strided_slice %114 {offsets = [0, 0], sizes = [240, 128], strides = [1, 1]} : vector<256x128xbf16> to vector<240x128xbf16>
    %cst_106 = arith.constant dense<0.000000e+00> : vector<240x128xf32>
    %118 = tpu.matmul %117, %116, %cst_106 {dimension_numbers = #tpu.dot_dimension_numbers<[1], [0], [0], [1], [0, 0, 1, 1], [], []>} : vector<240x128xbf16>, vector<128x128xbf16>, vector<240x128xf32> -> vector<240x128xf32>
    %c16_107 = arith.constant 16 : index
    %c0_108 = arith.constant 0 : index
    %119 = vector.load %arg7[%c16_107, %c0_108] : memref<256x128xf32, #tpu.memory_space<vmem>>, vector<240x128xf32>
    %120 = arith.addf %119, %118 : vector<240x128xf32>
    %c16_109 = arith.constant 16 : index
    %c0_110 = arith.constant 0 : index
    %121 = vector.load %arg7[%c16_109, %c0_110] : memref<256x128xf32, #tpu.memory_space<vmem>>, vector<240x128xf32>
    tpu.vector_store %arg7[%c16_109, %c0_110], %120 {strides = array<i32>} : memref<256x128xf32, #tpu.memory_space<vmem>>, vector<240x128xf32>,
    %c4_111 = arith.constant 4 : index
    %c0_112 = arith.constant 0 : index
    %c0_113 = arith.constant 0 : index
    %122 = vector.load %arg4[%c4_111, %c0_112, %c0_113] : memref<9x128x128xbf16, #tpu.memory_space<vmem>>, vector<1x128x128xbf16>
    %123 = vector.shape_cast %122 : vector<1x128x128xbf16> to vector<128x128xbf16>
    %cst_114 = arith.constant dense<0.000000e+00> : vector<256x128xf32>
    %124 = tpu.matmul %114, %123, %cst_114 {dimension_numbers = #tpu.dot_dimension_numbers<[1], [0], [0], [1], [0, 0, 1, 1], [], []>} : vector<256x128xbf16>, vector<128x128xbf16>, vector<256x128xf32> -> vector<256x128xf32>
    %c0_115 = arith.constant 0 : index
    %c0_116 = arith.constant 0 : index
    %125 = vector.load %arg7[%c0_115, %c0_116] : memref<256x128xf32, #tpu.memory_space<vmem>>, vector<256x128xf32>
    %126 = arith.addf %125, %124 : vector<256x128xf32>
    %c0_117 = arith.constant 0 : index
    %c0_118 = arith.constant 0 : index
    %127 = vector.load %arg7[%c0_117, %c0_118] : memref<256x128xf32, #tpu.memory_space<vmem>>, vector<256x128xf32>
    tpu.vector_store %arg7[%c0_117, %c0_118], %126 {strides = array<i32>} : memref<256x128xf32, #tpu.memory_space<vmem>>, vector<256x128xf32>,
    %c7_119 = arith.constant 7 : index
    %c0_120 = arith.constant 0 : index
    %c0_121 = arith.constant 0 : index
    %128 = vector.load %arg4[%c7_119, %c0_120, %c0_121] : memref<9x128x128xbf16, #tpu.memory_space<vmem>>, vector<1x128x128xbf16>
    %129 = vector.shape_cast %128 : vector<1x128x128xbf16> to vector<128x128xbf16>
    %130 = vector.extract_strided_slice %114 {offsets = [16, 0], sizes = [240, 128], strides = [1, 1]} : vector<256x128xbf16> to vector<240x128xbf16>
    %cst_122 = arith.constant dense<0.000000e+00> : vector<240x128xf32>
    %131 = tpu.matmul %130, %129, %cst_122 {dimension_numbers = #tpu.dot_dimension_numbers<[1], [0], [0], [1], [0, 0, 1, 1], [], []>} : vector<240x128xbf16>, vector<128x128xbf16>, vector<240x128xf32> -> vector<240x128xf32>
    %c0_123 = arith.constant 0 : index
    %c0_124 = arith.constant 0 : index
    %132 = vector.load %arg7[%c0_123, %c0_124] : memref<256x128xf32, #tpu.memory_space<vmem>>, vector<240x128xf32>
    %133 = arith.addf %132, %131 : vector<240x128xf32>
    %c0_125 = arith.constant 0 : index
    %c0_126 = arith.constant 0 : index
    %134 = vector.load %arg7[%c0_125, %c0_126] : memref<256x128xf32, #tpu.memory_space<vmem>>, vector<240x128xf32>
    tpu.vector_store %arg7[%c0_125, %c0_126], %133 {strides = array<i32>} : memref<256x128xf32, #tpu.memory_space<vmem>>, vector<240x128xf32>,
    %135 = vector.extract_strided_slice %85 {offsets = [0, 1, 0], sizes = [16, 15, 128], strides = [1, 1, 1]} : vector<16x16x128xbf16> to vector<16x15x128xbf16>
    %136 = tpu.concatenate %135, %90 in 1 : vector<16x15x128xbf16>, vector<16x1x128xbf16> -> vector<16x16x128xbf16>
    %137 = vector.shape_cast %136 : vector<16x16x128xbf16> to vector<256x128xbf16>
    %c2_127 = arith.constant 2 : index
    %c0_128 = arith.constant 0 : index
    %c0_129 = arith.constant 0 : index
    %138 = vector.load %arg4[%c2_127, %c0_128, %c0_129] : memref<9x128x128xbf16, #tpu.memory_space<vmem>>, vector<1x128x128xbf16>
    %139 = vector.shape_cast %138 : vector<1x128x128xbf16> to vector<128x128xbf16>
    %140 = vector.extract_strided_slice %137 {offsets = [0, 0], sizes = [240, 128], strides = [1, 1]} : vector<256x128xbf16> to vector<240x128xbf16>
    %cst_130 = arith.constant dense<0.000000e+00> : vector<240x128xf32>
    %141 = tpu.matmul %140, %139, %cst_130 {dimension_numbers = #tpu.dot_dimension_numbers<[1], [0], [0], [1], [0, 0, 1, 1], [], []>} : vector<240x128xbf16>, vector<128x128xbf16>, vector<240x128xf32> -> vector<240x128xf32>
    %c16_131 = arith.constant 16 : index
    %c0_132 = arith.constant 0 : index
    %142 = vector.load %arg7[%c16_131, %c0_132] : memref<256x128xf32, #tpu.memory_space<vmem>>, vector<240x128xf32>
    %143 = arith.addf %142, %141 : vector<240x128xf32>
    %c16_133 = arith.constant 16 : index
    %c0_134 = arith.constant 0 : index
    %144 = vector.load %arg7[%c16_133, %c0_134] : memref<256x128xf32, #tpu.memory_space<vmem>>, vector<240x128xf32>
    tpu.vector_store %arg7[%c16_133, %c0_134], %143 {strides = array<i32>} : memref<256x128xf32, #tpu.memory_space<vmem>>, vector<240x128xf32>,
    %c5_135 = arith.constant 5 : index
    %c0_136 = arith.constant 0 : index
    %c0_137 = arith.constant 0 : index
    %145 = vector.load %arg4[%c5_135, %c0_136, %c0_137] : memref<9x128x128xbf16, #tpu.memory_space<vmem>>, vector<1x128x128xbf16>
    %146 = vector.shape_cast %145 : vector<1x128x128xbf16> to vector<128x128xbf16>
    %cst_138 = arith.constant dense<0.000000e+00> : vector<256x128xf32>
    %147 = tpu.matmul %137, %146, %cst_138 {dimension_numbers = #tpu.dot_dimension_numbers<[1], [0], [0], [1], [0, 0, 1, 1], [], []>} : vector<256x128xbf16>, vector<128x128xbf16>, vector<256x128xf32> -> vector<256x128xf32>
    %c0_139 = arith.constant 0 : index
    %c0_140 = arith.constant 0 : index
    %148 = vector.load %arg7[%c0_139, %c0_140] : memref<256x128xf32, #tpu.memory_space<vmem>>, vector<256x128xf32>
    %149 = arith.addf %148, %147 : vector<256x128xf32>
    %c0_141 = arith.constant 0 : index
    %c0_142 = arith.constant 0 : index
    %150 = vector.load %arg7[%c0_141, %c0_142] : memref<256x128xf32, #tpu.memory_space<vmem>>, vector<256x128xf32>
    tpu.vector_store %arg7[%c0_141, %c0_142], %149 {strides = array<i32>} : memref<256x128xf32, #tpu.memory_space<vmem>>, vector<256x128xf32>,
    %c8_143 = arith.constant 8 : index
    %c0_144 = arith.constant 0 : index
    %c0_145 = arith.constant 0 : index
    %151 = vector.load %arg4[%c8_143, %c0_144, %c0_145] : memref<9x128x128xbf16, #tpu.memory_space<vmem>>, vector<1x128x128xbf16>
    %152 = vector.shape_cast %151 : vector<1x128x128xbf16> to vector<128x128xbf16>
    %153 = vector.extract_strided_slice %137 {offsets = [16, 0], sizes = [240, 128], strides = [1, 1]} : vector<256x128xbf16> to vector<240x128xbf16>
    %cst_146 = arith.constant dense<0.000000e+00> : vector<240x128xf32>
    %154 = tpu.matmul %153, %152, %cst_146 {dimension_numbers = #tpu.dot_dimension_numbers<[1], [0], [0], [1], [0, 0, 1, 1], [], []>} : vector<240x128xbf16>, vector<128x128xbf16>, vector<240x128xf32> -> vector<240x128xf32>
    %c0_147 = arith.constant 0 : index
    %c0_148 = arith.constant 0 : index
    %155 = vector.load %arg7[%c0_147, %c0_148] : memref<256x128xf32, #tpu.memory_space<vmem>>, vector<240x128xf32>
    %156 = arith.addf %155, %154 : vector<240x128xf32>
    %c0_149 = arith.constant 0 : index
    %c0_150 = arith.constant 0 : index
    %157 = vector.load %arg7[%c0_149, %c0_150] : memref<256x128xf32, #tpu.memory_space<vmem>>, vector<240x128xf32>
    tpu.vector_store %arg7[%c0_149, %c0_150], %156 {strides = array<i32>} : memref<256x128xf32, #tpu.memory_space<vmem>>, vector<240x128xf32>,
    %158 = vector.shape_cast %1 : vector<16x16x128xbf16> to vector<256x128xbf16>
    %159 = arith.extf %158 : vector<256x128xbf16> to vector<256x128xf32>
    %c0_151 = arith.constant 0 : index
    %c0_152 = arith.constant 0 : index
    %160 = vector.load %arg7[%c0_151, %c0_152] : memref<256x128xf32, #tpu.memory_space<vmem>>, vector<256x128xf32>
    %161 = arith.addf %160, %159 : vector<256x128xf32>
    %cst_153 = arith.constant 0.000000e+00 : f32
    %162 = vector.broadcast %cst_153 : f32 to vector<256x128xf32>
    %163 = arith.maximumf %161, %162 : vector<256x128xf32>
    %164 = vector.shape_cast %163 : vector<256x128xf32> to vector<1x16x16x128xf32>
    %165 = arith.truncf %164 : vector<1x16x16x128xf32> to vector<1x16x16x128xbf16>
    %c0_154 = arith.constant 0 : index
    %c0_155 = arith.constant 0 : index
    %c0_156 = arith.constant 0 : index
    %c0_157 = arith.constant 0 : index
    %166 = vector.load %arg6[%c0_154, %c0_155, %c0_156, %c0_157] : memref<1x16x16x128xbf16, #tpu.memory_space<vmem>>, vector<1x16x16x128xbf16>
    tpu.vector_store %arg6[%c0_154, %c0_155, %c0_156, %c0_157], %165 {strides = array<i32>} : memref<1x16x16x128xbf16, #tpu.memory_space<vmem>>, vector<1x16x16x128xbf16>,
    return
  }
  func.func @transform_0(%arg0: i32) -> (i32, i32, i32, i32) {
    %c0_i32 = arith.constant 0 : i32
    %c0_i32_0 = arith.constant 0 : i32
    %c0_i32_1 = arith.constant 0 : i32
    %c0_i32_2 = arith.constant 0 : i32
    return %arg0, %c0_i32, %c0_i32_0, %c0_i32_1 : i32, i32, i32, i32
  }
  func.func @transform_1(%arg0: i32) -> (i32, i32, i32) {
    %c0_i32 = arith.constant 0 : i32
    %c0_i32_0 = arith.constant 0 : i32
    %c0_i32_1 = arith.constant 0 : i32
    %c0_i32_2 = arith.constant 0 : i32
    return %c0_i32, %c0_i32_0, %c0_i32_1 : i32, i32, i32
  }
  func.func @transform_2(%arg0: i32) -> (i32, i32) {
    %c0_i32 = arith.constant 0 : i32
    %c0_i32_0 = arith.constant 0 : i32
    %c0_i32_1 = arith.constant 0 : i32
    return %c0_i32, %c0_i32_0 : i32, i32
  }
  func.func @transform_3(%arg0: i32) -> (i32, i32, i32) {
    %c0_i32 = arith.constant 0 : i32
    %c0_i32_0 = arith.constant 0 : i32
    %c0_i32_1 = arith.constant 0 : i32
    %c0_i32_2 = arith.constant 0 : i32
    return %c0_i32, %c0_i32_0, %c0_i32_1 : i32, i32, i32
  }
  func.func @transform_4(%arg0: i32) -> (i32, i32) {
    %c0_i32 = arith.constant 0 : i32
    %c0_i32_0 = arith.constant 0 : i32
    %c0_i32_1 = arith.constant 0 : i32
    return %c0_i32, %c0_i32_0 : i32, i32
  }
  func.func @transform_5(%arg0: i32) -> (i32, i32, i32, i32) {
    %c0_i32 = arith.constant 0 : i32
    %c0_i32_0 = arith.constant 0 : i32
    %c0_i32_1 = arith.constant 0 : i32
    %c0_i32_2 = arith.constant 0 : i32
    return %arg0, %c0_i32, %c0_i32_0, %c0_i32_1 : i32, i32, i32, i32
  }
}

</mosaic_0001>

<llo_original>
// kernel: tpu_custom_call.1
$region0: #{tpu_custom_call.1}
  #allocation0 [shape = 'u32[]', space=smem, size = 0x4, offset = 0x4, fixed_abs, tag = 'smem constant byte address 0x4 - core index']
  #allocation1 [shape = 'u32[144,128]{1,0:T(1,128)}', space=vmem, size = 0x12000, scoped, tag = 'internal scratch']
  #allocation2 [shape = 'f32[256,128]{1,0:T(8,128)}', space=vmem, size = 0x20000, scoped, tag = 'scratch operand']
  %s0 = inlined_call_operand.hbm [shape: bf16[2,16,16,128], index: 0, kind: input, shape index: {}]
  %s1 = inlined_call_operand.hbm [shape: bf16[9,128,128], index: 1, kind: input, shape index: {}]
  %s2 = inlined_call_operand.hbm [shape: f32[1,128], index: 2, kind: input, shape index: {}]
  %s3 = inlined_call_operand.hbm [shape: bf16[9,128,128], index: 3, kind: input, shape index: {}]
  %s4 = inlined_call_operand.hbm [shape: f32[1,128], index: 4, kind: input, shape index: {}]
  %s5 = inlined_call_operand.hbm [shape: bf16[2,16,16,128], index: 5, kind: output, shape index: {}]
  %s6 = sld [smem:[#allocation0]]
  $region73: #{tpu_custom_call.1} parent=0
    _
  %s8 = ssub.s32 1, %s6
  %s9 = scalar_select 0, %s8, %s6
  $region1: #{tpu_custom_call.1} parent=0
    #allocation3 [shape = 'u8[131072]{0}', space=vmem, size = 0x20000, scoped, tag = 'input window, operand 0']
    #allocation4 [shape = 's32[2]{0}', space=sflag, size = 0x8, scoped, tag = 'scoped memory for tpu_custom_call.1']
    #allocation5 [shape = 's32[2]{0}', space=sflag, size = 0x8, scoped, tag = 'scoped memory for tpu_custom_call.1']
    #allocation6 [shape = 'u8[294912]{0}', space=vmem, size = 0x48000, scoped, tag = 'input window, operand 1, single buffered']
    #allocation7 [shape = 's32[1]{0}', space=sflag, size = 0x4, scoped, tag = 'scoped memory for tpu_custom_call.1']
    #allocation8 [shape = 'u8[512]{0}', space=vmem, size = 0x400, scoped, tag = 'input window, operand 2, single buffered']
    #allocation9 [shape = 'u8[294912]{0}', space=vmem, size = 0x48000, scoped, tag = 'input window, operand 3, single buffered']
    #allocation10 [shape = 's32[1]{0}', space=sflag, size = 0x4, scoped, tag = 'scoped memory for tpu_custom_call.1']
    #allocation11 [shape = 'u8[512]{0}', space=vmem, size = 0x400, scoped, tag = 'input window, operand 4, single buffered']
    #allocation12 [shape = 'u8[131072]{0}', space=vmem, size = 0x20000, scoped, tag = 'output window, operand 0']
    %10 = vsyncpa [#allocation4], 0
    %s11 = scalar_lea.sflag [#allocation4], 1
    %12 = vsyncpa %s11, 0
    %13 = vsyncpa [#allocation7], 0
    %14 = vsyncpa [#allocation10], 0
    %15 = vsyncpa [#allocation5], 0
    %s16 = scalar_lea.sflag [#allocation5], 1
    %17 = vsyncpa %s16, 0
    loop: start=0, step=1, limit=4
    $region2: #{tpu_custom_call.1} parent=1 // loop_pre_header
      _
    $region3: #{tpu_custom_call.1} parent=1 // loop_header
      %s19 = sphi 0, %s23
      %p20 = scmp.ge.s32.totalorder %s19, 4
      %s29 = sphi 0, %s31
      %s32 = sphi 0, %s29
      %s33 = sphi 0, %s32
      %s49 = sphi 0, %s33
      %s53 = sphi 0, %s53
      %s55 = sphi 0, %s53
      %s56 = sphi 0, %s55
      %s70 = sphi 0, %s56
      %s74 = sphi 0, %s74
      %s76 = sphi 0, %s74
      %s77 = sphi 0, %s76
      %s91 = sphi 0, %s77
      %s95 = sphi 0, %s95
      %s97 = sphi 0, %s95
      %s98 = sphi 0, %s97
      %s112 = sphi 0, %s98
      %s116 = sphi 0, %s116
      %s118 = sphi 0, %s116
      %s119 = sphi 0, %s118
      %s133 = sphi 0, %s119
      %s139 = sphi 0, %s141
      %s142 = sphi 0, %s139
      %s143 = sphi 0, %s142
      %s159 = sphi 0, %s143
    $region4: #{tpu_custom_call.1} parent=1 // loop_header_branch
      %22 = sbr.rel (%p20) target = $region8
    $region5: #{tpu_custom_call.1} parent=1 // loop_body
      %s24 = ssub.s32 %s19, 1
      %s25 = ssub.s32 %s19, 2
      %s26 = sadd.s32 %s19, 1
      %s27 = ssub.s32 %s19, %s26
      %p28 = scmp.eq.s32.totalorder %s27, 0
      %s30 = sadd.s32 %s29, 1
      %s31 = scalar_select %p28, %s29, %s30
      %p34 = pneg %p28
      %p35 = scmp.eq.s32.totalorder %s19, 1
      %p36 = por %p34, %p35
      %p37 = scmp.ne.s32.totalorder %s29, %s32
      %p38 = scmp.eq.s32.totalorder %s19, 0
      %p39 = por %p37, %p38
      %p40 = scmp.ne.s32.totalorder %s29, %s32
      %p41 = scmp.eq.s32.totalorder %s24, 1
      %p42 = por %p40, %p41
      %p43 = scmp.ne.s32.totalorder %s32, %s33
      %p44 = scmp.eq.s32.totalorder %s24, 0
      %p45 = por %p43, %p44
      %p46 = scmp.ne.s32.totalorder %s32, %s33
      %p47 = scmp.eq.s32.totalorder %s25, 1
      %p48 = por %p46, %p47
      %p50 = scmp.ne.s32.totalorder %s33, %s49
      %p51 = scmp.eq.s32.totalorder %s25, 0
      %p52 = por %p50, %p51
      %s54 = sadd.s32 %s53, 1
      %p57 = scmp.eq.s32.totalorder %s19, 1
      %p58 = scmp.ne.s32.totalorder %s53, %s55
      %p59 = scmp.eq.s32.totalorder %s19, 0
      %p60 = por %p58, %p59
      %p61 = scmp.ne.s32.totalorder %s53, %s55
      %p62 = scmp.eq.s32.totalorder %s24, 1
      %p63 = por %p61, %p62
      %p64 = scmp.ne.s32.totalorder %s55, %s56
      %p65 = scmp.eq.s32.totalorder %s24, 0
      %p66 = por %p64, %p65
      %p67 = scmp.ne.s32.totalorder %s55, %s56
      %p68 = scmp.eq.s32.totalorder %s25, 1
      %p69 = por %p67, %p68
      %p71 = scmp.ne.s32.totalorder %s56, %s70
      %p72 = scmp.eq.s32.totalorder %s25, 0
      %p73 = por %p71, %p72
      %s75 = sadd.s32 %s74, 1
      %p78 = scmp.eq.s32.totalorder %s19, 1
      %p79 = scmp.ne.s32.totalorder %s74, %s76
      %p80 = scmp.eq.s32.totalorder %s19, 0
      %p81 = por %p79, %p80
      %p82 = scmp.ne.s32.totalorder %s74, %s76
      %p83 = scmp.eq.s32.totalorder %s24, 1
      %p84 = por %p82, %p83
      %p85 = scmp.ne.s32.totalorder %s76, %s77
      %p86 = scmp.eq.s32.totalorder %s24, 0
      %p87 = por %p85, %p86
      %p88 = scmp.ne.s32.totalorder %s76, %s77
      %p89 = scmp.eq.s32.totalorder %s25, 1
      %p90 = por %p88, %p89
      %p92 = scmp.ne.s32.totalorder %s77, %s91
      %p93 = scmp.eq.s32.totalorder %s25, 0
      %p94 = por %p92, %p93
      %s96 = sadd.s32 %s95, 1
      %p99 = scmp.eq.s32.totalorder %s19, 1
      %p100 = scmp.ne.s32.totalorder %s95, %s97
      %p101 = scmp.eq.s32.totalorder %s19, 0
      %p102 = por %p100, %p101
      %p103 = scmp.ne.s32.totalorder %s95, %s97
      %p104 = scmp.eq.s32.totalorder %s24, 1
      %p105 = por %p103, %p104
      %p106 = scmp.ne.s32.totalorder %s97, %s98
      %p107 = scmp.eq.s32.totalorder %s24, 0
      %p108 = por %p106, %p107
      %p109 = scmp.ne.s32.totalorder %s97, %s98
      %p110 = scmp.eq.s32.totalorder %s25, 1
      %p111 = por %p109, %p110
      %p113 = scmp.ne.s32.totalorder %s98, %s112
      %p114 = scmp.eq.s32.totalorder %s25, 0
      %p115 = por %p113, %p114
      %s117 = sadd.s32 %s116, 1
      %p120 = scmp.eq.s32.totalorder %s19, 1
      %p121 = scmp.ne.s32.totalorder %s116, %s118
      %p122 = scmp.eq.s32.totalorder %s19, 0
      %p123 = por %p121, %p122
      %p124 = scmp.ne.s32.totalorder %s116, %s118
      %p125 = scmp.eq.s32.totalorder %s24, 1
      %p126 = por %p124, %p125
      %p127 = scmp.ne.s32.totalorder %s118, %s119
      %p128 = scmp.eq.s32.totalorder %s24, 0
      %p129 = por %p127, %p128
      %p130 = scmp.ne.s32.totalorder %s118, %s119
      %p131 = scmp.eq.s32.totalorder %s25, 1
      %p132 = por %p130, %p131
      %p134 = scmp.ne.s32.totalorder %s119, %s133
      %p135 = scmp.eq.s32.totalorder %s25, 0
      %p136 = por %p134, %p135
      %s137 = ssub.s32 %s19, %s26
      %p138 = scmp.eq.s32.totalorder %s137, 0
      %s140 = sadd.s32 %s139, 1
      %s141 = scalar_select %p138, %s139, %s140
      %p144 = pneg %p138
      %p145 = scmp.eq.s32.totalorder %s19, 1
      %p146 = por %p144, %p145
      %p147 = scmp.ne.s32.totalorder %s139, %s142
      %p148 = scmp.eq.s32.totalorder %s19, 0
      %p149 = por %p147, %p148
      %p150 = scmp.ne.s32.totalorder %s139, %s142
      %p151 = scmp.eq.s32.totalorder %s24, 1
      %p152 = por %p150, %p151
      %p153 = scmp.ne.s32.totalorder %s142, %s143
      %p154 = scmp.eq.s32.totalorder %s24, 0
      %p155 = por %p153, %p154
      %p156 = scmp.ne.s32.totalorder %s142, %s143
      %p157 = scmp.eq.s32.totalorder %s25, 1
      %p158 = por %p156, %p157
      %p160 = scmp.ne.s32.totalorder %s143, %s159
      %p161 = scmp.eq.s32.totalorder %s25, 0
      %p162 = por %p160, %p161
      %p163 = scmp.le.s32.totalorder 1, %s19
      %p164 = scmp.lt.s32.totalorder %s19, 3
      %p165 = pnand %p163, %p164
      %p166 = pneg %p165
      // Predicated region
      $region9: #{tpu_custom_call.1} parent=5 // pred_check
        _
      $region10: #{tpu_custom_call.1} parent=5 // pred_check_branch
        %168 = sbr.rel (%p165) target = $region12
      $region11: #{tpu_custom_call.1} parent=5 // pred_region
        %s169 = ssub.s32 %s19, 1
        // Predicated region
        $region13: #{tpu_custom_call.1} parent=11 // pred_check
          %p170 = pneg %p66
        $region14: #{tpu_custom_call.1} parent=11 // pred_check_branch
          %172 = sbr.rel (%p170) target = $region16
        $region15: #{tpu_custom_call.1} parent=11 // pred_region
          %s174 = ssub.s32 9216, 9216
          %175 = vsyncadd [#allocation7], %s174
          %s176 = sshll.u32 [#allocation6], 4
          %s177 = int_to_ptr.vmem [resolvable:$true] %s176
          %182 = dma.hbm_to_vmem [thread:$0]  %s1, 9216, %s177, [#allocation7], 64, 64, 4
        $region16: #{tpu_custom_call.1} parent=11 // pred_fallthru
          _
        // Predicated region
        $region17: #{tpu_custom_call.1} parent=11 // pred_check
          %p183 = pneg %p87
        $region18: #{tpu_custom_call.1} parent=11 // pred_check_branch
          %185 = sbr.rel (%p183) target = $region20
        $region19: #{tpu_custom_call.1} parent=11 // pred_region
          %s187 = ssub.s32 16, 16
          %188 = vsyncadd [#allocation7], %s187
          %s190 = sshll.u32 [#allocation8], 4
          %s191 = int_to_ptr.vmem [resolvable:$true] %s190
          %193 = dma.hbm_to_vmem [thread:$0]  %s2, 16, %s191, [#allocation7]
        $region20: #{tpu_custom_call.1} parent=11 // pred_fallthru
          _
        // Predicated region
        $region21: #{tpu_custom_call.1} parent=11 // pred_check
          %p194 = pneg %p108
        $region22: #{tpu_custom_call.1} parent=11 // pred_check_branch
          %196 = sbr.rel (%p194) target = $region24
        $region23: #{tpu_custom_call.1} parent=11 // pred_region
          %s198 = ssub.s32 9216, 9216
          %199 = vsyncadd [#allocation10], %s198
          %s200 = sshll.u32 [#allocation9], 4
          %s201 = int_to_ptr.vmem [resolvable:$true] %s200
          %206 = dma.hbm_to_vmem [thread:$0]  %s3, 9216, %s201, [#allocation10], 64, 64, 4
        $region24: #{tpu_custom_call.1} parent=11 // pred_fallthru
          _
        // Predicated region
        $region25: #{tpu_custom_call.1} parent=11 // pred_check
          %p207 = pneg %p129
        $region26: #{tpu_custom_call.1} parent=11 // pred_check_branch
          %209 = sbr.rel (%p207) target = $region28
        $region27: #{tpu_custom_call.1} parent=11 // pred_region
          %s211 = ssub.s32 16, 16
          %212 = vsyncadd [#allocation10], %s211
          %s214 = sshll.u32 [#allocation11], 4
          %s215 = int_to_ptr.vmem [resolvable:$true] %s214
          %217 = dma.hbm_to_vmem [thread:$0]  %s4, 16, %s215, [#allocation10]
        $region28: #{tpu_custom_call.1} parent=11 // pred_fallthru
          _
      $region12: #{tpu_custom_call.1} parent=5 // pred_fallthru
        _
      %p218 = scmp.lt.s32.totalorder %s19, 2
      // Predicated region
      $region29: #{tpu_custom_call.1} parent=5 // pred_check
        %p219 = pneg %p218
      $region30: #{tpu_custom_call.1} parent=5 // pred_check_branch
        %221 = sbr.rel (%p219) target = $region32
      $region31: #{tpu_custom_call.1} parent=5 // pred_region
        // Predicated region
        $region33: #{tpu_custom_call.1} parent=31 // pred_check
          %p222 = pneg %p39
        $region34: #{tpu_custom_call.1} parent=31 // pred_check_branch
          %224 = sbr.rel (%p222) target = $region36
        $region35: #{tpu_custom_call.1} parent=31 // pred_region
          %s225 = sand.u32 %s29, 1
          %s226 = scalar_lea.sflag [#allocation4], %s225
          %s227 = sand.u32 %s29, 1
          %s228 = smul.addr %s227, 128
          %s229 = scalar_lea.vmem [#allocation3], %s228
          %s231 = ssub.s32 2048, 2048
          %232 = vsyncadd %s226, %s231
          %s233 = smul.addr %s19, 32
          %s234 = smul.addr %s233, 64
          %s235 = scalar_lea.hbm %s0, %s234
          %s236 = sshll.u32 %s229, 4
          %s237 = int_to_ptr.vmem [resolvable:$true] %s236
          %242 = dma.hbm_to_vmem [thread:$0]  %s235, 2048, %s237, %s226, 64, 64, 4
        $region36: #{tpu_custom_call.1} parent=31 // pred_fallthru
          _
      $region32: #{tpu_custom_call.1} parent=5 // pred_fallthru
        _
      %p243 = scmp.le.s32.totalorder 1, %s19
      %p244 = scmp.lt.s32.totalorder %s19, 3
      %p245 = pnand %p243, %p244
      %p246 = pneg %p245
      // Predicated region
      $region37: #{tpu_custom_call.1} parent=5 // pred_check
        _
      $region38: #{tpu_custom_call.1} parent=5 // pred_check_branch
        %248 = sbr.rel (%p245) target = $region40
      $region39: #{tpu_custom_call.1} parent=5 // pred_region
        %s249 = ssub.s32 %s19, 1
        %s250 = sand.u32 %s32, 1
        %s251 = scalar_lea.sflag [#allocation4], %s250
        %s252 = sand.u32 %s32, 1
        %s253 = smul.addr %s252, 128
        %s254 = scalar_lea.vmem [#allocation3], %s253
        // Predicated region
        $region41: #{tpu_custom_call.1} parent=39 // pred_check
          %p255 = pneg %p45
        $region42: #{tpu_custom_call.1} parent=39 // pred_check_branch
          %257 = sbr.rel (%p255) target = $region44
        $region43: #{tpu_custom_call.1} parent=39 // pred_region
          %258 = dma.done %s251, 2048
        $region44: #{tpu_custom_call.1} parent=39 // pred_fallthru
          _
        // Predicated region
        $region45: #{tpu_custom_call.1} parent=39 // pred_check
          %p259 = pneg %p66
        $region46: #{tpu_custom_call.1} parent=39 // pred_check_branch
          %261 = sbr.rel (%p259) target = $region48
        $region47: #{tpu_custom_call.1} parent=39 // pred_region
          %262 = dma.done [#allocation7], 9216
        $region48: #{tpu_custom_call.1} parent=39 // pred_fallthru
          _
        // Predicated region
        $region49: #{tpu_custom_call.1} parent=39 // pred_check
          %p263 = pneg %p87
        $region50: #{tpu_custom_call.1} parent=39 // pred_check_branch
          %265 = sbr.rel (%p263) target = $region52
        $region51: #{tpu_custom_call.1} parent=39 // pred_region
          %266 = dma.done [#allocation7], 16
        $region52: #{tpu_custom_call.1} parent=39 // pred_fallthru
          _
        // Predicated region
        $region53: #{tpu_custom_call.1} parent=39 // pred_check
          %p267 = pneg %p108
        $region54: #{tpu_custom_call.1} parent=39 // pred_check_branch
          %269 = sbr.rel (%p267) target = $region56
        $region55: #{tpu_custom_call.1} parent=39 // pred_region
          %270 = dma.done [#allocation10], 9216
        $region56: #{tpu_custom_call.1} parent=39 // pred_fallthru
          _
        // Predicated region
        $region57: #{tpu_custom_call.1} parent=39 // pred_check
          %p271 = pneg %p129
        $region58: #{tpu_custom_call.1} parent=39 // pred_check_branch
          %273 = sbr.rel (%p271) target = $region60
        $region59: #{tpu_custom_call.1} parent=39 // pred_region
          %274 = dma.done [#allocation10], 16
        $region60: #{tpu_custom_call.1} parent=39 // pred_fallthru
          _
        %s275 = sand.u32 %s32, 1
        %s276 = scalar_lea.sflag [#allocation4], %s275
        %s277 = sand.u32 %s32, 1
        %s278 = smul.addr %s277, 128
        %s279 = scalar_lea.vmem [#allocation3], %s278
        %p280 = pneg %p45
        %p281 = pneg %p42
        %p282 = pneg %p66
        %p283 = pneg %p63
        %p284 = pneg %p87
        %p285 = pneg %p84
        %p286 = pneg %p108
        %p287 = pneg %p105
        %p288 = pneg %p129
        %p289 = pneg %p126
        %p290 = pneg %p155
        %p291 = pneg %p152
        %s292 = sand.u32 %s142, 1
        %s293 = scalar_lea.sflag [#allocation5], %s292
        %s294 = sand.u32 %s142, 1
        %s295 = smul.addr %s294, 128
        %s296 = scalar_lea.vmem [#allocation12], %s295
        %v300 = vld [vmem:[%s254] sm:$0xf]
        %v301 = vld [vmem:[%s254 + $0x4] sm:$0xf]
        %v302 = vld [vmem:[%s254 + $0x8] sm:$0xf]
        %v303 = vld [vmem:[%s254 + $0xc] sm:$0xf]
        %v304 = vld [vmem:[%s254 + $0x10] sm:$0xf]
        %v305 = vld [vmem:[%s254 + $0x14] sm:$0xf]
        %v306 = vld [vmem:[%s254 + $0x18] sm:$0xf]
        %v307 = vld [vmem:[%s254 + $0x1c] sm:$0xf]
        %v308 = vld [vmem:[%s254 + $0x20] sm:$0xf]
        %v309 = vld [vmem:[%s254 + $0x24] sm:$0xf]
        %v310 = vld [vmem:[%s254 + $0x28] sm:$0xf]
        %v311 = vld [vmem:[%s254 + $0x2c] sm:$0xf]
        %v312 = vld [vmem:[%s254 + $0x30] sm:$0xf]
        %v313 = vld [vmem:[%s254 + $0x34] sm:$0xf]
        %v314 = vld [vmem:[%s254 + $0x38] sm:$0xf]
        %v315 = vld [vmem:[%s254 + $0x3c] sm:$0xf]
        %v316 = vld [vmem:[%s254 + $0x40] sm:$0xf]
        %v317 = vld [vmem:[%s254 + $0x44] sm:$0xf]
        %v318 = vld [vmem:[%s254 + $0x48] sm:$0xf]
        %v319 = vld [vmem:[%s254 + $0x4c] sm:$0xf]
        %v320 = vld [vmem:[%s254 + $0x50] sm:$0xf]
        %v321 = vld [vmem:[%s254 + $0x54] sm:$0xf]
        %v322 = vld [vmem:[%s254 + $0x58] sm:$0xf]
        %v323 = vld [vmem:[%s254 + $0x5c] sm:$0xf]
        %v324 = vld [vmem:[%s254 + $0x60] sm:$0xf]
        %v325 = vld [vmem:[%s254 + $0x64] sm:$0xf]
        %v326 = vld [vmem:[%s254 + $0x68] sm:$0xf]
        %v327 = vld [vmem:[%s254 + $0x6c] sm:$0xf]
        %v328 = vld [vmem:[%s254 + $0x70] sm:$0xf]
        %v329 = vld [vmem:[%s254 + $0x74] sm:$0xf]
        %v330 = vld [vmem:[%s254 + $0x78] sm:$0xf]
        %v331 = vld [vmem:[%s254 + $0x7c] sm:$0xf]
        %v332 = vld [vmem:[#allocation8] sm:$0x1]
        %v334 = vlaneseq
        %v335 = vshrl.u32 %v334, 7
        %v336 = vsub.s32 0, %v335
        %v337 = vrot.slane %v332, %v336
        %339 = vst [vmem:[#allocation2] sm:$0xff] %v337
        %340 = vst [vmem:[#allocation2 + $0x8] sm:$0xff] %v337
        %341 = vst [vmem:[#allocation2 + $0x10] sm:$0xff] %v337
        %342 = vst [vmem:[#allocation2 + $0x18] sm:$0xff] %v337
        %343 = vst [vmem:[#allocation2 + $0x20] sm:$0xff] %v337
        %344 = vst [vmem:[#allocation2 + $0x28] sm:$0xff] %v337
        %345 = vst [vmem:[#allocation2 + $0x30] sm:$0xff] %v337
        %346 = vst [vmem:[#allocation2 + $0x38] sm:$0xff] %v337
        %347 = vst [vmem:[#allocation2 + $0x40] sm:$0xff] %v337
        %348 = vst [vmem:[#allocation2 + $0x48] sm:$0xff] %v337
        %349 = vst [vmem:[#allocation2 + $0x50] sm:$0xff] %v337
        %350 = vst [vmem:[#allocation2 + $0x58] sm:$0xff] %v337
        %351 = vst [vmem:[#allocation2 + $0x60] sm:$0xff] %v337
        %352 = vst [vmem:[#allocation2 + $0x68] sm:$0xff] %v337
        %353 = vst [vmem:[#allocation2 + $0x70] sm:$0xff] %v337
        %354 = vst [vmem:[#allocation2 + $0x78] sm:$0xff] %v337
        %355 = vst [vmem:[#allocation2 + $0x80] sm:$0xff] %v337
        %356 = vst [vmem:[#allocation2 + $0x88] sm:$0xff] %v337
        %357 = vst [vmem:[#allocation2 + $0x90] sm:$0xff] %v337
        %358 = vst [vmem:[#allocation2 + $0x98] sm:$0xff] %v337
        %359 = vst [vmem:[#allocation2 + $0xa0] sm:$0xff] %v337
        %360 = vst [vmem:[#allocation2 + $0xa8] sm:$0xff] %v337
        %361 = vst [vmem:[#allocation2 + $0xb0] sm:$0xff] %v337
        %362 = vst [vmem:[#allocation2 + $0xb8] sm:$0xff] %v337
        %363 = vst [vmem:[#allocation2 + $0xc0] sm:$0xff] %v337
        %364 = vst [vmem:[#allocation2 + $0xc8] sm:$0xff] %v337
        %365 = vst [vmem:[#allocation2 + $0xd0] sm:$0xff] %v337
        %366 = vst [vmem:[#allocation2 + $0xd8] sm:$0xff] %v337
        %367 = vst [vmem:[#allocation2 + $0xe0] sm:$0xff] %v337
        %368 = vst [vmem:[#allocation2 + $0xe8] sm:$0xff] %v337
        %369 = vst [vmem:[#allocation2 + $0xf0] sm:$0xff] %v337
        %370 = vst [vmem:[#allocation2 + $0xf8] sm:$0xff] %v337
        %v403 = vunpack.c.l.b16 %v300
        %v404 = vunpack.c.l.b16 %v301
        %v405 = vunpack.c.l.b16 %v302
        %v406 = vunpack.c.l.b16 %v303
        %v407 = vunpack.c.l.b16 %v304
        %v408 = vunpack.c.l.b16 %v305
        %v409 = vunpack.c.l.b16 %v306
        %v410 = vunpack.c.l.b16 %v307
        %v411 = vunpack.c.l.b16 %v308
        %v412 = vunpack.c.l.b16 %v309
        %v413 = vunpack.c.l.b16 %v310
        %v414 = vunpack.c.l.b16 %v311
        %v415 = vunpack.c.l.b16 %v312
        %v416 = vunpack.c.l.b16 %v313
        %v417 = vunpack.c.l.b16 %v314
        %v418 = vunpack.c.l.b16 %v315
        %v419 = vunpack.c.l.b16 %v316
        %v420 = vunpack.c.l.b16 %v317
        %v421 = vunpack.c.l.b16 %v318
        %v422 = vunpack.c.l.b16 %v319
        %v423 = vunpack.c.l.b16 %v320
        %v424 = vunpack.c.l.b16 %v321
        %v425 = vunpack.c.l.b16 %v322
        %v426 = vunpack.c.l.b16 %v323
        %v427 = vunpack.c.l.b16 %v324
        %v428 = vunpack.c.l.b16 %v325
        %v429 = vunpack.c.l.b16 %v326
        %v430 = vunpack.c.l.b16 %v327
        %v431 = vunpack.c.l.b16 %v328
        %v432 = vunpack.c.l.b16 %v329
        %v433 = vunpack.c.l.b16 %v330
        %v434 = vunpack.c.l.b16 %v331
        %v435 = vpack.c.b16 %v404, %v403
        %v436 = vpack.c.b16 %v406, %v405
        %v437 = vpack.c.b16 %v408, %v407
        %v438 = vpack.c.b16 %v410, %v409
        %v439 = vpack.c.b16 %v412, %v411
        %v440 = vpack.c.b16 %v414, %v413
        %v441 = vpack.c.b16 %v416, %v415
        %v442 = vpack.c.b16 %v418, %v417
        %v443 = vpack.c.b16 %v420, %v419
        %v444 = vpack.c.b16 %v422, %v421
        %v445 = vpack.c.b16 %v424, %v423
        %v446 = vpack.c.b16 %v426, %v425
        %v447 = vpack.c.b16 %v428, %v427
        %v448 = vpack.c.b16 %v430, %v429
        %v449 = vpack.c.b16 %v432, %v431
        %v450 = vpack.c.b16 %v434, %v433
        %v452 = vshrl.u32 %v435, 16
        %v454 = vrot.slane %v452, 7
        %v455 = vshll.u32 %v435, 16
        %v457 = vor.u32 %v454, %v455
        %v459 = vshrl.u32 %v436, 16
        %v461 = vrot.slane %v459, 7
        %v462 = vshll.u32 %v436, 16
        %v464 = vor.u32 %v461, %v462
        %v466 = vshrl.u32 %v437, 16
        %v468 = vrot.slane %v466, 7
        %v469 = vshll.u32 %v437, 16
        %v471 = vor.u32 %v468, %v469
        %v473 = vshrl.u32 %v438, 16
        %v475 = vrot.slane %v473, 7
        %v476 = vshll.u32 %v438, 16
        %v478 = vor.u32 %v475, %v476
        %v480 = vshrl.u32 %v439, 16
        %v482 = vrot.slane %v480, 7
        %v483 = vshll.u32 %v439, 16
        %v485 = vor.u32 %v482, %v483
        %v487 = vshrl.u32 %v440, 16
        %v489 = vrot.slane %v487, 7
        %v490 = vshll.u32 %v440, 16
        %v492 = vor.u32 %v489, %v490
        %v494 = vshrl.u32 %v441, 16
        %v496 = vrot.slane %v494, 7
        %v497 = vshll.u32 %v441, 16
        %v499 = vor.u32 %v496, %v497
        %v501 = vshrl.u32 %v442, 16
        %v503 = vrot.slane %v501, 7
        %v504 = vshll.u32 %v442, 16
        %v506 = vor.u32 %v503, %v504
        %v508 = vshrl.u32 %v443, 16
        %v510 = vrot.slane %v508, 7
        %v511 = vshll.u32 %v443, 16
        %v513 = vor.u32 %v510, %v511
        %v515 = vshrl.u32 %v444, 16
        %v517 = vrot.slane %v515, 7
        %v518 = vshll.u32 %v444, 16
        %v520 = vor.u32 %v517, %v518
        %v522 = vshrl.u32 %v445, 16
        %v524 = vrot.slane %v522, 7
        %v525 = vshll.u32 %v445, 16
        %v527 = vor.u32 %v524, %v525
        %v529 = vshrl.u32 %v446, 16
        %v531 = vrot.slane %v529, 7
        %v532 = vshll.u32 %v446, 16
        %v534 = vor.u32 %v531, %v532
        %v536 = vshrl.u32 %v447, 16
        %v538 = vrot.slane %v536, 7
        %v539 = vshll.u32 %v447, 16
        %v541 = vor.u32 %v538, %v539
        %v543 = vshrl.u32 %v448, 16
        %v545 = vrot.slane %v543, 7
        %v546 = vshll.u32 %v448, 16
        %v548 = vor.u32 %v545, %v546
        %v550 = vshrl.u32 %v449, 16
        %v552 = vrot.slane %v550, 7
        %v553 = vshll.u32 %v449, 16
        %v555 = vor.u32 %v552, %v553
        %v557 = vshrl.u32 %v450, 16
        %v559 = vrot.slane %v557, 7
        %v560 = vshll.u32 %v450, 16
        %v562 = vor.u32 %v559, %v560
        %vm579 = vcmask 1040384
        %vm580 = vsmask.f32 256
        %vm581 = vmand %vm579, %vm580
        %v582 = vsel %vm581, 0, %v457
        %v583 = vsel %vm581, 0, %v464
        %v584 = vsel %vm581, 0, %v471
        %v585 = vsel %vm581, 0, %v478
        %v586 = vsel %vm581, 0, %v485
        %v587 = vsel %vm581, 0, %v492
        %v588 = vsel %vm581, 0, %v499
        %v589 = vsel %vm581, 0, %v506
        %v590 = vsel %vm581, 0, %v513
        %v591 = vsel %vm581, 0, %v520
        %v592 = vsel %vm581, 0, %v527
        %v593 = vsel %vm581, 0, %v534
        %v594 = vsel %vm581, 0, %v541
        %v595 = vsel %vm581, 0, %v548
        %v596 = vsel %vm581, 0, %v555
        %v597 = vsel %vm581, 0, %v562
        %v598 = vld [vmem:[#allocation6] sm:$0xf]
        %v599 = vld [vmem:[#allocation6 + $0x4] sm:$0xf]
        %v600 = vld [vmem:[#allocation6 + $0x8] sm:$0xf]
        %v601 = vld [vmem:[#allocation6 + $0xc] sm:$0xf]
        %v602 = vld [vmem:[#allocation6 + $0x10] sm:$0xf]
        %v603 = vld [vmem:[#allocation6 + $0x14] sm:$0xf]
        %v604 = vld [vmem:[#allocation6 + $0x18] sm:$0xf]
        %v605 = vld [vmem:[#allocation6 + $0x1c] sm:$0xf]
        %v606 = vld [vmem:[#allocation6 + $0x20] sm:$0xf]
        %v607 = vld [vmem:[#allocation6 + $0x24] sm:$0xf]
        %v608 = vld [vmem:[#allocation6 + $0x28] sm:$0xf]
        %v609 = vld [vmem:[#allocation6 + $0x2c] sm:$0xf]
        %v610 = vld [vmem:[#allocation6 + $0x30] sm:$0xf]
        %v611 = vld [vmem:[#allocation6 + $0x34] sm:$0xf]
        %v612 = vld [vmem:[#allocation6 + $0x38] sm:$0xf]
        %v613 = vld [vmem:[#allocation6 + $0x3c] sm:$0xf]
        %v630 = vunpack.c.l.b16 %v598
        %v631 = vunpack.c.l.b16 %v599
        %v632 = vunpack.c.l.b16 %v600
        %v633 = vunpack.c.l.b16 %v601
        %v634 = vunpack.c.l.b16 %v602
        %v635 = vunpack.c.l.b16 %v603
        %v636 = vunpack.c.l.b16 %v604
        %v637 = vunpack.c.l.b16 %v605
        %v638 = vunpack.c.l.b16 %v606
        %v639 = vunpack.c.l.b16 %v607
        %v640 = vunpack.c.l.b16 %v608
        %v641 = vunpack.c.l.b16 %v609
        %v642 = vunpack.c.l.b16 %v610
        %v643 = vunpack.c.l.b16 %v611
        %v644 = vunpack.c.l.b16 %v612
        %v645 = vunpack.c.l.b16 %v613
        %v646 = vpack.c.b16 %v631, %v630
        %v647 = vpack.c.b16 %v633, %v632
        %v648 = vpack.c.b16 %v635, %v634
        %v649 = vpack.c.b16 %v637, %v636
        %v650 = vpack.c.b16 %v639, %v638
        %v651 = vpack.c.b16 %v641, %v640
        %v652 = vpack.c.b16 %v643, %v642
        %v653 = vpack.c.b16 %v645, %v644
        %662 = vmatprep.subr.bf16.mxu0 0
        %663 = vmatpush1.bf16.msra.mxu0 %v646
        %664 = vmatprep.subr.bf16.mxu0 0
        %665 = vmatpush1.bf16.msra.mxu0 %v647
        %666 = vmatprep.subr.bf16.mxu0 0
        %667 = vmatpush1.bf16.msra.mxu0 %v648
        %668 = vmatprep.subr.bf16.mxu0 0
        %669 = vmatpush1.bf16.msra.mxu0 %v649
        %670 = vmatprep.subr.bf16.mxu0 0
        %671 = vmatpush1.bf16.msra.mxu0 %v650
        %672 = vmatprep.subr.bf16.mxu0 0
        %673 = vmatpush1.bf16.msra.mxu0 %v651
        %674 = vmatprep.subr.bf16.mxu0 0
        %675 = vmatpush1.bf16.msra.mxu0 %v652
        %676 = vmatprep.subr.bf16.mxu0 0
        %677 = vmatpush1.bf16.msra.mxu0 %v653
        %678 = vmatprep.subr.bf16.mxu0 0
        %679 = vmatpush1.bf16.msra.mxu0 0
        %680 = vmatprep.subr.bf16.mxu0 0
        %681 = vmatpush1.bf16.msra.mxu0 0
        %682 = vmatprep.subr.bf16.mxu0 0
        %683 = vmatpush1.bf16.msra.mxu0 0
        %684 = vmatprep.subr.bf16.mxu0 0
        %685 = vmatpush1.bf16.msra.mxu0 0
        %686 = vmatprep.subr.bf16.mxu0 0
        %687 = vmatpush1.bf16.msra.mxu0 0
        %688 = vmatprep.subr.bf16.mxu0 0
        %689 = vmatpush1.bf16.msra.mxu0 0
        %690 = vmatprep.subr.bf16.mxu0 0
        %691 = vmatpush1.bf16.msra.mxu0 0
        %692 = vmatprep.subr.bf16.mxu0 0
        %693 = vmatpush1.bf16.msra.mxu0 0
        %694 = vmatprep.mubr.bf16.mxu0 0
        %695 = vmatmul.mubr.bf16.gmra.mrb[0].mxu0 %v582
        %v696 = vpop.f32.mrb[0].mxu0
        %v697 = vadd.f32 0.0, %v696
        %v698 = vpop.f32.mrb[0].mxu0
        %v699 = vpop.f32.mrb[0].mxu0
        %v700 = vadd.f32 0.0, %v699
        %v701 = vpop.f32.mrb[0].mxu0
        %702 = vmatprep.mubr.bf16.mxu0 0
        %703 = vmatmul.mubr.bf16.gmra.mrb[0].mxu0 %v583
        %v704 = vpop.f32.mrb[0].mxu0
        %v705 = vadd.f32 0.0, %v704
        %v706 = vpop.f32.mrb[0].mxu0
        %v707 = vpop.f32.mrb[0].mxu0
        %v708 = vadd.f32 0.0, %v707
        %v709 = vpop.f32.mrb[0].mxu0
        %710 = vmatprep.mubr.bf16.mxu0 0
        %711 = vmatmul.mubr.bf16.gmra.mrb[0].mxu0 %v584
        %v712 = vpop.f32.mrb[0].mxu0
        %v713 = vadd.f32 0.0, %v712
        %v714 = vpop.f32.mrb[0].mxu0
        %v715 = vpop.f32.mrb[0].mxu0
        %v716 = vadd.f32 0.0, %v715
        %v717 = vpop.f32.mrb[0].mxu0
        %718 = vmatprep.mubr.bf16.mxu0 0
        %719 = vmatmul.mubr.bf16.gmra.mrb[0].mxu0 %v585
        %v720 = vpop.f32.mrb[0].mxu0
        %v721 = vadd.f32 0.0, %v720
        %v722 = vpop.f32.mrb[0].mxu0
        %v723 = vpop.f32.mrb[0].mxu0
        %v724 = vadd.f32 0.0, %v723
        %v725 = vpop.f32.mrb[0].mxu0
        %726 = vmatprep.mubr.bf16.mxu0 0
        %727 = vmatmul.mubr.bf16.gmra.mrb[0].mxu0 %v586
        %v728 = vpop.f32.mrb[0].mxu0
        %v729 = vadd.f32 0.0, %v728
        %v730 = vpop.f32.mrb[0].mxu0
        %v731 = vpop.f32.mrb[0].mxu0
        %v732 = vadd.f32 0.0, %v731
        %v733 = vpop.f32.mrb[0].mxu0
        %734 = vmatprep.mubr.bf16.mxu0 0
        %735 = vmatmul.mubr.bf16.gmra.mrb[0].mxu0 %v587
        %v736 = vpop.f32.mrb[0].mxu0
        %v737 = vadd.f32 0.0, %v736
        %v738 = vpop.f32.mrb[0].mxu0
        %v739 = vpop.f32.mrb[0].mxu0
        %v740 = vadd.f32 0.0, %v739
        %v741 = vpop.f32.mrb[0].mxu0
        %742 = vmatprep.mubr.bf16.mxu0 0
        %743 = vmatmul.mubr.bf16.gmra.mrb[0].mxu0 %v588
        %v744 = vpop.f32.mrb[0].mxu0
        %v745 = vadd.f32 0.0, %v744
        %v746 = vpop.f32.mrb[0].mxu0
        %v747 = vpop.f32.mrb[0].mxu0
        %v748 = vadd.f32 0.0, %v747
        %v749 = vpop.f32.mrb[0].mxu0
        %750 = vmatprep.mubr.bf16.mxu0 0
        %751 = vmatmul.mubr.bf16.gmra.mrb[0].mxu0 %v589
        %v752 = vpop.f32.mrb[0].mxu0
        %v753 = vadd.f32 0.0, %v752
        %v754 = vpop.f32.mrb[0].mxu0
        %v755 = vpop.f32.mrb[0].mxu0
        %v756 = vadd.f32 0.0, %v755
        %v757 = vpop.f32.mrb[0].mxu0
        %758 = vmatprep.mubr.bf16.mxu0 0
        %759 = vmatmul.mubr.bf16.gmra.mrb[0].mxu0 %v590
        %v760 = vpop.f32.mrb[0].mxu0
        %v761 = vadd.f32 0.0, %v760
        %v762 = vpop.f32.mrb[0].mxu0
        %v763 = vpop.f32.mrb[0].mxu0
        %v764 = vadd.f32 0.0, %v763
        %v765 = vpop.f32.mrb[0].mxu0
        %766 = vmatprep.mubr.bf16.mxu0 0
        %767 = vmatmul.mubr.bf16.gmra.mrb[0].mxu0 %v591
        %v768 = vpop.f32.mrb[0].mxu0
        %v769 = vadd.f32 0.0, %v768
        %v770 = vpop.f32.mrb[0].mxu0
        %v771 = vpop.f32.mrb[0].mxu0
        %v772 = vadd.f32 0.0, %v771
        %v773 = vpop.f32.mrb[0].mxu0
        %774 = vmatprep.mubr.bf16.mxu0 0
        %775 = vmatmul.mubr.bf16.gmra.mrb[0].mxu0 %v592
        %v776 = vpop.f32.mrb[0].mxu0
        %v777 = vadd.f32 0.0, %v776
        %v778 = vpop.f32.mrb[0].mxu0
        %v779 = vpop.f32.mrb[0].mxu0
        %v780 = vadd.f32 0.0, %v779
        %v781 = vpop.f32.mrb[0].mxu0
        %782 = vmatprep.mubr.bf16.mxu0 0
        %783 = vmatmul.mubr.bf16.gmra.mrb[0].mxu0 %v593
        %v784 = vpop.f32.mrb[0].mxu0
        %v785 = vadd.f32 0.0, %v784
        %v786 = vpop.f32.mrb[0].mxu0
        %v787 = vpop.f32.mrb[0].mxu0
        %v788 = vadd.f32 0.0, %v787
        %v789 = vpop.f32.mrb[0].mxu0
        %790 = vmatprep.mubr.bf16.mxu0 0
        %791 = vmatmul.mubr.bf16.gmra.mrb[0].mxu0 %v594
        %v792 = vpop.f32.mrb[0].mxu0
        %v793 = vadd.f32 0.0, %v792
        %v794 = vpop.f32.mrb[0].mxu0
        %v795 = vpop.f32.mrb[0].mxu0
        %v796 = vadd.f32 0.0, %v795
        %v797 = vpop.f32.mrb[0].mxu0
        %798 = vmatprep.mubr.bf16.mxu0 0
        %799 = vmatmul.mubr.bf16.gmra.mrb[0].mxu0 %v595
        %v800 = vpop.f32.mrb[0].mxu0
        %v801 = vadd.f32 0.0, %v800
        %v802 = vpop.f32.mrb[0].mxu0
        %v803 = vpop.f32.mrb[0].mxu0
        %v804 = vadd.f32 0.0, %v803
        %v805 = vpop.f32.mrb[0].mxu0
        %806 = vmatprep.mubr.bf16.mxu0 0
        %807 = vmatmul.mubr.bf16.gmra.mrb[0].mxu0 %v596
        %v808 = vpop.f32.mrb[0].mxu0
        %v809 = vadd.f32 0.0, %v808
        %v810 = vpop.f32.mrb[0].mxu0
        %v811 = vpop.f32.mrb[0].mxu0
        %v812 = vadd.f32 0.0, %v811
        %v813 = vpop.f32.mrb[0].mxu0
        %814 = vdwg.mxu0
        %v815 = vld [vmem:[#allocation2 + $0x10] sm:$0xff]
        %v816 = vld [vmem:[#allocation2 + $0x18] sm:$0xff]
        %v817 = vld [vmem:[#allocation2 + $0x20] sm:$0xff]
        %v818 = vld [vmem:[#allocation2 + $0x28] sm:$0xff]
        %v819 = vld [vmem:[#allocation2 + $0x30] sm:$0xff]
        %v820 = vld [vmem:[#allocation2 + $0x38] sm:$0xff]
        %v821 = vld [vmem:[#allocation2 + $0x40] sm:$0xff]
        %v822 = vld [vmem:[#allocation2 + $0x48] sm:$0xff]
        %v823 = vld [vmem:[#allocation2 + $0x50] sm:$0xff]
        %v824 = vld [vmem:[#allocation2 + $0x58] sm:$0xff]
        %v825 = vld [vmem:[#allocation2 + $0x60] sm:$0xff]
        %v826 = vld [vmem:[#allocation2 + $0x68] sm:$0xff]
        %v827 = vld [vmem:[#allocation2 + $0x70] sm:$0xff]
        %v828 = vld [vmem:[#allocation2 + $0x78] sm:$0xff]
        %v829 = vld [vmem:[#allocation2 + $0x80] sm:$0xff]
        %v830 = vld [vmem:[#allocation2 + $0x88] sm:$0xff]
        %v831 = vld [vmem:[#allocation2 + $0x90] sm:$0xff]
        %v832 = vld [vmem:[#allocation2 + $0x98] sm:$0xff]
        %v833 = vld [vmem:[#allocation2 + $0xa0] sm:$0xff]
        %v834 = vld [vmem:[#allocation2 + $0xa8] sm:$0xff]
        %v835 = vld [vmem:[#allocation2 + $0xb0] sm:$0xff]
        %v836 = vld [vmem:[#allocation2 + $0xb8] sm:$0xff]
        %v837 = vld [vmem:[#allocation2 + $0xc0] sm:$0xff]
        %v838 = vld [vmem:[#allocation2 + $0xc8] sm:$0xff]
        %v839 = vld [vmem:[#allocation2 + $0xd0] sm:$0xff]
        %v840 = vld [vmem:[#allocation2 + $0xd8] sm:$0xff]
        %v841 = vld [vmem:[#allocation2 + $0xe0] sm:$0xff]
        %v842 = vld [vmem:[#allocation2 + $0xe8] sm:$0xff]
        %v843 = vld [vmem:[#allocation2 + $0xf0] sm:$0xff]
        %v844 = vld [vmem:[#allocation2 + $0xf8] sm:$0xff]
        %v845 = vadd.f32 %v815, %v697
        %v846 = vadd.f32 %v816, %v700
        %v847 = vadd.f32 %v817, %v705
        %v848 = vadd.f32 %v818, %v708
        %v849 = vadd.f32 %v819, %v713
        %v850 = vadd.f32 %v820, %v716
        %v851 = vadd.f32 %v821, %v721
        %v852 = vadd.f32 %v822, %v724
        %v853 = vadd.f32 %v823, %v729
        %v854 = vadd.f32 %v824, %v732
        %v855 = vadd.f32 %v825, %v737
        %v856 = vadd.f32 %v826, %v740
        %v857 = vadd.f32 %v827, %v745
        %v858 = vadd.f32 %v828, %v748
        %v859 = vadd.f32 %v829, %v753
        %v860 = vadd.f32 %v830, %v756
        %v861 = vadd.f32 %v831, %v761
        %v862 = vadd.f32 %v832, %v764
        %v863 = vadd.f32 %v833, %v769
        %v864 = vadd.f32 %v834, %v772
        %v865 = vadd.f32 %v835, %v777
        %v866 = vadd.f32 %v836, %v780
        %v867 = vadd.f32 %v837, %v785
        %v868 = vadd.f32 %v838, %v788
        %v869 = vadd.f32 %v839, %v793
        %v870 = vadd.f32 %v840, %v796
        %v871 = vadd.f32 %v841, %v801
        %v872 = vadd.f32 %v842, %v804
        %v873 = vadd.f32 %v843, %v809
        %v874 = vadd.f32 %v844, %v812
        %875 = vst [vmem:[#allocation2 + $0x10] sm:$0xff] %v845
        %876 = vst [vmem:[#allocation2 + $0x18] sm:$0xff] %v846
        %877 = vst [vmem:[#allocation2 + $0x20] sm:$0xff] %v847
        %878 = vst [vmem:[#allocation2 + $0x28] sm:$0xff] %v848
        %879 = vst [vmem:[#allocation2 + $0x30] sm:$0xff] %v849
        %880 = vst [vmem:[#allocation2 + $0x38] sm:$0xff] %v850
        %881 = vst [vmem:[#allocation2 + $0x40] sm:$0xff] %v851
        %882 = vst [vmem:[#allocation2 + $0x48] sm:$0xff] %v852
        %883 = vst [vmem:[#allocation2 + $0x50] sm:$0xff] %v853
        %884 = vst [vmem:[#allocation2 + $0x58] sm:$0xff] %v854
        %885 = vst [vmem:[#allocation2 + $0x60] sm:$0xff] %v855
        %886 = vst [vmem:[#allocation2 + $0x68] sm:$0xff] %v856
        %887 = vst [vmem:[#allocation2 + $0x70] sm:$0xff] %v857
        %888 = vst [vmem:[#allocation2 + $0x78] sm:$0xff] %v858
        %889 = vst [vmem:[#allocation2 + $0x80] sm:$0xff] %v859
        %890 = vst [vmem:[#allocation2 + $0x88] sm:$0xff] %v860
        %891 = vst [vmem:[#allocation2 + $0x90] sm:$0xff] %v861
        %892 = vst [vmem:[#allocation2 + $0x98] sm:$0xff] %v862
        %893 = vst [vmem:[#allocation2 + $0xa0] sm:$0xff] %v863
        %894 = vst [vmem:[#allocation2 + $0xa8] sm:$0xff] %v864
        %895 = vst [vmem:[#allocation2 + $0xb0] sm:$0xff] %v865
        %896 = vst [vmem:[#allocation2 + $0xb8] sm:$0xff] %v866
        %897 = vst [vmem:[#allocation2 + $0xc0] sm:$0xff] %v867
        %898 = vst [vmem:[#allocation2 + $0xc8] sm:$0xff] %v868
        %899 = vst [vmem:[#allocation2 + $0xd0] sm:$0xff] %v869
        %900 = vst [vmem:[#allocation2 + $0xd8] sm:$0xff] %v870
        %901 = vst [vmem:[#allocation2 + $0xe0] sm:$0xff] %v871
        %902 = vst [vmem:[#allocation2 + $0xe8] sm:$0xff] %v872
        %903 = vst [vmem:[#allocation2 + $0xf0] sm:$0xff] %v873
        %904 = vst [vmem:[#allocation2 + $0xf8] sm:$0xff] %v874
        %s905 = scalar_lea.vmem [#allocation6], 192
        %v906 = vld [vmem:[%s905] sm:$0xf]
        %v907 = vld [vmem:[%s905 + $0x4] sm:$0xf]
        %v908 = vld [vmem:[%s905 + $0x8] sm:$0xf]
        %v909 = vld [vmem:[%s905 + $0xc] sm:$0xf]
        %v910 = vld [vmem:[%s905 + $0x10] sm:$0xf]
        %v911 = vld [vmem:[%s905 + $0x14] sm:$0xf]
        %v912 = vld [vmem:[%s905 + $0x18] sm:$0xf]
        %v913 = vld [vmem:[%s905 + $0x1c] sm:$0xf]
        %v914 = vld [vmem:[%s905 + $0x20] sm:$0xf]
        %v915 = vld [vmem:[%s905 + $0x24] sm:$0xf]
        %v916 = vld [vmem:[%s905 + $0x28] sm:$0xf]
        %v917 = vld [vmem:[%s905 + $0x2c] sm:$0xf]
        %v918 = vld [vmem:[%s905 + $0x30] sm:$0xf]
        %v919 = vld [vmem:[%s905 + $0x34] sm:$0xf]
        %v920 = vld [vmem:[%s905 + $0x38] sm:$0xf]
        %v921 = vld [vmem:[%s905 + $0x3c] sm:$0xf]
        %v938 = vunpack.c.l.b16 %v906
        %v939 = vunpack.c.l.b16 %v907
        %v940 = vunpack.c.l.b16 %v908
        %v941 = vunpack.c.l.b16 %v909
        %v942 = vunpack.c.l.b16 %v910
        %v943 = vunpack.c.l.b16 %v911
        %v944 = vunpack.c.l.b16 %v912
        %v945 = vunpack.c.l.b16 %v913
        %v946 = vunpack.c.l.b16 %v914
        %v947 = vunpack.c.l.b16 %v915
        %v948 = vunpack.c.l.b16 %v916
        %v949 = vunpack.c.l.b16 %v917
        %v950 = vunpack.c.l.b16 %v918
        %v951 = vunpack.c.l.b16 %v919
        %v952 = vunpack.c.l.b16 %v920
        %v953 = vunpack.c.l.b16 %v921
        %v954 = vpack.c.b16 %v939, %v938
        %v955 = vpack.c.b16 %v941, %v940
        %v956 = vpack.c.b16 %v943, %v942
        %v957 = vpack.c.b16 %v945, %v944
        %v958 = vpack.c.b16 %v947, %v946
        %v959 = vpack.c.b16 %v949, %v948
        %v960 = vpack.c.b16 %v951, %v950
        %v961 = vpack.c.b16 %v953, %v952
        %970 = vmatprep.subr.bf16.mxu0 0
        %971 = vmatpush1.bf16.msra.mxu0 %v954
        %972 = vmatprep.subr.bf16.mxu0 0
        %973 = vmatpush1.bf16.msra.mxu0 %v955
        %974 = vmatprep.subr.bf16.mxu0 0
        %975 = vmatpush1.bf16.msra.mxu0 %v956
        %976 = vmatprep.subr.bf16.mxu0 0
        %977 = vmatpush1.bf16.msra.mxu0 %v957
        %978 = vmatprep.subr.bf16.mxu0 0
        %979 = vmatpush1.bf16.msra.mxu0 %v958
        %980 = vmatprep.subr.bf16.mxu0 0
        %981 = vmatpush1.bf16.msra.mxu0 %v959
        %982 = vmatprep.subr.bf16.mxu0 0
        %983 = vmatpush1.bf16.msra.mxu0 %v960
        %984 = vmatprep.subr.bf16.mxu0 0
        %985 = vmatpush1.bf16.msra.mxu0 %v961
        %986 = vmatprep.subr.bf16.mxu0 0
        %987 = vmatpush1.bf16.msra.mxu0 0
        %988 = vmatprep.subr.bf16.mxu0 0
        %989 = vmatpush1.bf16.msra.mxu0 0
        %990 = vmatprep.subr.bf16.mxu0 0
        %991 = vmatpush1.bf16.msra.mxu0 0
        %992 = vmatprep.subr.bf16.mxu0 0
        %993 = vmatpush1.bf16.msra.mxu0 0
        %994 = vmatprep.subr.bf16.mxu0 0
        %995 = vmatpush1.bf16.msra.mxu0 0
        %996 = vmatprep.subr.bf16.mxu0 0
        %997 = vmatpush1.bf16.msra.mxu0 0
        %998 = vmatprep.subr.bf16.mxu0 0
        %999 = vmatpush1.bf16.msra.mxu0 0
        %1000 = vmatprep.subr.bf16.mxu0 0
        %1001 = vmatpush1.bf16.msra.mxu0 0
        %1002 = vmatprep.mubr.bf16.mxu0 0
        %1003 = vmatmul.mubr.bf16.gmra.mrb[0].mxu0 %v582
        %v1004 = vpop.f32.mrb[0].mxu0
        %v1005 = vadd.f32 0.0, %v1004
        %v1006 = vpop.f32.mrb[0].mxu0
        %v1007 = vpop.f32.mrb[0].mxu0
        %v1008 = vadd.f32 0.0, %v1007
        %v1009 = vpop.f32.mrb[0].mxu0
        %1010 = vmatprep.mubr.bf16.mxu0 0
        %1011 = vmatmul.mubr.bf16.gmra.mrb[0].mxu0 %v583
        %v1012 = vpop.f32.mrb[0].mxu0
        %v1013 = vadd.f32 0.0, %v1012
        %v1014 = vpop.f32.mrb[0].mxu0
        %v1015 = vpop.f32.mrb[0].mxu0
        %v1016 = vadd.f32 0.0, %v1015
        %v1017 = vpop.f32.mrb[0].mxu0
        %1018 = vmatprep.mubr.bf16.mxu0 0
        %1019 = vmatmul.mubr.bf16.gmra.mrb[0].mxu0 %v584
        %v1020 = vpop.f32.mrb[0].mxu0
        %v1021 = vadd.f32 0.0, %v1020
        %v1022 = vpop.f32.mrb[0].mxu0
        %v1023 = vpop.f32.mrb[0].mxu0
        %v1024 = vadd.f32 0.0, %v1023
        %v1025 = vpop.f32.mrb[0].mxu0
        %1026 = vmatprep.mubr.bf16.mxu0 0
        %1027 = vmatmul.mubr.bf16.gmra.mrb[0].mxu0 %v585
        %v1028 = vpop.f32.mrb[0].mxu0
        %v1029 = vadd.f32 0.0, %v1028
        %v1030 = vpop.f32.mrb[0].mxu0
        %v1031 = vpop.f32.mrb[0].mxu0
        %v1032 = vadd.f32 0.0, %v1031
        %v1033 = vpop.f32.mrb[0].mxu0
        %1034 = vmatprep.mubr.bf16.mxu0 0
        %1035 = vmatmul.mubr.bf16.gmra.mrb[0].mxu0 %v586
        %v1036 = vpop.f32.mrb[0].mxu0
        %v1037 = vadd.f32 0.0, %v1036
        %v1038 = vpop.f32.mrb[0].mxu0
        %v1039 = vpop.f32.mrb[0].mxu0
        %v1040 = vadd.f32 0.0, %v1039
        %v1041 = vpop.f32.mrb[0].mxu0
        %1042 = vmatprep.mubr.bf16.mxu0 0
        %1043 = vmatmul.mubr.bf16.gmra.mrb[0].mxu0 %v587
        %v1044 = vpop.f32.mrb[0].mxu0
        %v1045 = vadd.f32 0.0, %v1044
        %v1046 = vpop.f32.mrb[0].mxu0
        %v1047 = vpop.f32.mrb[0].mxu0
        %v1048 = vadd.f32 0.0, %v1047
        %v1049 = vpop.f32.mrb[0].mxu0
        %1050 = vmatprep.mubr.bf16.mxu0 0
        %1051 = vmatmul.mubr.bf16.gmra.mrb[0].mxu0 %v588
        %v1052 = vpop.f32.mrb[0].mxu0
        %v1053 = vadd.f32 0.0, %v1052
        %v1054 = vpop.f32.mrb[0].mxu0
        %v1055 = vpop.f32.mrb[0].mxu0
        %v1056 = vadd.f32 0.0, %v1055
        %v1057 = vpop.f32.mrb[0].mxu0
        %1058 = vmatprep.mubr.bf16.mxu0 0
        %1059 = vmatmul.mubr.bf16.gmra.mrb[0].mxu0 %v589
        %v1060 = vpop.f32.mrb[0].mxu0
        %v1061 = vadd.f32 0.0, %v1060
        %v1062 = vpop.f32.mrb[0].mxu0
        %v1063 = vpop.f32.mrb[0].mxu0
        %v1064 = vadd.f32 0.0, %v1063
        %v1065 = vpop.f32.mrb[0].mxu0
        %1066 = vmatprep.mubr.bf16.mxu0 0
        %1067 = vmatmul.mubr.bf16.gmra.mrb[0].mxu0 %v590
        %v1068 = vpop.f32.mrb[0].mxu0
        %v1069 = vadd.f32 0.0, %v1068
        %v1070 = vpop.f32.mrb[0].mxu0
        %v1071 = vpop.f32.mrb[0].mxu0
        %v1072 = vadd.f32 0.0, %v1071
        %v1073 = vpop.f32.mrb[0].mxu0
        %1074 = vmatprep.mubr.bf16.mxu0 0
        %1075 = vmatmul.mubr.bf16.gmra.mrb[0].mxu0 %v591
        %v1076 = vpop.f32.mrb[0].mxu0
        %v1077 = vadd.f32 0.0, %v1076
        %v1078 = vpop.f32.mrb[0].mxu0
        %v1079 = vpop.f32.mrb[0].mxu0
        %v1080 = vadd.f32 0.0, %v1079
        %v1081 = vpop.f32.mrb[0].mxu0
        %1082 = vmatprep.mubr.bf16.mxu0 0
        %1083 = vmatmul.mubr.bf16.gmra.mrb[0].mxu0 %v592
        %v1084 = vpop.f32.mrb[0].mxu0
        %v1085 = vadd.f32 0.0, %v1084
        %v1086 = vpop.f32.mrb[0].mxu0
        %v1087 = vpop.f32.mrb[0].mxu0
        %v1088 = vadd.f32 0.0, %v1087
        %v1089 = vpop.f32.mrb[0].mxu0
        %1090 = vmatprep.mubr.bf16.mxu0 0
        %1091 = vmatmul.mubr.bf16.gmra.mrb[0].mxu0 %v593
        %v1092 = vpop.f32.mrb[0].mxu0
        %v1093 = vadd.f32 0.0, %v1092
        %v1094 = vpop.f32.mrb[0].mxu0
        %v1095 = vpop.f32.mrb[0].mxu0
        %v1096 = vadd.f32 0.0, %v1095
        %v1097 = vpop.f32.mrb[0].mxu0
        %1098 = vmatprep.mubr.bf16.mxu0 0
        %1099 = vmatmul.mubr.bf16.gmra.mrb[0].mxu0 %v594
        %v1100 = vpop.f32.mrb[0].mxu0
        %v1101 = vadd.f32 0.0, %v1100
        %v1102 = vpop.f32.mrb[0].mxu0
        %v1103 = vpop.f32.mrb[0].mxu0
        %v1104 = vadd.f32 0.0, %v1103
        %v1105 = vpop.f32.mrb[0].mxu0
        %1106 = vmatprep.mubr.bf16.mxu0 0
        %1107 = vmatmul.mubr.bf16.gmra.mrb[0].mxu0 %v595
        %v1108 = vpop.f32.mrb[0].mxu0
        %v1109 = vadd.f32 0.0, %v1108
        %v1110 = vpop.f32.mrb[0].mxu0
        %v1111 = vpop.f32.mrb[0].mxu0
        %v1112 = vadd.f32 0.0, %v1111
        %v1113 = vpop.f32.mrb[0].mxu0
        %1114 = vmatprep.mubr.bf16.mxu0 0
        %1115 = vmatmul.mubr.bf16.gmra.mrb[0].mxu0 %v596
        %v1116 = vpop.f32.mrb[0].mxu0
        %v1117 = vadd.f32 0.0, %v1116
        %v1118 = vpop.f32.mrb[0].mxu0
        %v1119 = vpop.f32.mrb[0].mxu0
        %v1120 = vadd.f32 0.0, %v1119
        %v1121 = vpop.f32.mrb[0].mxu0
        %1122 = vmatprep.mubr.bf16.mxu0 0
        %1123 = vmatmul.mubr.bf16.gmra.mrb[0].mxu0 %v597
        %v1124 = vpop.f32.mrb[0].mxu0
        %v1125 = vadd.f32 0.0, %v1124
        %v1126 = vpop.f32.mrb[0].mxu0
        %v1127 = vpop.f32.mrb[0].mxu0
        %v1128 = vadd.f32 0.0, %v1127
        %v1129 = vpop.f32.mrb[0].mxu0
        %1130 = vdwg.mxu0
        %v1131 = vld [vmem:[#allocation2] sm:$0xff]
        %v1132 = vld [vmem:[#allocation2 + $0x8] sm:$0xff]
        %v1133 = vld [vmem:[#allocation2 + $0x10] sm:$0xff]
        %v1134 = vld [vmem:[#allocation2 + $0x18] sm:$0xff]
        %v1135 = vld [vmem:[#allocation2 + $0x20] sm:$0xff]
        %v1136 = vld [vmem:[#allocation2 + $0x28] sm:$0xff]
        %v1137 = vld [vmem:[#allocation2 + $0x30] sm:$0xff]
        %v1138 = vld [vmem:[#allocation2 + $0x38] sm:$0xff]
        %v1139 = vld [vmem:[#allocation2 + $0x40] sm:$0xff]
        %v1140 = vld [vmem:[#allocation2 + $0x48] sm:$0xff]
        %v1141 = vld [vmem:[#allocation2 + $0x50] sm:$0xff]
        %v1142 = vld [vmem:[#allocation2 + $0x58] sm:$0xff]
        %v1143 = vld [vmem:[#allocation2 + $0x60] sm:$0xff]
        %v1144 = vld [vmem:[#allocation2 + $0x68] sm:$0xff]
        %v1145 = vld [vmem:[#allocation2 + $0x70] sm:$0xff]
        %v1146 = vld [vmem:[#allocation2 + $0x78] sm:$0xff]
        %v1147 = vld [vmem:[#allocation2 + $0x80] sm:$0xff]
        %v1148 = vld [vmem:[#allocation2 + $0x88] sm:$0xff]
        %v1149 = vld [vmem:[#allocation2 + $0x90] sm:$0xff]
        %v1150 = vld [vmem:[#allocation2 + $0x98] sm:$0xff]
        %v1151 = vld [vmem:[#allocation2 + $0xa0] sm:$0xff]
        %v1152 = vld [vmem:[#allocation2 + $0xa8] sm:$0xff]
        %v1153 = vld [vmem:[#allocation2 + $0xb0] sm:$0xff]
        %v1154 = vld [vmem:[#allocation2 + $0xb8] sm:$0xff]
        %v1155 = vld [vmem:[#allocation2 + $0xc0] sm:$0xff]
        %v1156 = vld [vmem:[#allocation2 + $0xc8] sm:$0xff]
        %v1157 = vld [vmem:[#allocation2 + $0xd0] sm:$0xff]
        %v1158 = vld [vmem:[#allocation2 + $0xd8] sm:$0xff]
        %v1159 = vld [vmem:[#allocation2 + $0xe0] sm:$0xff]
        %v1160 = vld [vmem:[#allocation2 + $0xe8] sm:$0xff]
        %v1161 = vld [vmem:[#allocation2 + $0xf0] sm:$0xff]
        %v1162 = vld [vmem:[#allocation2 + $0xf8] sm:$0xff]
        %v1163 = vadd.f32 %v1131, %v1005
        %v1164 = vadd.f32 %v1132, %v1008
        %v1165 = vadd.f32 %v1133, %v1013
        %v1166 = vadd.f32 %v1134, %v1016
        %v1167 = vadd.f32 %v1135, %v1021
        %v1168 = vadd.f32 %v1136, %v1024
        %v1169 = vadd.f32 %v1137, %v1029
        %v1170 = vadd.f32 %v1138, %v1032
        %v1171 = vadd.f32 %v1139, %v1037
        %v1172 = vadd.f32 %v1140, %v1040
        %v1173 = vadd.f32 %v1141, %v1045
        %v1174 = vadd.f32 %v1142, %v1048
        %v1175 = vadd.f32 %v1143, %v1053
        %v1176 = vadd.f32 %v1144, %v1056
        %v1177 = vadd.f32 %v1145, %v1061
        %v1178 = vadd.f32 %v1146, %v1064
        %v1179 = vadd.f32 %v1147, %v1069
        %v1180 = vadd.f32 %v1148, %v1072
        %v1181 = vadd.f32 %v1149, %v1077
        %v1182 = vadd.f32 %v1150, %v1080
        %v1183 = vadd.f32 %v1151, %v1085
        %v1184 = vadd.f32 %v1152, %v1088
        %v1185 = vadd.f32 %v1153, %v1093
        %v1186 = vadd.f32 %v1154, %v1096
        %v1187 = vadd.f32 %v1155, %v1101
        %v1188 = vadd.f32 %v1156, %v1104
        %v1189 = vadd.f32 %v1157, %v1109
        %v1190 = vadd.f32 %v1158, %v1112
        %v1191 = vadd.f32 %v1159, %v1117
        %v1192 = vadd.f32 %v1160, %v1120
        %v1193 = vadd.f32 %v1161, %v1125
        %v1194 = vadd.f32 %v1162, %v1128
        %1195 = vst [vmem:[#allocation2] sm:$0xff] %v1163
        %1196 = vst [vmem:[#allocation2 + $0x8] sm:$0xff] %v1164
        %1197 = vst [vmem:[#allocation2 + $0x10] sm:$0xff] %v1165
        %1198 = vst [vmem:[#allocation2 + $0x18] sm:$0xff] %v1166
        %1199 = vst [vmem:[#allocation2 + $0x20] sm:$0xff] %v1167
        %1200 = vst [vmem:[#allocation2 + $0x28] sm:$0xff] %v1168
        %1201 = vst [vmem:[#allocation2 + $0x30] sm:$0xff] %v1169
        %1202 = vst [vmem:[#allocation2 + $0x38] sm:$0xff] %v1170
        %1203 = vst [vmem:[#allocation2 + $0x40] sm:$0xff] %v1171
        %1204 = vst [vmem:[#allocation2 + $0x48] sm:$0xff] %v1172
        %1205 = vst [vmem:[#allocation2 + $0x50] sm:$0xff] %v1173
        %1206 = vst [vmem:[#allocation2 + $0x58] sm:$0xff] %v1174
        %1207 = vst [vmem:[#allocation2 + $0x60] sm:$0xff] %v1175
        %1208 = vst [vmem:[#allocation2 + $0x68] sm:$0xff] %v1176
        %1209 = vst [vmem:[#allocation2 + $0x70] sm:$0xff] %v1177
        %1210 = vst [vmem:[#allocation2 + $0x78] sm:$0xff] %v1178
        %1211 = vst [vmem:[#allocation2 + $0x80] sm:$0xff] %v1179
        %1212 = vst [vmem:[#allocation2 + $0x88] sm:$0xff] %v1180
        %1213 = vst [vmem:[#allocation2 + $0x90] sm:$0xff] %v1181
        %1214 = vst [vmem:[#allocation2 + $0x98] sm:$0xff] %v1182
        %1215 = vst [vmem:[#allocation2 + $0xa0] sm:$0xff] %v1183
        %1216 = vst [vmem:[#allocation2 + $0xa8] sm:$0xff] %v1184
        %1217 = vst [vmem:[#allocation2 + $0xb0] sm:$0xff] %v1185
        %1218 = vst [vmem:[#allocation2 + $0xb8] sm:$0xff] %v1186
        %1219 = vst [vmem:[#allocation2 + $0xc0] sm:$0xff] %v1187
        %1220 = vst [vmem:[#allocation2 + $0xc8] sm:$0xff] %v1188
        %1221 = vst [vmem:[#allocation2 + $0xd0] sm:$0xff] %v1189
        %1222 = vst [vmem:[#allocation2 + $0xd8] sm:$0xff] %v1190
        %1223 = vst [vmem:[#allocation2 + $0xe0] sm:$0xff] %v1191
        %1224 = vst [vmem:[#allocation2 + $0xe8] sm:$0xff] %v1192
        %1225 = vst [vmem:[#allocation2 + $0xf0] sm:$0xff] %v1193
        %1226 = vst [vmem:[#allocation2 + $0xf8] sm:$0xff] %v1194
        %s1227 = scalar_lea.vmem [#allocation6], 384
        %v1228 = vld [vmem:[%s1227] sm:$0xf]
        %v1229 = vld [vmem:[%s1227 + $0x4] sm:$0xf]
        %v1230 = vld [vmem:[%s1227 + $0x8] sm:$0xf]
        %v1231 = vld [vmem:[%s1227 + $0xc] sm:$0xf]
        %v1232 = vld [vmem:[%s1227 + $0x10] sm:$0xf]
        %v1233 = vld [vmem:[%s1227 + $0x14] sm:$0xf]
        %v1234 = vld [vmem:[%s1227 + $0x18] sm:$0xf]
        %v1235 = vld [vmem:[%s1227 + $0x1c] sm:$0xf]
        %v1236 = vld [vmem:[%s1227 + $0x20] sm:$0xf]
        %v1237 = vld [vmem:[%s1227 + $0x24] sm:$0xf]
        %v1238 = vld [vmem:[%s1227 + $0x28] sm:$0xf]
        %v1239 = vld [vmem:[%s1227 + $0x2c] sm:$0xf]
        %v1240 = vld [vmem:[%s1227 + $0x30] sm:$0xf]
        %v1241 = vld [vmem:[%s1227 + $0x34] sm:$0xf]
        %v1242 = vld [vmem:[%s1227 + $0x38] sm:$0xf]
        %v1243 = vld [vmem:[%s1227 + $0x3c] sm:$0xf]
        %v1260 = vunpack.c.l.b16 %v1228
        %v1261 = vunpack.c.l.b16 %v1229
        %v1262 = vunpack.c.l.b16 %v1230
        %v1263 = vunpack.c.l.b16 %v1231
        %v1264 = vunpack.c.l.b16 %v1232
        %v1265 = vunpack.c.l.b16 %v1233
        %v1266 = vunpack.c.l.b16 %v1234
        %v1267 = vunpack.c.l.b16 %v1235
        %v1268 = vunpack.c.l.b16 %v1236
        %v1269 = vunpack.c.l.b16 %v1237
        %v1270 = vunpack.c.l.b16 %v1238
        %v1271 = vunpack.c.l.b16 %v1239
        %v1272 = vunpack.c.l.b16 %v1240
        %v1273 = vunpack.c.l.b16 %v1241
        %v1274 = vunpack.c.l.b16 %v1242
        %v1275 = vunpack.c.l.b16 %v1243
        %v1276 = vpack.c.b16 %v1261, %v1260
        %v1277 = vpack.c.b16 %v1263, %v1262
        %v1278 = vpack.c.b16 %v1265, %v1264
        %v1279 = vpack.c.b16 %v1267, %v1266
        %v1280 = vpack.c.b16 %v1269, %v1268
        %v1281 = vpack.c.b16 %v1271, %v1270
        %v1282 = vpack.c.b16 %v1273, %v1272
        %v1283 = vpack.c.b16 %v1275, %v1274
        %1292 = vmatprep.subr.bf16.mxu0 0
        %1293 = vmatpush1.bf16.msra.mxu0 %v1276
        %1294 = vmatprep.subr.bf16.mxu0 0
        %1295 = vmatpush1.bf16.msra.mxu0 %v1277
        %1296 = vmatprep.subr.bf16.mxu0 0
        %1297 = vmatpush1.bf16.msra.mxu0 %v1278
        %1298 = vmatprep.subr.bf16.mxu0 0
        %1299 = vmatpush1.bf16.msra.mxu0 %v1279
        %1300 = vmatprep.subr.bf16.mxu0 0
        %1301 = vmatpush1.bf16.msra.mxu0 %v1280
        %1302 = vmatprep.subr.bf16.mxu0 0
        %1303 = vmatpush1.bf16.msra.mxu0 %v1281
        %1304 = vmatprep.subr.bf16.mxu0 0
        %1305 = vmatpush1.bf16.msra.mxu0 %v1282
        %1306 = vmatprep.subr.bf16.mxu0 0
        %1307 = vmatpush1.bf16.msra.mxu0 %v1283
        %1308 = vmatprep.subr.bf16.mxu0 0
        %1309 = vmatpush1.bf16.msra.mxu0 0
        %1310 = vmatprep.subr.bf16.mxu0 0
        %1311 = vmatpush1.bf16.msra.mxu0 0
        %1312 = vmatprep.subr.bf16.mxu0 0
        %1313 = vmatpush1.bf16.msra.mxu0 0
        %1314 = vmatprep.subr.bf16.mxu0 0
        %1315 = vmatpush1.bf16.msra.mxu0 0
        %1316 = vmatprep.subr.bf16.mxu0 0
        %1317 = vmatpush1.bf16.msra.mxu0 0
        %1318 = vmatprep.subr.bf16.mxu0 0
        %1319 = vmatpush1.bf16.msra.mxu0 0
        %1320 = vmatprep.subr.bf16.mxu0 0
        %1321 = vmatpush1.bf16.msra.mxu0 0
        %1322 = vmatprep.subr.bf16.mxu0 0
        %1323 = vmatpush1.bf16.msra.mxu0 0
        %1324 = vmatprep.mubr.bf16.mxu0 0
        %1325 = vmatmul.mubr.bf16.gmra.mrb[0].mxu0 %v583
        %v1326 = vpop.f32.mrb[0].mxu0
        %v1327 = vadd.f32 0.0, %v1326
        %v1328 = vpop.f32.mrb[0].mxu0
        %v1329 = vpop.f32.mrb[0].mxu0
        %v1330 = vadd.f32 0.0, %v1329
        %v1331 = vpop.f32.mrb[0].mxu0
        %1332 = vmatprep.mubr.bf16.mxu0 0
        %1333 = vmatmul.mubr.bf16.gmra.mrb[0].mxu0 %v584
        %v1334 = vpop.f32.mrb[0].mxu0
        %v1335 = vadd.f32 0.0, %v1334
        %v1336 = vpop.f32.mrb[0].mxu0
        %v1337 = vpop.f32.mrb[0].mxu0
        %v1338 = vadd.f32 0.0, %v1337
        %v1339 = vpop.f32.mrb[0].mxu0
        %1340 = vmatprep.mubr.bf16.mxu0 0
        %1341 = vmatmul.mubr.bf16.gmra.mrb[0].mxu0 %v585
        %v1342 = vpop.f32.mrb[0].mxu0
        %v1343 = vadd.f32 0.0, %v1342
        %v1344 = vpop.f32.mrb[0].mxu0
        %v1345 = vpop.f32.mrb[0].mxu0
        %v1346 = vadd.f32 0.0, %v1345
        %v1347 = vpop.f32.mrb[0].mxu0
        %1348 = vmatprep.mubr.bf16.mxu0 0
        %1349 = vmatmul.mubr.bf16.gmra.mrb[0].mxu0 %v586
        %v1350 = vpop.f32.mrb[0].mxu0
        %v1351 = vadd.f32 0.0, %v1350
        %v1352 = vpop.f32.mrb[0].mxu0
        %v1353 = vpop.f32.mrb[0].mxu0
        %v1354 = vadd.f32 0.0, %v1353
        %v1355 = vpop.f32.mrb[0].mxu0
        %1356 = vmatprep.mubr.bf16.mxu0 0
        %1357 = vmatmul.mubr.bf16.gmra.mrb[0].mxu0 %v587
        %v1358 = vpop.f32.mrb[0].mxu0
        %v1359 = vadd.f32 0.0, %v1358
        %v1360 = vpop.f32.mrb[0].mxu0
        %v1361 = vpop.f32.mrb[0].mxu0
        %v1362 = vadd.f32 0.0, %v1361
        %v1363 = vpop.f32.mrb[0].mxu0
        %1364 = vmatprep.mubr.bf16.mxu0 0
        %1365 = vmatmul.mubr.bf16.gmra.mrb[0].mxu0 %v588
        %v1366 = vpop.f32.mrb[0].mxu0
        %v1367 = vadd.f32 0.0, %v1366
        %v1368 = vpop.f32.mrb[0].mxu0
        %v1369 = vpop.f32.mrb[0].mxu0
        %v1370 = vadd.f32 0.0, %v1369
        %v1371 = vpop.f32.mrb[0].mxu0
        %1372 = vmatprep.mubr.bf16.mxu0 0
        %1373 = vmatmul.mubr.bf16.gmra.mrb[0].mxu0 %v589
        %v1374 = vpop.f32.mrb[0].mxu0
        %v1375 = vadd.f32 0.0, %v1374
        %v1376 = vpop.f32.mrb[0].mxu0
        %v1377 = vpop.f32.mrb[0].mxu0
        %v1378 = vadd.f32 0.0, %v1377
        %v1379 = vpop.f32.mrb[0].mxu0
        %1380 = vmatprep.mubr.bf16.mxu0 0
        %1381 = vmatmul.mubr.bf16.gmra.mrb[0].mxu0 %v590
        %v1382 = vpop.f32.mrb[0].mxu0
        %v1383 = vadd.f32 0.0, %v1382
        %v1384 = vpop.f32.mrb[0].mxu0
        %v1385 = vpop.f32.mrb[0].mxu0
        %v1386 = vadd.f32 0.0, %v1385
        %v1387 = vpop.f32.mrb[0].mxu0
        %1388 = vmatprep.mubr.bf16.mxu0 0
        %1389 = vmatmul.mubr.bf16.gmra.mrb[0].mxu0 %v591
        %v1390 = vpop.f32.mrb[0].mxu0
        %v1391 = vadd.f32 0.0, %v1390
        %v1392 = vpop.f32.mrb[0].mxu0
        %v1393 = vpop.f32.mrb[0].mxu0
        %v1394 = vadd.f32 0.0, %v1393
        %v1395 = vpop.f32.mrb[0].mxu0
        %1396 = vmatprep.mubr.bf16.mxu0 0
        %1397 = vmatmul.mubr.bf16.gmra.mrb[0].mxu0 %v592
        %v1398 = vpop.f32.mrb[0].mxu0
        %v1399 = vadd.f32 0.0, %v1398
        %v1400 = vpop.f32.mrb[0].mxu0
        %v1401 = vpop.f32.mrb[0].mxu0
        %v1402 = vadd.f32 0.0, %v1401
        %v1403 = vpop.f32.mrb[0].mxu0
        %1404 = vmatprep.mubr.bf16.mxu0 0
        %1405 = vmatmul.mubr.bf16.gmra.mrb[0].mxu0 %v593
        %v1406 = vpop.f32.mrb[0].mxu0
        %v1407 = vadd.f32 0.0, %v1406
        %v1408 = vpop.f32.mrb[0].mxu0
        %v1409 = vpop.f32.mrb[0].mxu0
        %v1410 = vadd.f32 0.0, %v1409
        %v1411 = vpop.f32.mrb[0].mxu0
        %1412 = vmatprep.mubr.bf16.mxu0 0
        %1413 = vmatmul.mubr.bf16.gmra.mrb[0].mxu0 %v594
        %v1414 = vpop.f32.mrb[0].mxu0
        %v1415 = vadd.f32 0.0, %v1414
        %v1416 = vpop.f32.mrb[0].mxu0
        %v1417 = vpop.f32.mrb[0].mxu0
        %v1418 = vadd.f32 0.0, %v1417
        %v1419 = vpop.f32.mrb[0].mxu0
        %1420 = vmatprep.mubr.bf16.mxu0 0
        %1421 = vmatmul.mubr.bf16.gmra.mrb[0].mxu0 %v595
        %v1422 = vpop.f32.mrb[0].mxu0
        %v1423 = vadd.f32 0.0, %v1422
        %v1424 = vpop.f32.mrb[0].mxu0
        %v1425 = vpop.f32.mrb[0].mxu0
        %v1426 = vadd.f32 0.0, %v1425
        %v1427 = vpop.f32.mrb[0].mxu0
        %1428 = vmatprep.mubr.bf16.mxu0 0
        %1429 = vmatmul.mubr.bf16.gmra.mrb[0].mxu0 %v596
        %v1430 = vpop.f32.mrb[0].mxu0
        %v1431 = vadd.f32 0.0, %v1430
        %v1432 = vpop.f32.mrb[0].mxu0
        %v1433 = vpop.f32.mrb[0].mxu0
        %v1434 = vadd.f32 0.0, %v1433
        %v1435 = vpop.f32.mrb[0].mxu0
        %1436 = vmatprep.mubr.bf16.mxu0 0
        %1437 = vmatmul.mubr.bf16.gmra.mrb[0].mxu0 %v597
        %v1438 = vpop.f32.mrb[0].mxu0
        %v1439 = vadd.f32 0.0, %v1438
        %v1440 = vpop.f32.mrb[0].mxu0
        %v1441 = vpop.f32.mrb[0].mxu0
        %v1442 = vadd.f32 0.0, %v1441
        %v1443 = vpop.f32.mrb[0].mxu0
        %1444 = vdwg.mxu0
        %v1445 = vld [vmem:[#allocation2] sm:$0xff]
        %v1446 = vld [vmem:[#allocation2 + $0x8] sm:$0xff]
        %v1447 = vld [vmem:[#allocation2 + $0x10] sm:$0xff]
        %v1448 = vld [vmem:[#allocation2 + $0x18] sm:$0xff]
        %v1449 = vld [vmem:[#allocation2 + $0x20] sm:$0xff]
        %v1450 = vld [vmem:[#allocation2 + $0x28] sm:$0xff]
        %v1451 = vld [vmem:[#allocation2 + $0x30] sm:$0xff]
        %v1452 = vld [vmem:[#allocation2 + $0x38] sm:$0xff]
        %v1453 = vld [vmem:[#allocation2 + $0x40] sm:$0xff]
        %v1454 = vld [vmem:[#allocation2 + $0x48] sm:$0xff]
        %v1455 = vld [vmem:[#allocation2 + $0x50] sm:$0xff]
        %v1456 = vld [vmem:[#allocation2 + $0x58] sm:$0xff]
        %v1457 = vld [vmem:[#allocation2 + $0x60] sm:$0xff]
        %v1458 = vld [vmem:[#allocation2 + $0x68] sm:$0xff]
        %v1459 = vld [vmem:[#allocation2 + $0x70] sm:$0xff]
        %v1460 = vld [vmem:[#allocation2 + $0x78] sm:$0xff]
        %v1461 = vld [vmem:[#allocation2 + $0x80] sm:$0xff]
        %v1462 = vld [vmem:[#allocation2 + $0x88] sm:$0xff]
        %v1463 = vld [vmem:[#allocation2 + $0x90] sm:$0xff]
        %v1464 = vld [vmem:[#allocation2 + $0x98] sm:$0xff]
        %v1465 = vld [vmem:[#allocation2 + $0xa0] sm:$0xff]
        %v1466 = vld [vmem:[#allocation2 + $0xa8] sm:$0xff]
        %v1467 = vld [vmem:[#allocation2 + $0xb0] sm:$0xff]
        %v1468 = vld [vmem:[#allocation2 + $0xb8] sm:$0xff]
        %v1469 = vld [vmem:[#allocation2 + $0xc0] sm:$0xff]
        %v1470 = vld [vmem:[#allocation2 + $0xc8] sm:$0xff]
        %v1471 = vld [vmem:[#allocation2 + $0xd0] sm:$0xff]
        %v1472 = vld [vmem:[#allocation2 + $0xd8] sm:$0xff]
        %v1473 = vld [vmem:[#allocation2 + $0xe0] sm:$0xff]
        %v1474 = vld [vmem:[#allocation2 + $0xe8] sm:$0xff]
        %v1475 = vadd.f32 %v1445, %v1327
        %v1476 = vadd.f32 %v1446, %v1330
        %v1477 = vadd.f32 %v1447, %v1335
        %v1478 = vadd.f32 %v1448, %v1338
        %v1479 = vadd.f32 %v1449, %v1343
        %v1480 = vadd.f32 %v1450, %v1346
        %v1481 = vadd.f32 %v1451, %v1351
        %v1482 = vadd.f32 %v1452, %v1354
        %v1483 = vadd.f32 %v1453, %v1359
        %v1484 = vadd.f32 %v1454, %v1362
        %v1485 = vadd.f32 %v1455, %v1367
        %v1486 = vadd.f32 %v1456, %v1370
        %v1487 = vadd.f32 %v1457, %v1375
        %v1488 = vadd.f32 %v1458, %v1378
        %v1489 = vadd.f32 %v1459, %v1383
        %v1490 = vadd.f32 %v1460, %v1386
        %v1491 = vadd.f32 %v1461, %v1391
        %v1492 = vadd.f32 %v1462, %v1394
        %v1493 = vadd.f32 %v1463, %v1399
        %v1494 = vadd.f32 %v1464, %v1402
        %v1495 = vadd.f32 %v1465, %v1407
        %v1496 = vadd.f32 %v1466, %v1410
        %v1497 = vadd.f32 %v1467, %v1415
        %v1498 = vadd.f32 %v1468, %v1418
        %v1499 = vadd.f32 %v1469, %v1423
        %v1500 = vadd.f32 %v1470, %v1426
        %v1501 = vadd.f32 %v1471, %v1431
        %v1502 = vadd.f32 %v1472, %v1434
        %v1503 = vadd.f32 %v1473, %v1439
        %v1504 = vadd.f32 %v1474, %v1442
        %1505 = vst [vmem:[#allocation2] sm:$0xff] %v1475
        %1506 = vst [vmem:[#allocation2 + $0x8] sm:$0xff] %v1476
        %1507 = vst [vmem:[#allocation2 + $0x10] sm:$0xff] %v1477
        %1508 = vst [vmem:[#allocation2 + $0x18] sm:$0xff] %v1478
        %1509 = vst [vmem:[#allocation2 + $0x20] sm:$0xff] %v1479
        %1510 = vst [vmem:[#allocation2 + $0x28] sm:$0xff] %v1480
        %1511 = vst [vmem:[#allocation2 + $0x30] sm:$0xff] %v1481
        %1512 = vst [vmem:[#allocation2 + $0x38] sm:$0xff] %v1482
        %1513 = vst [vmem:[#allocation2 + $0x40] sm:$0xff] %v1483
        %1514 = vst [vmem:[#allocation2 + $0x48] sm:$0xff] %v1484
        %1515 = vst [vmem:[#allocation2 + $0x50] sm:$0xff] %v1485
        %1516 = vst [vmem:[#allocation2 + $0x58] sm:$0xff] %v1486
        %1517 = vst [vmem:[#allocation2 + $0x60] sm:$0xff] %v1487
        %1518 = vst [vmem:[#allocation2 + $0x68] sm:$0xff] %v1488
        %1519 = vst [vmem:[#allocation2 + $0x70] sm:$0xff] %v1489
        %1520 = vst [vmem:[#allocation2 + $0x78] sm:$0xff] %v1490
        %1521 = vst [vmem:[#allocation2 + $0x80] sm:$0xff] %v1491
        %1522 = vst [vmem:[#allocation2 + $0x88] sm:$0xff] %v1492
        %1523 = vst [vmem:[#allocation2 + $0x90] sm:$0xff] %v1493
        %1524 = vst [vmem:[#allocation2 + $0x98] sm:$0xff] %v1494
        %1525 = vst [vmem:[#allocation2 + $0xa0] sm:$0xff] %v1495
        %1526 = vst [vmem:[#allocation2 + $0xa8] sm:$0xff] %v1496
        %1527 = vst [vmem:[#allocation2 + $0xb0] sm:$0xff] %v1497
        %1528 = vst [vmem:[#allocation2 + $0xb8] sm:$0xff] %v1498
        %1529 = vst [vmem:[#allocation2 + $0xc0] sm:$0xff] %v1499
        %1530 = vst [vmem:[#allocation2 + $0xc8] sm:$0xff] %v1500
        %1531 = vst [vmem:[#allocation2 + $0xd0] sm:$0xff] %v1501
        %1532 = vst [vmem:[#allocation2 + $0xd8] sm:$0xff] %v1502
        %1533 = vst [vmem:[#allocation2 + $0xe0] sm:$0xff] %v1503
        %1534 = vst [vmem:[#allocation2 + $0xe8] sm:$0xff] %v1504
        %s1535 = scalar_lea.vmem [#allocation6], 64
        %v1536 = vld [vmem:[%s1535] sm:$0xf]
        %v1537 = vld [vmem:[%s1535 + $0x4] sm:$0xf]
        %v1538 = vld [vmem:[%s1535 + $0x8] sm:$0xf]
        %v1539 = vld [vmem:[%s1535 + $0xc] sm:$0xf]
        %v1540 = vld [vmem:[%s1535 + $0x10] sm:$0xf]
        %v1541 = vld [vmem:[%s1535 + $0x14] sm:$0xf]
        %v1542 = vld [vmem:[%s1535 + $0x18] sm:$0xf]
        %v1543 = vld [vmem:[%s1535 + $0x1c] sm:$0xf]
        %v1544 = vld [vmem:[%s1535 + $0x20] sm:$0xf]
        %v1545 = vld [vmem:[%s1535 + $0x24] sm:$0xf]
        %v1546 = vld [vmem:[%s1535 + $0x28] sm:$0xf]
        %v1547 = vld [vmem:[%s1535 + $0x2c] sm:$0xf]
        %v1548 = vld [vmem:[%s1535 + $0x30] sm:$0xf]
        %v1549 = vld [vmem:[%s1535 + $0x34] sm:$0xf]
        %v1550 = vld [vmem:[%s1535 + $0x38] sm:$0xf]
        %v1551 = vld [vmem:[%s1535 + $0x3c] sm:$0xf]
        %v1583 = vunpack.c.l.b16 %v1536
        %v1584 = vunpack.c.l.b16 %v1537
        %v1585 = vunpack.c.l.b16 %v1538
        %v1586 = vunpack.c.l.b16 %v1539
        %v1587 = vunpack.c.l.b16 %v1540
        %v1588 = vunpack.c.l.b16 %v1541
        %v1589 = vunpack.c.l.b16 %v1542
        %v1590 = vunpack.c.l.b16 %v1543
        %v1591 = vunpack.c.l.b16 %v1544
        %v1592 = vunpack.c.l.b16 %v1545
        %v1593 = vunpack.c.l.b16 %v1546
        %v1594 = vunpack.c.l.b16 %v1547
        %v1595 = vunpack.c.l.b16 %v1548
        %v1596 = vunpack.c.l.b16 %v1549
        %v1597 = vunpack.c.l.b16 %v1550
        %v1598 = vunpack.c.l.b16 %v1551
        %v1599 = vpack.c.b16 %v1584, %v1583
        %v1600 = vpack.c.b16 %v1586, %v1585
        %v1601 = vpack.c.b16 %v1588, %v1587
        %v1602 = vpack.c.b16 %v1590, %v1589
        %v1603 = vpack.c.b16 %v1592, %v1591
        %v1604 = vpack.c.b16 %v1594, %v1593
        %v1605 = vpack.c.b16 %v1596, %v1595
        %v1606 = vpack.c.b16 %v1598, %v1597
        %1615 = vmatprep.subr.bf16.mxu0 0
        %1616 = vmatpush1.bf16.msra.mxu0 %v1599
        %1617 = vmatprep.subr.bf16.mxu0 0
        %1618 = vmatpush1.bf16.msra.mxu0 %v1600
        %1619 = vmatprep.subr.bf16.mxu0 0
        %1620 = vmatpush1.bf16.msra.mxu0 %v1601
        %1621 = vmatprep.subr.bf16.mxu0 0
        %1622 = vmatpush1.bf16.msra.mxu0 %v1602
        %1623 = vmatprep.subr.bf16.mxu0 0
        %1624 = vmatpush1.bf16.msra.mxu0 %v1603
        %1625 = vmatprep.subr.bf16.mxu0 0
        %1626 = vmatpush1.bf16.msra.mxu0 %v1604
        %1627 = vmatprep.subr.bf16.mxu0 0
        %1628 = vmatpush1.bf16.msra.mxu0 %v1605
        %1629 = vmatprep.subr.bf16.mxu0 0
        %1630 = vmatpush1.bf16.msra.mxu0 %v1606
        %1631 = vmatprep.subr.bf16.mxu0 0
        %1632 = vmatpush1.bf16.msra.mxu0 0
        %1633 = vmatprep.subr.bf16.mxu0 0
        %1634 = vmatpush1.bf16.msra.mxu0 0
        %1635 = vmatprep.subr.bf16.mxu0 0
        %1636 = vmatpush1.bf16.msra.mxu0 0
        %1637 = vmatprep.subr.bf16.mxu0 0
        %1638 = vmatpush1.bf16.msra.mxu0 0
        %1639 = vmatprep.subr.bf16.mxu0 0
        %1640 = vmatpush1.bf16.msra.mxu0 0
        %1641 = vmatprep.subr.bf16.mxu0 0
        %1642 = vmatpush1.bf16.msra.mxu0 0
        %1643 = vmatprep.subr.bf16.mxu0 0
        %1644 = vmatpush1.bf16.msra.mxu0 0
        %1645 = vmatprep.subr.bf16.mxu0 0
        %1646 = vmatpush1.bf16.msra.mxu0 0
        %1647 = vmatprep.mubr.bf16.mxu0 0
        %1648 = vmatmul.mubr.bf16.gmra.mrb[0].mxu0 %v435
        %v1649 = vpop.f32.mrb[0].mxu0
        %v1650 = vadd.f32 0.0, %v1649
        %v1651 = vpop.f32.mrb[0].mxu0
        %v1652 = vpop.f32.mrb[0].mxu0
        %v1653 = vadd.f32 0.0, %v1652
        %v1654 = vpop.f32.mrb[0].mxu0
        %1655 = vmatprep.mubr.bf16.mxu0 0
        %1656 = vmatmul.mubr.bf16.gmra.mrb[0].mxu0 %v436
        %v1657 = vpop.f32.mrb[0].mxu0
        %v1658 = vadd.f32 0.0, %v1657
        %v1659 = vpop.f32.mrb[0].mxu0
        %v1660 = vpop.f32.mrb[0].mxu0
        %v1661 = vadd.f32 0.0, %v1660
        %v1662 = vpop.f32.mrb[0].mxu0
        %1663 = vmatprep.mubr.bf16.mxu0 0
        %1664 = vmatmul.mubr.bf16.gmra.mrb[0].mxu0 %v437
        %v1665 = vpop.f32.mrb[0].mxu0
        %v1666 = vadd.f32 0.0, %v1665
        %v1667 = vpop.f32.mrb[0].mxu0
        %v1668 = vpop.f32.mrb[0].mxu0
        %v1669 = vadd.f32 0.0, %v1668
        %v1670 = vpop.f32.mrb[0].mxu0
        %1671 = vmatprep.mubr.bf16.mxu0 0
        %1672 = vmatmul.mubr.bf16.gmra.mrb[0].mxu0 %v438
        %v1673 = vpop.f32.mrb[0].mxu0
        %v1674 = vadd.f32 0.0, %v1673
        %v1675 = vpop.f32.mrb[0].mxu0
        %v1676 = vpop.f32.mrb[0].mxu0
        %v1677 = vadd.f32 0.0, %v1676
        %v1678 = vpop.f32.mrb[0].mxu0
        %1679 = vmatprep.mubr.bf16.mxu0 0
        %1680 = vmatmul.mubr.bf16.gmra.mrb[0].mxu0 %v439
        %v1681 = vpop.f32.mrb[0].mxu0
        %v1682 = vadd.f32 0.0, %v1681
        %v1683 = vpop.f32.mrb[0].mxu0
        %v1684 = vpop.f32.mrb[0].mxu0
        %v1685 = vadd.f32 0.0, %v1684
        %v1686 = vpop.f32.mrb[0].mxu0
        %1687 = vmatprep.mubr.bf16.mxu0 0
        %1688 = vmatmul.mubr.bf16.gmra.mrb[0].mxu0 %v440
        %v1689 = vpop.f32.mrb[0].mxu0
        %v1690 = vadd.f32 0.0, %v1689
        %v1691 = vpop.f32.mrb[0].mxu0
        %v1692 = vpop.f32.mrb[0].mxu0
        %v1693 = vadd.f32 0.0, %v1692
        %v1694 = vpop.f32.mrb[0].mxu0
        %1695 = vmatprep.mubr.bf16.mxu0 0
        %1696 = vmatmul.mubr.bf16.gmra.mrb[0].mxu0 %v441
        %v1697 = vpop.f32.mrb[0].mxu0
        %v1698 = vadd.f32 0.0, %v1697
        %v1699 = vpop.f32.mrb[0].mxu0
        %v1700 = vpop.f32.mrb[0].mxu0
        %v1701 = vadd.f32 0.0, %v1700
        %v1702 = vpop.f32.mrb[0].mxu0
        %1703 = vmatprep.mubr.bf16.mxu0 0
        %1704 = vmatmul.mubr.bf16.gmra.mrb[0].mxu0 %v442
        %v1705 = vpop.f32.mrb[0].mxu0
        %v1706 = vadd.f32 0.0, %v1705
        %v1707 = vpop.f32.mrb[0].mxu0
        %v1708 = vpop.f32.mrb[0].mxu0
        %v1709 = vadd.f32 0.0, %v1708
        %v1710 = vpop.f32.mrb[0].mxu0
        %1711 = vmatprep.mubr.bf16.mxu0 0
        %1712 = vmatmul.mubr.bf16.gmra.mrb[0].mxu0 %v443
        %v1713 = vpop.f32.mrb[0].mxu0
        %v1714 = vadd.f32 0.0, %v1713
        %v1715 = vpop.f32.mrb[0].mxu0
        %v1716 = vpop.f32.mrb[0].mxu0
        %v1717 = vadd.f32 0.0, %v1716
        %v1718 = vpop.f32.mrb[0].mxu0
        %1719 = vmatprep.mubr.bf16.mxu0 0
        %1720 = vmatmul.mubr.bf16.gmra.mrb[0].mxu0 %v444
        %v1721 = vpop.f32.mrb[0].mxu0
        %v1722 = vadd.f32 0.0, %v1721
        %v1723 = vpop.f32.mrb[0].mxu0
        %v1724 = vpop.f32.mrb[0].mxu0
        %v1725 = vadd.f32 0.0, %v1724
        %v1726 = vpop.f32.mrb[0].mxu0
        %1727 = vmatprep.mubr.bf16.mxu0 0
        %1728 = vmatmul.mubr.bf16.gmra.mrb[0].mxu0 %v445
        %v1729 = vpop.f32.mrb[0].mxu0
        %v1730 = vadd.f32 0.0, %v1729
        %v1731 = vpop.f32.mrb[0].mxu0
        %v1732 = vpop.f32.mrb[0].mxu0
        %v1733 = vadd.f32 0.0, %v1732
        %v1734 = vpop.f32.mrb[0].mxu0
        %1735 = vmatprep.mubr.bf16.mxu0 0
        %1736 = vmatmul.mubr.bf16.gmra.mrb[0].mxu0 %v446
        %v1737 = vpop.f32.mrb[0].mxu0
        %v1738 = vadd.f32 0.0, %v1737
        %v1739 = vpop.f32.mrb[0].mxu0
        %v1740 = vpop.f32.mrb[0].mxu0
        %v1741 = vadd.f32 0.0, %v1740
        %v1742 = vpop.f32.mrb[0].mxu0
        %1743 = vmatprep.mubr.bf16.mxu0 0
        %1744 = vmatmul.mubr.bf16.gmra.mrb[0].mxu0 %v447
        %v1745 = vpop.f32.mrb[0].mxu0
        %v1746 = vadd.f32 0.0, %v1745
        %v1747 = vpop.f32.mrb[0].mxu0
        %v1748 = vpop.f32.mrb[0].mxu0
        %v1749 = vadd.f32 0.0, %v1748
        %v1750 = vpop.f32.mrb[0].mxu0
        %1751 = vmatprep.mubr.bf16.mxu0 0
        %1752 = vmatmul.mubr.bf16.gmra.mrb[0].mxu0 %v448
        %v1753 = vpop.f32.mrb[0].mxu0
        %v1754 = vadd.f32 0.0, %v1753
        %v1755 = vpop.f32.mrb[0].mxu0
        %v1756 = vpop.f32.mrb[0].mxu0
        %v1757 = vadd.f32 0.0, %v1756
        %v1758 = vpop.f32.mrb[0].mxu0
        %1759 = vmatprep.mubr.bf16.mxu0 0
        %1760 = vmatmul.mubr.bf16.gmra.mrb[0].mxu0 %v449
        %v1761 = vpop.f32.mrb[0].mxu0
        %v1762 = vadd.f32 0.0, %v1761
        %v1763 = vpop.f32.mrb[0].mxu0
        %v1764 = vpop.f32.mrb[0].mxu0
        %v1765 = vadd.f32 0.0, %v1764
        %v1766 = vpop.f32.mrb[0].mxu0
        %1767 = vdwg.mxu0
        %v1768 = vld [vmem:[#allocation2 + $0x10] sm:$0xff]
        %v1769 = vld [vmem:[#allocation2 + $0x18] sm:$0xff]
        %v1770 = vld [vmem:[#allocation2 + $0x20] sm:$0xff]
        %v1771 = vld [vmem:[#allocation2 + $0x28] sm:$0xff]
        %v1772 = vld [vmem:[#allocation2 + $0x30] sm:$0xff]
        %v1773 = vld [vmem:[#allocation2 + $0x38] sm:$0xff]
        %v1774 = vld [vmem:[#allocation2 + $0x40] sm:$0xff]
        %v1775 = vld [vmem:[#allocation2 + $0x48] sm:$0xff]
        %v1776 = vld [vmem:[#allocation2 + $0x50] sm:$0xff]
        %v1777 = vld [vmem:[#allocation2 + $0x58] sm:$0xff]
        %v1778 = vld [vmem:[#allocation2 + $0x60] sm:$0xff]
        %v1779 = vld [vmem:[#allocation2 + $0x68] sm:$0xff]
        %v1780 = vld [vmem:[#allocation2 + $0x70] sm:$0xff]
        %v1781 = vld [vmem:[#allocation2 + $0x78] sm:$0xff]
        %v1782 = vld [vmem:[#allocation2 + $0x80] sm:$0xff]
        %v1783 = vld [vmem:[#allocation2 + $0x88] sm:$0xff]
        %v1784 = vld [vmem:[#allocation2 + $0x90] sm:$0xff]
        %v1785 = vld [vmem:[#allocation2 + $0x98] sm:$0xff]
        %v1786 = vld [vmem:[#allocation2 + $0xa0] sm:$0xff]
        %v1787 = vld [vmem:[#allocation2 + $0xa8] sm:$0xff]
        %v1788 = vld [vmem:[#allocation2 + $0xb0] sm:$0xff]
        %v1789 = vld [vmem:[#allocation2 + $0xb8] sm:$0xff]
        %v1790 = vld [vmem:[#allocation2 + $0xc0] sm:$0xff]
        %v1791 = vld [vmem:[#allocation2 + $0xc8] sm:$0xff]
        %v1792 = vld [vmem:[#allocation2 + $0xd0] sm:$0xff]
        %v1793 = vld [vmem:[#allocation2 + $0xd8] sm:$0xff]
        %v1794 = vld [vmem:[#allocation2 + $0xe0] sm:$0xff]
        %v1795 = vld [vmem:[#allocation2 + $0xe8] sm:$0xff]
        %v1796 = vld [vmem:[#allocation2 + $0xf0] sm:$0xff]
        %v1797 = vld [vmem:[#allocation2 + $0xf8] sm:$0xff]
        %v1798 = vadd.f32 %v1768, %v1650
        %v1799 = vadd.f32 %v1769, %v1653
        %v1800 = vadd.f32 %v1770, %v1658
        %v1801 = vadd.f32 %v1771, %v1661
        %v1802 = vadd.f32 %v1772, %v1666
        %v1803 = vadd.f32 %v1773, %v1669
        %v1804 = vadd.f32 %v1774, %v1674
        %v1805 = vadd.f32 %v1775, %v1677
        %v1806 = vadd.f32 %v1776, %v1682
        %v1807 = vadd.f32 %v1777, %v1685
        %v1808 = vadd.f32 %v1778, %v1690
        %v1809 = vadd.f32 %v1779, %v1693
        %v1810 = vadd.f32 %v1780, %v1698
        %v1811 = vadd.f32 %v1781, %v1701
        %v1812 = vadd.f32 %v1782, %v1706
        %v1813 = vadd.f32 %v1783, %v1709
        %v1814 = vadd.f32 %v1784, %v1714
        %v1815 = vadd.f32 %v1785, %v1717
        %v1816 = vadd.f32 %v1786, %v1722
        %v1817 = vadd.f32 %v1787, %v1725
        %v1818 = vadd.f32 %v1788, %v1730
        %v1819 = vadd.f32 %v1789, %v1733
        %v1820 = vadd.f32 %v1790, %v1738
        %v1821 = vadd.f32 %v1791, %v1741
        %v1822 = vadd.f32 %v1792, %v1746
        %v1823 = vadd.f32 %v1793, %v1749
        %v1824 = vadd.f32 %v1794, %v1754
        %v1825 = vadd.f32 %v1795, %v1757
        %v1826 = vadd.f32 %v1796, %v1762
        %v1827 = vadd.f32 %v1797, %v1765
        %1828 = vst [vmem:[#allocation2 + $0x10] sm:$0xff] %v1798
        %1829 = vst [vmem:[#allocation2 + $0x18] sm:$0xff] %v1799
        %1830 = vst [vmem:[#allocation2 + $0x20] sm:$0xff] %v1800
        %1831 = vst [vmem:[#allocation2 + $0x28] sm:$0xff] %v1801
        %1832 = vst [vmem:[#allocation2 + $0x30] sm:$0xff] %v1802
        %1833 = vst [vmem:[#allocation2 + $0x38] sm:$0xff] %v1803
        %1834 = vst [vmem:[#allocation2 + $0x40] sm:$0xff] %v1804
        %1835 = vst [vmem:[#allocation2 + $0x48] sm:$0xff] %v1805
        %1836 = vst [vmem:[#allocation2 + $0x50] sm:$0xff] %v1806
        %1837 = vst [vmem:[#allocation2 + $0x58] sm:$0xff] %v1807
        %1838 = vst [vmem:[#allocation2 + $0x60] sm:$0xff] %v1808
        %1839 = vst [vmem:[#allocation2 + $0x68] sm:$0xff] %v1809
        %1840 = vst [vmem:[#allocation2 + $0x70] sm:$0xff] %v1810
        %1841 = vst [vmem:[#allocation2 + $0x78] sm:$0xff] %v1811
        %1842 = vst [vmem:[#allocation2 + $0x80] sm:$0xff] %v1812
        %1843 = vst [vmem:[#allocation2 + $0x88] sm:$0xff] %v1813
        %1844 = vst [vmem:[#allocation2 + $0x90] sm:$0xff] %v1814
        %1845 = vst [vmem:[#allocation2 + $0x98] sm:$0xff] %v1815
        %1846 = vst [vmem:[#allocation2 + $0xa0] sm:$0xff] %v1816
        %1847 = vst [vmem:[#allocation2 + $0xa8] sm:$0xff] %v1817
        %1848 = vst [vmem:[#allocation2 + $0xb0] sm:$0xff] %v1818
        %1849 = vst [vmem:[#allocation2 + $0xb8] sm:$0xff] %v1819
        %1850 = vst [vmem:[#allocation2 + $0xc0] sm:$0xff] %v1820
        %1851 = vst [vmem:[#allocation2 + $0xc8] sm:$0xff] %v1821
        %1852 = vst [vmem:[#allocation2 + $0xd0] sm:$0xff] %v1822
        %1853 = vst [vmem:[#allocation2 + $0xd8] sm:$0xff] %v1823
        %1854 = vst [vmem:[#allocation2 + $0xe0] sm:$0xff] %v1824
        %1855 = vst [vmem:[#allocation2 + $0xe8] sm:$0xff] %v1825
        %1856 = vst [vmem:[#allocation2 + $0xf0] sm:$0xff] %v1826
        %1857 = vst [vmem:[#allocation2 + $0xf8] sm:$0xff] %v1827
        %s1858 = scalar_lea.vmem [#allocation6], 256
        %v1859 = vld [vmem:[%s1858] sm:$0xf]
        %v1860 = vld [vmem:[%s1858 + $0x4] sm:$0xf]
        %v1861 = vld [vmem:[%s1858 + $0x8] sm:$0xf]
        %v1862 = vld [vmem:[%s1858 + $0xc] sm:$0xf]
        %v1863 = vld [vmem:[%s1858 + $0x10] sm:$0xf]
        %v1864 = vld [vmem:[%s1858 + $0x14] sm:$0xf]
        %v1865 = vld [vmem:[%s1858 + $0x18] sm:$0xf]
        %v1866 = vld [vmem:[%s1858 + $0x1c] sm:$0xf]
        %v1867 = vld [vmem:[%s1858 + $0x20] sm:$0xf]
        %v1868 = vld [vmem:[%s1858 + $0x24] sm:$0xf]
        %v1869 = vld [vmem:[%s1858 + $0x28] sm:$0xf]
        %v1870 = vld [vmem:[%s1858 + $0x2c] sm:$0xf]
        %v1871 = vld [vmem:[%s1858 + $0x30] sm:$0xf]
        %v1872 = vld [vmem:[%s1858 + $0x34] sm:$0xf]
        %v1873 = vld [vmem:[%s1858 + $0x38] sm:$0xf]
        %v1874 = vld [vmem:[%s1858 + $0x3c] sm:$0xf]
        %v1892 = vunpack.c.l.b16 %v1859
        %v1893 = vunpack.c.l.b16 %v1860
        %v1894 = vunpack.c.l.b16 %v1861
        %v1895 = vunpack.c.l.b16 %v1862
        %v1896 = vunpack.c.l.b16 %v1863
        %v1897 = vunpack.c.l.b16 %v1864
        %v1898 = vunpack.c.l.b16 %v1865
        %v1899 = vunpack.c.l.b16 %v1866
        %v1900 = vunpack.c.l.b16 %v1867
        %v1901 = vunpack.c.l.b16 %v1868
        %v1902 = vunpack.c.l.b16 %v1869
        %v1903 = vunpack.c.l.b16 %v1870
        %v1904 = vunpack.c.l.b16 %v1871
        %v1905 = vunpack.c.l.b16 %v1872
        %v1906 = vunpack.c.l.b16 %v1873
        %v1907 = vunpack.c.l.b16 %v1874
        %v1908 = vpack.c.b16 %v1893, %v1892
        %v1909 = vpack.c.b16 %v1895, %v1894
        %v1910 = vpack.c.b16 %v1897, %v1896
        %v1911 = vpack.c.b16 %v1899, %v1898
        %v1912 = vpack.c.b16 %v1901, %v1900
        %v1913 = vpack.c.b16 %v1903, %v1902
        %v1914 = vpack.c.b16 %v1905, %v1904
        %v1915 = vpack.c.b16 %v1907, %v1906
        %1924 = vmatprep.subr.bf16.mxu0 0
        %1925 = vmatpush1.bf16.msra.mxu0 %v1908
        %1926 = vmatprep.subr.bf16.mxu0 0
        %1927 = vmatpush1.bf16.msra.mxu0 %v1909
        %1928 = vmatprep.subr.bf16.mxu0 0
        %1929 = vmatpush1.bf16.msra.mxu0 %v1910
        %1930 = vmatprep.subr.bf16.mxu0 0
        %1931 = vmatpush1.bf16.msra.mxu0 %v1911
        %1932 = vmatprep.subr.bf16.mxu0 0
        %1933 = vmatpush1.bf16.msra.mxu0 %v1912
        %1934 = vmatprep.subr.bf16.mxu0 0
        %1935 = vmatpush1.bf16.msra.mxu0 %v1913
        %1936 = vmatprep.subr.bf16.mxu0 0
        %1937 = vmatpush1.bf16.msra.mxu0 %v1914
        %1938 = vmatprep.subr.bf16.mxu0 0
        %1939 = vmatpush1.bf16.msra.mxu0 %v1915
        %1940 = vmatprep.subr.bf16.mxu0 0
        %1941 = vmatpush1.bf16.msra.mxu0 0
        %1942 = vmatprep.subr.bf16.mxu0 0
        %1943 = vmatpush1.bf16.msra.mxu0 0
        %1944 = vmatprep.subr.bf16.mxu0 0
        %1945 = vmatpush1.bf16.msra.mxu0 0
        %1946 = vmatprep.subr.bf16.mxu0 0
        %1947 = vmatpush1.bf16.msra.mxu0 0
        %1948 = vmatprep.subr.bf16.mxu0 0
        %1949 = vmatpush1.bf16.msra.mxu0 0
        %1950 = vmatprep.subr.bf16.mxu0 0
        %1951 = vmatpush1.bf16.msra.mxu0 0
        %1952 = vmatprep.subr.bf16.mxu0 0
        %1953 = vmatpush1.bf16.msra.mxu0 0
        %1954 = vmatprep.subr.bf16.mxu0 0
        %1955 = vmatpush1.bf16.msra.mxu0 0
        %1956 = vmatprep.mubr.bf16.mxu0 0
        %1957 = vmatmul.mubr.bf16.gmra.mrb[0].mxu0 %v435
        %v1958 = vpop.f32.mrb[0].mxu0
        %v1959 = vadd.f32 0.0, %v1958
        %v1960 = vpop.f32.mrb[0].mxu0
        %v1961 = vpop.f32.mrb[0].mxu0
        %v1962 = vadd.f32 0.0, %v1961
        %v1963 = vpop.f32.mrb[0].mxu0
        %1964 = vmatprep.mubr.bf16.mxu0 0
        %1965 = vmatmul.mubr.bf16.gmra.mrb[0].mxu0 %v436
        %v1966 = vpop.f32.mrb[0].mxu0
        %v1967 = vadd.f32 0.0, %v1966
        %v1968 = vpop.f32.mrb[0].mxu0
        %v1969 = vpop.f32.mrb[0].mxu0
        %v1970 = vadd.f32 0.0, %v1969
        %v1971 = vpop.f32.mrb[0].mxu0
        %1972 = vmatprep.mubr.bf16.mxu0 0
        %1973 = vmatmul.mubr.bf16.gmra.mrb[0].mxu0 %v437
        %v1974 = vpop.f32.mrb[0].mxu0
        %v1975 = vadd.f32 0.0, %v1974
        %v1976 = vpop.f32.mrb[0].mxu0
        %v1977 = vpop.f32.mrb[0].mxu0
        %v1978 = vadd.f32 0.0, %v1977
        %v1979 = vpop.f32.mrb[0].mxu0
        %1980 = vmatprep.mubr.bf16.mxu0 0
        %1981 = vmatmul.mubr.bf16.gmra.mrb[0].mxu0 %v438
        %v1982 = vpop.f32.mrb[0].mxu0
        %v1983 = vadd.f32 0.0, %v1982
        %v1984 = vpop.f32.mrb[0].mxu0
        %v1985 = vpop.f32.mrb[0].mxu0
        %v1986 = vadd.f32 0.0, %v1985
        %v1987 = vpop.f32.mrb[0].mxu0
        %1988 = vmatprep.mubr.bf16.mxu0 0
        %1989 = vmatmul.mubr.bf16.gmra.mrb[0].mxu0 %v439
        %v1990 = vpop.f32.mrb[0].mxu0
        %v1991 = vadd.f32 0.0, %v1990
        %v1992 = vpop.f32.mrb[0].mxu0
        %v1993 = vpop.f32.mrb[0].mxu0
        %v1994 = vadd.f32 0.0, %v1993
        %v1995 = vpop.f32.mrb[0].mxu0
        %1996 = vmatprep.mubr.bf16.mxu0 0
        %1997 = vmatmul.mubr.bf16.gmra.mrb[0].mxu0 %v440
        %v1998 = vpop.f32.mrb[0].mxu0
        %v1999 = vadd.f32 0.0, %v1998
        %v2000 = vpop.f32.mrb[0].mxu0
        %v2001 = vpop.f32.mrb[0].mxu0
        %v2002 = vadd.f32 0.0, %v2001
        %v2003 = vpop.f32.mrb[0].mxu0
        %2004 = vmatprep.mubr.bf16.mxu0 0
        %2005 = vmatmul.mubr.bf16.gmra.mrb[0].mxu0 %v441
        %v2006 = vpop.f32.mrb[0].mxu0
        %v2007 = vadd.f32 0.0, %v2006
        %v2008 = vpop.f32.mrb[0].mxu0
        %v2009 = vpop.f32.mrb[0].mxu0
        %v2010 = vadd.f32 0.0, %v2009
        %v2011 = vpop.f32.mrb[0].mxu0
        %2012 = vmatprep.mubr.bf16.mxu0 0
        %2013 = vmatmul.mubr.bf16.gmra.mrb[0].mxu0 %v442
        %v2014 = vpop.f32.mrb[0].mxu0
        %v2015 = vadd.f32 0.0, %v2014
        %v2016 = vpop.f32.mrb[0].mxu0
        %v2017 = vpop.f32.mrb[0].mxu0
        %v2018 = vadd.f32 0.0, %v2017
        %v2019 = vpop.f32.mrb[0].mxu0
        %2020 = vmatprep.mubr.bf16.mxu0 0
        %2021 = vmatmul.mubr.bf16.gmra.mrb[0].mxu0 %v443
        %v2022 = vpop.f32.mrb[0].mxu0
        %v2023 = vadd.f32 0.0, %v2022
        %v2024 = vpop.f32.mrb[0].mxu0
        %v2025 = vpop.f32.mrb[0].mxu0
        %v2026 = vadd.f32 0.0, %v2025
        %v2027 = vpop.f32.mrb[0].mxu0
        %2028 = vmatprep.mubr.bf16.mxu0 0
        %2029 = vmatmul.mubr.bf16.gmra.mrb[0].mxu0 %v444
        %v2030 = vpop.f32.mrb[0].mxu0
        %v2031 = vadd.f32 0.0, %v2030
        %v2032 = vpop.f32.mrb[0].mxu0
        %v2033 = vpop.f32.mrb[0].mxu0
        %v2034 = vadd.f32 0.0, %v2033
        %v2035 = vpop.f32.mrb[0].mxu0
        %2036 = vmatprep.mubr.bf16.mxu0 0
        %2037 = vmatmul.mubr.bf16.gmra.mrb[0].mxu0 %v445
        %v2038 = vpop.f32.mrb[0].mxu0
        %v2039 = vadd.f32 0.0, %v2038
        %v2040 = vpop.f32.mrb[0].mxu0
        %v2041 = vpop.f32.mrb[0].mxu0
        %v2042 = vadd.f32 0.0, %v2041
        %v2043 = vpop.f32.mrb[0].mxu0
        %2044 = vmatprep.mubr.bf16.mxu0 0
        %2045 = vmatmul.mubr.bf16.gmra.mrb[0].mxu0 %v446
        %v2046 = vpop.f32.mrb[0].mxu0
        %v2047 = vadd.f32 0.0, %v2046
        %v2048 = vpop.f32.mrb[0].mxu0
        %v2049 = vpop.f32.mrb[0].mxu0
        %v2050 = vadd.f32 0.0, %v2049
        %v2051 = vpop.f32.mrb[0].mxu0
        %2052 = vmatprep.mubr.bf16.mxu0 0
        %2053 = vmatmul.mubr.bf16.gmra.mrb[0].mxu0 %v447
        %v2054 = vpop.f32.mrb[0].mxu0
        %v2055 = vadd.f32 0.0, %v2054
        %v2056 = vpop.f32.mrb[0].mxu0
        %v2057 = vpop.f32.mrb[0].mxu0
        %v2058 = vadd.f32 0.0, %v2057
        %v2059 = vpop.f32.mrb[0].mxu0
        %2060 = vmatprep.mubr.bf16.mxu0 0
        %2061 = vmatmul.mubr.bf16.gmra.mrb[0].mxu0 %v448
        %v2062 = vpop.f32.mrb[0].mxu0
        %v2063 = vadd.f32 0.0, %v2062
        %v2064 = vpop.f32.mrb[0].mxu0
        %v2065 = vpop.f32.mrb[0].mxu0
        %v2066 = vadd.f32 0.0, %v2065
        %v2067 = vpop.f32.mrb[0].mxu0
        %2068 = vmatprep.mubr.bf16.mxu0 0
        %2069 = vmatmul.mubr.bf16.gmra.mrb[0].mxu0 %v449
        %v2070 = vpop.f32.mrb[0].mxu0
        %v2071 = vadd.f32 0.0, %v2070
        %v2072 = vpop.f32.mrb[0].mxu0
        %v2073 = vpop.f32.mrb[0].mxu0
        %v2074 = vadd.f32 0.0, %v2073
        %v2075 = vpop.f32.mrb[0].mxu0
        %2076 = vmatprep.mubr.bf16.mxu0 0
        %2077 = vmatmul.mubr.bf16.gmra.mrb[0].mxu0 %v450
        %v2078 = vpop.f32.mrb[0].mxu0
        %v2079 = vadd.f32 0.0, %v2078
        %v2080 = vpop.f32.mrb[0].mxu0
        %v2081 = vpop.f32.mrb[0].mxu0
        %v2082 = vadd.f32 0.0, %v2081
        %v2083 = vpop.f32.mrb[0].mxu0
        %2084 = vdwg.mxu0
        %v2085 = vld [vmem:[#allocation2] sm:$0xff]
        %v2086 = vld [vmem:[#allocation2 + $0x8] sm:$0xff]
        %v2087 = vld [vmem:[#allocation2 + $0x10] sm:$0xff]
        %v2088 = vld [vmem:[#allocation2 + $0x18] sm:$0xff]
        %v2089 = vld [vmem:[#allocation2 + $0x20] sm:$0xff]
        %v2090 = vld [vmem:[#allocation2 + $0x28] sm:$0xff]
        %v2091 = vld [vmem:[#allocation2 + $0x30] sm:$0xff]
        %v2092 = vld [vmem:[#allocation2 + $0x38] sm:$0xff]
        %v2093 = vld [vmem:[#allocation2 + $0x40] sm:$0xff]
        %v2094 = vld [vmem:[#allocation2 + $0x48] sm:$0xff]
        %v2095 = vld [vmem:[#allocation2 + $0x50] sm:$0xff]
        %v2096 = vld [vmem:[#allocation2 + $0x58] sm:$0xff]
        %v2097 = vld [vmem:[#allocation2 + $0x60] sm:$0xff]
        %v2098 = vld [vmem:[#allocation2 + $0x68] sm:$0xff]
        %v2099 = vld [vmem:[#allocation2 + $0x70] sm:$0xff]
        %v2100 = vld [vmem:[#allocation2 + $0x78] sm:$0xff]
        %v2101 = vld [vmem:[#allocation2 + $0x80] sm:$0xff]
        %v2102 = vld [vmem:[#allocation2 + $0x88] sm:$0xff]
        %v2103 = vld [vmem:[#allocation2 + $0x90] sm:$0xff]
        %v2104 = vld [vmem:[#allocation2 + $0x98] sm:$0xff]
        %v2105 = vld [vmem:[#allocation2 + $0xa0] sm:$0xff]
        %v2106 = vld [vmem:[#allocation2 + $0xa8] sm:$0xff]
        %v2107 = vld [vmem:[#allocation2 + $0xb0] sm:$0xff]
        %v2108 = vld [vmem:[#allocation2 + $0xb8] sm:$0xff]
        %v2109 = vld [vmem:[#allocation2 + $0xc0] sm:$0xff]
        %v2110 = vld [vmem:[#allocation2 + $0xc8] sm:$0xff]
        %v2111 = vld [vmem:[#allocation2 + $0xd0] sm:$0xff]
        %v2112 = vld [vmem:[#allocation2 + $0xd8] sm:$0xff]
        %v2113 = vld [vmem:[#allocation2 + $0xe0] sm:$0xff]
        %v2114 = vld [vmem:[#allocation2 + $0xe8] sm:$0xff]
        %v2115 = vld [vmem:[#allocation2 + $0xf0] sm:$0xff]
        %v2116 = vld [vmem:[#allocation2 + $0xf8] sm:$0xff]
        %v2117 = vadd.f32 %v2085, %v1959
        %v2118 = vadd.f32 %v2086, %v1962
        %v2119 = vadd.f32 %v2087, %v1967
        %v2120 = vadd.f32 %v2088, %v1970
        %v2121 = vadd.f32 %v2089, %v1975
        %v2122 = vadd.f32 %v2090, %v1978
        %v2123 = vadd.f32 %v2091, %v1983
        %v2124 = vadd.f32 %v2092, %v1986
        %v2125 = vadd.f32 %v2093, %v1991
        %v2126 = vadd.f32 %v2094, %v1994
        %v2127 = vadd.f32 %v2095, %v1999
        %v2128 = vadd.f32 %v2096, %v2002
        %v2129 = vadd.f32 %v2097, %v2007
        %v2130 = vadd.f32 %v2098, %v2010
        %v2131 = vadd.f32 %v2099, %v2015
        %v2132 = vadd.f32 %v2100, %v2018
        %v2133 = vadd.f32 %v2101, %v2023
        %v2134 = vadd.f32 %v2102, %v2026
        %v2135 = vadd.f32 %v2103, %v2031
        %v2136 = vadd.f32 %v2104, %v2034
        %v2137 = vadd.f32 %v2105, %v2039
        %v2138 = vadd.f32 %v2106, %v2042
        %v2139 = vadd.f32 %v2107, %v2047
        %v2140 = vadd.f32 %v2108, %v2050
        %v2141 = vadd.f32 %v2109, %v2055
        %v2142 = vadd.f32 %v2110, %v2058
        %v2143 = vadd.f32 %v2111, %v2063
        %v2144 = vadd.f32 %v2112, %v2066
        %v2145 = vadd.f32 %v2113, %v2071
        %v2146 = vadd.f32 %v2114, %v2074
        %v2147 = vadd.f32 %v2115, %v2079
        %v2148 = vadd.f32 %v2116, %v2082
        %2149 = vst [vmem:[#allocation2] sm:$0xff] %v2117
        %2150 = vst [vmem:[#allocation2 + $0x8] sm:$0xff] %v2118
        %2151 = vst [vmem:[#allocation2 + $0x10] sm:$0xff] %v2119
        %2152 = vst [vmem:[#allocation2 + $0x18] sm:$0xff] %v2120
        %2153 = vst [vmem:[#allocation2 + $0x20] sm:$0xff] %v2121
        %2154 = vst [vmem:[#allocation2 + $0x28] sm:$0xff] %v2122
        %2155 = vst [vmem:[#allocation2 + $0x30] sm:$0xff] %v2123
        %2156 = vst [vmem:[#allocation2 + $0x38] sm:$0xff] %v2124
        %2157 = vst [vmem:[#allocation2 + $0x40] sm:$0xff] %v2125
        %2158 = vst [vmem:[#allocation2 + $0x48] sm:$0xff] %v2126
        %2159 = vst [vmem:[#allocation2 + $0x50] sm:$0xff] %v2127
        %2160 = vst [vmem:[#allocation2 + $0x58] sm:$0xff] %v2128
        %2161 = vst [vmem:[#allocation2 + $0x60] sm:$0xff] %v2129
        %2162 = vst [vmem:[#allocation2 + $0x68] sm:$0xff] %v2130
        %2163 = vst [vmem:[#allocation2 + $0x70] sm:$0xff] %v2131
        %2164 = vst [vmem:[#allocation2 + $0x78] sm:$0xff] %v2132
        %2165 = vst [vmem:[#allocation2 + $0x80] sm:$0xff] %v2133
        %2166 = vst [vmem:[#allocation2 + $0x88] sm:$0xff] %v2134
        %2167 = vst [vmem:[#allocation2 + $0x90] sm:$0xff] %v2135
        %2168 = vst [vmem:[#allocation2 + $0x98] sm:$0xff] %v2136
        %2169 = vst [vmem:[#allocation2 + $0xa0] sm:$0xff] %v2137
        %2170 = vst [vmem:[#allocation2 + $0xa8] sm:$0xff] %v2138
        %2171 = vst [vmem:[#allocation2 + $0xb0] sm:$0xff] %v2139
        %2172 = vst [vmem:[#allocation2 + $0xb8] sm:$0xff] %v2140
        %2173 = vst [vmem:[#allocation2 + $0xc0] sm:$0xff] %v2141
        %2174 = vst [vmem:[#allocation2 + $0xc8] sm:$0xff] %v2142
        %2175 = vst [vmem:[#allocation2 + $0xd0] sm:$0xff] %v2143
        %2176 = vst [vmem:[#allocation2 + $0xd8] sm:$0xff] %v2144
        %2177 = vst [vmem:[#allocation2 + $0xe0] sm:$0xff] %v2145
        %2178 = vst [vmem:[#allocation2 + $0xe8] sm:$0xff] %v2146
        %2179 = vst [vmem:[#allocation2 + $0xf0] sm:$0xff] %v2147
        %2180 = vst [vmem:[#allocation2 + $0xf8] sm:$0xff] %v2148
        %s2181 = scalar_lea.vmem [#allocation6], 448
        %v2182 = vld [vmem:[%s2181] sm:$0xf]
        %v2183 = vld [vmem:[%s2181 + $0x4] sm:$0xf]
        %v2184 = vld [vmem:[%s2181 + $0x8] sm:$0xf]
        %v2185 = vld [vmem:[%s2181 + $0xc] sm:$0xf]
        %v2186 = vld [vmem:[%s2181 + $0x10] sm:$0xf]
        %v2187 = vld [vmem:[%s2181 + $0x14] sm:$0xf]
        %v2188 = vld [vmem:[%s2181 + $0x18] sm:$0xf]
        %v2189 = vld [vmem:[%s2181 + $0x1c] sm:$0xf]
        %v2190 = vld [vmem:[%s2181 + $0x20] sm:$0xf]
        %v2191 = vld [vmem:[%s2181 + $0x24] sm:$0xf]
        %v2192 = vld [vmem:[%s2181 + $0x28] sm:$0xf]
        %v2193 = vld [vmem:[%s2181 + $0x2c] sm:$0xf]
        %v2194 = vld [vmem:[%s2181 + $0x30] sm:$0xf]
        %v2195 = vld [vmem:[%s2181 + $0x34] sm:$0xf]
        %v2196 = vld [vmem:[%s2181 + $0x38] sm:$0xf]
        %v2197 = vld [vmem:[%s2181 + $0x3c] sm:$0xf]
        %v2214 = vunpack.c.l.b16 %v2182
        %v2215 = vunpack.c.l.b16 %v2183
        %v2216 = vunpack.c.l.b16 %v2184
        %v2217 = vunpack.c.l.b16 %v2185
        %v2218 = vunpack.c.l.b16 %v2186
        %v2219 = vunpack.c.l.b16 %v2187
        %v2220 = vunpack.c.l.b16 %v2188
        %v2221 = vunpack.c.l.b16 %v2189
        %v2222 = vunpack.c.l.b16 %v2190
        %v2223 = vunpack.c.l.b16 %v2191
        %v2224 = vunpack.c.l.b16 %v2192
        %v2225 = vunpack.c.l.b16 %v2193
        %v2226 = vunpack.c.l.b16 %v2194
        %v2227 = vunpack.c.l.b16 %v2195
        %v2228 = vunpack.c.l.b16 %v2196
        %v2229 = vunpack.c.l.b16 %v2197
        %v2230 = vpack.c.b16 %v2215, %v2214
        %v2231 = vpack.c.b16 %v2217, %v2216
        %v2232 = vpack.c.b16 %v2219, %v2218
        %v2233 = vpack.c.b16 %v2221, %v2220
        %v2234 = vpack.c.b16 %v2223, %v2222
        %v2235 = vpack.c.b16 %v2225, %v2224
        %v2236 = vpack.c.b16 %v2227, %v2226
        %v2237 = vpack.c.b16 %v2229, %v2228
        %2246 = vmatprep.subr.bf16.mxu0 0
        %2247 = vmatpush1.bf16.msra.mxu0 %v2230
        %2248 = vmatprep.subr.bf16.mxu0 0
        %2249 = vmatpush1.bf16.msra.mxu0 %v2231
        %2250 = vmatprep.subr.bf16.mxu0 0
        %2251 = vmatpush1.bf16.msra.mxu0 %v2232
        %2252 = vmatprep.subr.bf16.mxu0 0
        %2253 = vmatpush1.bf16.msra.mxu0 %v2233
        %2254 = vmatprep.subr.bf16.mxu0 0
        %2255 = vmatpush1.bf16.msra.mxu0 %v2234
        %2256 = vmatprep.subr.bf16.mxu0 0
        %2257 = vmatpush1.bf16.msra.mxu0 %v2235
        %2258 = vmatprep.subr.bf16.mxu0 0
        %2259 = vmatpush1.bf16.msra.mxu0 %v2236
        %2260 = vmatprep.subr.bf16.mxu0 0
        %2261 = vmatpush1.bf16.msra.mxu0 %v2237
        %2262 = vmatprep.subr.bf16.mxu0 0
        %2263 = vmatpush1.bf16.msra.mxu0 0
        %2264 = vmatprep.subr.bf16.mxu0 0
        %2265 = vmatpush1.bf16.msra.mxu0 0
        %2266 = vmatprep.subr.bf16.mxu0 0
        %2267 = vmatpush1.bf16.msra.mxu0 0
        %2268 = vmatprep.subr.bf16.mxu0 0
        %2269 = vmatpush1.bf16.msra.mxu0 0
        %2270 = vmatprep.subr.bf16.mxu0 0
        %2271 = vmatpush1.bf16.msra.mxu0 0
        %2272 = vmatprep.subr.bf16.mxu0 0
        %2273 = vmatpush1.bf16.msra.mxu0 0
        %2274 = vmatprep.subr.bf16.mxu0 0
        %2275 = vmatpush1.bf16.msra.mxu0 0
        %2276 = vmatprep.subr.bf16.mxu0 0
        %2277 = vmatpush1.bf16.msra.mxu0 0
        %2278 = vmatprep.mubr.bf16.mxu0 0
        %2279 = vmatmul.mubr.bf16.gmra.mrb[0].mxu0 %v436
        %v2280 = vpop.f32.mrb[0].mxu0
        %v2281 = vadd.f32 0.0, %v2280
        %v2282 = vpop.f32.mrb[0].mxu0
        %v2283 = vpop.f32.mrb[0].mxu0
        %v2284 = vadd.f32 0.0, %v2283
        %v2285 = vpop.f32.mrb[0].mxu0
        %2286 = vmatprep.mubr.bf16.mxu0 0
        %2287 = vmatmul.mubr.bf16.gmra.mrb[0].mxu0 %v437
        %v2288 = vpop.f32.mrb[0].mxu0
        %v2289 = vadd.f32 0.0, %v2288
        %v2290 = vpop.f32.mrb[0].mxu0
        %v2291 = vpop.f32.mrb[0].mxu0
        %v2292 = vadd.f32 0.0, %v2291
        %v2293 = vpop.f32.mrb[0].mxu0
        %2294 = vmatprep.mubr.bf16.mxu0 0
        %2295 = vmatmul.mubr.bf16.gmra.mrb[0].mxu0 %v438
        %v2296 = vpop.f32.mrb[0].mxu0
        %v2297 = vadd.f32 0.0, %v2296
        %v2298 = vpop.f32.mrb[0].mxu0
        %v2299 = vpop.f32.mrb[0].mxu0
        %v2300 = vadd.f32 0.0, %v2299
        %v2301 = vpop.f32.mrb[0].mxu0
        %2302 = vmatprep.mubr.bf16.mxu0 0
        %2303 = vmatmul.mubr.bf16.gmra.mrb[0].mxu0 %v439
        %v2304 = vpop.f32.mrb[0].mxu0
        %v2305 = vadd.f32 0.0, %v2304
        %v2306 = vpop.f32.mrb[0].mxu0
        %v2307 = vpop.f32.mrb[0].mxu0
        %v2308 = vadd.f32 0.0, %v2307
        %v2309 = vpop.f32.mrb[0].mxu0
        %2310 = vmatprep.mubr.bf16.mxu0 0
        %2311 = vmatmul.mubr.bf16.gmra.mrb[0].mxu0 %v440
        %v2312 = vpop.f32.mrb[0].mxu0
        %v2313 = vadd.f32 0.0, %v2312
        %v2314 = vpop.f32.mrb[0].mxu0
        %v2315 = vpop.f32.mrb[0].mxu0
        %v2316 = vadd.f32 0.0, %v2315
        %v2317 = vpop.f32.mrb[0].mxu0
        %2318 = vmatprep.mubr.bf16.mxu0 0
        %2319 = vmatmul.mubr.bf16.gmra.mrb[0].mxu0 %v441
        %v2320 = vpop.f32.mrb[0].mxu0
        %v2321 = vadd.f32 0.0, %v2320
        %v2322 = vpop.f32.mrb[0].mxu0
        %v2323 = vpop.f32.mrb[0].mxu0
        %v2324 = vadd.f32 0.0, %v2323
        %v2325 = vpop.f32.mrb[0].mxu0
        %2326 = vmatprep.mubr.bf16.mxu0 0
        %2327 = vmatmul.mubr.bf16.gmra.mrb[0].mxu0 %v442
        %v2328 = vpop.f32.mrb[0].mxu0
        %v2329 = vadd.f32 0.0, %v2328
        %v2330 = vpop.f32.mrb[0].mxu0
        %v2331 = vpop.f32.mrb[0].mxu0
        %v2332 = vadd.f32 0.0, %v2331
        %v2333 = vpop.f32.mrb[0].mxu0
        %2334 = vmatprep.mubr.bf16.mxu0 0
        %2335 = vmatmul.mubr.bf16.gmra.mrb[0].mxu0 %v443
        %v2336 = vpop.f32.mrb[0].mxu0
        %v2337 = vadd.f32 0.0, %v2336
        %v2338 = vpop.f32.mrb[0].mxu0
        %v2339 = vpop.f32.mrb[0].mxu0
        %v2340 = vadd.f32 0.0, %v2339
        %v2341 = vpop.f32.mrb[0].mxu0
        %2342 = vmatprep.mubr.bf16.mxu0 0
        %2343 = vmatmul.mubr.bf16.gmra.mrb[0].mxu0 %v444
        %v2344 = vpop.f32.mrb[0].mxu0
        %v2345 = vadd.f32 0.0, %v2344
        %v2346 = vpop.f32.mrb[0].mxu0
        %v2347 = vpop.f32.mrb[0].mxu0
        %v2348 = vadd.f32 0.0, %v2347
        %v2349 = vpop.f32.mrb[0].mxu0
        %2350 = vmatprep.mubr.bf16.mxu0 0
        %2351 = vmatmul.mubr.bf16.gmra.mrb[0].mxu0 %v445
        %v2352 = vpop.f32.mrb[0].mxu0
        %v2353 = vadd.f32 0.0, %v2352
        %v2354 = vpop.f32.mrb[0].mxu0
        %v2355 = vpop.f32.mrb[0].mxu0
        %v2356 = vadd.f32 0.0, %v2355
        %v2357 = vpop.f32.mrb[0].mxu0
        %2358 = vmatprep.mubr.bf16.mxu0 0
        %2359 = vmatmul.mubr.bf16.gmra.mrb[0].mxu0 %v446
        %v2360 = vpop.f32.mrb[0].mxu0
        %v2361 = vadd.f32 0.0, %v2360
        %v2362 = vpop.f32.mrb[0].mxu0
        %v2363 = vpop.f32.mrb[0].mxu0
        %v2364 = vadd.f32 0.0, %v2363
        %v2365 = vpop.f32.mrb[0].mxu0
        %2366 = vmatprep.mubr.bf16.mxu0 0
        %2367 = vmatmul.mubr.bf16.gmra.mrb[0].mxu0 %v447
        %v2368 = vpop.f32.mrb[0].mxu0
        %v2369 = vadd.f32 0.0, %v2368
        %v2370 = vpop.f32.mrb[0].mxu0
        %v2371 = vpop.f32.mrb[0].mxu0
        %v2372 = vadd.f32 0.0, %v2371
        %v2373 = vpop.f32.mrb[0].mxu0
        %2374 = vmatprep.mubr.bf16.mxu0 0
        %2375 = vmatmul.mubr.bf16.gmra.mrb[0].mxu0 %v448
        %v2376 = vpop.f32.mrb[0].mxu0
        %v2377 = vadd.f32 0.0, %v2376
        %v2378 = vpop.f32.mrb[0].mxu0
        %v2379 = vpop.f32.mrb[0].mxu0
        %v2380 = vadd.f32 0.0, %v2379
        %v2381 = vpop.f32.mrb[0].mxu0
        %2382 = vmatprep.mubr.bf16.mxu0 0
        %2383 = vmatmul.mubr.bf16.gmra.mrb[0].mxu0 %v449
        %v2384 = vpop.f32.mrb[0].mxu0
        %v2385 = vadd.f32 0.0, %v2384
        %v2386 = vpop.f32.mrb[0].mxu0
        %v2387 = vpop.f32.mrb[0].mxu0
        %v2388 = vadd.f32 0.0, %v2387
        %v2389 = vpop.f32.mrb[0].mxu0
        %2390 = vmatprep.mubr.bf16.mxu0 0
        %2391 = vmatmul.mubr.bf16.gmra.mrb[0].mxu0 %v450
        %v2392 = vpop.f32.mrb[0].mxu0
        %v2393 = vadd.f32 0.0, %v2392
        %v2394 = vpop.f32.mrb[0].mxu0
        %v2395 = vpop.f32.mrb[0].mxu0
        %v2396 = vadd.f32 0.0, %v2395
        %v2397 = vpop.f32.mrb[0].mxu0
        %2398 = vdwg.mxu0
        %v2399 = vld [vmem:[#allocation2] sm:$0xff]
        %v2400 = vld [vmem:[#allocation2 + $0x8] sm:$0xff]
        %v2401 = vld [vmem:[#allocation2 + $0x10] sm:$0xff]
        %v2402 = vld [vmem:[#allocation2 + $0x18] sm:$0xff]
        %v2403 = vld [vmem:[#allocation2 + $0x20] sm:$0xff]
        %v2404 = vld [vmem:[#allocation2 + $0x28] sm:$0xff]
        %v2405 = vld [vmem:[#allocation2 + $0x30] sm:$0xff]
        %v2406 = vld [vmem:[#allocation2 + $0x38] sm:$0xff]
        %v2407 = vld [vmem:[#allocation2 + $0x40] sm:$0xff]
        %v2408 = vld [vmem:[#allocation2 + $0x48] sm:$0xff]
        %v2409 = vld [vmem:[#allocation2 + $0x50] sm:$0xff]
        %v2410 = vld [vmem:[#allocation2 + $0x58] sm:$0xff]
        %v2411 = vld [vmem:[#allocation2 + $0x60] sm:$0xff]
        %v2412 = vld [vmem:[#allocation2 + $0x68] sm:$0xff]
        %v2413 = vld [vmem:[#allocation2 + $0x70] sm:$0xff]
        %v2414 = vld [vmem:[#allocation2 + $0x78] sm:$0xff]
        %v2415 = vld [vmem:[#allocation2 + $0x80] sm:$0xff]
        %v2416 = vld [vmem:[#allocation2 + $0x88] sm:$0xff]
        %v2417 = vld [vmem:[#allocation2 + $0x90] sm:$0xff]
        %v2418 = vld [vmem:[#allocation2 + $0x98] sm:$0xff]
        %v2419 = vld [vmem:[#allocation2 + $0xa0] sm:$0xff]
        %v2420 = vld [vmem:[#allocation2 + $0xa8] sm:$0xff]
        %v2421 = vld [vmem:[#allocation2 + $0xb0] sm:$0xff]
        %v2422 = vld [vmem:[#allocation2 + $0xb8] sm:$0xff]
        %v2423 = vld [vmem:[#allocation2 + $0xc0] sm:$0xff]
        %v2424 = vld [vmem:[#allocation2 + $0xc8] sm:$0xff]
        %v2425 = vld [vmem:[#allocation2 + $0xd0] sm:$0xff]
        %v2426 = vld [vmem:[#allocation2 + $0xd8] sm:$0xff]
        %v2427 = vld [vmem:[#allocation2 + $0xe0] sm:$0xff]
        %v2428 = vld [vmem:[#allocation2 + $0xe8] sm:$0xff]
        %v2429 = vadd.f32 %v2399, %v2281
        %v2430 = vadd.f32 %v2400, %v2284
        %v2431 = vadd.f32 %v2401, %v2289
        %v2432 = vadd.f32 %v2402, %v2292
        %v2433 = vadd.f32 %v2403, %v2297
        %v2434 = vadd.f32 %v2404, %v2300
        %v2435 = vadd.f32 %v2405, %v2305
        %v2436 = vadd.f32 %v2406, %v2308
        %v2437 = vadd.f32 %v2407, %v2313
        %v2438 = vadd.f32 %v2408, %v2316
        %v2439 = vadd.f32 %v2409, %v2321
        %v2440 = vadd.f32 %v2410, %v2324
        %v2441 = vadd.f32 %v2411, %v2329
        %v2442 = vadd.f32 %v2412, %v2332
        %v2443 = vadd.f32 %v2413, %v2337
        %v2444 = vadd.f32 %v2414, %v2340
        %v2445 = vadd.f32 %v2415, %v2345
        %v2446 = vadd.f32 %v2416, %v2348
        %v2447 = vadd.f32 %v2417, %v2353
        %v2448 = vadd.f32 %v2418, %v2356
        %v2449 = vadd.f32 %v2419, %v2361
        %v2450 = vadd.f32 %v2420, %v2364
        %v2451 = vadd.f32 %v2421, %v2369
        %v2452 = vadd.f32 %v2422, %v2372
        %v2453 = vadd.f32 %v2423, %v2377
        %v2454 = vadd.f32 %v2424, %v2380
        %v2455 = vadd.f32 %v2425, %v2385
        %v2456 = vadd.f32 %v2426, %v2388
        %v2457 = vadd.f32 %v2427, %v2393
        %v2458 = vadd.f32 %v2428, %v2396
        %2459 = vst [vmem:[#allocation2] sm:$0xff] %v2429
        %2460 = vst [vmem:[#allocation2 + $0x8] sm:$0xff] %v2430
        %2461 = vst [vmem:[#allocation2 + $0x10] sm:$0xff] %v2431
        %2462 = vst [vmem:[#allocation2 + $0x18] sm:$0xff] %v2432
        %2463 = vst [vmem:[#allocation2 + $0x20] sm:$0xff] %v2433
        %2464 = vst [vmem:[#allocation2 + $0x28] sm:$0xff] %v2434
        %2465 = vst [vmem:[#allocation2 + $0x30] sm:$0xff] %v2435
        %2466 = vst [vmem:[#allocation2 + $0x38] sm:$0xff] %v2436
        %2467 = vst [vmem:[#allocation2 + $0x40] sm:$0xff] %v2437
        %2468 = vst [vmem:[#allocation2 + $0x48] sm:$0xff] %v2438
        %2469 = vst [vmem:[#allocation2 + $0x50] sm:$0xff] %v2439
        %2470 = vst [vmem:[#allocation2 + $0x58] sm:$0xff] %v2440
        %2471 = vst [vmem:[#allocation2 + $0x60] sm:$0xff] %v2441
        %2472 = vst [vmem:[#allocation2 + $0x68] sm:$0xff] %v2442
        %2473 = vst [vmem:[#allocation2 + $0x70] sm:$0xff] %v2443
        %2474 = vst [vmem:[#allocation2 + $0x78] sm:$0xff] %v2444
        %2475 = vst [vmem:[#allocation2 + $0x80] sm:$0xff] %v2445
        %2476 = vst [vmem:[#allocation2 + $0x88] sm:$0xff] %v2446
        %2477 = vst [vmem:[#allocation2 + $0x90] sm:$0xff] %v2447
        %2478 = vst [vmem:[#allocation2 + $0x98] sm:$0xff] %v2448
        %2479 = vst [vmem:[#allocation2 + $0xa0] sm:$0xff] %v2449
        %2480 = vst [vmem:[#allocation2 + $0xa8] sm:$0xff] %v2450
        %2481 = vst [vmem:[#allocation2 + $0xb0] sm:$0xff] %v2451
        %2482 = vst [vmem:[#allocation2 + $0xb8] sm:$0xff] %v2452
        %2483 = vst [vmem:[#allocation2 + $0xc0] sm:$0xff] %v2453
        %2484 = vst [vmem:[#allocation2 + $0xc8] sm:$0xff] %v2454
        %2485 = vst [vmem:[#allocation2 + $0xd0] sm:$0xff] %v2455
        %2486 = vst [vmem:[#allocation2 + $0xd8] sm:$0xff] %v2456
        %2487 = vst [vmem:[#allocation2 + $0xe0] sm:$0xff] %v2457
        %2488 = vst [vmem:[#allocation2 + $0xe8] sm:$0xff] %v2458
        %v2489 = vrot.slane %v455, 1
        %v2490 = vor.u32 %v452, %v2489
        %v2491 = vrot.slane %v462, 1
        %v2492 = vor.u32 %v459, %v2491
        %v2493 = vrot.slane %v469, 1
        %v2494 = vor.u32 %v466, %v2493
        %v2495 = vrot.slane %v476, 1
        %v2496 = vor.u32 %v473, %v2495
        %v2497 = vrot.slane %v483, 1
        %v2498 = vor.u32 %v480, %v2497
        %v2499 = vrot.slane %v490, 1
        %v2500 = vor.u32 %v487, %v2499
        %v2501 = vrot.slane %v497, 1
        %v2502 = vor.u32 %v494, %v2501
        %v2503 = vrot.slane %v504, 1
        %v2504 = vor.u32 %v501, %v2503
        %v2505 = vrot.slane %v511, 1
        %v2506 = vor.u32 %v508, %v2505
        %v2507 = vrot.slane %v518, 1
        %v2508 = vor.u32 %v515, %v2507
        %v2509 = vrot.slane %v525, 1
        %v2510 = vor.u32 %v522, %v2509
        %v2511 = vrot.slane %v532, 1
        %v2512 = vor.u32 %v529, %v2511
        %v2513 = vrot.slane %v539, 1
        %v2514 = vor.u32 %v536, %v2513
        %v2515 = vrot.slane %v546, 1
        %v2516 = vor.u32 %v543, %v2515
        %v2517 = vrot.slane %v553, 1
        %v2518 = vor.u32 %v550, %v2517
        %v2519 = vrot.slane %v560, 1
        %v2520 = vor.u32 %v557, %v2519
        %vm2537 = vcmask 1047552
        %vm2538 = vsmask.f32 7424
        %vm2539 = vmand %vm2537, %vm2538
        %v2540 = vsel %vm2539, %v2490, 0
        %v2541 = vsel %vm2539, %v2492, 0
        %v2542 = vsel %vm2539, %v2494, 0
        %v2543 = vsel %vm2539, %v2496, 0
        %v2544 = vsel %vm2539, %v2498, 0
        %v2545 = vsel %vm2539, %v2500, 0
        %v2546 = vsel %vm2539, %v2502, 0
        %v2547 = vsel %vm2539, %v2504, 0
        %v2548 = vsel %vm2539, %v2506, 0
        %v2549 = vsel %vm2539, %v2508, 0
        %v2550 = vsel %vm2539, %v2510, 0
        %v2551 = vsel %vm2539, %v2512, 0
        %v2552 = vsel %vm2539, %v2514, 0
        %v2553 = vsel %vm2539, %v2516, 0
        %v2554 = vsel %vm2539, %v2518, 0
        %v2555 = vsel %vm2539, %v2520, 0
        %s2556 = scalar_lea.vmem [#allocation6], 128
        %v2557 = vld [vmem:[%s2556] sm:$0xf]
        %v2558 = vld [vmem:[%s2556 + $0x4] sm:$0xf]
        %v2559 = vld [vmem:[%s2556 + $0x8] sm:$0xf]
        %v2560 = vld [vmem:[%s2556 + $0xc] sm:$0xf]
        %v2561 = vld [vmem:[%s2556 + $0x10] sm:$0xf]
        %v2562 = vld [vmem:[%s2556 + $0x14] sm:$0xf]
        %v2563 = vld [vmem:[%s2556 + $0x18] sm:$0xf]
        %v2564 = vld [vmem:[%s2556 + $0x1c] sm:$0xf]
        %v2565 = vld [vmem:[%s2556 + $0x20] sm:$0xf]
        %v2566 = vld [vmem:[%s2556 + $0x24] sm:$0xf]
        %v2567 = vld [vmem:[%s2556 + $0x28] sm:$0xf]
        %v2568 = vld [vmem:[%s2556 + $0x2c] sm:$0xf]
        %v2569 = vld [vmem:[%s2556 + $0x30] sm:$0xf]
        %v2570 = vld [vmem:[%s2556 + $0x34] sm:$0xf]
        %v2571 = vld [vmem:[%s2556 + $0x38] sm:$0xf]
        %v2572 = vld [vmem:[%s2556 + $0x3c] sm:$0xf]
        %v2589 = vunpack.c.l.b16 %v2557
        %v2590 = vunpack.c.l.b16 %v2558
        %v2591 = vunpack.c.l.b16 %v2559
        %v2592 = vunpack.c.l.b16 %v2560
        %v2593 = vunpack.c.l.b16 %v2561
        %v2594 = vunpack.c.l.b16 %v2562
        %v2595 = vunpack.c.l.b16 %v2563
        %v2596 = vunpack.c.l.b16 %v2564
        %v2597 = vunpack.c.l.b16 %v2565
        %v2598 = vunpack.c.l.b16 %v2566
        %v2599 = vunpack.c.l.b16 %v2567
        %v2600 = vunpack.c.l.b16 %v2568
        %v2601 = vunpack.c.l.b16 %v2569
        %v2602 = vunpack.c.l.b16 %v2570
        %v2603 = vunpack.c.l.b16 %v2571
        %v2604 = vunpack.c.l.b16 %v2572
        %v2605 = vpack.c.b16 %v2590, %v2589
        %v2606 = vpack.c.b16 %v2592, %v2591
        %v2607 = vpack.c.b16 %v2594, %v2593
        %v2608 = vpack.c.b16 %v2596, %v2595
        %v2609 = vpack.c.b16 %v2598, %v2597
        %v2610 = vpack.c.b16 %v2600, %v2599
        %v2611 = vpack.c.b16 %v2602, %v2601
        %v2612 = vpack.c.b16 %v2604, %v2603
        %2621 = vmatprep.subr.bf16.mxu0 0
        %2622 = vmatpush1.bf16.msra.mxu0 %v2605
        %2623 = vmatprep.subr.bf16.mxu0 0
        %2624 = vmatpush1.bf16.msra.mxu0 %v2606
        %2625 = vmatprep.subr.bf16.mxu0 0
        %2626 = vmatpush1.bf16.msra.mxu0 %v2607
        %2627 = vmatprep.subr.bf16.mxu0 0
        %2628 = vmatpush1.bf16.msra.mxu0 %v2608
        %2629 = vmatprep.subr.bf16.mxu0 0
        %2630 = vmatpush1.bf16.msra.mxu0 %v2609
        %2631 = vmatprep.subr.bf16.mxu0 0
        %2632 = vmatpush1.bf16.msra.mxu0 %v2610
        %2633 = vmatprep.subr.bf16.mxu0 0
        %2634 = vmatpush1.bf16.msra.mxu0 %v2611
        %2635 = vmatprep.subr.bf16.mxu0 0
        %2636 = vmatpush1.bf16.msra.mxu0 %v2612
        %2637 = vmatprep.subr.bf16.mxu0 0
        %2638 = vmatpush1.bf16.msra.mxu0 0
        %2639 = vmatprep.subr.bf16.mxu0 0
        %2640 = vmatpush1.bf16.msra.mxu0 0
        %2641 = vmatprep.subr.bf16.mxu0 0
        %2642 = vmatpush1.bf16.msra.mxu0 0
        %2643 = vmatprep.subr.bf16.mxu0 0
        %2644 = vmatpush1.bf16.msra.mxu0 0
        %2645 = vmatprep.subr.bf16.mxu0 0
        %2646 = vmatpush1.bf16.msra.mxu0 0
        %2647 = vmatprep.subr.bf16.mxu0 0
        %2648 = vmatpush1.bf16.msra.mxu0 0
        %2649 = vmatprep.subr.bf16.mxu0 0
        %2650 = vmatpush1.bf16.msra.mxu0 0
        %2651 = vmatprep.subr.bf16.mxu0 0
        %2652 = vmatpush1.bf16.msra.mxu0 0
        %2653 = vmatprep.mubr.bf16.mxu0 0
        %2654 = vmatmul.mubr.bf16.gmra.mrb[0].mxu0 %v2540
        %v2655 = vpop.f32.mrb[0].mxu0
        %v2656 = vadd.f32 0.0, %v2655
        %v2657 = vpop.f32.mrb[0].mxu0
        %v2658 = vpop.f32.mrb[0].mxu0
        %v2659 = vadd.f32 0.0, %v2658
        %v2660 = vpop.f32.mrb[0].mxu0
        %2661 = vmatprep.mubr.bf16.mxu0 0
        %2662 = vmatmul.mubr.bf16.gmra.mrb[0].mxu0 %v2541
        %v2663 = vpop.f32.mrb[0].mxu0
        %v2664 = vadd.f32 0.0, %v2663
        %v2665 = vpop.f32.mrb[0].mxu0
        %v2666 = vpop.f32.mrb[0].mxu0
        %v2667 = vadd.f32 0.0, %v2666
        %v2668 = vpop.f32.mrb[0].mxu0
        %2669 = vmatprep.mubr.bf16.mxu0 0
        %2670 = vmatmul.mubr.bf16.gmra.mrb[0].mxu0 %v2542
        %v2671 = vpop.f32.mrb[0].mxu0
        %v2672 = vadd.f32 0.0, %v2671
        %v2673 = vpop.f32.mrb[0].mxu0
        %v2674 = vpop.f32.mrb[0].mxu0
        %v2675 = vadd.f32 0.0, %v2674
        %v2676 = vpop.f32.mrb[0].mxu0
        %2677 = vmatprep.mubr.bf16.mxu0 0
        %2678 = vmatmul.mubr.bf16.gmra.mrb[0].mxu0 %v2543
        %v2679 = vpop.f32.mrb[0].mxu0
        %v2680 = vadd.f32 0.0, %v2679
        %v2681 = vpop.f32.mrb[0].mxu0
        %v2682 = vpop.f32.mrb[0].mxu0
        %v2683 = vadd.f32 0.0, %v2682
        %v2684 = vpop.f32.mrb[0].mxu0
        %2685 = vmatprep.mubr.bf16.mxu0 0
        %2686 = vmatmul.mubr.bf16.gmra.mrb[0].mxu0 %v2544
        %v2687 = vpop.f32.mrb[0].mxu0
        %v2688 = vadd.f32 0.0, %v2687
        %v2689 = vpop.f32.mrb[0].mxu0
        %v2690 = vpop.f32.mrb[0].mxu0
        %v2691 = vadd.f32 0.0, %v2690
        %v2692 = vpop.f32.mrb[0].mxu0
        %2693 = vmatprep.mubr.bf16.mxu0 0
        %2694 = vmatmul.mubr.bf16.gmra.mrb[0].mxu0 %v2545
        %v2695 = vpop.f32.mrb[0].mxu0
        %v2696 = vadd.f32 0.0, %v2695
        %v2697 = vpop.f32.mrb[0].mxu0
        %v2698 = vpop.f32.mrb[0].mxu0
        %v2699 = vadd.f32 0.0, %v2698
        %v2700 = vpop.f32.mrb[0].mxu0
        %2701 = vmatprep.mubr.bf16.mxu0 0
        %2702 = vmatmul.mubr.bf16.gmra.mrb[0].mxu0 %v2546
        %v2703 = vpop.f32.mrb[0].mxu0
        %v2704 = vadd.f32 0.0, %v2703
        %v2705 = vpop.f32.mrb[0].mxu0
        %v2706 = vpop.f32.mrb[0].mxu0
        %v2707 = vadd.f32 0.0, %v2706
        %v2708 = vpop.f32.mrb[0].mxu0
        %2709 = vmatprep.mubr.bf16.mxu0 0
        %2710 = vmatmul.mubr.bf16.gmra.mrb[0].mxu0 %v2547
        %v2711 = vpop.f32.mrb[0].mxu0
        %v2712 = vadd.f32 0.0, %v2711
        %v2713 = vpop.f32.mrb[0].mxu0
        %v2714 = vpop.f32.mrb[0].mxu0
        %v2715 = vadd.f32 0.0, %v2714
        %v2716 = vpop.f32.mrb[0].mxu0
        %2717 = vmatprep.mubr.bf16.mxu0 0
        %2718 = vmatmul.mubr.bf16.gmra.mrb[0].mxu0 %v2548
        %v2719 = vpop.f32.mrb[0].mxu0
        %v2720 = vadd.f32 0.0, %v2719
        %v2721 = vpop.f32.mrb[0].mxu0
        %v2722 = vpop.f32.mrb[0].mxu0
        %v2723 = vadd.f32 0.0, %v2722
        %v2724 = vpop.f32.mrb[0].mxu0
        %2725 = vmatprep.mubr.bf16.mxu0 0
        %2726 = vmatmul.mubr.bf16.gmra.mrb[0].mxu0 %v2549
        %v2727 = vpop.f32.mrb[0].mxu0
        %v2728 = vadd.f32 0.0, %v2727
        %v2729 = vpop.f32.mrb[0].mxu0
        %v2730 = vpop.f32.mrb[0].mxu0
        %v2731 = vadd.f32 0.0, %v2730
        %v2732 = vpop.f32.mrb[0].mxu0
        %2733 = vmatprep.mubr.bf16.mxu0 0
        %2734 = vmatmul.mubr.bf16.gmra.mrb[0].mxu0 %v2550
        %v2735 = vpop.f32.mrb[0].mxu0
        %v2736 = vadd.f32 0.0, %v2735
        %v2737 = vpop.f32.mrb[0].mxu0
        %v2738 = vpop.f32.mrb[0].mxu0
        %v2739 = vadd.f32 0.0, %v2738
        %v2740 = vpop.f32.mrb[0].mxu0
        %2741 = vmatprep.mubr.bf16.mxu0 0
        %2742 = vmatmul.mubr.bf16.gmra.mrb[0].mxu0 %v2551
        %v2743 = vpop.f32.mrb[0].mxu0
        %v2744 = vadd.f32 0.0, %v2743
        %v2745 = vpop.f32.mrb[0].mxu0
        %v2746 = vpop.f32.mrb[0].mxu0
        %v2747 = vadd.f32 0.0, %v2746
        %v2748 = vpop.f32.mrb[0].mxu0
        %2749 = vmatprep.mubr.bf16.mxu0 0
        %2750 = vmatmul.mubr.bf16.gmra.mrb[0].mxu0 %v2552
        %v2751 = vpop.f32.mrb[0].mxu0
        %v2752 = vadd.f32 0.0, %v2751
        %v2753 = vpop.f32.mrb[0].mxu0
        %v2754 = vpop.f32.mrb[0].mxu0
        %v2755 = vadd.f32 0.0, %v2754
        %v2756 = vpop.f32.mrb[0].mxu0
        %2757 = vmatprep.mubr.bf16.mxu0 0
        %2758 = vmatmul.mubr.bf16.gmra.mrb[0].mxu0 %v2553
        %v2759 = vpop.f32.mrb[0].mxu0
        %v2760 = vadd.f32 0.0, %v2759
        %v2761 = vpop.f32.mrb[0].mxu0
        %v2762 = vpop.f32.mrb[0].mxu0
        %v2763 = vadd.f32 0.0, %v2762
        %v2764 = vpop.f32.mrb[0].mxu0
        %2765 = vmatprep.mubr.bf16.mxu0 0
        %2766 = vmatmul.mubr.bf16.gmra.mrb[0].mxu0 %v2554
        %v2767 = vpop.f32.mrb[0].mxu0
        %v2768 = vadd.f32 0.0, %v2767
        %v2769 = vpop.f32.mrb[0].mxu0
        %v2770 = vpop.f32.mrb[0].mxu0
        %v2771 = vadd.f32 0.0, %v2770
        %v2772 = vpop.f32.mrb[0].mxu0
        %2773 = vdwg.mxu0
        %v2774 = vld [vmem:[#allocation2 + $0x10] sm:$0xff]
        %v2775 = vld [vmem:[#allocation2 + $0x18] sm:$0xff]
        %v2776 = vld [vmem:[#allocation2 + $0x20] sm:$0xff]
        %v2777 = vld [vmem:[#allocation2 + $0x28] sm:$0xff]
        %v2778 = vld [vmem:[#allocation2 + $0x30] sm:$0xff]
        %v2779 = vld [vmem:[#allocation2 + $0x38] sm:$0xff]
        %v2780 = vld [vmem:[#allocation2 + $0x40] sm:$0xff]
        %v2781 = vld [vmem:[#allocation2 + $0x48] sm:$0xff]
        %v2782 = vld [vmem:[#allocation2 + $0x50] sm:$0xff]
        %v2783 = vld [vmem:[#allocation2 + $0x58] sm:$0xff]
        %v2784 = vld [vmem:[#allocation2 + $0x60] sm:$0xff]
        %v2785 = vld [vmem:[#allocation2 + $0x68] sm:$0xff]
        %v2786 = vld [vmem:[#allocation2 + $0x70] sm:$0xff]
        %v2787 = vld [vmem:[#allocation2 + $0x78] sm:$0xff]
        %v2788 = vld [vmem:[#allocation2 + $0x80] sm:$0xff]
        %v2789 = vld [vmem:[#allocation2 + $0x88] sm:$0xff]
        %v2790 = vld [vmem:[#allocation2 + $0x90] sm:$0xff]
        %v2791 = vld [vmem:[#allocation2 + $0x98] sm:$0xff]
        %v2792 = vld [vmem:[#allocation2 + $0xa0] sm:$0xff]
        %v2793 = vld [vmem:[#allocation2 + $0xa8] sm:$0xff]
        %v2794 = vld [vmem:[#allocation2 + $0xb0] sm:$0xff]
        %v2795 = vld [vmem:[#allocation2 + $0xb8] sm:$0xff]
        %v2796 = vld [vmem:[#allocation2 + $0xc0] sm:$0xff]
        %v2797 = vld [vmem:[#allocation2 + $0xc8] sm:$0xff]
        %v2798 = vld [vmem:[#allocation2 + $0xd0] sm:$0xff]
        %v2799 = vld [vmem:[#allocation2 + $0xd8] sm:$0xff]
        %v2800 = vld [vmem:[#allocation2 + $0xe0] sm:$0xff]
        %v2801 = vld [vmem:[#allocation2 + $0xe8] sm:$0xff]
        %v2802 = vld [vmem:[#allocation2 + $0xf0] sm:$0xff]
        %v2803 = vld [vmem:[#allocation2 + $0xf8] sm:$0xff]
        %v2804 = vadd.f32 %v2774, %v2656
        %v2805 = vadd.f32 %v2775, %v2659
        %v2806 = vadd.f32 %v2776, %v2664
        %v2807 = vadd.f32 %v2777, %v2667
        %v2808 = vadd.f32 %v2778, %v2672
        %v2809 = vadd.f32 %v2779, %v2675
        %v2810 = vadd.f32 %v2780, %v2680
        %v2811 = vadd.f32 %v2781, %v2683
        %v2812 = vadd.f32 %v2782, %v2688
        %v2813 = vadd.f32 %v2783, %v2691
        %v2814 = vadd.f32 %v2784, %v2696
        %v2815 = vadd.f32 %v2785, %v2699
        %v2816 = vadd.f32 %v2786, %v2704
        %v2817 = vadd.f32 %v2787, %v2707
        %v2818 = vadd.f32 %v2788, %v2712
        %v2819 = vadd.f32 %v2789, %v2715
        %v2820 = vadd.f32 %v2790, %v2720
        %v2821 = vadd.f32 %v2791, %v2723
        %v2822 = vadd.f32 %v2792, %v2728
        %v2823 = vadd.f32 %v2793, %v2731
        %v2824 = vadd.f32 %v2794, %v2736
        %v2825 = vadd.f32 %v2795, %v2739
        %v2826 = vadd.f32 %v2796, %v2744
        %v2827 = vadd.f32 %v2797, %v2747
        %v2828 = vadd.f32 %v2798, %v2752
        %v2829 = vadd.f32 %v2799, %v2755
        %v2830 = vadd.f32 %v2800, %v2760
        %v2831 = vadd.f32 %v2801, %v2763
        %v2832 = vadd.f32 %v2802, %v2768
        %v2833 = vadd.f32 %v2803, %v2771
        %2834 = vst [vmem:[#allocation2 + $0x10] sm:$0xff] %v2804
        %2835 = vst [vmem:[#allocation2 + $0x18] sm:$0xff] %v2805
        %2836 = vst [vmem:[#allocation2 + $0x20] sm:$0xff] %v2806
        %2837 = vst [vmem:[#allocation2 + $0x28] sm:$0xff] %v2807
        %2838 = vst [vmem:[#allocation2 + $0x30] sm:$0xff] %v2808
        %2839 = vst [vmem:[#allocation2 + $0x38] sm:$0xff] %v2809
        %2840 = vst [vmem:[#allocation2 + $0x40] sm:$0xff] %v2810
        %2841 = vst [vmem:[#allocation2 + $0x48] sm:$0xff] %v2811
        %2842 = vst [vmem:[#allocation2 + $0x50] sm:$0xff] %v2812
        %2843 = vst [vmem:[#allocation2 + $0x58] sm:$0xff] %v2813
        %2844 = vst [vmem:[#allocation2 + $0x60] sm:$0xff] %v2814
        %2845 = vst [vmem:[#allocation2 + $0x68] sm:$0xff] %v2815
        %2846 = vst [vmem:[#allocation2 + $0x70] sm:$0xff] %v2816
        %2847 = vst [vmem:[#allocation2 + $0x78] sm:$0xff] %v2817
        %2848 = vst [vmem:[#allocation2 + $0x80] sm:$0xff] %v2818
        %2849 = vst [vmem:[#allocation2 + $0x88] sm:$0xff] %v2819
        %2850 = vst [vmem:[#allocation2 + $0x90] sm:$0xff] %v2820
        %2851 = vst [vmem:[#allocation2 + $0x98] sm:$0xff] %v2821
        %2852 = vst [vmem:[#allocation2 + $0xa0] sm:$0xff] %v2822
        %2853 = vst [vmem:[#allocation2 + $0xa8] sm:$0xff] %v2823
        %2854 = vst [vmem:[#allocation2 + $0xb0] sm:$0xff] %v2824
        %2855 = vst [vmem:[#allocation2 + $0xb8] sm:$0xff] %v2825
        %2856 = vst [vmem:[#allocation2 + $0xc0] sm:$0xff] %v2826
        %2857 = vst [vmem:[#allocation2 + $0xc8] sm:$0xff] %v2827
        %2858 = vst [vmem:[#allocation2 + $0xd0] sm:$0xff] %v2828
        %2859 = vst [vmem:[#allocation2 + $0xd8] sm:$0xff] %v2829
        %2860 = vst [vmem:[#allocation2 + $0xe0] sm:$0xff] %v2830
        %2861 = vst [vmem:[#allocation2 + $0xe8] sm:$0xff] %v2831
        %2862 = vst [vmem:[#allocation2 + $0xf0] sm:$0xff] %v2832
        %2863 = vst [vmem:[#allocation2 + $0xf8] sm:$0xff] %v2833
        %s2864 = scalar_lea.vmem [#allocation6], 320
        %v2865 = vld [vmem:[%s2864] sm:$0xf]
        %v2866 = vld [vmem:[%s2864 + $0x4] sm:$0xf]
        %v2867 = vld [vmem:[%s2864 + $0x8] sm:$0xf]
        %v2868 = vld [vmem:[%s2864 + $0xc] sm:$0xf]
        %v2869 = vld [vmem:[%s2864 + $0x10] sm:$0xf]
        %v2870 = vld [vmem:[%s2864 + $0x14] sm:$0xf]
        %v2871 = vld [vmem:[%s2864 + $0x18] sm:$0xf]
        %v2872 = vld [vmem:[%s2864 + $0x1c] sm:$0xf]
        %v2873 = vld [vmem:[%s2864 + $0x20] sm:$0xf]
        %v2874 = vld [vmem:[%s2864 + $0x24] sm:$0xf]
        %v2875 = vld [vmem:[%s2864 + $0x28] sm:$0xf]
        %v2876 = vld [vmem:[%s2864 + $0x2c] sm:$0xf]
        %v2877 = vld [vmem:[%s2864 + $0x30] sm:$0xf]
        %v2878 = vld [vmem:[%s2864 + $0x34] sm:$0xf]
        %v2879 = vld [vmem:[%s2864 + $0x38] sm:$0xf]
        %v2880 = vld [vmem:[%s2864 + $0x3c] sm:$0xf]
        %v2897 = vunpack.c.l.b16 %v2865
        %v2898 = vunpack.c.l.b16 %v2866
        %v2899 = vunpack.c.l.b16 %v2867
        %v2900 = vunpack.c.l.b16 %v2868
        %v2901 = vunpack.c.l.b16 %v2869
        %v2902 = vunpack.c.l.b16 %v2870
        %v2903 = vunpack.c.l.b16 %v2871
        %v2904 = vunpack.c.l.b16 %v2872
        %v2905 = vunpack.c.l.b16 %v2873
        %v2906 = vunpack.c.l.b16 %v2874
        %v2907 = vunpack.c.l.b16 %v2875
        %v2908 = vunpack.c.l.b16 %v2876
        %v2909 = vunpack.c.l.b16 %v2877
        %v2910 = vunpack.c.l.b16 %v2878
        %v2911 = vunpack.c.l.b16 %v2879
        %v2912 = vunpack.c.l.b16 %v2880
        %v2913 = vpack.c.b16 %v2898, %v2897
        %v2914 = vpack.c.b16 %v2900, %v2899
        %v2915 = vpack.c.b16 %v2902, %v2901
        %v2916 = vpack.c.b16 %v2904, %v2903
        %v2917 = vpack.c.b16 %v2906, %v2905
        %v2918 = vpack.c.b16 %v2908, %v2907
        %v2919 = vpack.c.b16 %v2910, %v2909
        %v2920 = vpack.c.b16 %v2912, %v2911
        %2929 = vmatprep.subr.bf16.mxu0 0
        %2930 = vmatpush1.bf16.msra.mxu0 %v2913
        %2931 = vmatprep.subr.bf16.mxu0 0
        %2932 = vmatpush1.bf16.msra.mxu0 %v2914
        %2933 = vmatprep.subr.bf16.mxu0 0
        %2934 = vmatpush1.bf16.msra.mxu0 %v2915
        %2935 = vmatprep.subr.bf16.mxu0 0
        %2936 = vmatpush1.bf16.msra.mxu0 %v2916
        %2937 = vmatprep.subr.bf16.mxu0 0
        %2938 = vmatpush1.bf16.msra.mxu0 %v2917
        %2939 = vmatprep.subr.bf16.mxu0 0
        %2940 = vmatpush1.bf16.msra.mxu0 %v2918
        %2941 = vmatprep.subr.bf16.mxu0 0
        %2942 = vmatpush1.bf16.msra.mxu0 %v2919
        %2943 = vmatprep.subr.bf16.mxu0 0
        %2944 = vmatpush1.bf16.msra.mxu0 %v2920
        %2945 = vmatprep.subr.bf16.mxu0 0
        %2946 = vmatpush1.bf16.msra.mxu0 0
        %2947 = vmatprep.subr.bf16.mxu0 0
        %2948 = vmatpush1.bf16.msra.mxu0 0
        %2949 = vmatprep.subr.bf16.mxu0 0
        %2950 = vmatpush1.bf16.msra.mxu0 0
        %2951 = vmatprep.subr.bf16.mxu0 0
        %2952 = vmatpush1.bf16.msra.mxu0 0
        %2953 = vmatprep.subr.bf16.mxu0 0
        %2954 = vmatpush1.bf16.msra.mxu0 0
        %2955 = vmatprep.subr.bf16.mxu0 0
        %2956 = vmatpush1.bf16.msra.mxu0 0
        %2957 = vmatprep.subr.bf16.mxu0 0
        %2958 = vmatpush1.bf16.msra.mxu0 0
        %2959 = vmatprep.subr.bf16.mxu0 0
        %2960 = vmatpush1.bf16.msra.mxu0 0
        %2961 = vmatprep.mubr.bf16.mxu0 0
        %2962 = vmatmul.mubr.bf16.gmra.mrb[0].mxu0 %v2540
        %v2963 = vpop.f32.mrb[0].mxu0
        %v2964 = vadd.f32 0.0, %v2963
        %v2965 = vpop.f32.mrb[0].mxu0
        %v2966 = vpop.f32.mrb[0].mxu0
        %v2967 = vadd.f32 0.0, %v2966
        %v2968 = vpop.f32.mrb[0].mxu0
        %2969 = vmatprep.mubr.bf16.mxu0 0
        %2970 = vmatmul.mubr.bf16.gmra.mrb[0].mxu0 %v2541
        %v2971 = vpop.f32.mrb[0].mxu0
        %v2972 = vadd.f32 0.0, %v2971
        %v2973 = vpop.f32.mrb[0].mxu0
        %v2974 = vpop.f32.mrb[0].mxu0
        %v2975 = vadd.f32 0.0, %v2974
        %v2976 = vpop.f32.mrb[0].mxu0
        %2977 = vmatprep.mubr.bf16.mxu0 0
        %2978 = vmatmul.mubr.bf16.gmra.mrb[0].mxu0 %v2542
        %v2979 = vpop.f32.mrb[0].mxu0
        %v2980 = vadd.f32 0.0, %v2979
        %v2981 = vpop.f32.mrb[0].mxu0
        %v2982 = vpop.f32.mrb[0].mxu0
        %v2983 = vadd.f32 0.0, %v2982
        %v2984 = vpop.f32.mrb[0].mxu0
        %2985 = vmatprep.mubr.bf16.mxu0 0
        %2986 = vmatmul.mubr.bf16.gmra.mrb[0].mxu0 %v2543
        %v2987 = vpop.f32.mrb[0].mxu0
        %v2988 = vadd.f32 0.0, %v2987
        %v2989 = vpop.f32.mrb[0].mxu0
        %v2990 = vpop.f32.mrb[0].mxu0
        %v2991 = vadd.f32 0.0, %v2990
        %v2992 = vpop.f32.mrb[0].mxu0
        %2993 = vmatprep.mubr.bf16.mxu0 0
        %2994 = vmatmul.mubr.bf16.gmra.mrb[0].mxu0 %v2544
        %v2995 = vpop.f32.mrb[0].mxu0
        %v2996 = vadd.f32 0.0, %v2995
        %v2997 = vpop.f32.mrb[0].mxu0
        %v2998 = vpop.f32.mrb[0].mxu0
        %v2999 = vadd.f32 0.0, %v2998
        %v3000 = vpop.f32.mrb[0].mxu0
        %3001 = vmatprep.mubr.bf16.mxu0 0
        %3002 = vmatmul.mubr.bf16.gmra.mrb[0].mxu0 %v2545
        %v3003 = vpop.f32.mrb[0].mxu0
        %v3004 = vadd.f32 0.0, %v3003
        %v3005 = vpop.f32.mrb[0].mxu0
        %v3006 = vpop.f32.mrb[0].mxu0
        %v3007 = vadd.f32 0.0, %v3006
        %v3008 = vpop.f32.mrb[0].mxu0
        %3009 = vmatprep.mubr.bf16.mxu0 0
        %3010 = vmatmul.mubr.bf16.gmra.mrb[0].mxu0 %v2546
        %v3011 = vpop.f32.mrb[0].mxu0
        %v3012 = vadd.f32 0.0, %v3011
        %v3013 = vpop.f32.mrb[0].mxu0
        %v3014 = vpop.f32.mrb[0].mxu0
        %v3015 = vadd.f32 0.0, %v3014
        %v3016 = vpop.f32.mrb[0].mxu0
        %3017 = vmatprep.mubr.bf16.mxu0 0
        %3018 = vmatmul.mubr.bf16.gmra.mrb[0].mxu0 %v2547
        %v3019 = vpop.f32.mrb[0].mxu0
        %v3020 = vadd.f32 0.0, %v3019
        %v3021 = vpop.f32.mrb[0].mxu0
        %v3022 = vpop.f32.mrb[0].mxu0
        %v3023 = vadd.f32 0.0, %v3022
        %v3024 = vpop.f32.mrb[0].mxu0
        %3025 = vmatprep.mubr.bf16.mxu0 0
        %3026 = vmatmul.mubr.bf16.gmra.mrb[0].mxu0 %v2548
        %v3027 = vpop.f32.mrb[0].mxu0
        %v3028 = vadd.f32 0.0, %v3027
        %v3029 = vpop.f32.mrb[0].mxu0
        %v3030 = vpop.f32.mrb[0].mxu0
        %v3031 = vadd.f32 0.0, %v3030
        %v3032 = vpop.f32.mrb[0].mxu0
        %3033 = vmatprep.mubr.bf16.mxu0 0
        %3034 = vmatmul.mubr.bf16.gmra.mrb[0].mxu0 %v2549
        %v3035 = vpop.f32.mrb[0].mxu0
        %v3036 = vadd.f32 0.0, %v3035
        %v3037 = vpop.f32.mrb[0].mxu0
        %v3038 = vpop.f32.mrb[0].mxu0
        %v3039 = vadd.f32 0.0, %v3038
        %v3040 = vpop.f32.mrb[0].mxu0
        %3041 = vmatprep.mubr.bf16.mxu0 0
        %3042 = vmatmul.mubr.bf16.gmra.mrb[0].mxu0 %v2550
        %v3043 = vpop.f32.mrb[0].mxu0
        %v3044 = vadd.f32 0.0, %v3043
        %v3045 = vpop.f32.mrb[0].mxu0
        %v3046 = vpop.f32.mrb[0].mxu0
        %v3047 = vadd.f32 0.0, %v3046
        %v3048 = vpop.f32.mrb[0].mxu0
        %3049 = vmatprep.mubr.bf16.mxu0 0
        %3050 = vmatmul.mubr.bf16.gmra.mrb[0].mxu0 %v2551
        %v3051 = vpop.f32.mrb[0].mxu0
        %v3052 = vadd.f32 0.0, %v3051
        %v3053 = vpop.f32.mrb[0].mxu0
        %v3054 = vpop.f32.mrb[0].mxu0
        %v3055 = vadd.f32 0.0, %v3054
        %v3056 = vpop.f32.mrb[0].mxu0
        %3057 = vmatprep.mubr.bf16.mxu0 0
        %3058 = vmatmul.mubr.bf16.gmra.mrb[0].mxu0 %v2552
        %v3059 = vpop.f32.mrb[0].mxu0
        %v3060 = vadd.f32 0.0, %v3059
        %v3061 = vpop.f32.mrb[0].mxu0
        %v3062 = vpop.f32.mrb[0].mxu0
        %v3063 = vadd.f32 0.0, %v3062
        %v3064 = vpop.f32.mrb[0].mxu0
        %3065 = vmatprep.mubr.bf16.mxu0 0
        %3066 = vmatmul.mubr.bf16.gmra.mrb[0].mxu0 %v2553
        %v3067 = vpop.f32.mrb[0].mxu0
        %v3068 = vadd.f32 0.0, %v3067
        %v3069 = vpop.f32.mrb[0].mxu0
        %v3070 = vpop.f32.mrb[0].mxu0
        %v3071 = vadd.f32 0.0, %v3070
        %v3072 = vpop.f32.mrb[0].mxu0
        %3073 = vmatprep.mubr.bf16.mxu0 0
        %3074 = vmatmul.mubr.bf16.gmra.mrb[0].mxu0 %v2554
        %v3075 = vpop.f32.mrb[0].mxu0
        %v3076 = vadd.f32 0.0, %v3075
        %v3077 = vpop.f32.mrb[0].mxu0
        %v3078 = vpop.f32.mrb[0].mxu0
        %v3079 = vadd.f32 0.0, %v3078
        %v3080 = vpop.f32.mrb[0].mxu0
        %3081 = vmatprep.mubr.bf16.mxu0 0
        %3082 = vmatmul.mubr.bf16.gmra.mrb[0].mxu0 %v2555
        %v3083 = vpop.f32.mrb[0].mxu0
        %v3084 = vadd.f32 0.0, %v3083
        %v3085 = vpop.f32.mrb[0].mxu0
        %v3086 = vpop.f32.mrb[0].mxu0
        %v3087 = vadd.f32 0.0, %v3086
        %v3088 = vpop.f32.mrb[0].mxu0
        %3089 = vdwg.mxu0
        %v3090 = vld [vmem:[#allocation2] sm:$0xff]
        %v3091 = vld [vmem:[#allocation2 + $0x8] sm:$0xff]
        %v3092 = vld [vmem:[#allocation2 + $0x10] sm:$0xff]
        %v3093 = vld [vmem:[#allocation2 + $0x18] sm:$0xff]
        %v3094 = vld [vmem:[#allocation2 + $0x20] sm:$0xff]
        %v3095 = vld [vmem:[#allocation2 + $0x28] sm:$0xff]
        %v3096 = vld [vmem:[#allocation2 + $0x30] sm:$0xff]
        %v3097 = vld [vmem:[#allocation2 + $0x38] sm:$0xff]
        %v3098 = vld [vmem:[#allocation2 + $0x40] sm:$0xff]
        %v3099 = vld [vmem:[#allocation2 + $0x48] sm:$0xff]
        %v3100 = vld [vmem:[#allocation2 + $0x50] sm:$0xff]
        %v3101 = vld [vmem:[#allocation2 + $0x58] sm:$0xff]
        %v3102 = vld [vmem:[#allocation2 + $0x60] sm:$0xff]
        %v3103 = vld [vmem:[#allocation2 + $0x68] sm:$0xff]
        %v3104 = vld [vmem:[#allocation2 + $0x70] sm:$0xff]
        %v3105 = vld [vmem:[#allocation2 + $0x78] sm:$0xff]
        %v3106 = vld [vmem:[#allocation2 + $0x80] sm:$0xff]
        %v3107 = vld [vmem:[#allocation2 + $0x88] sm:$0xff]
        %v3108 = vld [vmem:[#allocation2 + $0x90] sm:$0xff]
        %v3109 = vld [vmem:[#allocation2 + $0x98] sm:$0xff]
        %v3110 = vld [vmem:[#allocation2 + $0xa0] sm:$0xff]
        %v3111 = vld [vmem:[#allocation2 + $0xa8] sm:$0xff]
        %v3112 = vld [vmem:[#allocation2 + $0xb0] sm:$0xff]
        %v3113 = vld [vmem:[#allocation2 + $0xb8] sm:$0xff]
        %v3114 = vld [vmem:[#allocation2 + $0xc0] sm:$0xff]
        %v3115 = vld [vmem:[#allocation2 + $0xc8] sm:$0xff]
        %v3116 = vld [vmem:[#allocation2 + $0xd0] sm:$0xff]
        %v3117 = vld [vmem:[#allocation2 + $0xd8] sm:$0xff]
        %v3118 = vld [vmem:[#allocation2 + $0xe0] sm:$0xff]
        %v3119 = vld [vmem:[#allocation2 + $0xe8] sm:$0xff]
        %v3120 = vld [vmem:[#allocation2 + $0xf0] sm:$0xff]
        %v3121 = vld [vmem:[#allocation2 + $0xf8] sm:$0xff]
        %v3122 = vadd.f32 %v3090, %v2964
        %v3123 = vadd.f32 %v3091, %v2967
        %v3124 = vadd.f32 %v3092, %v2972
        %v3125 = vadd.f32 %v3093, %v2975
        %v3126 = vadd.f32 %v3094, %v2980
        %v3127 = vadd.f32 %v3095, %v2983
        %v3128 = vadd.f32 %v3096, %v2988
        %v3129 = vadd.f32 %v3097, %v2991
        %v3130 = vadd.f32 %v3098, %v2996
        %v3131 = vadd.f32 %v3099, %v2999
        %v3132 = vadd.f32 %v3100, %v3004
        %v3133 = vadd.f32 %v3101, %v3007
        %v3134 = vadd.f32 %v3102, %v3012
        %v3135 = vadd.f32 %v3103, %v3015
        %v3136 = vadd.f32 %v3104, %v3020
        %v3137 = vadd.f32 %v3105, %v3023
        %v3138 = vadd.f32 %v3106, %v3028
        %v3139 = vadd.f32 %v3107, %v3031
        %v3140 = vadd.f32 %v3108, %v3036
        %v3141 = vadd.f32 %v3109, %v3039
        %v3142 = vadd.f32 %v3110, %v3044
        %v3143 = vadd.f32 %v3111, %v3047
        %v3144 = vadd.f32 %v3112, %v3052
        %v3145 = vadd.f32 %v3113, %v3055
        %v3146 = vadd.f32 %v3114, %v3060
        %v3147 = vadd.f32 %v3115, %v3063
        %v3148 = vadd.f32 %v3116, %v3068
        %v3149 = vadd.f32 %v3117, %v3071
        %v3150 = vadd.f32 %v3118, %v3076
        %v3151 = vadd.f32 %v3119, %v3079
        %v3152 = vadd.f32 %v3120, %v3084
        %v3153 = vadd.f32 %v3121, %v3087
        %3154 = vst [vmem:[#allocation2] sm:$0xff] %v3122
        %3155 = vst [vmem:[#allocation2 + $0x8] sm:$0xff] %v3123
        %3156 = vst [vmem:[#allocation2 + $0x10] sm:$0xff] %v3124
        %3157 = vst [vmem:[#allocation2 + $0x18] sm:$0xff] %v3125
        %3158 = vst [vmem:[#allocation2 + $0x20] sm:$0xff] %v3126
        %3159 = vst [vmem:[#allocation2 + $0x28] sm:$0xff] %v3127
        %3160 = vst [vmem:[#allocation2 + $0x30] sm:$0xff] %v3128
        %3161 = vst [vmem:[#allocation2 + $0x38] sm:$0xff] %v3129
        %3162 = vst [vmem:[#allocation2 + $0x40] sm:$0xff] %v3130
        %3163 = vst [vmem:[#allocation2 + $0x48] sm:$0xff] %v3131
        %3164 = vst [vmem:[#allocation2 + $0x50] sm:$0xff] %v3132
        %3165 = vst [vmem:[#allocation2 + $0x58] sm:$0xff] %v3133
        %3166 = vst [vmem:[#allocation2 + $0x60] sm:$0xff] %v3134
        %3167 = vst [vmem:[#allocation2 + $0x68] sm:$0xff] %v3135
        %3168 = vst [vmem:[#allocation2 + $0x70] sm:$0xff] %v3136
        %3169 = vst [vmem:[#allocation2 + $0x78] sm:$0xff] %v3137
        %3170 = vst [vmem:[#allocation2 + $0x80] sm:$0xff] %v3138
        %3171 = vst [vmem:[#allocation2 + $0x88] sm:$0xff] %v3139
        %3172 = vst [vmem:[#allocation2 + $0x90] sm:$0xff] %v3140
        %3173 = vst [vmem:[#allocation2 + $0x98] sm:$0xff] %v3141
        %3174 = vst [vmem:[#allocation2 + $0xa0] sm:$0xff] %v3142
        %3175 = vst [vmem:[#allocation2 + $0xa8] sm:$0xff] %v3143
        %3176 = vst [vmem:[#allocation2 + $0xb0] sm:$0xff] %v3144
        %3177 = vst [vmem:[#allocation2 + $0xb8] sm:$0xff] %v3145
        %3178 = vst [vmem:[#allocation2 + $0xc0] sm:$0xff] %v3146
        %3179 = vst [vmem:[#allocation2 + $0xc8] sm:$0xff] %v3147
        %3180 = vst [vmem:[#allocation2 + $0xd0] sm:$0xff] %v3148
        %3181 = vst [vmem:[#allocation2 + $0xd8] sm:$0xff] %v3149
        %3182 = vst [vmem:[#allocation2 + $0xe0] sm:$0xff] %v3150
        %3183 = vst [vmem:[#allocation2 + $0xe8] sm:$0xff] %v3151
        %3184 = vst [vmem:[#allocation2 + $0xf0] sm:$0xff] %v3152
        %3185 = vst [vmem:[#allocation2 + $0xf8] sm:$0xff] %v3153
        %s3186 = scalar_lea.vmem [#allocation6], 512
        %v3187 = vld [vmem:[%s3186] sm:$0xf]
        %v3188 = vld [vmem:[%s3186 + $0x4] sm:$0xf]
        %v3189 = vld [vmem:[%s3186 + $0x8] sm:$0xf]
        %v3190 = vld [vmem:[%s3186 + $0xc] sm:$0xf]
        %v3191 = vld [vmem:[%s3186 + $0x10] sm:$0xf]
        %v3192 = vld [vmem:[%s3186 + $0x14] sm:$0xf]
        %v3193 = vld [vmem:[%s3186 + $0x18] sm:$0xf]
        %v3194 = vld [vmem:[%s3186 + $0x1c] sm:$0xf]
        %v3195 = vld [vmem:[%s3186 + $0x20] sm:$0xf]
        %v3196 = vld [vmem:[%s3186 + $0x24] sm:$0xf]
        %v3197 = vld [vmem:[%s3186 + $0x28] sm:$0xf]
        %v3198 = vld [vmem:[%s3186 + $0x2c] sm:$0xf]
        %v3199 = vld [vmem:[%s3186 + $0x30] sm:$0xf]
        %v3200 = vld [vmem:[%s3186 + $0x34] sm:$0xf]
        %v3201 = vld [vmem:[%s3186 + $0x38] sm:$0xf]
        %v3202 = vld [vmem:[%s3186 + $0x3c] sm:$0xf]
        %v3219 = vunpack.c.l.b16 %v3187
        %v3220 = vunpack.c.l.b16 %v3188
        %v3221 = vunpack.c.l.b16 %v3189
        %v3222 = vunpack.c.l.b16 %v3190
        %v3223 = vunpack.c.l.b16 %v3191
        %v3224 = vunpack.c.l.b16 %v3192
        %v3225 = vunpack.c.l.b16 %v3193
        %v3226 = vunpack.c.l.b16 %v3194
        %v3227 = vunpack.c.l.b16 %v3195
        %v3228 = vunpack.c.l.b16 %v3196
        %v3229 = vunpack.c.l.b16 %v3197
        %v3230 = vunpack.c.l.b16 %v3198
        %v3231 = vunpack.c.l.b16 %v3199
        %v3232 = vunpack.c.l.b16 %v3200
        %v3233 = vunpack.c.l.b16 %v3201
        %v3234 = vunpack.c.l.b16 %v3202
        %v3235 = vpack.c.b16 %v3220, %v3219
        %v3236 = vpack.c.b16 %v3222, %v3221
        %v3237 = vpack.c.b16 %v3224, %v3223
        %v3238 = vpack.c.b16 %v3226, %v3225
        %v3239 = vpack.c.b16 %v3228, %v3227
        %v3240 = vpack.c.b16 %v3230, %v3229
        %v3241 = vpack.c.b16 %v3232, %v3231
        %v3242 = vpack.c.b16 %v3234, %v3233
        %3251 = vmatprep.subr.bf16.mxu0 0
        %3252 = vmatpush1.bf16.msra.mxu0 %v3235
        %3253 = vmatprep.subr.bf16.mxu0 0
        %3254 = vmatpush1.bf16.msra.mxu0 %v3236
        %3255 = vmatprep.subr.bf16.mxu0 0
        %3256 = vmatpush1.bf16.msra.mxu0 %v3237
        %3257 = vmatprep.subr.bf16.mxu0 0
        %3258 = vmatpush1.bf16.msra.mxu0 %v3238
        %3259 = vmatprep.subr.bf16.mxu0 0
        %3260 = vmatpush1.bf16.msra.mxu0 %v3239
        %3261 = vmatprep.subr.bf16.mxu0 0
        %3262 = vmatpush1.bf16.msra.mxu0 %v3240
        %3263 = vmatprep.subr.bf16.mxu0 0
        %3264 = vmatpush1.bf16.msra.mxu0 %v3241
        %3265 = vmatprep.subr.bf16.mxu0 0
        %3266 = vmatpush1.bf16.msra.mxu0 %v3242
        %3267 = vmatprep.subr.bf16.mxu0 0
        %3268 = vmatpush1.bf16.msra.mxu0 0
        %3269 = vmatprep.subr.bf16.mxu0 0
        %3270 = vmatpush1.bf16.msra.mxu0 0
        %3271 = vmatprep.subr.bf16.mxu0 0
        %3272 = vmatpush1.bf16.msra.mxu0 0
        %3273 = vmatprep.subr.bf16.mxu0 0
        %3274 = vmatpush1.bf16.msra.mxu0 0
        %3275 = vmatprep.subr.bf16.mxu0 0
        %3276 = vmatpush1.bf16.msra.mxu0 0
        %3277 = vmatprep.subr.bf16.mxu0 0
        %3278 = vmatpush1.bf16.msra.mxu0 0
        %3279 = vmatprep.subr.bf16.mxu0 0
        %3280 = vmatpush1.bf16.msra.mxu0 0
        %3281 = vmatprep.subr.bf16.mxu0 0
        %3282 = vmatpush1.bf16.msra.mxu0 0
        %3283 = vmatprep.mubr.bf16.mxu0 0
        %3284 = vmatmul.mubr.bf16.gmra.mrb[0].mxu0 %v2541
        %v3285 = vpop.f32.mrb[0].mxu0
        %v3286 = vadd.f32 0.0, %v3285
        %v3287 = vpop.f32.mrb[0].mxu0
        %v3288 = vpop.f32.mrb[0].mxu0
        %v3289 = vadd.f32 0.0, %v3288
        %v3290 = vpop.f32.mrb[0].mxu0
        %3291 = vmatprep.mubr.bf16.mxu0 0
        %3292 = vmatmul.mubr.bf16.gmra.mrb[0].mxu0 %v2542
        %v3293 = vpop.f32.mrb[0].mxu0
        %v3294 = vadd.f32 0.0, %v3293
        %v3295 = vpop.f32.mrb[0].mxu0
        %v3296 = vpop.f32.mrb[0].mxu0
        %v3297 = vadd.f32 0.0, %v3296
        %v3298 = vpop.f32.mrb[0].mxu0
        %3299 = vmatprep.mubr.bf16.mxu0 0
        %3300 = vmatmul.mubr.bf16.gmra.mrb[0].mxu0 %v2543
        %v3301 = vpop.f32.mrb[0].mxu0
        %v3302 = vadd.f32 0.0, %v3301
        %v3303 = vpop.f32.mrb[0].mxu0
        %v3304 = vpop.f32.mrb[0].mxu0
        %v3305 = vadd.f32 0.0, %v3304
        %v3306 = vpop.f32.mrb[0].mxu0
        %3307 = vmatprep.mubr.bf16.mxu0 0
        %3308 = vmatmul.mubr.bf16.gmra.mrb[0].mxu0 %v2544
        %v3309 = vpop.f32.mrb[0].mxu0
        %v3310 = vadd.f32 0.0, %v3309
        %v3311 = vpop.f32.mrb[0].mxu0
        %v3312 = vpop.f32.mrb[0].mxu0
        %v3313 = vadd.f32 0.0, %v3312
        %v3314 = vpop.f32.mrb[0].mxu0
        %3315 = vmatprep.mubr.bf16.mxu0 0
        %3316 = vmatmul.mubr.bf16.gmra.mrb[0].mxu0 %v2545
        %v3317 = vpop.f32.mrb[0].mxu0
        %v3318 = vadd.f32 0.0, %v3317
        %v3319 = vpop.f32.mrb[0].mxu0
        %v3320 = vpop.f32.mrb[0].mxu0
        %v3321 = vadd.f32 0.0, %v3320
        %v3322 = vpop.f32.mrb[0].mxu0
        %3323 = vmatprep.mubr.bf16.mxu0 0
        %3324 = vmatmul.mubr.bf16.gmra.mrb[0].mxu0 %v2546
        %v3325 = vpop.f32.mrb[0].mxu0
        %v3326 = vadd.f32 0.0, %v3325
        %v3327 = vpop.f32.mrb[0].mxu0
        %v3328 = vpop.f32.mrb[0].mxu0
        %v3329 = vadd.f32 0.0, %v3328
        %v3330 = vpop.f32.mrb[0].mxu0
        %3331 = vmatprep.mubr.bf16.mxu0 0
        %3332 = vmatmul.mubr.bf16.gmra.mrb[0].mxu0 %v2547
        %v3333 = vpop.f32.mrb[0].mxu0
        %v3334 = vadd.f32 0.0, %v3333
        %v3335 = vpop.f32.mrb[0].mxu0
        %v3336 = vpop.f32.mrb[0].mxu0
        %v3337 = vadd.f32 0.0, %v3336
        %v3338 = vpop.f32.mrb[0].mxu0
        %3339 = vmatprep.mubr.bf16.mxu0 0
        %3340 = vmatmul.mubr.bf16.gmra.mrb[0].mxu0 %v2548
        %v3341 = vpop.f32.mrb[0].mxu0
        %v3342 = vadd.f32 0.0, %v3341
        %v3343 = vpop.f32.mrb[0].mxu0
        %v3344 = vpop.f32.mrb[0].mxu0
        %v3345 = vadd.f32 0.0, %v3344
        %v3346 = vpop.f32.mrb[0].mxu0
        %3347 = vmatprep.mubr.bf16.mxu0 0
        %3348 = vmatmul.mubr.bf16.gmra.mrb[0].mxu0 %v2549
        %v3349 = vpop.f32.mrb[0].mxu0
        %v3350 = vadd.f32 0.0, %v3349
        %v3351 = vpop.f32.mrb[0].mxu0
        %v3352 = vpop.f32.mrb[0].mxu0
        %v3353 = vadd.f32 0.0, %v3352
        %v3354 = vpop.f32.mrb[0].mxu0
        %3355 = vmatprep.mubr.bf16.mxu0 0
        %3356 = vmatmul.mubr.bf16.gmra.mrb[0].mxu0 %v2550
        %v3357 = vpop.f32.mrb[0].mxu0
        %v3358 = vadd.f32 0.0, %v3357
        %v3359 = vpop.f32.mrb[0].mxu0
        %v3360 = vpop.f32.mrb[0].mxu0
        %v3361 = vadd.f32 0.0, %v3360
        %v3362 = vpop.f32.mrb[0].mxu0
        %3363 = vmatprep.mubr.bf16.mxu0 0
        %3364 = vmatmul.mubr.bf16.gmra.mrb[0].mxu0 %v2551
        %v3365 = vpop.f32.mrb[0].mxu0
        %v3366 = vadd.f32 0.0, %v3365
        %v3367 = vpop.f32.mrb[0].mxu0
        %v3368 = vpop.f32.mrb[0].mxu0
        %v3369 = vadd.f32 0.0, %v3368
        %v3370 = vpop.f32.mrb[0].mxu0
        %3371 = vmatprep.mubr.bf16.mxu0 0
        %3372 = vmatmul.mubr.bf16.gmra.mrb[0].mxu0 %v2552
        %v3373 = vpop.f32.mrb[0].mxu0
        %v3374 = vadd.f32 0.0, %v3373
        %v3375 = vpop.f32.mrb[0].mxu0
        %v3376 = vpop.f32.mrb[0].mxu0
        %v3377 = vadd.f32 0.0, %v3376
        %v3378 = vpop.f32.mrb[0].mxu0
        %3379 = vmatprep.mubr.bf16.mxu0 0
        %3380 = vmatmul.mubr.bf16.gmra.mrb[0].mxu0 %v2553
        %v3381 = vpop.f32.mrb[0].mxu0
        %v3382 = vadd.f32 0.0, %v3381
        %v3383 = vpop.f32.mrb[0].mxu0
        %v3384 = vpop.f32.mrb[0].mxu0
        %v3385 = vadd.f32 0.0, %v3384
        %v3386 = vpop.f32.mrb[0].mxu0
        %3387 = vmatprep.mubr.bf16.mxu0 0
        %3388 = vmatmul.mubr.bf16.gmra.mrb[0].mxu0 %v2554
        %v3389 = vpop.f32.mrb[0].mxu0
        %v3390 = vadd.f32 0.0, %v3389
        %v3391 = vpop.f32.mrb[0].mxu0
        %v3392 = vpop.f32.mrb[0].mxu0
        %v3393 = vadd.f32 0.0, %v3392
        %v3394 = vpop.f32.mrb[0].mxu0
        %3395 = vmatprep.mubr.bf16.mxu0 0
        %3396 = vmatmul.mubr.bf16.gmra.mrb[0].mxu0 %v2555
        %v3397 = vpop.f32.mrb[0].mxu0
        %v3398 = vadd.f32 0.0, %v3397
        %v3399 = vpop.f32.mrb[0].mxu0
        %v3400 = vpop.f32.mrb[0].mxu0
        %v3401 = vadd.f32 0.0, %v3400
        %v3402 = vpop.f32.mrb[0].mxu0
        %3403 = vdwg.mxu0
        %v3404 = vld [vmem:[#allocation2] sm:$0xff]
        %v3405 = vld [vmem:[#allocation2 + $0x8] sm:$0xff]
        %v3406 = vld [vmem:[#allocation2 + $0x10] sm:$0xff]
        %v3407 = vld [vmem:[#allocation2 + $0x18] sm:$0xff]
        %v3408 = vld [vmem:[#allocation2 + $0x20] sm:$0xff]
        %v3409 = vld [vmem:[#allocation2 + $0x28] sm:$0xff]
        %v3410 = vld [vmem:[#allocation2 + $0x30] sm:$0xff]
        %v3411 = vld [vmem:[#allocation2 + $0x38] sm:$0xff]
        %v3412 = vld [vmem:[#allocation2 + $0x40] sm:$0xff]
        %v3413 = vld [vmem:[#allocation2 + $0x48] sm:$0xff]
        %v3414 = vld [vmem:[#allocation2 + $0x50] sm:$0xff]
        %v3415 = vld [vmem:[#allocation2 + $0x58] sm:$0xff]
        %v3416 = vld [vmem:[#allocation2 + $0x60] sm:$0xff]
        %v3417 = vld [vmem:[#allocation2 + $0x68] sm:$0xff]
        %v3418 = vld [vmem:[#allocation2 + $0x70] sm:$0xff]
        %v3419 = vld [vmem:[#allocation2 + $0x78] sm:$0xff]
        %v3420 = vld [vmem:[#allocation2 + $0x80] sm:$0xff]
        %v3421 = vld [vmem:[#allocation2 + $0x88] sm:$0xff]
        %v3422 = vld [vmem:[#allocation2 + $0x90] sm:$0xff]
        %v3423 = vld [vmem:[#allocation2 + $0x98] sm:$0xff]
        %v3424 = vld [vmem:[#allocation2 + $0xa0] sm:$0xff]
        %v3425 = vld [vmem:[#allocation2 + $0xa8] sm:$0xff]
        %v3426 = vld [vmem:[#allocation2 + $0xb0] sm:$0xff]
        %v3427 = vld [vmem:[#allocation2 + $0xb8] sm:$0xff]
        %v3428 = vld [vmem:[#allocation2 + $0xc0] sm:$0xff]
        %v3429 = vld [vmem:[#allocation2 + $0xc8] sm:$0xff]
        %v3430 = vld [vmem:[#allocation2 + $0xd0] sm:$0xff]
        %v3431 = vld [vmem:[#allocation2 + $0xd8] sm:$0xff]
        %v3432 = vld [vmem:[#allocation2 + $0xe0] sm:$0xff]
        %v3433 = vld [vmem:[#allocation2 + $0xe8] sm:$0xff]
        %v3434 = vadd.f32 %v3404, %v3286
        %v3435 = vadd.f32 %v3405, %v3289
        %v3436 = vadd.f32 %v3406, %v3294
        %v3437 = vadd.f32 %v3407, %v3297
        %v3438 = vadd.f32 %v3408, %v3302
        %v3439 = vadd.f32 %v3409, %v3305
        %v3440 = vadd.f32 %v3410, %v3310
        %v3441 = vadd.f32 %v3411, %v3313
        %v3442 = vadd.f32 %v3412, %v3318
        %v3443 = vadd.f32 %v3413, %v3321
        %v3444 = vadd.f32 %v3414, %v3326
        %v3445 = vadd.f32 %v3415, %v3329
        %v3446 = vadd.f32 %v3416, %v3334
        %v3447 = vadd.f32 %v3417, %v3337
        %v3448 = vadd.f32 %v3418, %v3342
        %v3449 = vadd.f32 %v3419, %v3345
        %v3450 = vadd.f32 %v3420, %v3350
        %v3451 = vadd.f32 %v3421, %v3353
        %v3452 = vadd.f32 %v3422, %v3358
        %v3453 = vadd.f32 %v3423, %v3361
        %v3454 = vadd.f32 %v3424, %v3366
        %v3455 = vadd.f32 %v3425, %v3369
        %v3456 = vadd.f32 %v3426, %v3374
        %v3457 = vadd.f32 %v3427, %v3377
        %v3458 = vadd.f32 %v3428, %v3382
        %v3459 = vadd.f32 %v3429, %v3385
        %v3460 = vadd.f32 %v3430, %v3390
        %v3461 = vadd.f32 %v3431, %v3393
        %v3462 = vadd.f32 %v3432, %v3398
        %v3463 = vadd.f32 %v3433, %v3401
        %3464 = vst [vmem:[#allocation2] sm:$0xff] %v3434
        %3465 = vst [vmem:[#allocation2 + $0x8] sm:$0xff] %v3435
        %3466 = vst [vmem:[#allocation2 + $0x10] sm:$0xff] %v3436
        %3467 = vst [vmem:[#allocation2 + $0x18] sm:$0xff] %v3437
        %3468 = vst [vmem:[#allocation2 + $0x20] sm:$0xff] %v3438
        %3469 = vst [vmem:[#allocation2 + $0x28] sm:$0xff] %v3439
        %3470 = vst [vmem:[#allocation2 + $0x30] sm:$0xff] %v3440
        %3471 = vst [vmem:[#allocation2 + $0x38] sm:$0xff] %v3441
        %3472 = vst [vmem:[#allocation2 + $0x40] sm:$0xff] %v3442
        %3473 = vst [vmem:[#allocation2 + $0x48] sm:$0xff] %v3443
        %3474 = vst [vmem:[#allocation2 + $0x50] sm:$0xff] %v3444
        %3475 = vst [vmem:[#allocation2 + $0x58] sm:$0xff] %v3445
        %3476 = vst [vmem:[#allocation2 + $0x60] sm:$0xff] %v3446
        %3477 = vst [vmem:[#allocation2 + $0x68] sm:$0xff] %v3447
        %3478 = vst [vmem:[#allocation2 + $0x70] sm:$0xff] %v3448
        %3479 = vst [vmem:[#allocation2 + $0x78] sm:$0xff] %v3449
        %3480 = vst [vmem:[#allocation2 + $0x80] sm:$0xff] %v3450
        %3481 = vst [vmem:[#allocation2 + $0x88] sm:$0xff] %v3451
        %3482 = vst [vmem:[#allocation2 + $0x90] sm:$0xff] %v3452
        %3483 = vst [vmem:[#allocation2 + $0x98] sm:$0xff] %v3453
        %3484 = vst [vmem:[#allocation2 + $0xa0] sm:$0xff] %v3454
        %3485 = vst [vmem:[#allocation2 + $0xa8] sm:$0xff] %v3455
        %3486 = vst [vmem:[#allocation2 + $0xb0] sm:$0xff] %v3456
        %3487 = vst [vmem:[#allocation2 + $0xb8] sm:$0xff] %v3457
        %3488 = vst [vmem:[#allocation2 + $0xc0] sm:$0xff] %v3458
        %3489 = vst [vmem:[#allocation2 + $0xc8] sm:$0xff] %v3459
        %3490 = vst [vmem:[#allocation2 + $0xd0] sm:$0xff] %v3460
        %3491 = vst [vmem:[#allocation2 + $0xd8] sm:$0xff] %v3461
        %3492 = vst [vmem:[#allocation2 + $0xe0] sm:$0xff] %v3462
        %3493 = vst [vmem:[#allocation2 + $0xe8] sm:$0xff] %v3463
        %v3494 = vld [vmem:[#allocation2] sm:$0xff]
        %v3495 = vld [vmem:[#allocation2 + $0x8] sm:$0xff]
        %v3496 = vld [vmem:[#allocation2 + $0x10] sm:$0xff]
        %v3497 = vld [vmem:[#allocation2 + $0x18] sm:$0xff]
        %v3498 = vld [vmem:[#allocation2 + $0x20] sm:$0xff]
        %v3499 = vld [vmem:[#allocation2 + $0x28] sm:$0xff]
        %v3500 = vld [vmem:[#allocation2 + $0x30] sm:$0xff]
        %v3501 = vld [vmem:[#allocation2 + $0x38] sm:$0xff]
        %v3502 = vld [vmem:[#allocation2 + $0x40] sm:$0xff]
        %v3503 = vld [vmem:[#allocation2 + $0x48] sm:$0xff]
        %v3504 = vld [vmem:[#allocation2 + $0x50] sm:$0xff]
        %v3505 = vld [vmem:[#allocation2 + $0x58] sm:$0xff]
        %v3506 = vld [vmem:[#allocation2 + $0x60] sm:$0xff]
        %v3507 = vld [vmem:[#allocation2 + $0x68] sm:$0xff]
        %v3508 = vld [vmem:[#allocation2 + $0x70] sm:$0xff]
        %v3509 = vld [vmem:[#allocation2 + $0x78] sm:$0xff]
        %v3510 = vld [vmem:[#allocation2 + $0x80] sm:$0xff]
        %v3511 = vld [vmem:[#allocation2 + $0x88] sm:$0xff]
        %v3512 = vld [vmem:[#allocation2 + $0x90] sm:$0xff]
        %v3513 = vld [vmem:[#allocation2 + $0x98] sm:$0xff]
        %v3514 = vld [vmem:[#allocation2 + $0xa0] sm:$0xff]
        %v3515 = vld [vmem:[#allocation2 + $0xa8] sm:$0xff]
        %v3516 = vld [vmem:[#allocation2 + $0xb0] sm:$0xff]
        %v3517 = vld [vmem:[#allocation2 + $0xb8] sm:$0xff]
        %v3518 = vld [vmem:[#allocation2 + $0xc0] sm:$0xff]
        %v3519 = vld [vmem:[#allocation2 + $0xc8] sm:$0xff]
        %v3520 = vld [vmem:[#allocation2 + $0xd0] sm:$0xff]
        %v3521 = vld [vmem:[#allocation2 + $0xd8] sm:$0xff]
        %v3522 = vld [vmem:[#allocation2 + $0xe0] sm:$0xff]
        %v3523 = vld [vmem:[#allocation2 + $0xe8] sm:$0xff]
        %v3524 = vld [vmem:[#allocation2 + $0xf0] sm:$0xff]
        %v3525 = vld [vmem:[#allocation2 + $0xf8] sm:$0xff]
        %v3526 = vmax.f32 %v3494, 0.0
        %v3527 = vmax.f32 %v3495, 0.0
        %v3528 = vmax.f32 %v3496, 0.0
        %v3529 = vmax.f32 %v3497, 0.0
        %v3530 = vmax.f32 %v3498, 0.0
        %v3531 = vmax.f32 %v3499, 0.0
        %v3532 = vmax.f32 %v3500, 0.0
        %v3533 = vmax.f32 %v3501, 0.0
        %v3534 = vmax.f32 %v3502, 0.0
        %v3535 = vmax.f32 %v3503, 0.0
        %v3536 = vmax.f32 %v3504, 0.0
        %v3537 = vmax.f32 %v3505, 0.0
        %v3538 = vmax.f32 %v3506, 0.0
        %v3539 = vmax.f32 %v3507, 0.0
        %v3540 = vmax.f32 %v3508, 0.0
        %v3541 = vmax.f32 %v3509, 0.0
        %v3542 = vmax.f32 %v3510, 0.0
        %v3543 = vmax.f32 %v3511, 0.0
        %v3544 = vmax.f32 %v3512, 0.0
        %v3545 = vmax.f32 %v3513, 0.0
        %v3546 = vmax.f32 %v3514, 0.0
        %v3547 = vmax.f32 %v3515, 0.0
        %v3548 = vmax.f32 %v3516, 0.0
        %v3549 = vmax.f32 %v3517, 0.0
        %v3550 = vmax.f32 %v3518, 0.0
        %v3551 = vmax.f32 %v3519, 0.0
        %v3552 = vmax.f32 %v3520, 0.0
        %v3553 = vmax.f32 %v3521, 0.0
        %v3554 = vmax.f32 %v3522, 0.0
        %v3555 = vmax.f32 %v3523, 0.0
        %v3556 = vmax.f32 %v3524, 0.0
        %v3557 = vmax.f32 %v3525, 0.0
        %v3558 = vpack.c.bf16 %v3527, %v3526
        %v3559 = vpack.c.bf16 %v3529, %v3528
        %v3560 = vpack.c.bf16 %v3531, %v3530
        %v3561 = vpack.c.bf16 %v3533, %v3532
        %v3562 = vpack.c.bf16 %v3535, %v3534
        %v3563 = vpack.c.bf16 %v3537, %v3536
        %v3564 = vpack.c.bf16 %v3539, %v3538
        %v3565 = vpack.c.bf16 %v3541, %v3540
        %v3566 = vpack.c.bf16 %v3543, %v3542
        %v3567 = vpack.c.bf16 %v3545, %v3544
        %v3568 = vpack.c.bf16 %v3547, %v3546
        %v3569 = vpack.c.bf16 %v3549, %v3548
        %v3570 = vpack.c.bf16 %v3551, %v3550
        %v3571 = vpack.c.bf16 %v3553, %v3552
        %v3572 = vpack.c.bf16 %v3555, %v3554
        %v3573 = vpack.c.bf16 %v3557, %v3556
        %v3574 = vlaneseq
        %v3575 = vshrl.u32 %v3574, 7
        %v3576 = vadd.s32 %v3575, 8
        %vm3577 = vcmp.lt.s32.totalorder %v3575, 12
        %vm3578 = vcmp.lt.s32.totalorder %v3576, 12
        %v3579 = vsel %vm3577, 1, 0
        %v3580 = vsel %vm3578, 1, 0
        %vm3581 = vcmp.eq.s32.totalorder %v3579, 1
        %vm3582 = vcmp.eq.s32.totalorder %v3580, 1
        %vm3583 = vmpackc.low %vm3581, %vm3581
        %vm3584 = vmpackc.low %vm3582, %vm3582
        %v3585 = vsel %vm3583, 65537, 0
        %v3586 = vsel %vm3584, 65537, 0
        %v3587 = vunpack.c.l.b16 %v3585
        %v3588 = vunpack.c.l.b16 %v3586
        %v3589 = vpack.c.b16 %v3588, %v3587
        %vm3590 = vcmp.ne.s16.totalorder %v3589, 0
        %v3591 = vsel %vm3590, %v3558, 0
        %v3592 = vsel %vm3590, %v3559, 0
        %v3593 = vsel %vm3590, %v3560, 0
        %v3594 = vsel %vm3590, %v3561, 0
        %v3595 = vsel %vm3590, %v3562, 0
        %v3596 = vsel %vm3590, %v3563, 0
        %v3597 = vsel %vm3590, %v3564, 0
        %v3598 = vsel %vm3590, %v3565, 0
        %v3599 = vsel %vm3590, %v3566, 0
        %v3600 = vsel %vm3590, %v3567, 0
        %v3601 = vsel %vm3590, %v3568, 0
        %v3602 = vsel %vm3590, %v3569, 0
        %v3603 = vsel %vm3590, %v3570, 0
        %v3604 = vsel %vm3590, %v3571, 0
        %v3605 = vsel %vm3590, %v3572, 0
        %v3606 = vsel %vm3590, %v3573, 0
        %v3607 = vld [vmem:[#allocation11] sm:$0x1]
        %v3609 = vlaneseq
        %v3610 = vshrl.u32 %v3609, 7
        %v3611 = vsub.s32 0, %v3610
        %v3612 = vrot.slane %v3607, %v3611
        %3614 = vst [vmem:[#allocation2] sm:$0xff] %v3612
        %3615 = vst [vmem:[#allocation2 + $0x8] sm:$0xff] %v3612
        %3616 = vst [vmem:[#allocation2 + $0x10] sm:$0xff] %v3612
        %3617 = vst [vmem:[#allocation2 + $0x18] sm:$0xff] %v3612
        %3618 = vst [vmem:[#allocation2 + $0x20] sm:$0xff] %v3612
        %3619 = vst [vmem:[#allocation2 + $0x28] sm:$0xff] %v3612
        %3620 = vst [vmem:[#allocation2 + $0x30] sm:$0xff] %v3612
        %3621 = vst [vmem:[#allocation2 + $0x38] sm:$0xff] %v3612
        %3622 = vst [vmem:[#allocation2 + $0x40] sm:$0xff] %v3612
        %3623 = vst [vmem:[#allocation2 + $0x48] sm:$0xff] %v3612
        %3624 = vst [vmem:[#allocation2 + $0x50] sm:$0xff] %v3612
        %3625 = vst [vmem:[#allocation2 + $0x58] sm:$0xff] %v3612
        %3626 = vst [vmem:[#allocation2 + $0x60] sm:$0xff] %v3612
        %3627 = vst [vmem:[#allocation2 + $0x68] sm:$0xff] %v3612
        %3628 = vst [vmem:[#allocation2 + $0x70] sm:$0xff] %v3612
        %3629 = vst [vmem:[#allocation2 + $0x78] sm:$0xff] %v3612
        %3630 = vst [vmem:[#allocation2 + $0x80] sm:$0xff] %v3612
        %3631 = vst [vmem:[#allocation2 + $0x88] sm:$0xff] %v3612
        %3632 = vst [vmem:[#allocation2 + $0x90] sm:$0xff] %v3612
        %3633 = vst [vmem:[#allocation2 + $0x98] sm:$0xff] %v3612
        %3634 = vst [vmem:[#allocation2 + $0xa0] sm:$0xff] %v3612
        %3635 = vst [vmem:[#allocation2 + $0xa8] sm:$0xff] %v3612
        %3636 = vst [vmem:[#allocation2 + $0xb0] sm:$0xff] %v3612
        %3637 = vst [vmem:[#allocation2 + $0xb8] sm:$0xff] %v3612
        %3638 = vst [vmem:[#allocation2 + $0xc0] sm:$0xff] %v3612
        %3639 = vst [vmem:[#allocation2 + $0xc8] sm:$0xff] %v3612
        %3640 = vst [vmem:[#allocation2 + $0xd0] sm:$0xff] %v3612
        %3641 = vst [vmem:[#allocation2 + $0xd8] sm:$0xff] %v3612
        %3642 = vst [vmem:[#allocation2 + $0xe0] sm:$0xff] %v3612
        %3643 = vst [vmem:[#allocation2 + $0xe8] sm:$0xff] %v3612
        %3644 = vst [vmem:[#allocation2 + $0xf0] sm:$0xff] %v3612
        %3645 = vst [vmem:[#allocation2 + $0xf8] sm:$0xff] %v3612
        %v3647 = vshrl.u32 %v3591, 16
        %v3649 = vrot.slane %v3647, 7
        %v3650 = vshll.u32 %v3591, 16
        %v3652 = vor.u32 %v3649, %v3650
        %v3654 = vshrl.u32 %v3592, 16
        %v3656 = vrot.slane %v3654, 7
        %v3657 = vshll.u32 %v3592, 16
        %v3659 = vor.u32 %v3656, %v3657
        %v3661 = vshrl.u32 %v3593, 16
        %v3663 = vrot.slane %v3661, 7
        %v3664 = vshll.u32 %v3593, 16
        %v3666 = vor.u32 %v3663, %v3664
        %v3668 = vshrl.u32 %v3594, 16
        %v3670 = vrot.slane %v3668, 7
        %v3671 = vshll.u32 %v3594, 16
        %v3673 = vor.u32 %v3670, %v3671
        %v3675 = vshrl.u32 %v3595, 16
        %v3677 = vrot.slane %v3675, 7
        %v3678 = vshll.u32 %v3595, 16
        %v3680 = vor.u32 %v3677, %v3678
        %v3682 = vshrl.u32 %v3596, 16
        %v3684 = vrot.slane %v3682, 7
        %v3685 = vshll.u32 %v3596, 16
        %v3687 = vor.u32 %v3684, %v3685
        %v3689 = vshrl.u32 %v3597, 16
        %v3691 = vrot.slane %v3689, 7
        %v3692 = vshll.u32 %v3597, 16
        %v3694 = vor.u32 %v3691, %v3692
        %v3696 = vshrl.u32 %v3598, 16
        %v3698 = vrot.slane %v3696, 7
        %v3699 = vshll.u32 %v3598, 16
        %v3701 = vor.u32 %v3698, %v3699
        %v3703 = vshrl.u32 %v3599, 16
        %v3705 = vrot.slane %v3703, 7
        %v3706 = vshll.u32 %v3599, 16
        %v3708 = vor.u32 %v3705, %v3706
        %v3710 = vshrl.u32 %v3600, 16
        %v3712 = vrot.slane %v3710, 7
        %v3713 = vshll.u32 %v3600, 16
        %v3715 = vor.u32 %v3712, %v3713
        %v3717 = vshrl.u32 %v3601, 16
        %v3719 = vrot.slane %v3717, 7
        %v3720 = vshll.u32 %v3601, 16
        %v3722 = vor.u32 %v3719, %v3720
        %v3724 = vshrl.u32 %v3602, 16
        %v3726 = vrot.slane %v3724, 7
        %v3727 = vshll.u32 %v3602, 16
        %v3729 = vor.u32 %v3726, %v3727
        %v3731 = vshrl.u32 %v3603, 16
        %v3733 = vrot.slane %v3731, 7
        %v3734 = vshll.u32 %v3603, 16
        %v3736 = vor.u32 %v3733, %v3734
        %v3738 = vshrl.u32 %v3604, 16
        %v3740 = vrot.slane %v3738, 7
        %v3741 = vshll.u32 %v3604, 16
        %v3743 = vor.u32 %v3740, %v3741
        %v3745 = vshrl.u32 %v3605, 16
        %v3747 = vrot.slane %v3745, 7
        %v3748 = vshll.u32 %v3605, 16
        %v3750 = vor.u32 %v3747, %v3748
        %v3752 = vshrl.u32 %v3606, 16
        %v3754 = vrot.slane %v3752, 7
        %v3755 = vshll.u32 %v3606, 16
        %v3757 = vor.u32 %v3754, %v3755
        %v3774 = vsel %vm581, 0, %v3652
        %v3775 = vsel %vm581, 0, %v3659
        %v3776 = vsel %vm581, 0, %v3666
        %v3777 = vsel %vm581, 0, %v3673
        %v3778 = vsel %vm581, 0, %v3680
        %v3779 = vsel %vm581, 0, %v3687
        %v3780 = vsel %vm581, 0, %v3694
        %v3781 = vsel %vm581, 0, %v3701
        %v3782 = vsel %vm581, 0, %v3708
        %v3783 = vsel %vm581, 0, %v3715
        %v3784 = vsel %vm581, 0, %v3722
        %v3785 = vsel %vm581, 0, %v3729
        %v3786 = vsel %vm581, 0, %v3736
        %v3787 = vsel %vm581, 0, %v3743
        %v3788 = vsel %vm581, 0, %v3750
        %v3789 = vsel %vm581, 0, %v3757
        %v3790 = vld [vmem:[#allocation9] sm:$0xf]
        %v3791 = vld [vmem:[#allocation9 + $0x4] sm:$0xf]
        %v3792 = vld [vmem:[#allocation9 + $0x8] sm:$0xf]
        %v3793 = vld [vmem:[#allocation9 + $0xc] sm:$0xf]
        %v3794 = vld [vmem:[#allocation9 + $0x10] sm:$0xf]
        %v3795 = vld [vmem:[#allocation9 + $0x14] sm:$0xf]
        %v3796 = vld [vmem:[#allocation9 + $0x18] sm:$0xf]
        %v3797 = vld [vmem:[#allocation9 + $0x1c] sm:$0xf]
        %v3798 = vld [vmem:[#allocation9 + $0x20] sm:$0xf]
        %v3799 = vld [vmem:[#allocation9 + $0x24] sm:$0xf]
        %v3800 = vld [vmem:[#allocation9 + $0x28] sm:$0xf]
        %v3801 = vld [vmem:[#allocation9 + $0x2c] sm:$0xf]
        %v3802 = vld [vmem:[#allocation9 + $0x30] sm:$0xf]
        %v3803 = vld [vmem:[#allocation9 + $0x34] sm:$0xf]
        %v3804 = vld [vmem:[#allocation9 + $0x38] sm:$0xf]
        %v3805 = vld [vmem:[#allocation9 + $0x3c] sm:$0xf]
        %v3822 = vunpack.c.l.b16 %v3790
        %v3823 = vunpack.c.l.b16 %v3791
        %v3824 = vunpack.c.l.b16 %v3792
        %v3825 = vunpack.c.l.b16 %v3793
        %v3826 = vunpack.c.l.b16 %v3794
        %v3827 = vunpack.c.l.b16 %v3795
        %v3828 = vunpack.c.l.b16 %v3796
        %v3829 = vunpack.c.l.b16 %v3797
        %v3830 = vunpack.c.l.b16 %v3798
        %v3831 = vunpack.c.l.b16 %v3799
        %v3832 = vunpack.c.l.b16 %v3800
        %v3833 = vunpack.c.l.b16 %v3801
        %v3834 = vunpack.c.l.b16 %v3802
        %v3835 = vunpack.c.l.b16 %v3803
        %v3836 = vunpack.c.l.b16 %v3804
        %v3837 = vunpack.c.l.b16 %v3805
        %v3838 = vpack.c.b16 %v3823, %v3822
        %v3839 = vpack.c.b16 %v3825, %v3824
        %v3840 = vpack.c.b16 %v3827, %v3826
        %v3841 = vpack.c.b16 %v3829, %v3828
        %v3842 = vpack.c.b16 %v3831, %v3830
        %v3843 = vpack.c.b16 %v3833, %v3832
        %v3844 = vpack.c.b16 %v3835, %v3834
        %v3845 = vpack.c.b16 %v3837, %v3836
        %3854 = vmatprep.subr.bf16.mxu0 0
        %3855 = vmatpush1.bf16.msra.mxu0 %v3838
        %3856 = vmatprep.subr.bf16.mxu0 0
        %3857 = vmatpush1.bf16.msra.mxu0 %v3839
        %3858 = vmatprep.subr.bf16.mxu0 0
        %3859 = vmatpush1.bf16.msra.mxu0 %v3840
        %3860 = vmatprep.subr.bf16.mxu0 0
        %3861 = vmatpush1.bf16.msra.mxu0 %v3841
        %3862 = vmatprep.subr.bf16.mxu0 0
        %3863 = vmatpush1.bf16.msra.mxu0 %v3842
        %3864 = vmatprep.subr.bf16.mxu0 0
        %3865 = vmatpush1.bf16.msra.mxu0 %v3843
        %3866 = vmatprep.subr.bf16.mxu0 0
        %3867 = vmatpush1.bf16.msra.mxu0 %v3844
        %3868 = vmatprep.subr.bf16.mxu0 0
        %3869 = vmatpush1.bf16.msra.mxu0 %v3845
        %3870 = vmatprep.subr.bf16.mxu0 0
        %3871 = vmatpush1.bf16.msra.mxu0 0
        %3872 = vmatprep.subr.bf16.mxu0 0
        %3873 = vmatpush1.bf16.msra.mxu0 0
        %3874 = vmatprep.subr.bf16.mxu0 0
        %3875 = vmatpush1.bf16.msra.mxu0 0
        %3876 = vmatprep.subr.bf16.mxu0 0
        %3877 = vmatpush1.bf16.msra.mxu0 0
        %3878 = vmatprep.subr.bf16.mxu0 0
        %3879 = vmatpush1.bf16.msra.mxu0 0
        %3880 = vmatprep.subr.bf16.mxu0 0
        %3881 = vmatpush1.bf16.msra.mxu0 0
        %3882 = vmatprep.subr.bf16.mxu0 0
        %3883 = vmatpush1.bf16.msra.mxu0 0
        %3884 = vmatprep.subr.bf16.mxu0 0
        %3885 = vmatpush1.bf16.msra.mxu0 0
        %3886 = vmatprep.mubr.bf16.mxu0 0
        %3887 = vmatmul.mubr.bf16.gmra.mrb[0].mxu0 %v3774
        %v3888 = vpop.f32.mrb[0].mxu0
        %v3889 = vadd.f32 0.0, %v3888
        %v3890 = vpop.f32.mrb[0].mxu0
        %v3891 = vpop.f32.mrb[0].mxu0
        %v3892 = vadd.f32 0.0, %v3891
        %v3893 = vpop.f32.mrb[0].mxu0
        %3894 = vmatprep.mubr.bf16.mxu0 0
        %3895 = vmatmul.mubr.bf16.gmra.mrb[0].mxu0 %v3775
        %v3896 = vpop.f32.mrb[0].mxu0
        %v3897 = vadd.f32 0.0, %v3896
        %v3898 = vpop.f32.mrb[0].mxu0
        %v3899 = vpop.f32.mrb[0].mxu0
        %v3900 = vadd.f32 0.0, %v3899
        %v3901 = vpop.f32.mrb[0].mxu0
        %3902 = vmatprep.mubr.bf16.mxu0 0
        %3903 = vmatmul.mubr.bf16.gmra.mrb[0].mxu0 %v3776
        %v3904 = vpop.f32.mrb[0].mxu0
        %v3905 = vadd.f32 0.0, %v3904
        %v3906 = vpop.f32.mrb[0].mxu0
        %v3907 = vpop.f32.mrb[0].mxu0
        %v3908 = vadd.f32 0.0, %v3907
        %v3909 = vpop.f32.mrb[0].mxu0
        %3910 = vmatprep.mubr.bf16.mxu0 0
        %3911 = vmatmul.mubr.bf16.gmra.mrb[0].mxu0 %v3777
        %v3912 = vpop.f32.mrb[0].mxu0
        %v3913 = vadd.f32 0.0, %v3912
        %v3914 = vpop.f32.mrb[0].mxu0
        %v3915 = vpop.f32.mrb[0].mxu0
        %v3916 = vadd.f32 0.0, %v3915
        %v3917 = vpop.f32.mrb[0].mxu0
        %3918 = vmatprep.mubr.bf16.mxu0 0
        %3919 = vmatmul.mubr.bf16.gmra.mrb[0].mxu0 %v3778
        %v3920 = vpop.f32.mrb[0].mxu0
        %v3921 = vadd.f32 0.0, %v3920
        %v3922 = vpop.f32.mrb[0].mxu0
        %v3923 = vpop.f32.mrb[0].mxu0
        %v3924 = vadd.f32 0.0, %v3923
        %v3925 = vpop.f32.mrb[0].mxu0
        %3926 = vmatprep.mubr.bf16.mxu0 0
        %3927 = vmatmul.mubr.bf16.gmra.mrb[0].mxu0 %v3779
        %v3928 = vpop.f32.mrb[0].mxu0
        %v3929 = vadd.f32 0.0, %v3928
        %v3930 = vpop.f32.mrb[0].mxu0
        %v3931 = vpop.f32.mrb[0].mxu0
        %v3932 = vadd.f32 0.0, %v3931
        %v3933 = vpop.f32.mrb[0].mxu0
        %3934 = vmatprep.mubr.bf16.mxu0 0
        %3935 = vmatmul.mubr.bf16.gmra.mrb[0].mxu0 %v3780
        %v3936 = vpop.f32.mrb[0].mxu0
        %v3937 = vadd.f32 0.0, %v3936
        %v3938 = vpop.f32.mrb[0].mxu0
        %v3939 = vpop.f32.mrb[0].mxu0
        %v3940 = vadd.f32 0.0, %v3939
        %v3941 = vpop.f32.mrb[0].mxu0
        %3942 = vmatprep.mubr.bf16.mxu0 0
        %3943 = vmatmul.mubr.bf16.gmra.mrb[0].mxu0 %v3781
        %v3944 = vpop.f32.mrb[0].mxu0
        %v3945 = vadd.f32 0.0, %v3944
        %v3946 = vpop.f32.mrb[0].mxu0
        %v3947 = vpop.f32.mrb[0].mxu0
        %v3948 = vadd.f32 0.0, %v3947
        %v3949 = vpop.f32.mrb[0].mxu0
        %3950 = vmatprep.mubr.bf16.mxu0 0
        %3951 = vmatmul.mubr.bf16.gmra.mrb[0].mxu0 %v3782
        %v3952 = vpop.f32.mrb[0].mxu0
        %v3953 = vadd.f32 0.0, %v3952
        %v3954 = vpop.f32.mrb[0].mxu0
        %v3955 = vpop.f32.mrb[0].mxu0
        %v3956 = vadd.f32 0.0, %v3955
        %v3957 = vpop.f32.mrb[0].mxu0
        %3958 = vmatprep.mubr.bf16.mxu0 0
        %3959 = vmatmul.mubr.bf16.gmra.mrb[0].mxu0 %v3783
        %v3960 = vpop.f32.mrb[0].mxu0
        %v3961 = vadd.f32 0.0, %v3960
        %v3962 = vpop.f32.mrb[0].mxu0
        %v3963 = vpop.f32.mrb[0].mxu0
        %v3964 = vadd.f32 0.0, %v3963
        %v3965 = vpop.f32.mrb[0].mxu0
        %3966 = vmatprep.mubr.bf16.mxu0 0
        %3967 = vmatmul.mubr.bf16.gmra.mrb[0].mxu0 %v3784
        %v3968 = vpop.f32.mrb[0].mxu0
        %v3969 = vadd.f32 0.0, %v3968
        %v3970 = vpop.f32.mrb[0].mxu0
        %v3971 = vpop.f32.mrb[0].mxu0
        %v3972 = vadd.f32 0.0, %v3971
        %v3973 = vpop.f32.mrb[0].mxu0
        %3974 = vmatprep.mubr.bf16.mxu0 0
        %3975 = vmatmul.mubr.bf16.gmra.mrb[0].mxu0 %v3785
        %v3976 = vpop.f32.mrb[0].mxu0
        %v3977 = vadd.f32 0.0, %v3976
        %v3978 = vpop.f32.mrb[0].mxu0
        %v3979 = vpop.f32.mrb[0].mxu0
        %v3980 = vadd.f32 0.0, %v3979
        %v3981 = vpop.f32.mrb[0].mxu0
        %3982 = vmatprep.mubr.bf16.mxu0 0
        %3983 = vmatmul.mubr.bf16.gmra.mrb[0].mxu0 %v3786
        %v3984 = vpop.f32.mrb[0].mxu0
        %v3985 = vadd.f32 0.0, %v3984
        %v3986 = vpop.f32.mrb[0].mxu0
        %v3987 = vpop.f32.mrb[0].mxu0
        %v3988 = vadd.f32 0.0, %v3987
        %v3989 = vpop.f32.mrb[0].mxu0
        %3990 = vmatprep.mubr.bf16.mxu0 0
        %3991 = vmatmul.mubr.bf16.gmra.mrb[0].mxu0 %v3787
        %v3992 = vpop.f32.mrb[0].mxu0
        %v3993 = vadd.f32 0.0, %v3992
        %v3994 = vpop.f32.mrb[0].mxu0
        %v3995 = vpop.f32.mrb[0].mxu0
        %v3996 = vadd.f32 0.0, %v3995
        %v3997 = vpop.f32.mrb[0].mxu0
        %3998 = vmatprep.mubr.bf16.mxu0 0
        %3999 = vmatmul.mubr.bf16.gmra.mrb[0].mxu0 %v3788
        %v4000 = vpop.f32.mrb[0].mxu0
        %v4001 = vadd.f32 0.0, %v4000
        %v4002 = vpop.f32.mrb[0].mxu0
        %v4003 = vpop.f32.mrb[0].mxu0
        %v4004 = vadd.f32 0.0, %v4003
        %v4005 = vpop.f32.mrb[0].mxu0
        %4006 = vdwg.mxu0
        %v4007 = vld [vmem:[#allocation2 + $0x10] sm:$0xff]
        %v4008 = vld [vmem:[#allocation2 + $0x18] sm:$0xff]
        %v4009 = vld [vmem:[#allocation2 + $0x20] sm:$0xff]
        %v4010 = vld [vmem:[#allocation2 + $0x28] sm:$0xff]
        %v4011 = vld [vmem:[#allocation2 + $0x30] sm:$0xff]
        %v4012 = vld [vmem:[#allocation2 + $0x38] sm:$0xff]
        %v4013 = vld [vmem:[#allocation2 + $0x40] sm:$0xff]
        %v4014 = vld [vmem:[#allocation2 + $0x48] sm:$0xff]
        %v4015 = vld [vmem:[#allocation2 + $0x50] sm:$0xff]
        %v4016 = vld [vmem:[#allocation2 + $0x58] sm:$0xff]
        %v4017 = vld [vmem:[#allocation2 + $0x60] sm:$0xff]
        %v4018 = vld [vmem:[#allocation2 + $0x68] sm:$0xff]
        %v4019 = vld [vmem:[#allocation2 + $0x70] sm:$0xff]
        %v4020 = vld [vmem:[#allocation2 + $0x78] sm:$0xff]
        %v4021 = vld [vmem:[#allocation2 + $0x80] sm:$0xff]
        %v4022 = vld [vmem:[#allocation2 + $0x88] sm:$0xff]
        %v4023 = vld [vmem:[#allocation2 + $0x90] sm:$0xff]
        %v4024 = vld [vmem:[#allocation2 + $0x98] sm:$0xff]
        %v4025 = vld [vmem:[#allocation2 + $0xa0] sm:$0xff]
        %v4026 = vld [vmem:[#allocation2 + $0xa8] sm:$0xff]
        %v4027 = vld [vmem:[#allocation2 + $0xb0] sm:$0xff]
        %v4028 = vld [vmem:[#allocation2 + $0xb8] sm:$0xff]
        %v4029 = vld [vmem:[#allocation2 + $0xc0] sm:$0xff]
        %v4030 = vld [vmem:[#allocation2 + $0xc8] sm:$0xff]
        %v4031 = vld [vmem:[#allocation2 + $0xd0] sm:$0xff]
        %v4032 = vld [vmem:[#allocation2 + $0xd8] sm:$0xff]
        %v4033 = vld [vmem:[#allocation2 + $0xe0] sm:$0xff]
        %v4034 = vld [vmem:[#allocation2 + $0xe8] sm:$0xff]
        %v4035 = vld [vmem:[#allocation2 + $0xf0] sm:$0xff]
        %v4036 = vld [vmem:[#allocation2 + $0xf8] sm:$0xff]
        %v4037 = vadd.f32 %v4007, %v3889
        %v4038 = vadd.f32 %v4008, %v3892
        %v4039 = vadd.f32 %v4009, %v3897
        %v4040 = vadd.f32 %v4010, %v3900
        %v4041 = vadd.f32 %v4011, %v3905
        %v4042 = vadd.f32 %v4012, %v3908
        %v4043 = vadd.f32 %v4013, %v3913
        %v4044 = vadd.f32 %v4014, %v3916
        %v4045 = vadd.f32 %v4015, %v3921
        %v4046 = vadd.f32 %v4016, %v3924
        %v4047 = vadd.f32 %v4017, %v3929
        %v4048 = vadd.f32 %v4018, %v3932
        %v4049 = vadd.f32 %v4019, %v3937
        %v4050 = vadd.f32 %v4020, %v3940
        %v4051 = vadd.f32 %v4021, %v3945
        %v4052 = vadd.f32 %v4022, %v3948
        %v4053 = vadd.f32 %v4023, %v3953
        %v4054 = vadd.f32 %v4024, %v3956
        %v4055 = vadd.f32 %v4025, %v3961
        %v4056 = vadd.f32 %v4026, %v3964
        %v4057 = vadd.f32 %v4027, %v3969
        %v4058 = vadd.f32 %v4028, %v3972
        %v4059 = vadd.f32 %v4029, %v3977
        %v4060 = vadd.f32 %v4030, %v3980
        %v4061 = vadd.f32 %v4031, %v3985
        %v4062 = vadd.f32 %v4032, %v3988
        %v4063 = vadd.f32 %v4033, %v3993
        %v4064 = vadd.f32 %v4034, %v3996
        %v4065 = vadd.f32 %v4035, %v4001
        %v4066 = vadd.f32 %v4036, %v4004
        %4067 = vst [vmem:[#allocation2 + $0x10] sm:$0xff] %v4037
        %4068 = vst [vmem:[#allocation2 + $0x18] sm:$0xff] %v4038
        %4069 = vst [vmem:[#allocation2 + $0x20] sm:$0xff] %v4039
        %4070 = vst [vmem:[#allocation2 + $0x28] sm:$0xff] %v4040
        %4071 = vst [vmem:[#allocation2 + $0x30] sm:$0xff] %v4041
        %4072 = vst [vmem:[#allocation2 + $0x38] sm:$0xff] %v4042
        %4073 = vst [vmem:[#allocation2 + $0x40] sm:$0xff] %v4043
        %4074 = vst [vmem:[#allocation2 + $0x48] sm:$0xff] %v4044
        %4075 = vst [vmem:[#allocation2 + $0x50] sm:$0xff] %v4045
        %4076 = vst [vmem:[#allocation2 + $0x58] sm:$0xff] %v4046
        %4077 = vst [vmem:[#allocation2 + $0x60] sm:$0xff] %v4047
        %4078 = vst [vmem:[#allocation2 + $0x68] sm:$0xff] %v4048
        %4079 = vst [vmem:[#allocation2 + $0x70] sm:$0xff] %v4049
        %4080 = vst [vmem:[#allocation2 + $0x78] sm:$0xff] %v4050
        %4081 = vst [vmem:[#allocation2 + $0x80] sm:$0xff] %v4051
        %4082 = vst [vmem:[#allocation2 + $0x88] sm:$0xff] %v4052
        %4083 = vst [vmem:[#allocation2 + $0x90] sm:$0xff] %v4053
        %4084 = vst [vmem:[#allocation2 + $0x98] sm:$0xff] %v4054
        %4085 = vst [vmem:[#allocation2 + $0xa0] sm:$0xff] %v4055
        %4086 = vst [vmem:[#allocation2 + $0xa8] sm:$0xff] %v4056
        %4087 = vst [vmem:[#allocation2 + $0xb0] sm:$0xff] %v4057
        %4088 = vst [vmem:[#allocation2 + $0xb8] sm:$0xff] %v4058
        %4089 = vst [vmem:[#allocation2 + $0xc0] sm:$0xff] %v4059
        %4090 = vst [vmem:[#allocation2 + $0xc8] sm:$0xff] %v4060
        %4091 = vst [vmem:[#allocation2 + $0xd0] sm:$0xff] %v4061
        %4092 = vst [vmem:[#allocation2 + $0xd8] sm:$0xff] %v4062
        %4093 = vst [vmem:[#allocation2 + $0xe0] sm:$0xff] %v4063
        %4094 = vst [vmem:[#allocation2 + $0xe8] sm:$0xff] %v4064
        %4095 = vst [vmem:[#allocation2 + $0xf0] sm:$0xff] %v4065
        %4096 = vst [vmem:[#allocation2 + $0xf8] sm:$0xff] %v4066
        %s4097 = scalar_lea.vmem [#allocation9], 192
        %v4098 = vld [vmem:[%s4097] sm:$0xf]
        %v4099 = vld [vmem:[%s4097 + $0x4] sm:$0xf]
        %v4100 = vld [vmem:[%s4097 + $0x8] sm:$0xf]
        %v4101 = vld [vmem:[%s4097 + $0xc] sm:$0xf]
        %v4102 = vld [vmem:[%s4097 + $0x10] sm:$0xf]
        %v4103 = vld [vmem:[%s4097 + $0x14] sm:$0xf]
        %v4104 = vld [vmem:[%s4097 + $0x18] sm:$0xf]
        %v4105 = vld [vmem:[%s4097 + $0x1c] sm:$0xf]
        %v4106 = vld [vmem:[%s4097 + $0x20] sm:$0xf]
        %v4107 = vld [vmem:[%s4097 + $0x24] sm:$0xf]
        %v4108 = vld [vmem:[%s4097 + $0x28] sm:$0xf]
        %v4109 = vld [vmem:[%s4097 + $0x2c] sm:$0xf]
        %v4110 = vld [vmem:[%s4097 + $0x30] sm:$0xf]
        %v4111 = vld [vmem:[%s4097 + $0x34] sm:$0xf]
        %v4112 = vld [vmem:[%s4097 + $0x38] sm:$0xf]
        %v4113 = vld [vmem:[%s4097 + $0x3c] sm:$0xf]
        %v4130 = vunpack.c.l.b16 %v4098
        %v4131 = vunpack.c.l.b16 %v4099
        %v4132 = vunpack.c.l.b16 %v4100
        %v4133 = vunpack.c.l.b16 %v4101
        %v4134 = vunpack.c.l.b16 %v4102
        %v4135 = vunpack.c.l.b16 %v4103
        %v4136 = vunpack.c.l.b16 %v4104
        %v4137 = vunpack.c.l.b16 %v4105
        %v4138 = vunpack.c.l.b16 %v4106
        %v4139 = vunpack.c.l.b16 %v4107
        %v4140 = vunpack.c.l.b16 %v4108
        %v4141 = vunpack.c.l.b16 %v4109
        %v4142 = vunpack.c.l.b16 %v4110
        %v4143 = vunpack.c.l.b16 %v4111
        %v4144 = vunpack.c.l.b16 %v4112
        %v4145 = vunpack.c.l.b16 %v4113
        %v4146 = vpack.c.b16 %v4131, %v4130
        %v4147 = vpack.c.b16 %v4133, %v4132
        %v4148 = vpack.c.b16 %v4135, %v4134
        %v4149 = vpack.c.b16 %v4137, %v4136
        %v4150 = vpack.c.b16 %v4139, %v4138
        %v4151 = vpack.c.b16 %v4141, %v4140
        %v4152 = vpack.c.b16 %v4143, %v4142
        %v4153 = vpack.c.b16 %v4145, %v4144
        %4162 = vmatprep.subr.bf16.mxu0 0
        %4163 = vmatpush1.bf16.msra.mxu0 %v4146
        %4164 = vmatprep.subr.bf16.mxu0 0
        %4165 = vmatpush1.bf16.msra.mxu0 %v4147
        %4166 = vmatprep.subr.bf16.mxu0 0
        %4167 = vmatpush1.bf16.msra.mxu0 %v4148
        %4168 = vmatprep.subr.bf16.mxu0 0
        %4169 = vmatpush1.bf16.msra.mxu0 %v4149
        %4170 = vmatprep.subr.bf16.mxu0 0
        %4171 = vmatpush1.bf16.msra.mxu0 %v4150
        %4172 = vmatprep.subr.bf16.mxu0 0
        %4173 = vmatpush1.bf16.msra.mxu0 %v4151
        %4174 = vmatprep.subr.bf16.mxu0 0
        %4175 = vmatpush1.bf16.msra.mxu0 %v4152
        %4176 = vmatprep.subr.bf16.mxu0 0
        %4177 = vmatpush1.bf16.msra.mxu0 %v4153
        %4178 = vmatprep.subr.bf16.mxu0 0
        %4179 = vmatpush1.bf16.msra.mxu0 0
        %4180 = vmatprep.subr.bf16.mxu0 0
        %4181 = vmatpush1.bf16.msra.mxu0 0
        %4182 = vmatprep.subr.bf16.mxu0 0
        %4183 = vmatpush1.bf16.msra.mxu0 0
        %4184 = vmatprep.subr.bf16.mxu0 0
        %4185 = vmatpush1.bf16.msra.mxu0 0
        %4186 = vmatprep.subr.bf16.mxu0 0
        %4187 = vmatpush1.bf16.msra.mxu0 0
        %4188 = vmatprep.subr.bf16.mxu0 0
        %4189 = vmatpush1.bf16.msra.mxu0 0
        %4190 = vmatprep.subr.bf16.mxu0 0
        %4191 = vmatpush1.bf16.msra.mxu0 0
        %4192 = vmatprep.subr.bf16.mxu0 0
        %4193 = vmatpush1.bf16.msra.mxu0 0
        %4194 = vmatprep.mubr.bf16.mxu0 0
        %4195 = vmatmul.mubr.bf16.gmra.mrb[0].mxu0 %v3774
        %v4196 = vpop.f32.mrb[0].mxu0
        %v4197 = vadd.f32 0.0, %v4196
        %v4198 = vpop.f32.mrb[0].mxu0
        %v4199 = vpop.f32.mrb[0].mxu0
        %v4200 = vadd.f32 0.0, %v4199
        %v4201 = vpop.f32.mrb[0].mxu0
        %4202 = vmatprep.mubr.bf16.mxu0 0
        %4203 = vmatmul.mubr.bf16.gmra.mrb[0].mxu0 %v3775
        %v4204 = vpop.f32.mrb[0].mxu0
        %v4205 = vadd.f32 0.0, %v4204
        %v4206 = vpop.f32.mrb[0].mxu0
        %v4207 = vpop.f32.mrb[0].mxu0
        %v4208 = vadd.f32 0.0, %v4207
        %v4209 = vpop.f32.mrb[0].mxu0
        %4210 = vmatprep.mubr.bf16.mxu0 0
        %4211 = vmatmul.mubr.bf16.gmra.mrb[0].mxu0 %v3776
        %v4212 = vpop.f32.mrb[0].mxu0
        %v4213 = vadd.f32 0.0, %v4212
        %v4214 = vpop.f32.mrb[0].mxu0
        %v4215 = vpop.f32.mrb[0].mxu0
        %v4216 = vadd.f32 0.0, %v4215
        %v4217 = vpop.f32.mrb[0].mxu0
        %4218 = vmatprep.mubr.bf16.mxu0 0
        %4219 = vmatmul.mubr.bf16.gmra.mrb[0].mxu0 %v3777
        %v4220 = vpop.f32.mrb[0].mxu0
        %v4221 = vadd.f32 0.0, %v4220
        %v4222 = vpop.f32.mrb[0].mxu0
        %v4223 = vpop.f32.mrb[0].mxu0
        %v4224 = vadd.f32 0.0, %v4223
        %v4225 = vpop.f32.mrb[0].mxu0
        %4226 = vmatprep.mubr.bf16.mxu0 0
        %4227 = vmatmul.mubr.bf16.gmra.mrb[0].mxu0 %v3778
        %v4228 = vpop.f32.mrb[0].mxu0
        %v4229 = vadd.f32 0.0, %v4228
        %v4230 = vpop.f32.mrb[0].mxu0
        %v4231 = vpop.f32.mrb[0].mxu0
        %v4232 = vadd.f32 0.0, %v4231
        %v4233 = vpop.f32.mrb[0].mxu0
        %4234 = vmatprep.mubr.bf16.mxu0 0
        %4235 = vmatmul.mubr.bf16.gmra.mrb[0].mxu0 %v3779
        %v4236 = vpop.f32.mrb[0].mxu0
        %v4237 = vadd.f32 0.0, %v4236
        %v4238 = vpop.f32.mrb[0].mxu0
        %v4239 = vpop.f32.mrb[0].mxu0
        %v4240 = vadd.f32 0.0, %v4239
        %v4241 = vpop.f32.mrb[0].mxu0
        %4242 = vmatprep.mubr.bf16.mxu0 0
        %4243 = vmatmul.mubr.bf16.gmra.mrb[0].mxu0 %v3780
        %v4244 = vpop.f32.mrb[0].mxu0
        %v4245 = vadd.f32 0.0, %v4244
        %v4246 = vpop.f32.mrb[0].mxu0
        %v4247 = vpop.f32.mrb[0].mxu0
        %v4248 = vadd.f32 0.0, %v4247
        %v4249 = vpop.f32.mrb[0].mxu0
        %4250 = vmatprep.mubr.bf16.mxu0 0
        %4251 = vmatmul.mubr.bf16.gmra.mrb[0].mxu0 %v3781
        %v4252 = vpop.f32.mrb[0].mxu0
        %v4253 = vadd.f32 0.0, %v4252
        %v4254 = vpop.f32.mrb[0].mxu0
        %v4255 = vpop.f32.mrb[0].mxu0
        %v4256 = vadd.f32 0.0, %v4255
        %v4257 = vpop.f32.mrb[0].mxu0
        %4258 = vmatprep.mubr.bf16.mxu0 0
        %4259 = vmatmul.mubr.bf16.gmra.mrb[0].mxu0 %v3782
        %v4260 = vpop.f32.mrb[0].mxu0
        %v4261 = vadd.f32 0.0, %v4260
        %v4262 = vpop.f32.mrb[0].mxu0
        %v4263 = vpop.f32.mrb[0].mxu0
        %v4264 = vadd.f32 0.0, %v4263
        %v4265 = vpop.f32.mrb[0].mxu0
        %4266 = vmatprep.mubr.bf16.mxu0 0
        %4267 = vmatmul.mubr.bf16.gmra.mrb[0].mxu0 %v3783
        %v4268 = vpop.f32.mrb[0].mxu0
        %v4269 = vadd.f32 0.0, %v4268
        %v4270 = vpop.f32.mrb[0].mxu0
        %v4271 = vpop.f32.mrb[0].mxu0
        %v4272 = vadd.f32 0.0, %v4271
        %v4273 = vpop.f32.mrb[0].mxu0
        %4274 = vmatprep.mubr.bf16.mxu0 0
        %4275 = vmatmul.mubr.bf16.gmra.mrb[0].mxu0 %v3784
        %v4276 = vpop.f32.mrb[0].mxu0
        %v4277 = vadd.f32 0.0, %v4276
        %v4278 = vpop.f32.mrb[0].mxu0
        %v4279 = vpop.f32.mrb[0].mxu0
        %v4280 = vadd.f32 0.0, %v4279
        %v4281 = vpop.f32.mrb[0].mxu0
        %4282 = vmatprep.mubr.bf16.mxu0 0
        %4283 = vmatmul.mubr.bf16.gmra.mrb[0].mxu0 %v3785
        %v4284 = vpop.f32.mrb[0].mxu0
        %v4285 = vadd.f32 0.0, %v4284
        %v4286 = vpop.f32.mrb[0].mxu0
        %v4287 = vpop.f32.mrb[0].mxu0
        %v4288 = vadd.f32 0.0, %v4287
        %v4289 = vpop.f32.mrb[0].mxu0
        %4290 = vmatprep.mubr.bf16.mxu0 0
        %4291 = vmatmul.mubr.bf16.gmra.mrb[0].mxu0 %v3786
        %v4292 = vpop.f32.mrb[0].mxu0
        %v4293 = vadd.f32 0.0, %v4292
        %v4294 = vpop.f32.mrb[0].mxu0
        %v4295 = vpop.f32.mrb[0].mxu0
        %v4296 = vadd.f32 0.0, %v4295
        %v4297 = vpop.f32.mrb[0].mxu0
        %4298 = vmatprep.mubr.bf16.mxu0 0
        %4299 = vmatmul.mubr.bf16.gmra.mrb[0].mxu0 %v3787
        %v4300 = vpop.f32.mrb[0].mxu0
        %v4301 = vadd.f32 0.0, %v4300
        %v4302 = vpop.f32.mrb[0].mxu0
        %v4303 = vpop.f32.mrb[0].mxu0
        %v4304 = vadd.f32 0.0, %v4303
        %v4305 = vpop.f32.mrb[0].mxu0
        %4306 = vmatprep.mubr.bf16.mxu0 0
        %4307 = vmatmul.mubr.bf16.gmra.mrb[0].mxu0 %v3788
        %v4308 = vpop.f32.mrb[0].mxu0
        %v4309 = vadd.f32 0.0, %v4308
        %v4310 = vpop.f32.mrb[0].mxu0
        %v4311 = vpop.f32.mrb[0].mxu0
        %v4312 = vadd.f32 0.0, %v4311
        %v4313 = vpop.f32.mrb[0].mxu0
        %4314 = vmatprep.mubr.bf16.mxu0 0
        %4315 = vmatmul.mubr.bf16.gmra.mrb[0].mxu0 %v3789
        %v4316 = vpop.f32.mrb[0].mxu0
        %v4317 = vadd.f32 0.0, %v4316
        %v4318 = vpop.f32.mrb[0].mxu0
        %v4319 = vpop.f32.mrb[0].mxu0
        %v4320 = vadd.f32 0.0, %v4319
        %v4321 = vpop.f32.mrb[0].mxu0
        %4322 = vdwg.mxu0
        %v4323 = vld [vmem:[#allocation2] sm:$0xff]
        %v4324 = vld [vmem:[#allocation2 + $0x8] sm:$0xff]
        %v4325 = vld [vmem:[#allocation2 + $0x10] sm:$0xff]
        %v4326 = vld [vmem:[#allocation2 + $0x18] sm:$0xff]
        %v4327 = vld [vmem:[#allocation2 + $0x20] sm:$0xff]
        %v4328 = vld [vmem:[#allocation2 + $0x28] sm:$0xff]
        %v4329 = vld [vmem:[#allocation2 + $0x30] sm:$0xff]
        %v4330 = vld [vmem:[#allocation2 + $0x38] sm:$0xff]
        %v4331 = vld [vmem:[#allocation2 + $0x40] sm:$0xff]
        %v4332 = vld [vmem:[#allocation2 + $0x48] sm:$0xff]
        %v4333 = vld [vmem:[#allocation2 + $0x50] sm:$0xff]
        %v4334 = vld [vmem:[#allocation2 + $0x58] sm:$0xff]
        %v4335 = vld [vmem:[#allocation2 + $0x60] sm:$0xff]
        %v4336 = vld [vmem:[#allocation2 + $0x68] sm:$0xff]
        %v4337 = vld [vmem:[#allocation2 + $0x70] sm:$0xff]
        %v4338 = vld [vmem:[#allocation2 + $0x78] sm:$0xff]
        %v4339 = vld [vmem:[#allocation2 + $0x80] sm:$0xff]
        %v4340 = vld [vmem:[#allocation2 + $0x88] sm:$0xff]
        %v4341 = vld [vmem:[#allocation2 + $0x90] sm:$0xff]
        %v4342 = vld [vmem:[#allocation2 + $0x98] sm:$0xff]
        %v4343 = vld [vmem:[#allocation2 + $0xa0] sm:$0xff]
        %v4344 = vld [vmem:[#allocation2 + $0xa8] sm:$0xff]
        %v4345 = vld [vmem:[#allocation2 + $0xb0] sm:$0xff]
        %v4346 = vld [vmem:[#allocation2 + $0xb8] sm:$0xff]
        %v4347 = vld [vmem:[#allocation2 + $0xc0] sm:$0xff]
        %v4348 = vld [vmem:[#allocation2 + $0xc8] sm:$0xff]
        %v4349 = vld [vmem:[#allocation2 + $0xd0] sm:$0xff]
        %v4350 = vld [vmem:[#allocation2 + $0xd8] sm:$0xff]
        %v4351 = vld [vmem:[#allocation2 + $0xe0] sm:$0xff]
        %v4352 = vld [vmem:[#allocation2 + $0xe8] sm:$0xff]
        %v4353 = vld [vmem:[#allocation2 + $0xf0] sm:$0xff]
        %v4354 = vld [vmem:[#allocation2 + $0xf8] sm:$0xff]
        %v4355 = vadd.f32 %v4323, %v4197
        %v4356 = vadd.f32 %v4324, %v4200
        %v4357 = vadd.f32 %v4325, %v4205
        %v4358 = vadd.f32 %v4326, %v4208
        %v4359 = vadd.f32 %v4327, %v4213
        %v4360 = vadd.f32 %v4328, %v4216
        %v4361 = vadd.f32 %v4329, %v4221
        %v4362 = vadd.f32 %v4330, %v4224
        %v4363 = vadd.f32 %v4331, %v4229
        %v4364 = vadd.f32 %v4332, %v4232
        %v4365 = vadd.f32 %v4333, %v4237
        %v4366 = vadd.f32 %v4334, %v4240
        %v4367 = vadd.f32 %v4335, %v4245
        %v4368 = vadd.f32 %v4336, %v4248
        %v4369 = vadd.f32 %v4337, %v4253
        %v4370 = vadd.f32 %v4338, %v4256
        %v4371 = vadd.f32 %v4339, %v4261
        %v4372 = vadd.f32 %v4340, %v4264
        %v4373 = vadd.f32 %v4341, %v4269
        %v4374 = vadd.f32 %v4342, %v4272
        %v4375 = vadd.f32 %v4343, %v4277
        %v4376 = vadd.f32 %v4344, %v4280
        %v4377 = vadd.f32 %v4345, %v4285
        %v4378 = vadd.f32 %v4346, %v4288
        %v4379 = vadd.f32 %v4347, %v4293
        %v4380 = vadd.f32 %v4348, %v4296
        %v4381 = vadd.f32 %v4349, %v4301
        %v4382 = vadd.f32 %v4350, %v4304
        %v4383 = vadd.f32 %v4351, %v4309
        %v4384 = vadd.f32 %v4352, %v4312
        %v4385 = vadd.f32 %v4353, %v4317
        %v4386 = vadd.f32 %v4354, %v4320
        %4387 = vst [vmem:[#allocation2] sm:$0xff] %v4355
        %4388 = vst [vmem:[#allocation2 + $0x8] sm:$0xff] %v4356
        %4389 = vst [vmem:[#allocation2 + $0x10] sm:$0xff] %v4357
        %4390 = vst [vmem:[#allocation2 + $0x18] sm:$0xff] %v4358
        %4391 = vst [vmem:[#allocation2 + $0x20] sm:$0xff] %v4359
        %4392 = vst [vmem:[#allocation2 + $0x28] sm:$0xff] %v4360
        %4393 = vst [vmem:[#allocation2 + $0x30] sm:$0xff] %v4361
        %4394 = vst [vmem:[#allocation2 + $0x38] sm:$0xff] %v4362
        %4395 = vst [vmem:[#allocation2 + $0x40] sm:$0xff] %v4363
        %4396 = vst [vmem:[#allocation2 + $0x48] sm:$0xff] %v4364
        %4397 = vst [vmem:[#allocation2 + $0x50] sm:$0xff] %v4365
        %4398 = vst [vmem:[#allocation2 + $0x58] sm:$0xff] %v4366
        %4399 = vst [vmem:[#allocation2 + $0x60] sm:$0xff] %v4367
        %4400 = vst [vmem:[#allocation2 + $0x68] sm:$0xff] %v4368
        %4401 = vst [vmem:[#allocation2 + $0x70] sm:$0xff] %v4369
        %4402 = vst [vmem:[#allocation2 + $0x78] sm:$0xff] %v4370
        %4403 = vst [vmem:[#allocation2 + $0x80] sm:$0xff] %v4371
        %4404 = vst [vmem:[#allocation2 + $0x88] sm:$0xff] %v4372
        %4405 = vst [vmem:[#allocation2 + $0x90] sm:$0xff] %v4373
        %4406 = vst [vmem:[#allocation2 + $0x98] sm:$0xff] %v4374
        %4407 = vst [vmem:[#allocation2 + $0xa0] sm:$0xff] %v4375
        %4408 = vst [vmem:[#allocation2 + $0xa8] sm:$0xff] %v4376
        %4409 = vst [vmem:[#allocation2 + $0xb0] sm:$0xff] %v4377
        %4410 = vst [vmem:[#allocation2 + $0xb8] sm:$0xff] %v4378
        %4411 = vst [vmem:[#allocation2 + $0xc0] sm:$0xff] %v4379
        %4412 = vst [vmem:[#allocation2 + $0xc8] sm:$0xff] %v4380
        %4413 = vst [vmem:[#allocation2 + $0xd0] sm:$0xff] %v4381
        %4414 = vst [vmem:[#allocation2 + $0xd8] sm:$0xff] %v4382
        %4415 = vst [vmem:[#allocation2 + $0xe0] sm:$0xff] %v4383
        %4416 = vst [vmem:[#allocation2 + $0xe8] sm:$0xff] %v4384
        %4417 = vst [vmem:[#allocation2 + $0xf0] sm:$0xff] %v4385
        %4418 = vst [vmem:[#allocation2 + $0xf8] sm:$0xff] %v4386
        %s4419 = scalar_lea.vmem [#allocation9], 384
        %v4420 = vld [vmem:[%s4419] sm:$0xf]
        %v4421 = vld [vmem:[%s4419 + $0x4] sm:$0xf]
        %v4422 = vld [vmem:[%s4419 + $0x8] sm:$0xf]
        %v4423 = vld [vmem:[%s4419 + $0xc] sm:$0xf]
        %v4424 = vld [vmem:[%s4419 + $0x10] sm:$0xf]
        %v4425 = vld [vmem:[%s4419 + $0x14] sm:$0xf]
        %v4426 = vld [vmem:[%s4419 + $0x18] sm:$0xf]
        %v4427 = vld [vmem:[%s4419 + $0x1c] sm:$0xf]
        %v4428 = vld [vmem:[%s4419 + $0x20] sm:$0xf]
        %v4429 = vld [vmem:[%s4419 + $0x24] sm:$0xf]
        %v4430 = vld [vmem:[%s4419 + $0x28] sm:$0xf]
        %v4431 = vld [vmem:[%s4419 + $0x2c] sm:$0xf]
        %v4432 = vld [vmem:[%s4419 + $0x30] sm:$0xf]
        %v4433 = vld [vmem:[%s4419 + $0x34] sm:$0xf]
        %v4434 = vld [vmem:[%s4419 + $0x38] sm:$0xf]
        %v4435 = vld [vmem:[%s4419 + $0x3c] sm:$0xf]
        %v4452 = vunpack.c.l.b16 %v4420
        %v4453 = vunpack.c.l.b16 %v4421
        %v4454 = vunpack.c.l.b16 %v4422
        %v4455 = vunpack.c.l.b16 %v4423
        %v4456 = vunpack.c.l.b16 %v4424
        %v4457 = vunpack.c.l.b16 %v4425
        %v4458 = vunpack.c.l.b16 %v4426
        %v4459 = vunpack.c.l.b16 %v4427
        %v4460 = vunpack.c.l.b16 %v4428
        %v4461 = vunpack.c.l.b16 %v4429
        %v4462 = vunpack.c.l.b16 %v4430
        %v4463 = vunpack.c.l.b16 %v4431
        %v4464 = vunpack.c.l.b16 %v4432
        %v4465 = vunpack.c.l.b16 %v4433
        %v4466 = vunpack.c.l.b16 %v4434
        %v4467 = vunpack.c.l.b16 %v4435
        %v4468 = vpack.c.b16 %v4453, %v4452
        %v4469 = vpack.c.b16 %v4455, %v4454
        %v4470 = vpack.c.b16 %v4457, %v4456
        %v4471 = vpack.c.b16 %v4459, %v4458
        %v4472 = vpack.c.b16 %v4461, %v4460
        %v4473 = vpack.c.b16 %v4463, %v4462
        %v4474 = vpack.c.b16 %v4465, %v4464
        %v4475 = vpack.c.b16 %v4467, %v4466
        %4484 = vmatprep.subr.bf16.mxu0 0
        %4485 = vmatpush1.bf16.msra.mxu0 %v4468
        %4486 = vmatprep.subr.bf16.mxu0 0
        %4487 = vmatpush1.bf16.msra.mxu0 %v4469
        %4488 = vmatprep.subr.bf16.mxu0 0
        %4489 = vmatpush1.bf16.msra.mxu0 %v4470
        %4490 = vmatprep.subr.bf16.mxu0 0
        %4491 = vmatpush1.bf16.msra.mxu0 %v4471
        %4492 = vmatprep.subr.bf16.mxu0 0
        %4493 = vmatpush1.bf16.msra.mxu0 %v4472
        %4494 = vmatprep.subr.bf16.mxu0 0
        %4495 = vmatpush1.bf16.msra.mxu0 %v4473
        %4496 = vmatprep.subr.bf16.mxu0 0
        %4497 = vmatpush1.bf16.msra.mxu0 %v4474
        %4498 = vmatprep.subr.bf16.mxu0 0
        %4499 = vmatpush1.bf16.msra.mxu0 %v4475
        %4500 = vmatprep.subr.bf16.mxu0 0
        %4501 = vmatpush1.bf16.msra.mxu0 0
        %4502 = vmatprep.subr.bf16.mxu0 0
        %4503 = vmatpush1.bf16.msra.mxu0 0
        %4504 = vmatprep.subr.bf16.mxu0 0
        %4505 = vmatpush1.bf16.msra.mxu0 0
        %4506 = vmatprep.subr.bf16.mxu0 0
        %4507 = vmatpush1.bf16.msra.mxu0 0
        %4508 = vmatprep.subr.bf16.mxu0 0
        %4509 = vmatpush1.bf16.msra.mxu0 0
        %4510 = vmatprep.subr.bf16.mxu0 0
        %4511 = vmatpush1.bf16.msra.mxu0 0
        %4512 = vmatprep.subr.bf16.mxu0 0
        %4513 = vmatpush1.bf16.msra.mxu0 0
        %4514 = vmatprep.subr.bf16.mxu0 0
        %4515 = vmatpush1.bf16.msra.mxu0 0
        %4516 = vmatprep.mubr.bf16.mxu0 0
        %4517 = vmatmul.mubr.bf16.gmra.mrb[0].mxu0 %v3775
        %v4518 = vpop.f32.mrb[0].mxu0
        %v4519 = vadd.f32 0.0, %v4518
        %v4520 = vpop.f32.mrb[0].mxu0
        %v4521 = vpop.f32.mrb[0].mxu0
        %v4522 = vadd.f32 0.0, %v4521
        %v4523 = vpop.f32.mrb[0].mxu0
        %4524 = vmatprep.mubr.bf16.mxu0 0
        %4525 = vmatmul.mubr.bf16.gmra.mrb[0].mxu0 %v3776
        %v4526 = vpop.f32.mrb[0].mxu0
        %v4527 = vadd.f32 0.0, %v4526
        %v4528 = vpop.f32.mrb[0].mxu0
        %v4529 = vpop.f32.mrb[0].mxu0
        %v4530 = vadd.f32 0.0, %v4529
        %v4531 = vpop.f32.mrb[0].mxu0
        %4532 = vmatprep.mubr.bf16.mxu0 0
        %4533 = vmatmul.mubr.bf16.gmra.mrb[0].mxu0 %v3777
        %v4534 = vpop.f32.mrb[0].mxu0
        %v4535 = vadd.f32 0.0, %v4534
        %v4536 = vpop.f32.mrb[0].mxu0
        %v4537 = vpop.f32.mrb[0].mxu0
        %v4538 = vadd.f32 0.0, %v4537
        %v4539 = vpop.f32.mrb[0].mxu0
        %4540 = vmatprep.mubr.bf16.mxu0 0
        %4541 = vmatmul.mubr.bf16.gmra.mrb[0].mxu0 %v3778
        %v4542 = vpop.f32.mrb[0].mxu0
        %v4543 = vadd.f32 0.0, %v4542
        %v4544 = vpop.f32.mrb[0].mxu0
        %v4545 = vpop.f32.mrb[0].mxu0
        %v4546 = vadd.f32 0.0, %v4545
        %v4547 = vpop.f32.mrb[0].mxu0
        %4548 = vmatprep.mubr.bf16.mxu0 0
        %4549 = vmatmul.mubr.bf16.gmra.mrb[0].mxu0 %v3779
        %v4550 = vpop.f32.mrb[0].mxu0
        %v4551 = vadd.f32 0.0, %v4550
        %v4552 = vpop.f32.mrb[0].mxu0
        %v4553 = vpop.f32.mrb[0].mxu0
        %v4554 = vadd.f32 0.0, %v4553
        %v4555 = vpop.f32.mrb[0].mxu0
        %4556 = vmatprep.mubr.bf16.mxu0 0
        %4557 = vmatmul.mubr.bf16.gmra.mrb[0].mxu0 %v3780
        %v4558 = vpop.f32.mrb[0].mxu0
        %v4559 = vadd.f32 0.0, %v4558
        %v4560 = vpop.f32.mrb[0].mxu0
        %v4561 = vpop.f32.mrb[0].mxu0
        %v4562 = vadd.f32 0.0, %v4561
        %v4563 = vpop.f32.mrb[0].mxu0
        %4564 = vmatprep.mubr.bf16.mxu0 0
        %4565 = vmatmul.mubr.bf16.gmra.mrb[0].mxu0 %v3781
        %v4566 = vpop.f32.mrb[0].mxu0
        %v4567 = vadd.f32 0.0, %v4566
        %v4568 = vpop.f32.mrb[0].mxu0
        %v4569 = vpop.f32.mrb[0].mxu0
        %v4570 = vadd.f32 0.0, %v4569
        %v4571 = vpop.f32.mrb[0].mxu0
        %4572 = vmatprep.mubr.bf16.mxu0 0
        %4573 = vmatmul.mubr.bf16.gmra.mrb[0].mxu0 %v3782
        %v4574 = vpop.f32.mrb[0].mxu0
        %v4575 = vadd.f32 0.0, %v4574
        %v4576 = vpop.f32.mrb[0].mxu0
        %v4577 = vpop.f32.mrb[0].mxu0
        %v4578 = vadd.f32 0.0, %v4577
        %v4579 = vpop.f32.mrb[0].mxu0
        %4580 = vmatprep.mubr.bf16.mxu0 0
        %4581 = vmatmul.mubr.bf16.gmra.mrb[0].mxu0 %v3783
        %v4582 = vpop.f32.mrb[0].mxu0
        %v4583 = vadd.f32 0.0, %v4582
        %v4584 = vpop.f32.mrb[0].mxu0
        %v4585 = vpop.f32.mrb[0].mxu0
        %v4586 = vadd.f32 0.0, %v4585
        %v4587 = vpop.f32.mrb[0].mxu0
        %4588 = vmatprep.mubr.bf16.mxu0 0
        %4589 = vmatmul.mubr.bf16.gmra.mrb[0].mxu0 %v3784
        %v4590 = vpop.f32.mrb[0].mxu0
        %v4591 = vadd.f32 0.0, %v4590
        %v4592 = vpop.f32.mrb[0].mxu0
        %v4593 = vpop.f32.mrb[0].mxu0
        %v4594 = vadd.f32 0.0, %v4593
        %v4595 = vpop.f32.mrb[0].mxu0
        %4596 = vmatprep.mubr.bf16.mxu0 0
        %4597 = vmatmul.mubr.bf16.gmra.mrb[0].mxu0 %v3785
        %v4598 = vpop.f32.mrb[0].mxu0
        %v4599 = vadd.f32 0.0, %v4598
        %v4600 = vpop.f32.mrb[0].mxu0
        %v4601 = vpop.f32.mrb[0].mxu0
        %v4602 = vadd.f32 0.0, %v4601
        %v4603 = vpop.f32.mrb[0].mxu0
        %4604 = vmatprep.mubr.bf16.mxu0 0
        %4605 = vmatmul.mubr.bf16.gmra.mrb[0].mxu0 %v3786
        %v4606 = vpop.f32.mrb[0].mxu0
        %v4607 = vadd.f32 0.0, %v4606
        %v4608 = vpop.f32.mrb[0].mxu0
        %v4609 = vpop.f32.mrb[0].mxu0
        %v4610 = vadd.f32 0.0, %v4609
        %v4611 = vpop.f32.mrb[0].mxu0
        %4612 = vmatprep.mubr.bf16.mxu0 0
        %4613 = vmatmul.mubr.bf16.gmra.mrb[0].mxu0 %v3787
        %v4614 = vpop.f32.mrb[0].mxu0
        %v4615 = vadd.f32 0.0, %v4614
        %v4616 = vpop.f32.mrb[0].mxu0
        %v4617 = vpop.f32.mrb[0].mxu0
        %v4618 = vadd.f32 0.0, %v4617
        %v4619 = vpop.f32.mrb[0].mxu0
        %4620 = vmatprep.mubr.bf16.mxu0 0
        %4621 = vmatmul.mubr.bf16.gmra.mrb[0].mxu0 %v3788
        %v4622 = vpop.f32.mrb[0].mxu0
        %v4623 = vadd.f32 0.0, %v4622
        %v4624 = vpop.f32.mrb[0].mxu0
        %v4625 = vpop.f32.mrb[0].mxu0
        %v4626 = vadd.f32 0.0, %v4625
        %v4627 = vpop.f32.mrb[0].mxu0
        %4628 = vmatprep.mubr.bf16.mxu0 0
        %4629 = vmatmul.mubr.bf16.gmra.mrb[0].mxu0 %v3789
        %v4630 = vpop.f32.mrb[0].mxu0
        %v4631 = vadd.f32 0.0, %v4630
        %v4632 = vpop.f32.mrb[0].mxu0
        %v4633 = vpop.f32.mrb[0].mxu0
        %v4634 = vadd.f32 0.0, %v4633
        %v4635 = vpop.f32.mrb[0].mxu0
        %4636 = vdwg.mxu0
        %v4637 = vld [vmem:[#allocation2] sm:$0xff]
        %v4638 = vld [vmem:[#allocation2 + $0x8] sm:$0xff]
        %v4639 = vld [vmem:[#allocation2 + $0x10] sm:$0xff]
        %v4640 = vld [vmem:[#allocation2 + $0x18] sm:$0xff]
        %v4641 = vld [vmem:[#allocation2 + $0x20] sm:$0xff]
        %v4642 = vld [vmem:[#allocation2 + $0x28] sm:$0xff]
        %v4643 = vld [vmem:[#allocation2 + $0x30] sm:$0xff]
        %v4644 = vld [vmem:[#allocation2 + $0x38] sm:$0xff]
        %v4645 = vld [vmem:[#allocation2 + $0x40] sm:$0xff]
        %v4646 = vld [vmem:[#allocation2 + $0x48] sm:$0xff]
        %v4647 = vld [vmem:[#allocation2 + $0x50] sm:$0xff]
        %v4648 = vld [vmem:[#allocation2 + $0x58] sm:$0xff]
        %v4649 = vld [vmem:[#allocation2 + $0x60] sm:$0xff]
        %v4650 = vld [vmem:[#allocation2 + $0x68] sm:$0xff]
        %v4651 = vld [vmem:[#allocation2 + $0x70] sm:$0xff]
        %v4652 = vld [vmem:[#allocation2 + $0x78] sm:$0xff]
        %v4653 = vld [vmem:[#allocation2 + $0x80] sm:$0xff]
        %v4654 = vld [vmem:[#allocation2 + $0x88] sm:$0xff]
        %v4655 = vld [vmem:[#allocation2 + $0x90] sm:$0xff]
        %v4656 = vld [vmem:[#allocation2 + $0x98] sm:$0xff]
        %v4657 = vld [vmem:[#allocation2 + $0xa0] sm:$0xff]
        %v4658 = vld [vmem:[#allocation2 + $0xa8] sm:$0xff]
        %v4659 = vld [vmem:[#allocation2 + $0xb0] sm:$0xff]
        %v4660 = vld [vmem:[#allocation2 + $0xb8] sm:$0xff]
        %v4661 = vld [vmem:[#allocation2 + $0xc0] sm:$0xff]
        %v4662 = vld [vmem:[#allocation2 + $0xc8] sm:$0xff]
        %v4663 = vld [vmem:[#allocation2 + $0xd0] sm:$0xff]
        %v4664 = vld [vmem:[#allocation2 + $0xd8] sm:$0xff]
        %v4665 = vld [vmem:[#allocation2 + $0xe0] sm:$0xff]
        %v4666 = vld [vmem:[#allocation2 + $0xe8] sm:$0xff]
        %v4667 = vadd.f32 %v4637, %v4519
        %v4668 = vadd.f32 %v4638, %v4522
        %v4669 = vadd.f32 %v4639, %v4527
        %v4670 = vadd.f32 %v4640, %v4530
        %v4671 = vadd.f32 %v4641, %v4535
        %v4672 = vadd.f32 %v4642, %v4538
        %v4673 = vadd.f32 %v4643, %v4543
        %v4674 = vadd.f32 %v4644, %v4546
        %v4675 = vadd.f32 %v4645, %v4551
        %v4676 = vadd.f32 %v4646, %v4554
        %v4677 = vadd.f32 %v4647, %v4559
        %v4678 = vadd.f32 %v4648, %v4562
        %v4679 = vadd.f32 %v4649, %v4567
        %v4680 = vadd.f32 %v4650, %v4570
        %v4681 = vadd.f32 %v4651, %v4575
        %v4682 = vadd.f32 %v4652, %v4578
        %v4683 = vadd.f32 %v4653, %v4583
        %v4684 = vadd.f32 %v4654, %v4586
        %v4685 = vadd.f32 %v4655, %v4591
        %v4686 = vadd.f32 %v4656, %v4594
        %v4687 = vadd.f32 %v4657, %v4599
        %v4688 = vadd.f32 %v4658, %v4602
        %v4689 = vadd.f32 %v4659, %v4607
        %v4690 = vadd.f32 %v4660, %v4610
        %v4691 = vadd.f32 %v4661, %v4615
        %v4692 = vadd.f32 %v4662, %v4618
        %v4693 = vadd.f32 %v4663, %v4623
        %v4694 = vadd.f32 %v4664, %v4626
        %v4695 = vadd.f32 %v4665, %v4631
        %v4696 = vadd.f32 %v4666, %v4634
        %4697 = vst [vmem:[#allocation2] sm:$0xff] %v4667
        %4698 = vst [vmem:[#allocation2 + $0x8] sm:$0xff] %v4668
        %4699 = vst [vmem:[#allocation2 + $0x10] sm:$0xff] %v4669
        %4700 = vst [vmem:[#allocation2 + $0x18] sm:$0xff] %v4670
        %4701 = vst [vmem:[#allocation2 + $0x20] sm:$0xff] %v4671
        %4702 = vst [vmem:[#allocation2 + $0x28] sm:$0xff] %v4672
        %4703 = vst [vmem:[#allocation2 + $0x30] sm:$0xff] %v4673
        %4704 = vst [vmem:[#allocation2 + $0x38] sm:$0xff] %v4674
        %4705 = vst [vmem:[#allocation2 + $0x40] sm:$0xff] %v4675
        %4706 = vst [vmem:[#allocation2 + $0x48] sm:$0xff] %v4676
        %4707 = vst [vmem:[#allocation2 + $0x50] sm:$0xff] %v4677
        %4708 = vst [vmem:[#allocation2 + $0x58] sm:$0xff] %v4678
        %4709 = vst [vmem:[#allocation2 + $0x60] sm:$0xff] %v4679
        %4710 = vst [vmem:[#allocation2 + $0x68] sm:$0xff] %v4680
        %4711 = vst [vmem:[#allocation2 + $0x70] sm:$0xff] %v4681
        %4712 = vst [vmem:[#allocation2 + $0x78] sm:$0xff] %v4682
        %4713 = vst [vmem:[#allocation2 + $0x80] sm:$0xff] %v4683
        %4714 = vst [vmem:[#allocation2 + $0x88] sm:$0xff] %v4684
        %4715 = vst [vmem:[#allocation2 + $0x90] sm:$0xff] %v4685
        %4716 = vst [vmem:[#allocation2 + $0x98] sm:$0xff] %v4686
        %4717 = vst [vmem:[#allocation2 + $0xa0] sm:$0xff] %v4687
        %4718 = vst [vmem:[#allocation2 + $0xa8] sm:$0xff] %v4688
        %4719 = vst [vmem:[#allocation2 + $0xb0] sm:$0xff] %v4689
        %4720 = vst [vmem:[#allocation2 + $0xb8] sm:$0xff] %v4690
        %4721 = vst [vmem:[#allocation2 + $0xc0] sm:$0xff] %v4691
        %4722 = vst [vmem:[#allocation2 + $0xc8] sm:$0xff] %v4692
        %4723 = vst [vmem:[#allocation2 + $0xd0] sm:$0xff] %v4693
        %4724 = vst [vmem:[#allocation2 + $0xd8] sm:$0xff] %v4694
        %4725 = vst [vmem:[#allocation2 + $0xe0] sm:$0xff] %v4695
        %4726 = vst [vmem:[#allocation2 + $0xe8] sm:$0xff] %v4696
        %s4727 = scalar_lea.vmem [#allocation9], 64
        %v4728 = vld [vmem:[%s4727] sm:$0xf]
        %v4729 = vld [vmem:[%s4727 + $0x4] sm:$0xf]
        %v4730 = vld [vmem:[%s4727 + $0x8] sm:$0xf]
        %v4731 = vld [vmem:[%s4727 + $0xc] sm:$0xf]
        %v4732 = vld [vmem:[%s4727 + $0x10] sm:$0xf]
        %v4733 = vld [vmem:[%s4727 + $0x14] sm:$0xf]
        %v4734 = vld [vmem:[%s4727 + $0x18] sm:$0xf]
        %v4735 = vld [vmem:[%s4727 + $0x1c] sm:$0xf]
        %v4736 = vld [vmem:[%s4727 + $0x20] sm:$0xf]
        %v4737 = vld [vmem:[%s4727 + $0x24] sm:$0xf]
        %v4738 = vld [vmem:[%s4727 + $0x28] sm:$0xf]
        %v4739 = vld [vmem:[%s4727 + $0x2c] sm:$0xf]
        %v4740 = vld [vmem:[%s4727 + $0x30] sm:$0xf]
        %v4741 = vld [vmem:[%s4727 + $0x34] sm:$0xf]
        %v4742 = vld [vmem:[%s4727 + $0x38] sm:$0xf]
        %v4743 = vld [vmem:[%s4727 + $0x3c] sm:$0xf]
        %v4760 = vunpack.c.l.b16 %v4728
        %v4761 = vunpack.c.l.b16 %v4729
        %v4762 = vunpack.c.l.b16 %v4730
        %v4763 = vunpack.c.l.b16 %v4731
        %v4764 = vunpack.c.l.b16 %v4732
        %v4765 = vunpack.c.l.b16 %v4733
        %v4766 = vunpack.c.l.b16 %v4734
        %v4767 = vunpack.c.l.b16 %v4735
        %v4768 = vunpack.c.l.b16 %v4736
        %v4769 = vunpack.c.l.b16 %v4737
        %v4770 = vunpack.c.l.b16 %v4738
        %v4771 = vunpack.c.l.b16 %v4739
        %v4772 = vunpack.c.l.b16 %v4740
        %v4773 = vunpack.c.l.b16 %v4741
        %v4774 = vunpack.c.l.b16 %v4742
        %v4775 = vunpack.c.l.b16 %v4743
        %v4776 = vpack.c.b16 %v4761, %v4760
        %v4777 = vpack.c.b16 %v4763, %v4762
        %v4778 = vpack.c.b16 %v4765, %v4764
        %v4779 = vpack.c.b16 %v4767, %v4766
        %v4780 = vpack.c.b16 %v4769, %v4768
        %v4781 = vpack.c.b16 %v4771, %v4770
        %v4782 = vpack.c.b16 %v4773, %v4772
        %v4783 = vpack.c.b16 %v4775, %v4774
        %4792 = vmatprep.subr.bf16.mxu0 0
        %4793 = vmatpush1.bf16.msra.mxu0 %v4776
        %4794 = vmatprep.subr.bf16.mxu0 0
        %4795 = vmatpush1.bf16.msra.mxu0 %v4777
        %4796 = vmatprep.subr.bf16.mxu0 0
        %4797 = vmatpush1.bf16.msra.mxu0 %v4778
        %4798 = vmatprep.subr.bf16.mxu0 0
        %4799 = vmatpush1.bf16.msra.mxu0 %v4779
        %4800 = vmatprep.subr.bf16.mxu0 0
        %4801 = vmatpush1.bf16.msra.mxu0 %v4780
        %4802 = vmatprep.subr.bf16.mxu0 0
        %4803 = vmatpush1.bf16.msra.mxu0 %v4781
        %4804 = vmatprep.subr.bf16.mxu0 0
        %4805 = vmatpush1.bf16.msra.mxu0 %v4782
        %4806 = vmatprep.subr.bf16.mxu0 0
        %4807 = vmatpush1.bf16.msra.mxu0 %v4783
        %4808 = vmatprep.subr.bf16.mxu0 0
        %4809 = vmatpush1.bf16.msra.mxu0 0
        %4810 = vmatprep.subr.bf16.mxu0 0
        %4811 = vmatpush1.bf16.msra.mxu0 0
        %4812 = vmatprep.subr.bf16.mxu0 0
        %4813 = vmatpush1.bf16.msra.mxu0 0
        %4814 = vmatprep.subr.bf16.mxu0 0
        %4815 = vmatpush1.bf16.msra.mxu0 0
        %4816 = vmatprep.subr.bf16.mxu0 0
        %4817 = vmatpush1.bf16.msra.mxu0 0
        %4818 = vmatprep.subr.bf16.mxu0 0
        %4819 = vmatpush1.bf16.msra.mxu0 0
        %4820 = vmatprep.subr.bf16.mxu0 0
        %4821 = vmatpush1.bf16.msra.mxu0 0
        %4822 = vmatprep.subr.bf16.mxu0 0
        %4823 = vmatpush1.bf16.msra.mxu0 0
        %4824 = vmatprep.mubr.bf16.mxu0 0
        %4825 = vmatmul.mubr.bf16.gmra.mrb[0].mxu0 %v3591
        %v4826 = vpop.f32.mrb[0].mxu0
        %v4827 = vadd.f32 0.0, %v4826
        %v4828 = vpop.f32.mrb[0].mxu0
        %v4829 = vpop.f32.mrb[0].mxu0
        %v4830 = vadd.f32 0.0, %v4829
        %v4831 = vpop.f32.mrb[0].mxu0
        %4832 = vmatprep.mubr.bf16.mxu0 0
        %4833 = vmatmul.mubr.bf16.gmra.mrb[0].mxu0 %v3592
        %v4834 = vpop.f32.mrb[0].mxu0
        %v4835 = vadd.f32 0.0, %v4834
        %v4836 = vpop.f32.mrb[0].mxu0
        %v4837 = vpop.f32.mrb[0].mxu0
        %v4838 = vadd.f32 0.0, %v4837
        %v4839 = vpop.f32.mrb[0].mxu0
        %4840 = vmatprep.mubr.bf16.mxu0 0
        %4841 = vmatmul.mubr.bf16.gmra.mrb[0].mxu0 %v3593
        %v4842 = vpop.f32.mrb[0].mxu0
        %v4843 = vadd.f32 0.0, %v4842
        %v4844 = vpop.f32.mrb[0].mxu0
        %v4845 = vpop.f32.mrb[0].mxu0
        %v4846 = vadd.f32 0.0, %v4845
        %v4847 = vpop.f32.mrb[0].mxu0
        %4848 = vmatprep.mubr.bf16.mxu0 0
        %4849 = vmatmul.mubr.bf16.gmra.mrb[0].mxu0 %v3594
        %v4850 = vpop.f32.mrb[0].mxu0
        %v4851 = vadd.f32 0.0, %v4850
        %v4852 = vpop.f32.mrb[0].mxu0
        %v4853 = vpop.f32.mrb[0].mxu0
        %v4854 = vadd.f32 0.0, %v4853
        %v4855 = vpop.f32.mrb[0].mxu0
        %4856 = vmatprep.mubr.bf16.mxu0 0
        %4857 = vmatmul.mubr.bf16.gmra.mrb[0].mxu0 %v3595
        %v4858 = vpop.f32.mrb[0].mxu0
        %v4859 = vadd.f32 0.0, %v4858
        %v4860 = vpop.f32.mrb[0].mxu0
        %v4861 = vpop.f32.mrb[0].mxu0
        %v4862 = vadd.f32 0.0, %v4861
        %v4863 = vpop.f32.mrb[0].mxu0
        %4864 = vmatprep.mubr.bf16.mxu0 0
        %4865 = vmatmul.mubr.bf16.gmra.mrb[0].mxu0 %v3596
        %v4866 = vpop.f32.mrb[0].mxu0
        %v4867 = vadd.f32 0.0, %v4866
        %v4868 = vpop.f32.mrb[0].mxu0
        %v4869 = vpop.f32.mrb[0].mxu0
        %v4870 = vadd.f32 0.0, %v4869
        %v4871 = vpop.f32.mrb[0].mxu0
        %4872 = vmatprep.mubr.bf16.mxu0 0
        %4873 = vmatmul.mubr.bf16.gmra.mrb[0].mxu0 %v3597
        %v4874 = vpop.f32.mrb[0].mxu0
        %v4875 = vadd.f32 0.0, %v4874
        %v4876 = vpop.f32.mrb[0].mxu0
        %v4877 = vpop.f32.mrb[0].mxu0
        %v4878 = vadd.f32 0.0, %v4877
        %v4879 = vpop.f32.mrb[0].mxu0
        %4880 = vmatprep.mubr.bf16.mxu0 0
        %4881 = vmatmul.mubr.bf16.gmra.mrb[0].mxu0 %v3598
        %v4882 = vpop.f32.mrb[0].mxu0
        %v4883 = vadd.f32 0.0, %v4882
        %v4884 = vpop.f32.mrb[0].mxu0
        %v4885 = vpop.f32.mrb[0].mxu0
        %v4886 = vadd.f32 0.0, %v4885
        %v4887 = vpop.f32.mrb[0].mxu0
        %4888 = vmatprep.mubr.bf16.mxu0 0
        %4889 = vmatmul.mubr.bf16.gmra.mrb[0].mxu0 %v3599
        %v4890 = vpop.f32.mrb[0].mxu0
        %v4891 = vadd.f32 0.0, %v4890
        %v4892 = vpop.f32.mrb[0].mxu0
        %v4893 = vpop.f32.mrb[0].mxu0
        %v4894 = vadd.f32 0.0, %v4893
        %v4895 = vpop.f32.mrb[0].mxu0
        %4896 = vmatprep.mubr.bf16.mxu0 0
        %4897 = vmatmul.mubr.bf16.gmra.mrb[0].mxu0 %v3600
        %v4898 = vpop.f32.mrb[0].mxu0
        %v4899 = vadd.f32 0.0, %v4898
        %v4900 = vpop.f32.mrb[0].mxu0
        %v4901 = vpop.f32.mrb[0].mxu0
        %v4902 = vadd.f32 0.0, %v4901
        %v4903 = vpop.f32.mrb[0].mxu0
        %4904 = vmatprep.mubr.bf16.mxu0 0
        %4905 = vmatmul.mubr.bf16.gmra.mrb[0].mxu0 %v3601
        %v4906 = vpop.f32.mrb[0].mxu0
        %v4907 = vadd.f32 0.0, %v4906
        %v4908 = vpop.f32.mrb[0].mxu0
        %v4909 = vpop.f32.mrb[0].mxu0
        %v4910 = vadd.f32 0.0, %v4909
        %v4911 = vpop.f32.mrb[0].mxu0
        %4912 = vmatprep.mubr.bf16.mxu0 0
        %4913 = vmatmul.mubr.bf16.gmra.mrb[0].mxu0 %v3602
        %v4914 = vpop.f32.mrb[0].mxu0
        %v4915 = vadd.f32 0.0, %v4914
        %v4916 = vpop.f32.mrb[0].mxu0
        %v4917 = vpop.f32.mrb[0].mxu0
        %v4918 = vadd.f32 0.0, %v4917
        %v4919 = vpop.f32.mrb[0].mxu0
        %4920 = vmatprep.mubr.bf16.mxu0 0
        %4921 = vmatmul.mubr.bf16.gmra.mrb[0].mxu0 %v3603
        %v4922 = vpop.f32.mrb[0].mxu0
        %v4923 = vadd.f32 0.0, %v4922
        %v4924 = vpop.f32.mrb[0].mxu0
        %v4925 = vpop.f32.mrb[0].mxu0
        %v4926 = vadd.f32 0.0, %v4925
        %v4927 = vpop.f32.mrb[0].mxu0
        %4928 = vmatprep.mubr.bf16.mxu0 0
        %4929 = vmatmul.mubr.bf16.gmra.mrb[0].mxu0 %v3604
        %v4930 = vpop.f32.mrb[0].mxu0
        %v4931 = vadd.f32 0.0, %v4930
        %v4932 = vpop.f32.mrb[0].mxu0
        %v4933 = vpop.f32.mrb[0].mxu0
        %v4934 = vadd.f32 0.0, %v4933
        %v4935 = vpop.f32.mrb[0].mxu0
        %4936 = vmatprep.mubr.bf16.mxu0 0
        %4937 = vmatmul.mubr.bf16.gmra.mrb[0].mxu0 %v3605
        %v4938 = vpop.f32.mrb[0].mxu0
        %v4939 = vadd.f32 0.0, %v4938
        %v4940 = vpop.f32.mrb[0].mxu0
        %v4941 = vpop.f32.mrb[0].mxu0
        %v4942 = vadd.f32 0.0, %v4941
        %v4943 = vpop.f32.mrb[0].mxu0
        %4944 = vdwg.mxu0
        %v4945 = vld [vmem:[#allocation2 + $0x10] sm:$0xff]
        %v4946 = vld [vmem:[#allocation2 + $0x18] sm:$0xff]
        %v4947 = vld [vmem:[#allocation2 + $0x20] sm:$0xff]
        %v4948 = vld [vmem:[#allocation2 + $0x28] sm:$0xff]
        %v4949 = vld [vmem:[#allocation2 + $0x30] sm:$0xff]
        %v4950 = vld [vmem:[#allocation2 + $0x38] sm:$0xff]
        %v4951 = vld [vmem:[#allocation2 + $0x40] sm:$0xff]
        %v4952 = vld [vmem:[#allocation2 + $0x48] sm:$0xff]
        %v4953 = vld [vmem:[#allocation2 + $0x50] sm:$0xff]
        %v4954 = vld [vmem:[#allocation2 + $0x58] sm:$0xff]
        %v4955 = vld [vmem:[#allocation2 + $0x60] sm:$0xff]
        %v4956 = vld [vmem:[#allocation2 + $0x68] sm:$0xff]
        %v4957 = vld [vmem:[#allocation2 + $0x70] sm:$0xff]
        %v4958 = vld [vmem:[#allocation2 + $0x78] sm:$0xff]
        %v4959 = vld [vmem:[#allocation2 + $0x80] sm:$0xff]
        %v4960 = vld [vmem:[#allocation2 + $0x88] sm:$0xff]
        %v4961 = vld [vmem:[#allocation2 + $0x90] sm:$0xff]
        %v4962 = vld [vmem:[#allocation2 + $0x98] sm:$0xff]
        %v4963 = vld [vmem:[#allocation2 + $0xa0] sm:$0xff]
        %v4964 = vld [vmem:[#allocation2 + $0xa8] sm:$0xff]
        %v4965 = vld [vmem:[#allocation2 + $0xb0] sm:$0xff]
        %v4966 = vld [vmem:[#allocation2 + $0xb8] sm:$0xff]
        %v4967 = vld [vmem:[#allocation2 + $0xc0] sm:$0xff]
        %v4968 = vld [vmem:[#allocation2 + $0xc8] sm:$0xff]
        %v4969 = vld [vmem:[#allocation2 + $0xd0] sm:$0xff]
        %v4970 = vld [vmem:[#allocation2 + $0xd8] sm:$0xff]
        %v4971 = vld [vmem:[#allocation2 + $0xe0] sm:$0xff]
        %v4972 = vld [vmem:[#allocation2 + $0xe8] sm:$0xff]
        %v4973 = vld [vmem:[#allocation2 + $0xf0] sm:$0xff]
        %v4974 = vld [vmem:[#allocation2 + $0xf8] sm:$0xff]
        %v4975 = vadd.f32 %v4945, %v4827
        %v4976 = vadd.f32 %v4946, %v4830
        %v4977 = vadd.f32 %v4947, %v4835
        %v4978 = vadd.f32 %v4948, %v4838
        %v4979 = vadd.f32 %v4949, %v4843
        %v4980 = vadd.f32 %v4950, %v4846
        %v4981 = vadd.f32 %v4951, %v4851
        %v4982 = vadd.f32 %v4952, %v4854
        %v4983 = vadd.f32 %v4953, %v4859
        %v4984 = vadd.f32 %v4954, %v4862
        %v4985 = vadd.f32 %v4955, %v4867
        %v4986 = vadd.f32 %v4956, %v4870
        %v4987 = vadd.f32 %v4957, %v4875
        %v4988 = vadd.f32 %v4958, %v4878
        %v4989 = vadd.f32 %v4959, %v4883
        %v4990 = vadd.f32 %v4960, %v4886
        %v4991 = vadd.f32 %v4961, %v4891
        %v4992 = vadd.f32 %v4962, %v4894
        %v4993 = vadd.f32 %v4963, %v4899
        %v4994 = vadd.f32 %v4964, %v4902
        %v4995 = vadd.f32 %v4965, %v4907
        %v4996 = vadd.f32 %v4966, %v4910
        %v4997 = vadd.f32 %v4967, %v4915
        %v4998 = vadd.f32 %v4968, %v4918
        %v4999 = vadd.f32 %v4969, %v4923
        %v5000 = vadd.f32 %v4970, %v4926
        %v5001 = vadd.f32 %v4971, %v4931
        %v5002 = vadd.f32 %v4972, %v4934
        %v5003 = vadd.f32 %v4973, %v4939
        %v5004 = vadd.f32 %v4974, %v4942
        %5005 = vst [vmem:[#allocation2 + $0x10] sm:$0xff] %v4975
        %5006 = vst [vmem:[#allocation2 + $0x18] sm:$0xff] %v4976
        %5007 = vst [vmem:[#allocation2 + $0x20] sm:$0xff] %v4977
        %5008 = vst [vmem:[#allocation2 + $0x28] sm:$0xff] %v4978
        %5009 = vst [vmem:[#allocation2 + $0x30] sm:$0xff] %v4979
        %5010 = vst [vmem:[#allocation2 + $0x38] sm:$0xff] %v4980
        %5011 = vst [vmem:[#allocation2 + $0x40] sm:$0xff] %v4981
        %5012 = vst [vmem:[#allocation2 + $0x48] sm:$0xff] %v4982
        %5013 = vst [vmem:[#allocation2 + $0x50] sm:$0xff] %v4983
        %5014 = vst [vmem:[#allocation2 + $0x58] sm:$0xff] %v4984
        %5015 = vst [vmem:[#allocation2 + $0x60] sm:$0xff] %v4985
        %5016 = vst [vmem:[#allocation2 + $0x68] sm:$0xff] %v4986
        %5017 = vst [vmem:[#allocation2 + $0x70] sm:$0xff] %v4987
        %5018 = vst [vmem:[#allocation2 + $0x78] sm:$0xff] %v4988
        %5019 = vst [vmem:[#allocation2 + $0x80] sm:$0xff] %v4989
        %5020 = vst [vmem:[#allocation2 + $0x88] sm:$0xff] %v4990
        %5021 = vst [vmem:[#allocation2 + $0x90] sm:$0xff] %v4991
        %5022 = vst [vmem:[#allocation2 + $0x98] sm:$0xff] %v4992
        %5023 = vst [vmem:[#allocation2 + $0xa0] sm:$0xff] %v4993
        %5024 = vst [vmem:[#allocation2 + $0xa8] sm:$0xff] %v4994
        %5025 = vst [vmem:[#allocation2 + $0xb0] sm:$0xff] %v4995
        %5026 = vst [vmem:[#allocation2 + $0xb8] sm:$0xff] %v4996
        %5027 = vst [vmem:[#allocation2 + $0xc0] sm:$0xff] %v4997
        %5028 = vst [vmem:[#allocation2 + $0xc8] sm:$0xff] %v4998
        %5029 = vst [vmem:[#allocation2 + $0xd0] sm:$0xff] %v4999
        %5030 = vst [vmem:[#allocation2 + $0xd8] sm:$0xff] %v5000
        %5031 = vst [vmem:[#allocation2 + $0xe0] sm:$0xff] %v5001
        %5032 = vst [vmem:[#allocation2 + $0xe8] sm:$0xff] %v5002
        %5033 = vst [vmem:[#allocation2 + $0xf0] sm:$0xff] %v5003
        %5034 = vst [vmem:[#allocation2 + $0xf8] sm:$0xff] %v5004
        %s5035 = scalar_lea.vmem [#allocation9], 256
        %v5036 = vld [vmem:[%s5035] sm:$0xf]
        %v5037 = vld [vmem:[%s5035 + $0x4] sm:$0xf]
        %v5038 = vld [vmem:[%s5035 + $0x8] sm:$0xf]
        %v5039 = vld [vmem:[%s5035 + $0xc] sm:$0xf]
        %v5040 = vld [vmem:[%s5035 + $0x10] sm:$0xf]
        %v5041 = vld [vmem:[%s5035 + $0x14] sm:$0xf]
        %v5042 = vld [vmem:[%s5035 + $0x18] sm:$0xf]
        %v5043 = vld [vmem:[%s5035 + $0x1c] sm:$0xf]
        %v5044 = vld [vmem:[%s5035 + $0x20] sm:$0xf]
        %v5045 = vld [vmem:[%s5035 + $0x24] sm:$0xf]
        %v5046 = vld [vmem:[%s5035 + $0x28] sm:$0xf]
        %v5047 = vld [vmem:[%s5035 + $0x2c] sm:$0xf]
        %v5048 = vld [vmem:[%s5035 + $0x30] sm:$0xf]
        %v5049 = vld [vmem:[%s5035 + $0x34] sm:$0xf]
        %v5050 = vld [vmem:[%s5035 + $0x38] sm:$0xf]
        %v5051 = vld [vmem:[%s5035 + $0x3c] sm:$0xf]
        %v5068 = vunpack.c.l.b16 %v5036
        %v5069 = vunpack.c.l.b16 %v5037
        %v5070 = vunpack.c.l.b16 %v5038
        %v5071 = vunpack.c.l.b16 %v5039
        %v5072 = vunpack.c.l.b16 %v5040
        %v5073 = vunpack.c.l.b16 %v5041
        %v5074 = vunpack.c.l.b16 %v5042
        %v5075 = vunpack.c.l.b16 %v5043
        %v5076 = vunpack.c.l.b16 %v5044
        %v5077 = vunpack.c.l.b16 %v5045
        %v5078 = vunpack.c.l.b16 %v5046
        %v5079 = vunpack.c.l.b16 %v5047
        %v5080 = vunpack.c.l.b16 %v5048
        %v5081 = vunpack.c.l.b16 %v5049
        %v5082 = vunpack.c.l.b16 %v5050
        %v5083 = vunpack.c.l.b16 %v5051
        %v5084 = vpack.c.b16 %v5069, %v5068
        %v5085 = vpack.c.b16 %v5071, %v5070
        %v5086 = vpack.c.b16 %v5073, %v5072
        %v5087 = vpack.c.b16 %v5075, %v5074
        %v5088 = vpack.c.b16 %v5077, %v5076
        %v5089 = vpack.c.b16 %v5079, %v5078
        %v5090 = vpack.c.b16 %v5081, %v5080
        %v5091 = vpack.c.b16 %v5083, %v5082
        %5100 = vmatprep.subr.bf16.mxu0 0
        %5101 = vmatpush1.bf16.msra.mxu0 %v5084
        %5102 = vmatprep.subr.bf16.mxu0 0
        %5103 = vmatpush1.bf16.msra.mxu0 %v5085
        %5104 = vmatprep.subr.bf16.mxu0 0
        %5105 = vmatpush1.bf16.msra.mxu0 %v5086
        %5106 = vmatprep.subr.bf16.mxu0 0
        %5107 = vmatpush1.bf16.msra.mxu0 %v5087
        %5108 = vmatprep.subr.bf16.mxu0 0
        %5109 = vmatpush1.bf16.msra.mxu0 %v5088
        %5110 = vmatprep.subr.bf16.mxu0 0
        %5111 = vmatpush1.bf16.msra.mxu0 %v5089
        %5112 = vmatprep.subr.bf16.mxu0 0
        %5113 = vmatpush1.bf16.msra.mxu0 %v5090
        %5114 = vmatprep.subr.bf16.mxu0 0
        %5115 = vmatpush1.bf16.msra.mxu0 %v5091
        %5116 = vmatprep.subr.bf16.mxu0 0
        %5117 = vmatpush1.bf16.msra.mxu0 0
        %5118 = vmatprep.subr.bf16.mxu0 0
        %5119 = vmatpush1.bf16.msra.mxu0 0
        %5120 = vmatprep.subr.bf16.mxu0 0
        %5121 = vmatpush1.bf16.msra.mxu0 0
        %5122 = vmatprep.subr.bf16.mxu0 0
        %5123 = vmatpush1.bf16.msra.mxu0 0
        %5124 = vmatprep.subr.bf16.mxu0 0
        %5125 = vmatpush1.bf16.msra.mxu0 0
        %5126 = vmatprep.subr.bf16.mxu0 0
        %5127 = vmatpush1.bf16.msra.mxu0 0
        %5128 = vmatprep.subr.bf16.mxu0 0
        %5129 = vmatpush1.bf16.msra.mxu0 0
        %5130 = vmatprep.subr.bf16.mxu0 0
        %5131 = vmatpush1.bf16.msra.mxu0 0
        %5132 = vmatprep.mubr.bf16.mxu0 0
        %5133 = vmatmul.mubr.bf16.gmra.mrb[0].mxu0 %v3591
        %v5134 = vpop.f32.mrb[0].mxu0
        %v5135 = vadd.f32 0.0, %v5134
        %v5136 = vpop.f32.mrb[0].mxu0
        %v5137 = vpop.f32.mrb[0].mxu0
        %v5138 = vadd.f32 0.0, %v5137
        %v5139 = vpop.f32.mrb[0].mxu0
        %5140 = vmatprep.mubr.bf16.mxu0 0
        %5141 = vmatmul.mubr.bf16.gmra.mrb[0].mxu0 %v3592
        %v5142 = vpop.f32.mrb[0].mxu0
        %v5143 = vadd.f32 0.0, %v5142
        %v5144 = vpop.f32.mrb[0].mxu0
        %v5145 = vpop.f32.mrb[0].mxu0
        %v5146 = vadd.f32 0.0, %v5145
        %v5147 = vpop.f32.mrb[0].mxu0
        %5148 = vmatprep.mubr.bf16.mxu0 0
        %5149 = vmatmul.mubr.bf16.gmra.mrb[0].mxu0 %v3593
        %v5150 = vpop.f32.mrb[0].mxu0
        %v5151 = vadd.f32 0.0, %v5150
        %v5152 = vpop.f32.mrb[0].mxu0
        %v5153 = vpop.f32.mrb[0].mxu0
        %v5154 = vadd.f32 0.0, %v5153
        %v5155 = vpop.f32.mrb[0].mxu0
        %5156 = vmatprep.mubr.bf16.mxu0 0
        %5157 = vmatmul.mubr.bf16.gmra.mrb[0].mxu0 %v3594
        %v5158 = vpop.f32.mrb[0].mxu0
        %v5159 = vadd.f32 0.0, %v5158
        %v5160 = vpop.f32.mrb[0].mxu0
        %v5161 = vpop.f32.mrb[0].mxu0
        %v5162 = vadd.f32 0.0, %v5161
        %v5163 = vpop.f32.mrb[0].mxu0
        %5164 = vmatprep.mubr.bf16.mxu0 0
        %5165 = vmatmul.mubr.bf16.gmra.mrb[0].mxu0 %v3595
        %v5166 = vpop.f32.mrb[0].mxu0
        %v5167 = vadd.f32 0.0, %v5166
        %v5168 = vpop.f32.mrb[0].mxu0
        %v5169 = vpop.f32.mrb[0].mxu0
        %v5170 = vadd.f32 0.0, %v5169
        %v5171 = vpop.f32.mrb[0].mxu0
        %5172 = vmatprep.mubr.bf16.mxu0 0
        %5173 = vmatmul.mubr.bf16.gmra.mrb[0].mxu0 %v3596
        %v5174 = vpop.f32.mrb[0].mxu0
        %v5175 = vadd.f32 0.0, %v5174
        %v5176 = vpop.f32.mrb[0].mxu0
        %v5177 = vpop.f32.mrb[0].mxu0
        %v5178 = vadd.f32 0.0, %v5177
        %v5179 = vpop.f32.mrb[0].mxu0
        %5180 = vmatprep.mubr.bf16.mxu0 0
        %5181 = vmatmul.mubr.bf16.gmra.mrb[0].mxu0 %v3597
        %v5182 = vpop.f32.mrb[0].mxu0
        %v5183 = vadd.f32 0.0, %v5182
        %v5184 = vpop.f32.mrb[0].mxu0
        %v5185 = vpop.f32.mrb[0].mxu0
        %v5186 = vadd.f32 0.0, %v5185
        %v5187 = vpop.f32.mrb[0].mxu0
        %5188 = vmatprep.mubr.bf16.mxu0 0
        %5189 = vmatmul.mubr.bf16.gmra.mrb[0].mxu0 %v3598
        %v5190 = vpop.f32.mrb[0].mxu0
        %v5191 = vadd.f32 0.0, %v5190
        %v5192 = vpop.f32.mrb[0].mxu0
        %v5193 = vpop.f32.mrb[0].mxu0
        %v5194 = vadd.f32 0.0, %v5193
        %v5195 = vpop.f32.mrb[0].mxu0
        %5196 = vmatprep.mubr.bf16.mxu0 0
        %5197 = vmatmul.mubr.bf16.gmra.mrb[0].mxu0 %v3599
        %v5198 = vpop.f32.mrb[0].mxu0
        %v5199 = vadd.f32 0.0, %v5198
        %v5200 = vpop.f32.mrb[0].mxu0
        %v5201 = vpop.f32.mrb[0].mxu0
        %v5202 = vadd.f32 0.0, %v5201
        %v5203 = vpop.f32.mrb[0].mxu0
        %5204 = vmatprep.mubr.bf16.mxu0 0
        %5205 = vmatmul.mubr.bf16.gmra.mrb[0].mxu0 %v3600
        %v5206 = vpop.f32.mrb[0].mxu0
        %v5207 = vadd.f32 0.0, %v5206
        %v5208 = vpop.f32.mrb[0].mxu0
        %v5209 = vpop.f32.mrb[0].mxu0
        %v5210 = vadd.f32 0.0, %v5209
        %v5211 = vpop.f32.mrb[0].mxu0
        %5212 = vmatprep.mubr.bf16.mxu0 0
        %5213 = vmatmul.mubr.bf16.gmra.mrb[0].mxu0 %v3601
        %v5214 = vpop.f32.mrb[0].mxu0
        %v5215 = vadd.f32 0.0, %v5214
        %v5216 = vpop.f32.mrb[0].mxu0
        %v5217 = vpop.f32.mrb[0].mxu0
        %v5218 = vadd.f32 0.0, %v5217
        %v5219 = vpop.f32.mrb[0].mxu0
        %5220 = vmatprep.mubr.bf16.mxu0 0
        %5221 = vmatmul.mubr.bf16.gmra.mrb[0].mxu0 %v3602
        %v5222 = vpop.f32.mrb[0].mxu0
        %v5223 = vadd.f32 0.0, %v5222
        %v5224 = vpop.f32.mrb[0].mxu0
        %v5225 = vpop.f32.mrb[0].mxu0
        %v5226 = vadd.f32 0.0, %v5225
        %v5227 = vpop.f32.mrb[0].mxu0
        %5228 = vmatprep.mubr.bf16.mxu0 0
        %5229 = vmatmul.mubr.bf16.gmra.mrb[0].mxu0 %v3603
        %v5230 = vpop.f32.mrb[0].mxu0
        %v5231 = vadd.f32 0.0, %v5230
        %v5232 = vpop.f32.mrb[0].mxu0
        %v5233 = vpop.f32.mrb[0].mxu0
        %v5234 = vadd.f32 0.0, %v5233
        %v5235 = vpop.f32.mrb[0].mxu0
        %5236 = vmatprep.mubr.bf16.mxu0 0
        %5237 = vmatmul.mubr.bf16.gmra.mrb[0].mxu0 %v3604
        %v5238 = vpop.f32.mrb[0].mxu0
        %v5239 = vadd.f32 0.0, %v5238
        %v5240 = vpop.f32.mrb[0].mxu0
        %v5241 = vpop.f32.mrb[0].mxu0
        %v5242 = vadd.f32 0.0, %v5241
        %v5243 = vpop.f32.mrb[0].mxu0
        %5244 = vmatprep.mubr.bf16.mxu0 0
        %5245 = vmatmul.mubr.bf16.gmra.mrb[0].mxu0 %v3605
        %v5246 = vpop.f32.mrb[0].mxu0
        %v5247 = vadd.f32 0.0, %v5246
        %v5248 = vpop.f32.mrb[0].mxu0
        %v5249 = vpop.f32.mrb[0].mxu0
        %v5250 = vadd.f32 0.0, %v5249
        %v5251 = vpop.f32.mrb[0].mxu0
        %5252 = vmatprep.mubr.bf16.mxu0 0
        %5253 = vmatmul.mubr.bf16.gmra.mrb[0].mxu0 %v3606
        %v5254 = vpop.f32.mrb[0].mxu0
        %v5255 = vadd.f32 0.0, %v5254
        %v5256 = vpop.f32.mrb[0].mxu0
        %v5257 = vpop.f32.mrb[0].mxu0
        %v5258 = vadd.f32 0.0, %v5257
        %v5259 = vpop.f32.mrb[0].mxu0
        %5260 = vdwg.mxu0
        %v5261 = vld [vmem:[#allocation2] sm:$0xff]
        %v5262 = vld [vmem:[#allocation2 + $0x8] sm:$0xff]
        %v5263 = vld [vmem:[#allocation2 + $0x10] sm:$0xff]
        %v5264 = vld [vmem:[#allocation2 + $0x18] sm:$0xff]
        %v5265 = vld [vmem:[#allocation2 + $0x20] sm:$0xff]
        %v5266 = vld [vmem:[#allocation2 + $0x28] sm:$0xff]
        %v5267 = vld [vmem:[#allocation2 + $0x30] sm:$0xff]
        %v5268 = vld [vmem:[#allocation2 + $0x38] sm:$0xff]
        %v5269 = vld [vmem:[#allocation2 + $0x40] sm:$0xff]
        %v5270 = vld [vmem:[#allocation2 + $0x48] sm:$0xff]
        %v5271 = vld [vmem:[#allocation2 + $0x50] sm:$0xff]
        %v5272 = vld [vmem:[#allocation2 + $0x58] sm:$0xff]
        %v5273 = vld [vmem:[#allocation2 + $0x60] sm:$0xff]
        %v5274 = vld [vmem:[#allocation2 + $0x68] sm:$0xff]
        %v5275 = vld [vmem:[#allocation2 + $0x70] sm:$0xff]
        %v5276 = vld [vmem:[#allocation2 + $0x78] sm:$0xff]
        %v5277 = vld [vmem:[#allocation2 + $0x80] sm:$0xff]
        %v5278 = vld [vmem:[#allocation2 + $0x88] sm:$0xff]
        %v5279 = vld [vmem:[#allocation2 + $0x90] sm:$0xff]
        %v5280 = vld [vmem:[#allocation2 + $0x98] sm:$0xff]
        %v5281 = vld [vmem:[#allocation2 + $0xa0] sm:$0xff]
        %v5282 = vld [vmem:[#allocation2 + $0xa8] sm:$0xff]
        %v5283 = vld [vmem:[#allocation2 + $0xb0] sm:$0xff]
        %v5284 = vld [vmem:[#allocation2 + $0xb8] sm:$0xff]
        %v5285 = vld [vmem:[#allocation2 + $0xc0] sm:$0xff]
        %v5286 = vld [vmem:[#allocation2 + $0xc8] sm:$0xff]
        %v5287 = vld [vmem:[#allocation2 + $0xd0] sm:$0xff]
        %v5288 = vld [vmem:[#allocation2 + $0xd8] sm:$0xff]
        %v5289 = vld [vmem:[#allocation2 + $0xe0] sm:$0xff]
        %v5290 = vld [vmem:[#allocation2 + $0xe8] sm:$0xff]
        %v5291 = vld [vmem:[#allocation2 + $0xf0] sm:$0xff]
        %v5292 = vld [vmem:[#allocation2 + $0xf8] sm:$0xff]
        %v5293 = vadd.f32 %v5261, %v5135
        %v5294 = vadd.f32 %v5262, %v5138
        %v5295 = vadd.f32 %v5263, %v5143
        %v5296 = vadd.f32 %v5264, %v5146
        %v5297 = vadd.f32 %v5265, %v5151
        %v5298 = vadd.f32 %v5266, %v5154
        %v5299 = vadd.f32 %v5267, %v5159
        %v5300 = vadd.f32 %v5268, %v5162
        %v5301 = vadd.f32 %v5269, %v5167
        %v5302 = vadd.f32 %v5270, %v5170
        %v5303 = vadd.f32 %v5271, %v5175
        %v5304 = vadd.f32 %v5272, %v5178
        %v5305 = vadd.f32 %v5273, %v5183
        %v5306 = vadd.f32 %v5274, %v5186
        %v5307 = vadd.f32 %v5275, %v5191
        %v5308 = vadd.f32 %v5276, %v5194
        %v5309 = vadd.f32 %v5277, %v5199
        %v5310 = vadd.f32 %v5278, %v5202
        %v5311 = vadd.f32 %v5279, %v5207
        %v5312 = vadd.f32 %v5280, %v5210
        %v5313 = vadd.f32 %v5281, %v5215
        %v5314 = vadd.f32 %v5282, %v5218
        %v5315 = vadd.f32 %v5283, %v5223
        %v5316 = vadd.f32 %v5284, %v5226
        %v5317 = vadd.f32 %v5285, %v5231
        %v5318 = vadd.f32 %v5286, %v5234
        %v5319 = vadd.f32 %v5287, %v5239
        %v5320 = vadd.f32 %v5288, %v5242
        %v5321 = vadd.f32 %v5289, %v5247
        %v5322 = vadd.f32 %v5290, %v5250
        %v5323 = vadd.f32 %v5291, %v5255
        %v5324 = vadd.f32 %v5292, %v5258
        %5325 = vst [vmem:[#allocation2] sm:$0xff] %v5293
        %5326 = vst [vmem:[#allocation2 + $0x8] sm:$0xff] %v5294
        %5327 = vst [vmem:[#allocation2 + $0x10] sm:$0xff] %v5295
        %5328 = vst [vmem:[#allocation2 + $0x18] sm:$0xff] %v5296
        %5329 = vst [vmem:[#allocation2 + $0x20] sm:$0xff] %v5297
        %5330 = vst [vmem:[#allocation2 + $0x28] sm:$0xff] %v5298
        %5331 = vst [vmem:[#allocation2 + $0x30] sm:$0xff] %v5299
        %5332 = vst [vmem:[#allocation2 + $0x38] sm:$0xff] %v5300
        %5333 = vst [vmem:[#allocation2 + $0x40] sm:$0xff] %v5301
        %5334 = vst [vmem:[#allocation2 + $0x48] sm:$0xff] %v5302
        %5335 = vst [vmem:[#allocation2 + $0x50] sm:$0xff] %v5303
        %5336 = vst [vmem:[#allocation2 + $0x58] sm:$0xff] %v5304
        %5337 = vst [vmem:[#allocation2 + $0x60] sm:$0xff] %v5305
        %5338 = vst [vmem:[#allocation2 + $0x68] sm:$0xff] %v5306
        %5339 = vst [vmem:[#allocation2 + $0x70] sm:$0xff] %v5307
        %5340 = vst [vmem:[#allocation2 + $0x78] sm:$0xff] %v5308
        %5341 = vst [vmem:[#allocation2 + $0x80] sm:$0xff] %v5309
        %5342 = vst [vmem:[#allocation2 + $0x88] sm:$0xff] %v5310
        %5343 = vst [vmem:[#allocation2 + $0x90] sm:$0xff] %v5311
        %5344 = vst [vmem:[#allocation2 + $0x98] sm:$0xff] %v5312
        %5345 = vst [vmem:[#allocation2 + $0xa0] sm:$0xff] %v5313
        %5346 = vst [vmem:[#allocation2 + $0xa8] sm:$0xff] %v5314
        %5347 = vst [vmem:[#allocation2 + $0xb0] sm:$0xff] %v5315
        %5348 = vst [vmem:[#allocation2 + $0xb8] sm:$0xff] %v5316
        %5349 = vst [vmem:[#allocation2 + $0xc0] sm:$0xff] %v5317
        %5350 = vst [vmem:[#allocation2 + $0xc8] sm:$0xff] %v5318
        %5351 = vst [vmem:[#allocation2 + $0xd0] sm:$0xff] %v5319
        %5352 = vst [vmem:[#allocation2 + $0xd8] sm:$0xff] %v5320
        %5353 = vst [vmem:[#allocation2 + $0xe0] sm:$0xff] %v5321
        %5354 = vst [vmem:[#allocation2 + $0xe8] sm:$0xff] %v5322
        %5355 = vst [vmem:[#allocation2 + $0xf0] sm:$0xff] %v5323
        %5356 = vst [vmem:[#allocation2 + $0xf8] sm:$0xff] %v5324
        %s5357 = scalar_lea.vmem [#allocation9], 448
        %v5358 = vld [vmem:[%s5357] sm:$0xf]
        %v5359 = vld [vmem:[%s5357 + $0x4] sm:$0xf]
        %v5360 = vld [vmem:[%s5357 + $0x8] sm:$0xf]
        %v5361 = vld [vmem:[%s5357 + $0xc] sm:$0xf]
        %v5362 = vld [vmem:[%s5357 + $0x10] sm:$0xf]
        %v5363 = vld [vmem:[%s5357 + $0x14] sm:$0xf]
        %v5364 = vld [vmem:[%s5357 + $0x18] sm:$0xf]
        %v5365 = vld [vmem:[%s5357 + $0x1c] sm:$0xf]
        %v5366 = vld [vmem:[%s5357 + $0x20] sm:$0xf]
        %v5367 = vld [vmem:[%s5357 + $0x24] sm:$0xf]
        %v5368 = vld [vmem:[%s5357 + $0x28] sm:$0xf]
        %v5369 = vld [vmem:[%s5357 + $0x2c] sm:$0xf]
        %v5370 = vld [vmem:[%s5357 + $0x30] sm:$0xf]
        %v5371 = vld [vmem:[%s5357 + $0x34] sm:$0xf]
        %v5372 = vld [vmem:[%s5357 + $0x38] sm:$0xf]
        %v5373 = vld [vmem:[%s5357 + $0x3c] sm:$0xf]
        %v5390 = vunpack.c.l.b16 %v5358
        %v5391 = vunpack.c.l.b16 %v5359
        %v5392 = vunpack.c.l.b16 %v5360
        %v5393 = vunpack.c.l.b16 %v5361
        %v5394 = vunpack.c.l.b16 %v5362
        %v5395 = vunpack.c.l.b16 %v5363
        %v5396 = vunpack.c.l.b16 %v5364
        %v5397 = vunpack.c.l.b16 %v5365
        %v5398 = vunpack.c.l.b16 %v5366
        %v5399 = vunpack.c.l.b16 %v5367
        %v5400 = vunpack.c.l.b16 %v5368
        %v5401 = vunpack.c.l.b16 %v5369
        %v5402 = vunpack.c.l.b16 %v5370
        %v5403 = vunpack.c.l.b16 %v5371
        %v5404 = vunpack.c.l.b16 %v5372
        %v5405 = vunpack.c.l.b16 %v5373
        %v5406 = vpack.c.b16 %v5391, %v5390
        %v5407 = vpack.c.b16 %v5393, %v5392
        %v5408 = vpack.c.b16 %v5395, %v5394
        %v5409 = vpack.c.b16 %v5397, %v5396
        %v5410 = vpack.c.b16 %v5399, %v5398
        %v5411 = vpack.c.b16 %v5401, %v5400
        %v5412 = vpack.c.b16 %v5403, %v5402
        %v5413 = vpack.c.b16 %v5405, %v5404
        %5422 = vmatprep.subr.bf16.mxu0 0
        %5423 = vmatpush1.bf16.msra.mxu0 %v5406
        %5424 = vmatprep.subr.bf16.mxu0 0
        %5425 = vmatpush1.bf16.msra.mxu0 %v5407
        %5426 = vmatprep.subr.bf16.mxu0 0
        %5427 = vmatpush1.bf16.msra.mxu0 %v5408
        %5428 = vmatprep.subr.bf16.mxu0 0
        %5429 = vmatpush1.bf16.msra.mxu0 %v5409
        %5430 = vmatprep.subr.bf16.mxu0 0
        %5431 = vmatpush1.bf16.msra.mxu0 %v5410
        %5432 = vmatprep.subr.bf16.mxu0 0
        %5433 = vmatpush1.bf16.msra.mxu0 %v5411
        %5434 = vmatprep.subr.bf16.mxu0 0
        %5435 = vmatpush1.bf16.msra.mxu0 %v5412
        %5436 = vmatprep.subr.bf16.mxu0 0
        %5437 = vmatpush1.bf16.msra.mxu0 %v5413
        %5438 = vmatprep.subr.bf16.mxu0 0
        %5439 = vmatpush1.bf16.msra.mxu0 0
        %5440 = vmatprep.subr.bf16.mxu0 0
        %5441 = vmatpush1.bf16.msra.mxu0 0
        %5442 = vmatprep.subr.bf16.mxu0 0
        %5443 = vmatpush1.bf16.msra.mxu0 0
        %5444 = vmatprep.subr.bf16.mxu0 0
        %5445 = vmatpush1.bf16.msra.mxu0 0
        %5446 = vmatprep.subr.bf16.mxu0 0
        %5447 = vmatpush1.bf16.msra.mxu0 0
        %5448 = vmatprep.subr.bf16.mxu0 0
        %5449 = vmatpush1.bf16.msra.mxu0 0
        %5450 = vmatprep.subr.bf16.mxu0 0
        %5451 = vmatpush1.bf16.msra.mxu0 0
        %5452 = vmatprep.subr.bf16.mxu0 0
        %5453 = vmatpush1.bf16.msra.mxu0 0
        %5454 = vmatprep.mubr.bf16.mxu0 0
        %5455 = vmatmul.mubr.bf16.gmra.mrb[0].mxu0 %v3592
        %v5456 = vpop.f32.mrb[0].mxu0
        %v5457 = vadd.f32 0.0, %v5456
        %v5458 = vpop.f32.mrb[0].mxu0
        %v5459 = vpop.f32.mrb[0].mxu0
        %v5460 = vadd.f32 0.0, %v5459
        %v5461 = vpop.f32.mrb[0].mxu0
        %5462 = vmatprep.mubr.bf16.mxu0 0
        %5463 = vmatmul.mubr.bf16.gmra.mrb[0].mxu0 %v3593
        %v5464 = vpop.f32.mrb[0].mxu0
        %v5465 = vadd.f32 0.0, %v5464
        %v5466 = vpop.f32.mrb[0].mxu0
        %v5467 = vpop.f32.mrb[0].mxu0
        %v5468 = vadd.f32 0.0, %v5467
        %v5469 = vpop.f32.mrb[0].mxu0
        %5470 = vmatprep.mubr.bf16.mxu0 0
        %5471 = vmatmul.mubr.bf16.gmra.mrb[0].mxu0 %v3594
        %v5472 = vpop.f32.mrb[0].mxu0
        %v5473 = vadd.f32 0.0, %v5472
        %v5474 = vpop.f32.mrb[0].mxu0
        %v5475 = vpop.f32.mrb[0].mxu0
        %v5476 = vadd.f32 0.0, %v5475
        %v5477 = vpop.f32.mrb[0].mxu0
        %5478 = vmatprep.mubr.bf16.mxu0 0
        %5479 = vmatmul.mubr.bf16.gmra.mrb[0].mxu0 %v3595
        %v5480 = vpop.f32.mrb[0].mxu0
        %v5481 = vadd.f32 0.0, %v5480
        %v5482 = vpop.f32.mrb[0].mxu0
        %v5483 = vpop.f32.mrb[0].mxu0
        %v5484 = vadd.f32 0.0, %v5483
        %v5485 = vpop.f32.mrb[0].mxu0
        %5486 = vmatprep.mubr.bf16.mxu0 0
        %5487 = vmatmul.mubr.bf16.gmra.mrb[0].mxu0 %v3596
        %v5488 = vpop.f32.mrb[0].mxu0
        %v5489 = vadd.f32 0.0, %v5488
        %v5490 = vpop.f32.mrb[0].mxu0
        %v5491 = vpop.f32.mrb[0].mxu0
        %v5492 = vadd.f32 0.0, %v5491
        %v5493 = vpop.f32.mrb[0].mxu0
        %5494 = vmatprep.mubr.bf16.mxu0 0
        %5495 = vmatmul.mubr.bf16.gmra.mrb[0].mxu0 %v3597
        %v5496 = vpop.f32.mrb[0].mxu0
        %v5497 = vadd.f32 0.0, %v5496
        %v5498 = vpop.f32.mrb[0].mxu0
        %v5499 = vpop.f32.mrb[0].mxu0
        %v5500 = vadd.f32 0.0, %v5499
        %v5501 = vpop.f32.mrb[0].mxu0
        %5502 = vmatprep.mubr.bf16.mxu0 0
        %5503 = vmatmul.mubr.bf16.gmra.mrb[0].mxu0 %v3598
        %v5504 = vpop.f32.mrb[0].mxu0
        %v5505 = vadd.f32 0.0, %v5504
        %v5506 = vpop.f32.mrb[0].mxu0
        %v5507 = vpop.f32.mrb[0].mxu0
        %v5508 = vadd.f32 0.0, %v5507
        %v5509 = vpop.f32.mrb[0].mxu0
        %5510 = vmatprep.mubr.bf16.mxu0 0
        %5511 = vmatmul.mubr.bf16.gmra.mrb[0].mxu0 %v3599
        %v5512 = vpop.f32.mrb[0].mxu0
        %v5513 = vadd.f32 0.0, %v5512
        %v5514 = vpop.f32.mrb[0].mxu0
        %v5515 = vpop.f32.mrb[0].mxu0
        %v5516 = vadd.f32 0.0, %v5515
        %v5517 = vpop.f32.mrb[0].mxu0
        %5518 = vmatprep.mubr.bf16.mxu0 0
        %5519 = vmatmul.mubr.bf16.gmra.mrb[0].mxu0 %v3600
        %v5520 = vpop.f32.mrb[0].mxu0
        %v5521 = vadd.f32 0.0, %v5520
        %v5522 = vpop.f32.mrb[0].mxu0
        %v5523 = vpop.f32.mrb[0].mxu0
        %v5524 = vadd.f32 0.0, %v5523
        %v5525 = vpop.f32.mrb[0].mxu0
        %5526 = vmatprep.mubr.bf16.mxu0 0
        %5527 = vmatmul.mubr.bf16.gmra.mrb[0].mxu0 %v3601
        %v5528 = vpop.f32.mrb[0].mxu0
        %v5529 = vadd.f32 0.0, %v5528
        %v5530 = vpop.f32.mrb[0].mxu0
        %v5531 = vpop.f32.mrb[0].mxu0
        %v5532 = vadd.f32 0.0, %v5531
        %v5533 = vpop.f32.mrb[0].mxu0
        %5534 = vmatprep.mubr.bf16.mxu0 0
        %5535 = vmatmul.mubr.bf16.gmra.mrb[0].mxu0 %v3602
        %v5536 = vpop.f32.mrb[0].mxu0
        %v5537 = vadd.f32 0.0, %v5536
        %v5538 = vpop.f32.mrb[0].mxu0
        %v5539 = vpop.f32.mrb[0].mxu0
        %v5540 = vadd.f32 0.0, %v5539
        %v5541 = vpop.f32.mrb[0].mxu0
        %5542 = vmatprep.mubr.bf16.mxu0 0
        %5543 = vmatmul.mubr.bf16.gmra.mrb[0].mxu0 %v3603
        %v5544 = vpop.f32.mrb[0].mxu0
        %v5545 = vadd.f32 0.0, %v5544
        %v5546 = vpop.f32.mrb[0].mxu0
        %v5547 = vpop.f32.mrb[0].mxu0
        %v5548 = vadd.f32 0.0, %v5547
        %v5549 = vpop.f32.mrb[0].mxu0
        %5550 = vmatprep.mubr.bf16.mxu0 0
        %5551 = vmatmul.mubr.bf16.gmra.mrb[0].mxu0 %v3604
        %v5552 = vpop.f32.mrb[0].mxu0
        %v5553 = vadd.f32 0.0, %v5552
        %v5554 = vpop.f32.mrb[0].mxu0
        %v5555 = vpop.f32.mrb[0].mxu0
        %v5556 = vadd.f32 0.0, %v5555
        %v5557 = vpop.f32.mrb[0].mxu0
        %5558 = vmatprep.mubr.bf16.mxu0 0
        %5559 = vmatmul.mubr.bf16.gmra.mrb[0].mxu0 %v3605
        %v5560 = vpop.f32.mrb[0].mxu0
        %v5561 = vadd.f32 0.0, %v5560
        %v5562 = vpop.f32.mrb[0].mxu0
        %v5563 = vpop.f32.mrb[0].mxu0
        %v5564 = vadd.f32 0.0, %v5563
        %v5565 = vpop.f32.mrb[0].mxu0
        %5566 = vmatprep.mubr.bf16.mxu0 0
        %5567 = vmatmul.mubr.bf16.gmra.mrb[0].mxu0 %v3606
        %v5568 = vpop.f32.mrb[0].mxu0
        %v5569 = vadd.f32 0.0, %v5568
        %v5570 = vpop.f32.mrb[0].mxu0
        %v5571 = vpop.f32.mrb[0].mxu0
        %v5572 = vadd.f32 0.0, %v5571
        %v5573 = vpop.f32.mrb[0].mxu0
        %5574 = vdwg.mxu0
        %v5575 = vld [vmem:[#allocation2] sm:$0xff]
        %v5576 = vld [vmem:[#allocation2 + $0x8] sm:$0xff]
        %v5577 = vld [vmem:[#allocation2 + $0x10] sm:$0xff]
        %v5578 = vld [vmem:[#allocation2 + $0x18] sm:$0xff]
        %v5579 = vld [vmem:[#allocation2 + $0x20] sm:$0xff]
        %v5580 = vld [vmem:[#allocation2 + $0x28] sm:$0xff]
        %v5581 = vld [vmem:[#allocation2 + $0x30] sm:$0xff]
        %v5582 = vld [vmem:[#allocation2 + $0x38] sm:$0xff]
        %v5583 = vld [vmem:[#allocation2 + $0x40] sm:$0xff]
        %v5584 = vld [vmem:[#allocation2 + $0x48] sm:$0xff]
        %v5585 = vld [vmem:[#allocation2 + $0x50] sm:$0xff]
        %v5586 = vld [vmem:[#allocation2 + $0x58] sm:$0xff]
        %v5587 = vld [vmem:[#allocation2 + $0x60] sm:$0xff]
        %v5588 = vld [vmem:[#allocation2 + $0x68] sm:$0xff]
        %v5589 = vld [vmem:[#allocation2 + $0x70] sm:$0xff]
        %v5590 = vld [vmem:[#allocation2 + $0x78] sm:$0xff]
        %v5591 = vld [vmem:[#allocation2 + $0x80] sm:$0xff]
        %v5592 = vld [vmem:[#allocation2 + $0x88] sm:$0xff]
        %v5593 = vld [vmem:[#allocation2 + $0x90] sm:$0xff]
        %v5594 = vld [vmem:[#allocation2 + $0x98] sm:$0xff]
        %v5595 = vld [vmem:[#allocation2 + $0xa0] sm:$0xff]
        %v5596 = vld [vmem:[#allocation2 + $0xa8] sm:$0xff]
        %v5597 = vld [vmem:[#allocation2 + $0xb0] sm:$0xff]
        %v5598 = vld [vmem:[#allocation2 + $0xb8] sm:$0xff]
        %v5599 = vld [vmem:[#allocation2 + $0xc0] sm:$0xff]
        %v5600 = vld [vmem:[#allocation2 + $0xc8] sm:$0xff]
        %v5601 = vld [vmem:[#allocation2 + $0xd0] sm:$0xff]
        %v5602 = vld [vmem:[#allocation2 + $0xd8] sm:$0xff]
        %v5603 = vld [vmem:[#allocation2 + $0xe0] sm:$0xff]
        %v5604 = vld [vmem:[#allocation2 + $0xe8] sm:$0xff]
        %v5605 = vadd.f32 %v5575, %v5457
        %v5606 = vadd.f32 %v5576, %v5460
        %v5607 = vadd.f32 %v5577, %v5465
        %v5608 = vadd.f32 %v5578, %v5468
        %v5609 = vadd.f32 %v5579, %v5473
        %v5610 = vadd.f32 %v5580, %v5476
        %v5611 = vadd.f32 %v5581, %v5481
        %v5612 = vadd.f32 %v5582, %v5484
        %v5613 = vadd.f32 %v5583, %v5489
        %v5614 = vadd.f32 %v5584, %v5492
        %v5615 = vadd.f32 %v5585, %v5497
        %v5616 = vadd.f32 %v5586, %v5500
        %v5617 = vadd.f32 %v5587, %v5505
        %v5618 = vadd.f32 %v5588, %v5508
        %v5619 = vadd.f32 %v5589, %v5513
        %v5620 = vadd.f32 %v5590, %v5516
        %v5621 = vadd.f32 %v5591, %v5521
        %v5622 = vadd.f32 %v5592, %v5524
        %v5623 = vadd.f32 %v5593, %v5529
        %v5624 = vadd.f32 %v5594, %v5532
        %v5625 = vadd.f32 %v5595, %v5537
        %v5626 = vadd.f32 %v5596, %v5540
        %v5627 = vadd.f32 %v5597, %v5545
        %v5628 = vadd.f32 %v5598, %v5548
        %v5629 = vadd.f32 %v5599, %v5553
        %v5630 = vadd.f32 %v5600, %v5556
        %v5631 = vadd.f32 %v5601, %v5561
        %v5632 = vadd.f32 %v5602, %v5564
        %v5633 = vadd.f32 %v5603, %v5569
        %v5634 = vadd.f32 %v5604, %v5572
        %5635 = vst [vmem:[#allocation2] sm:$0xff] %v5605
        %5636 = vst [vmem:[#allocation2 + $0x8] sm:$0xff] %v5606
        %5637 = vst [vmem:[#allocation2 + $0x10] sm:$0xff] %v5607
        %5638 = vst [vmem:[#allocation2 + $0x18] sm:$0xff] %v5608
        %5639 = vst [vmem:[#allocation2 + $0x20] sm:$0xff] %v5609
        %5640 = vst [vmem:[#allocation2 + $0x28] sm:$0xff] %v5610
        %5641 = vst [vmem:[#allocation2 + $0x30] sm:$0xff] %v5611
        %5642 = vst [vmem:[#allocation2 + $0x38] sm:$0xff] %v5612
        %5643 = vst [vmem:[#allocation2 + $0x40] sm:$0xff] %v5613
        %5644 = vst [vmem:[#allocation2 + $0x48] sm:$0xff] %v5614
        %5645 = vst [vmem:[#allocation2 + $0x50] sm:$0xff] %v5615
        %5646 = vst [vmem:[#allocation2 + $0x58] sm:$0xff] %v5616
        %5647 = vst [vmem:[#allocation2 + $0x60] sm:$0xff] %v5617
        %5648 = vst [vmem:[#allocation2 + $0x68] sm:$0xff] %v5618
        %5649 = vst [vmem:[#allocation2 + $0x70] sm:$0xff] %v5619
        %5650 = vst [vmem:[#allocation2 + $0x78] sm:$0xff] %v5620
        %5651 = vst [vmem:[#allocation2 + $0x80] sm:$0xff] %v5621
        %5652 = vst [vmem:[#allocation2 + $0x88] sm:$0xff] %v5622
        %5653 = vst [vmem:[#allocation2 + $0x90] sm:$0xff] %v5623
        %5654 = vst [vmem:[#allocation2 + $0x98] sm:$0xff] %v5624
        %5655 = vst [vmem:[#allocation2 + $0xa0] sm:$0xff] %v5625
        %5656 = vst [vmem:[#allocation2 + $0xa8] sm:$0xff] %v5626
        %5657 = vst [vmem:[#allocation2 + $0xb0] sm:$0xff] %v5627
        %5658 = vst [vmem:[#allocation2 + $0xb8] sm:$0xff] %v5628
        %5659 = vst [vmem:[#allocation2 + $0xc0] sm:$0xff] %v5629
        %5660 = vst [vmem:[#allocation2 + $0xc8] sm:$0xff] %v5630
        %5661 = vst [vmem:[#allocation2 + $0xd0] sm:$0xff] %v5631
        %5662 = vst [vmem:[#allocation2 + $0xd8] sm:$0xff] %v5632
        %5663 = vst [vmem:[#allocation2 + $0xe0] sm:$0xff] %v5633
        %5664 = vst [vmem:[#allocation2 + $0xe8] sm:$0xff] %v5634
        %v5665 = vrot.slane %v3650, 1
        %v5666 = vor.u32 %v3647, %v5665
        %v5667 = vrot.slane %v3657, 1
        %v5668 = vor.u32 %v3654, %v5667
        %v5669 = vrot.slane %v3664, 1
        %v5670 = vor.u32 %v3661, %v5669
        %v5671 = vrot.slane %v3671, 1
        %v5672 = vor.u32 %v3668, %v5671
        %v5673 = vrot.slane %v3678, 1
        %v5674 = vor.u32 %v3675, %v5673
        %v5675 = vrot.slane %v3685, 1
        %v5676 = vor.u32 %v3682, %v5675
        %v5677 = vrot.slane %v3692, 1
        %v5678 = vor.u32 %v3689, %v5677
        %v5679 = vrot.slane %v3699, 1
        %v5680 = vor.u32 %v3696, %v5679
        %v5681 = vrot.slane %v3706, 1
        %v5682 = vor.u32 %v3703, %v5681
        %v5683 = vrot.slane %v3713, 1
        %v5684 = vor.u32 %v3710, %v5683
        %v5685 = vrot.slane %v3720, 1
        %v5686 = vor.u32 %v3717, %v5685
        %v5687 = vrot.slane %v3727, 1
        %v5688 = vor.u32 %v3724, %v5687
        %v5689 = vrot.slane %v3734, 1
        %v5690 = vor.u32 %v3731, %v5689
        %v5691 = vrot.slane %v3741, 1
        %v5692 = vor.u32 %v3738, %v5691
        %v5693 = vrot.slane %v3748, 1
        %v5694 = vor.u32 %v3745, %v5693
        %v5695 = vrot.slane %v3755, 1
        %v5696 = vor.u32 %v3752, %v5695
        %v5713 = vsel %vm2539, %v5666, 0
        %v5714 = vsel %vm2539, %v5668, 0
        %v5715 = vsel %vm2539, %v5670, 0
        %v5716 = vsel %vm2539, %v5672, 0
        %v5717 = vsel %vm2539, %v5674, 0
        %v5718 = vsel %vm2539, %v5676, 0
        %v5719 = vsel %vm2539, %v5678, 0
        %v5720 = vsel %vm2539, %v5680, 0
        %v5721 = vsel %vm2539, %v5682, 0
        %v5722 = vsel %vm2539, %v5684, 0
        %v5723 = vsel %vm2539, %v5686, 0
        %v5724 = vsel %vm2539, %v5688, 0
        %v5725 = vsel %vm2539, %v5690, 0
        %v5726 = vsel %vm2539, %v5692, 0
        %v5727 = vsel %vm2539, %v5694, 0
        %v5728 = vsel %vm2539, %v5696, 0
        %s5729 = scalar_lea.vmem [#allocation9], 128
        %v5730 = vld [vmem:[%s5729] sm:$0xf]
        %v5731 = vld [vmem:[%s5729 + $0x4] sm:$0xf]
        %v5732 = vld [vmem:[%s5729 + $0x8] sm:$0xf]
        %v5733 = vld [vmem:[%s5729 + $0xc] sm:$0xf]
        %v5734 = vld [vmem:[%s5729 + $0x10] sm:$0xf]
        %v5735 = vld [vmem:[%s5729 + $0x14] sm:$0xf]
        %v5736 = vld [vmem:[%s5729 + $0x18] sm:$0xf]
        %v5737 = vld [vmem:[%s5729 + $0x1c] sm:$0xf]
        %v5738 = vld [vmem:[%s5729 + $0x20] sm:$0xf]
        %v5739 = vld [vmem:[%s5729 + $0x24] sm:$0xf]
        %v5740 = vld [vmem:[%s5729 + $0x28] sm:$0xf]
        %v5741 = vld [vmem:[%s5729 + $0x2c] sm:$0xf]
        %v5742 = vld [vmem:[%s5729 + $0x30] sm:$0xf]
        %v5743 = vld [vmem:[%s5729 + $0x34] sm:$0xf]
        %v5744 = vld [vmem:[%s5729 + $0x38] sm:$0xf]
        %v5745 = vld [vmem:[%s5729 + $0x3c] sm:$0xf]
        %v5762 = vunpack.c.l.b16 %v5730
        %v5763 = vunpack.c.l.b16 %v5731
        %v5764 = vunpack.c.l.b16 %v5732
        %v5765 = vunpack.c.l.b16 %v5733
        %v5766 = vunpack.c.l.b16 %v5734
        %v5767 = vunpack.c.l.b16 %v5735
        %v5768 = vunpack.c.l.b16 %v5736
        %v5769 = vunpack.c.l.b16 %v5737
        %v5770 = vunpack.c.l.b16 %v5738
        %v5771 = vunpack.c.l.b16 %v5739
        %v5772 = vunpack.c.l.b16 %v5740
        %v5773 = vunpack.c.l.b16 %v5741
        %v5774 = vunpack.c.l.b16 %v5742
        %v5775 = vunpack.c.l.b16 %v5743
        %v5776 = vunpack.c.l.b16 %v5744
        %v5777 = vunpack.c.l.b16 %v5745
        %v5778 = vpack.c.b16 %v5763, %v5762
        %v5779 = vpack.c.b16 %v5765, %v5764
        %v5780 = vpack.c.b16 %v5767, %v5766
        %v5781 = vpack.c.b16 %v5769, %v5768
        %v5782 = vpack.c.b16 %v5771, %v5770
        %v5783 = vpack.c.b16 %v5773, %v5772
        %v5784 = vpack.c.b16 %v5775, %v5774
        %v5785 = vpack.c.b16 %v5777, %v5776
        %5794 = vmatprep.subr.bf16.mxu0 0
        %5795 = vmatpush1.bf16.msra.mxu0 %v5778
        %5796 = vmatprep.subr.bf16.mxu0 0
        %5797 = vmatpush1.bf16.msra.mxu0 %v5779
        %5798 = vmatprep.subr.bf16.mxu0 0
        %5799 = vmatpush1.bf16.msra.mxu0 %v5780
        %5800 = vmatprep.subr.bf16.mxu0 0
        %5801 = vmatpush1.bf16.msra.mxu0 %v5781
        %5802 = vmatprep.subr.bf16.mxu0 0
        %5803 = vmatpush1.bf16.msra.mxu0 %v5782
        %5804 = vmatprep.subr.bf16.mxu0 0
        %5805 = vmatpush1.bf16.msra.mxu0 %v5783
        %5806 = vmatprep.subr.bf16.mxu0 0
        %5807 = vmatpush1.bf16.msra.mxu0 %v5784
        %5808 = vmatprep.subr.bf16.mxu0 0
        %5809 = vmatpush1.bf16.msra.mxu0 %v5785
        %5810 = vmatprep.subr.bf16.mxu0 0
        %5811 = vmatpush1.bf16.msra.mxu0 0
        %5812 = vmatprep.subr.bf16.mxu0 0
        %5813 = vmatpush1.bf16.msra.mxu0 0
        %5814 = vmatprep.subr.bf16.mxu0 0
        %5815 = vmatpush1.bf16.msra.mxu0 0
        %5816 = vmatprep.subr.bf16.mxu0 0
        %5817 = vmatpush1.bf16.msra.mxu0 0
        %5818 = vmatprep.subr.bf16.mxu0 0
        %5819 = vmatpush1.bf16.msra.mxu0 0
        %5820 = vmatprep.subr.bf16.mxu0 0
        %5821 = vmatpush1.bf16.msra.mxu0 0
        %5822 = vmatprep.subr.bf16.mxu0 0
        %5823 = vmatpush1.bf16.msra.mxu0 0
        %5824 = vmatprep.subr.bf16.mxu0 0
        %5825 = vmatpush1.bf16.msra.mxu0 0
        %5826 = vmatprep.mubr.bf16.mxu0 0
        %5827 = vmatmul.mubr.bf16.gmra.mrb[0].mxu0 %v5713
        %v5828 = vpop.f32.mrb[0].mxu0
        %v5829 = vadd.f32 0.0, %v5828
        %v5830 = vpop.f32.mrb[0].mxu0
        %v5831 = vpop.f32.mrb[0].mxu0
        %v5832 = vadd.f32 0.0, %v5831
        %v5833 = vpop.f32.mrb[0].mxu0
        %5834 = vmatprep.mubr.bf16.mxu0 0
        %5835 = vmatmul.mubr.bf16.gmra.mrb[0].mxu0 %v5714
        %v5836 = vpop.f32.mrb[0].mxu0
        %v5837 = vadd.f32 0.0, %v5836
        %v5838 = vpop.f32.mrb[0].mxu0
        %v5839 = vpop.f32.mrb[0].mxu0
        %v5840 = vadd.f32 0.0, %v5839
        %v5841 = vpop.f32.mrb[0].mxu0
        %5842 = vmatprep.mubr.bf16.mxu0 0
        %5843 = vmatmul.mubr.bf16.gmra.mrb[0].mxu0 %v5715
        %v5844 = vpop.f32.mrb[0].mxu0
        %v5845 = vadd.f32 0.0, %v5844
        %v5846 = vpop.f32.mrb[0].mxu0
        %v5847 = vpop.f32.mrb[0].mxu0
        %v5848 = vadd.f32 0.0, %v5847
        %v5849 = vpop.f32.mrb[0].mxu0
        %5850 = vmatprep.mubr.bf16.mxu0 0
        %5851 = vmatmul.mubr.bf16.gmra.mrb[0].mxu0 %v5716
        %v5852 = vpop.f32.mrb[0].mxu0
        %v5853 = vadd.f32 0.0, %v5852
        %v5854 = vpop.f32.mrb[0].mxu0
        %v5855 = vpop.f32.mrb[0].mxu0
        %v5856 = vadd.f32 0.0, %v5855
        %v5857 = vpop.f32.mrb[0].mxu0
        %5858 = vmatprep.mubr.bf16.mxu0 0
        %5859 = vmatmul.mubr.bf16.gmra.mrb[0].mxu0 %v5717
        %v5860 = vpop.f32.mrb[0].mxu0
        %v5861 = vadd.f32 0.0, %v5860
        %v5862 = vpop.f32.mrb[0].mxu0
        %v5863 = vpop.f32.mrb[0].mxu0
        %v5864 = vadd.f32 0.0, %v5863
        %v5865 = vpop.f32.mrb[0].mxu0
        %5866 = vmatprep.mubr.bf16.mxu0 0
        %5867 = vmatmul.mubr.bf16.gmra.mrb[0].mxu0 %v5718
        %v5868 = vpop.f32.mrb[0].mxu0
        %v5869 = vadd.f32 0.0, %v5868
        %v5870 = vpop.f32.mrb[0].mxu0
        %v5871 = vpop.f32.mrb[0].mxu0
        %v5872 = vadd.f32 0.0, %v5871
        %v5873 = vpop.f32.mrb[0].mxu0
        %5874 = vmatprep.mubr.bf16.mxu0 0
        %5875 = vmatmul.mubr.bf16.gmra.mrb[0].mxu0 %v5719
        %v5876 = vpop.f32.mrb[0].mxu0
        %v5877 = vadd.f32 0.0, %v5876
        %v5878 = vpop.f32.mrb[0].mxu0
        %v5879 = vpop.f32.mrb[0].mxu0
        %v5880 = vadd.f32 0.0, %v5879
        %v5881 = vpop.f32.mrb[0].mxu0
        %5882 = vmatprep.mubr.bf16.mxu0 0
        %5883 = vmatmul.mubr.bf16.gmra.mrb[0].mxu0 %v5720
        %v5884 = vpop.f32.mrb[0].mxu0
        %v5885 = vadd.f32 0.0, %v5884
        %v5886 = vpop.f32.mrb[0].mxu0
        %v5887 = vpop.f32.mrb[0].mxu0
        %v5888 = vadd.f32 0.0, %v5887
        %v5889 = vpop.f32.mrb[0].mxu0
        %5890 = vmatprep.mubr.bf16.mxu0 0
        %5891 = vmatmul.mubr.bf16.gmra.mrb[0].mxu0 %v5721
        %v5892 = vpop.f32.mrb[0].mxu0
        %v5893 = vadd.f32 0.0, %v5892
        %v5894 = vpop.f32.mrb[0].mxu0
        %v5895 = vpop.f32.mrb[0].mxu0
        %v5896 = vadd.f32 0.0, %v5895
        %v5897 = vpop.f32.mrb[0].mxu0
        %5898 = vmatprep.mubr.bf16.mxu0 0
        %5899 = vmatmul.mubr.bf16.gmra.mrb[0].mxu0 %v5722
        %v5900 = vpop.f32.mrb[0].mxu0
        %v5901 = vadd.f32 0.0, %v5900
        %v5902 = vpop.f32.mrb[0].mxu0
        %v5903 = vpop.f32.mrb[0].mxu0
        %v5904 = vadd.f32 0.0, %v5903
        %v5905 = vpop.f32.mrb[0].mxu0
        %5906 = vmatprep.mubr.bf16.mxu0 0
        %5907 = vmatmul.mubr.bf16.gmra.mrb[0].mxu0 %v5723
        %v5908 = vpop.f32.mrb[0].mxu0
        %v5909 = vadd.f32 0.0, %v5908
        %v5910 = vpop.f32.mrb[0].mxu0
        %v5911 = vpop.f32.mrb[0].mxu0
        %v5912 = vadd.f32 0.0, %v5911
        %v5913 = vpop.f32.mrb[0].mxu0
        %5914 = vmatprep.mubr.bf16.mxu0 0
        %5915 = vmatmul.mubr.bf16.gmra.mrb[0].mxu0 %v5724
        %v5916 = vpop.f32.mrb[0].mxu0
        %v5917 = vadd.f32 0.0, %v5916
        %v5918 = vpop.f32.mrb[0].mxu0
        %v5919 = vpop.f32.mrb[0].mxu0
        %v5920 = vadd.f32 0.0, %v5919
        %v5921 = vpop.f32.mrb[0].mxu0
        %5922 = vmatprep.mubr.bf16.mxu0 0
        %5923 = vmatmul.mubr.bf16.gmra.mrb[0].mxu0 %v5725
        %v5924 = vpop.f32.mrb[0].mxu0
        %v5925 = vadd.f32 0.0, %v5924
        %v5926 = vpop.f32.mrb[0].mxu0
        %v5927 = vpop.f32.mrb[0].mxu0
        %v5928 = vadd.f32 0.0, %v5927
        %v5929 = vpop.f32.mrb[0].mxu0
        %5930 = vmatprep.mubr.bf16.mxu0 0
        %5931 = vmatmul.mubr.bf16.gmra.mrb[0].mxu0 %v5726
        %v5932 = vpop.f32.mrb[0].mxu0
        %v5933 = vadd.f32 0.0, %v5932
        %v5934 = vpop.f32.mrb[0].mxu0
        %v5935 = vpop.f32.mrb[0].mxu0
        %v5936 = vadd.f32 0.0, %v5935
        %v5937 = vpop.f32.mrb[0].mxu0
        %5938 = vmatprep.mubr.bf16.mxu0 0
        %5939 = vmatmul.mubr.bf16.gmra.mrb[0].mxu0 %v5727
        %v5940 = vpop.f32.mrb[0].mxu0
        %v5941 = vadd.f32 0.0, %v5940
        %v5942 = vpop.f32.mrb[0].mxu0
        %v5943 = vpop.f32.mrb[0].mxu0
        %v5944 = vadd.f32 0.0, %v5943
        %v5945 = vpop.f32.mrb[0].mxu0
        %5946 = vdwg.mxu0
        %v5947 = vld [vmem:[#allocation2 + $0x10] sm:$0xff]
        %v5948 = vld [vmem:[#allocation2 + $0x18] sm:$0xff]
        %v5949 = vld [vmem:[#allocation2 + $0x20] sm:$0xff]
        %v5950 = vld [vmem:[#allocation2 + $0x28] sm:$0xff]
        %v5951 = vld [vmem:[#allocation2 + $0x30] sm:$0xff]
        %v5952 = vld [vmem:[#allocation2 + $0x38] sm:$0xff]
        %v5953 = vld [vmem:[#allocation2 + $0x40] sm:$0xff]
        %v5954 = vld [vmem:[#allocation2 + $0x48] sm:$0xff]
        %v5955 = vld [vmem:[#allocation2 + $0x50] sm:$0xff]
        %v5956 = vld [vmem:[#allocation2 + $0x58] sm:$0xff]
        %v5957 = vld [vmem:[#allocation2 + $0x60] sm:$0xff]
        %v5958 = vld [vmem:[#allocation2 + $0x68] sm:$0xff]
        %v5959 = vld [vmem:[#allocation2 + $0x70] sm:$0xff]
        %v5960 = vld [vmem:[#allocation2 + $0x78] sm:$0xff]
        %v5961 = vld [vmem:[#allocation2 + $0x80] sm:$0xff]
        %v5962 = vld [vmem:[#allocation2 + $0x88] sm:$0xff]
        %v5963 = vld [vmem:[#allocation2 + $0x90] sm:$0xff]
        %v5964 = vld [vmem:[#allocation2 + $0x98] sm:$0xff]
        %v5965 = vld [vmem:[#allocation2 + $0xa0] sm:$0xff]
        %v5966 = vld [vmem:[#allocation2 + $0xa8] sm:$0xff]
        %v5967 = vld [vmem:[#allocation2 + $0xb0] sm:$0xff]
        %v5968 = vld [vmem:[#allocation2 + $0xb8] sm:$0xff]
        %v5969 = vld [vmem:[#allocation2 + $0xc0] sm:$0xff]
        %v5970 = vld [vmem:[#allocation2 + $0xc8] sm:$0xff]
        %v5971 = vld [vmem:[#allocation2 + $0xd0] sm:$0xff]
        %v5972 = vld [vmem:[#allocation2 + $0xd8] sm:$0xff]
        %v5973 = vld [vmem:[#allocation2 + $0xe0] sm:$0xff]
        %v5974 = vld [vmem:[#allocation2 + $0xe8] sm:$0xff]
        %v5975 = vld [vmem:[#allocation2 + $0xf0] sm:$0xff]
        %v5976 = vld [vmem:[#allocation2 + $0xf8] sm:$0xff]
        %v5977 = vadd.f32 %v5947, %v5829
        %v5978 = vadd.f32 %v5948, %v5832
        %v5979 = vadd.f32 %v5949, %v5837
        %v5980 = vadd.f32 %v5950, %v5840
        %v5981 = vadd.f32 %v5951, %v5845
        %v5982 = vadd.f32 %v5952, %v5848
        %v5983 = vadd.f32 %v5953, %v5853
        %v5984 = vadd.f32 %v5954, %v5856
        %v5985 = vadd.f32 %v5955, %v5861
        %v5986 = vadd.f32 %v5956, %v5864
        %v5987 = vadd.f32 %v5957, %v5869
        %v5988 = vadd.f32 %v5958, %v5872
        %v5989 = vadd.f32 %v5959, %v5877
        %v5990 = vadd.f32 %v5960, %v5880
        %v5991 = vadd.f32 %v5961, %v5885
        %v5992 = vadd.f32 %v5962, %v5888
        %v5993 = vadd.f32 %v5963, %v5893
        %v5994 = vadd.f32 %v5964, %v5896
        %v5995 = vadd.f32 %v5965, %v5901
        %v5996 = vadd.f32 %v5966, %v5904
        %v5997 = vadd.f32 %v5967, %v5909
        %v5998 = vadd.f32 %v5968, %v5912
        %v5999 = vadd.f32 %v5969, %v5917
        %v6000 = vadd.f32 %v5970, %v5920
        %v6001 = vadd.f32 %v5971, %v5925
        %v6002 = vadd.f32 %v5972, %v5928
        %v6003 = vadd.f32 %v5973, %v5933
        %v6004 = vadd.f32 %v5974, %v5936
        %v6005 = vadd.f32 %v5975, %v5941
        %v6006 = vadd.f32 %v5976, %v5944
        %6007 = vst [vmem:[#allocation2 + $0x10] sm:$0xff] %v5977
        %6008 = vst [vmem:[#allocation2 + $0x18] sm:$0xff] %v5978
        %6009 = vst [vmem:[#allocation2 + $0x20] sm:$0xff] %v5979
        %6010 = vst [vmem:[#allocation2 + $0x28] sm:$0xff] %v5980
        %6011 = vst [vmem:[#allocation2 + $0x30] sm:$0xff] %v5981
        %6012 = vst [vmem:[#allocation2 + $0x38] sm:$0xff] %v5982
        %6013 = vst [vmem:[#allocation2 + $0x40] sm:$0xff] %v5983
        %6014 = vst [vmem:[#allocation2 + $0x48] sm:$0xff] %v5984
        %6015 = vst [vmem:[#allocation2 + $0x50] sm:$0xff] %v5985
        %6016 = vst [vmem:[#allocation2 + $0x58] sm:$0xff] %v5986
        %6017 = vst [vmem:[#allocation2 + $0x60] sm:$0xff] %v5987
        %6018 = vst [vmem:[#allocation2 + $0x68] sm:$0xff] %v5988
        %6019 = vst [vmem:[#allocation2 + $0x70] sm:$0xff] %v5989
        %6020 = vst [vmem:[#allocation2 + $0x78] sm:$0xff] %v5990
        %6021 = vst [vmem:[#allocation2 + $0x80] sm:$0xff] %v5991
        %6022 = vst [vmem:[#allocation2 + $0x88] sm:$0xff] %v5992
        %6023 = vst [vmem:[#allocation2 + $0x90] sm:$0xff] %v5993
        %6024 = vst [vmem:[#allocation2 + $0x98] sm:$0xff] %v5994
        %6025 = vst [vmem:[#allocation2 + $0xa0] sm:$0xff] %v5995
        %6026 = vst [vmem:[#allocation2 + $0xa8] sm:$0xff] %v5996
        %6027 = vst [vmem:[#allocation2 + $0xb0] sm:$0xff] %v5997
        %6028 = vst [vmem:[#allocation2 + $0xb8] sm:$0xff] %v5998
        %6029 = vst [vmem:[#allocation2 + $0xc0] sm:$0xff] %v5999
        %6030 = vst [vmem:[#allocation2 + $0xc8] sm:$0xff] %v6000
        %6031 = vst [vmem:[#allocation2 + $0xd0] sm:$0xff] %v6001
        %6032 = vst [vmem:[#allocation2 + $0xd8] sm:$0xff] %v6002
        %6033 = vst [vmem:[#allocation2 + $0xe0] sm:$0xff] %v6003
        %6034 = vst [vmem:[#allocation2 + $0xe8] sm:$0xff] %v6004
        %6035 = vst [vmem:[#allocation2 + $0xf0] sm:$0xff] %v6005
        %6036 = vst [vmem:[#allocation2 + $0xf8] sm:$0xff] %v6006
        %s6037 = scalar_lea.vmem [#allocation9], 320
        %v6038 = vld [vmem:[%s6037] sm:$0xf]
        %v6039 = vld [vmem:[%s6037 + $0x4] sm:$0xf]
        %v6040 = vld [vmem:[%s6037 + $0x8] sm:$0xf]
        %v6041 = vld [vmem:[%s6037 + $0xc] sm:$0xf]
        %v6042 = vld [vmem:[%s6037 + $0x10] sm:$0xf]
        %v6043 = vld [vmem:[%s6037 + $0x14] sm:$0xf]
        %v6044 = vld [vmem:[%s6037 + $0x18] sm:$0xf]
        %v6045 = vld [vmem:[%s6037 + $0x1c] sm:$0xf]
        %v6046 = vld [vmem:[%s6037 + $0x20] sm:$0xf]
        %v6047 = vld [vmem:[%s6037 + $0x24] sm:$0xf]
        %v6048 = vld [vmem:[%s6037 + $0x28] sm:$0xf]
        %v6049 = vld [vmem:[%s6037 + $0x2c] sm:$0xf]
        %v6050 = vld [vmem:[%s6037 + $0x30] sm:$0xf]
        %v6051 = vld [vmem:[%s6037 + $0x34] sm:$0xf]
        %v6052 = vld [vmem:[%s6037 + $0x38] sm:$0xf]
        %v6053 = vld [vmem:[%s6037 + $0x3c] sm:$0xf]
        %v6070 = vunpack.c.l.b16 %v6038
        %v6071 = vunpack.c.l.b16 %v6039
        %v6072 = vunpack.c.l.b16 %v6040
        %v6073 = vunpack.c.l.b16 %v6041
        %v6074 = vunpack.c.l.b16 %v6042
        %v6075 = vunpack.c.l.b16 %v6043
        %v6076 = vunpack.c.l.b16 %v6044
        %v6077 = vunpack.c.l.b16 %v6045
        %v6078 = vunpack.c.l.b16 %v6046
        %v6079 = vunpack.c.l.b16 %v6047
        %v6080 = vunpack.c.l.b16 %v6048
        %v6081 = vunpack.c.l.b16 %v6049
        %v6082 = vunpack.c.l.b16 %v6050
        %v6083 = vunpack.c.l.b16 %v6051
        %v6084 = vunpack.c.l.b16 %v6052
        %v6085 = vunpack.c.l.b16 %v6053
        %v6086 = vpack.c.b16 %v6071, %v6070
        %v6087 = vpack.c.b16 %v6073, %v6072
        %v6088 = vpack.c.b16 %v6075, %v6074
        %v6089 = vpack.c.b16 %v6077, %v6076
        %v6090 = vpack.c.b16 %v6079, %v6078
        %v6091 = vpack.c.b16 %v6081, %v6080
        %v6092 = vpack.c.b16 %v6083, %v6082
        %v6093 = vpack.c.b16 %v6085, %v6084
        %6102 = vmatprep.subr.bf16.mxu0 0
        %6103 = vmatpush1.bf16.msra.mxu0 %v6086
        %6104 = vmatprep.subr.bf16.mxu0 0
        %6105 = vmatpush1.bf16.msra.mxu0 %v6087
        %6106 = vmatprep.subr.bf16.mxu0 0
        %6107 = vmatpush1.bf16.msra.mxu0 %v6088
        %6108 = vmatprep.subr.bf16.mxu0 0
        %6109 = vmatpush1.bf16.msra.mxu0 %v6089
        %6110 = vmatprep.subr.bf16.mxu0 0
        %6111 = vmatpush1.bf16.msra.mxu0 %v6090
        %6112 = vmatprep.subr.bf16.mxu0 0
        %6113 = vmatpush1.bf16.msra.mxu0 %v6091
        %6114 = vmatprep.subr.bf16.mxu0 0
        %6115 = vmatpush1.bf16.msra.mxu0 %v6092
        %6116 = vmatprep.subr.bf16.mxu0 0
        %6117 = vmatpush1.bf16.msra.mxu0 %v6093
        %6118 = vmatprep.subr.bf16.mxu0 0
        %6119 = vmatpush1.bf16.msra.mxu0 0
        %6120 = vmatprep.subr.bf16.mxu0 0
        %6121 = vmatpush1.bf16.msra.mxu0 0
        %6122 = vmatprep.subr.bf16.mxu0 0
        %6123 = vmatpush1.bf16.msra.mxu0 0
        %6124 = vmatprep.subr.bf16.mxu0 0
        %6125 = vmatpush1.bf16.msra.mxu0 0
        %6126 = vmatprep.subr.bf16.mxu0 0
        %6127 = vmatpush1.bf16.msra.mxu0 0
        %6128 = vmatprep.subr.bf16.mxu0 0
        %6129 = vmatpush1.bf16.msra.mxu0 0
        %6130 = vmatprep.subr.bf16.mxu0 0
        %6131 = vmatpush1.bf16.msra.mxu0 0
        %6132 = vmatprep.subr.bf16.mxu0 0
        %6133 = vmatpush1.bf16.msra.mxu0 0
        %6134 = vmatprep.mubr.bf16.mxu0 0
        %6135 = vmatmul.mubr.bf16.gmra.mrb[0].mxu0 %v5713
        %v6136 = vpop.f32.mrb[0].mxu0
        %v6137 = vadd.f32 0.0, %v6136
        %v6138 = vpop.f32.mrb[0].mxu0
        %v6139 = vpop.f32.mrb[0].mxu0
        %v6140 = vadd.f32 0.0, %v6139
        %v6141 = vpop.f32.mrb[0].mxu0
        %6142 = vmatprep.mubr.bf16.mxu0 0
        %6143 = vmatmul.mubr.bf16.gmra.mrb[0].mxu0 %v5714
        %v6144 = vpop.f32.mrb[0].mxu0
        %v6145 = vadd.f32 0.0, %v6144
        %v6146 = vpop.f32.mrb[0].mxu0
        %v6147 = vpop.f32.mrb[0].mxu0
        %v6148 = vadd.f32 0.0, %v6147
        %v6149 = vpop.f32.mrb[0].mxu0
        %6150 = vmatprep.mubr.bf16.mxu0 0
        %6151 = vmatmul.mubr.bf16.gmra.mrb[0].mxu0 %v5715
        %v6152 = vpop.f32.mrb[0].mxu0
        %v6153 = vadd.f32 0.0, %v6152
        %v6154 = vpop.f32.mrb[0].mxu0
        %v6155 = vpop.f32.mrb[0].mxu0
        %v6156 = vadd.f32 0.0, %v6155
        %v6157 = vpop.f32.mrb[0].mxu0
        %6158 = vmatprep.mubr.bf16.mxu0 0
        %6159 = vmatmul.mubr.bf16.gmra.mrb[0].mxu0 %v5716
        %v6160 = vpop.f32.mrb[0].mxu0
        %v6161 = vadd.f32 0.0, %v6160
        %v6162 = vpop.f32.mrb[0].mxu0
        %v6163 = vpop.f32.mrb[0].mxu0
        %v6164 = vadd.f32 0.0, %v6163
        %v6165 = vpop.f32.mrb[0].mxu0
        %6166 = vmatprep.mubr.bf16.mxu0 0
        %6167 = vmatmul.mubr.bf16.gmra.mrb[0].mxu0 %v5717
        %v6168 = vpop.f32.mrb[0].mxu0
        %v6169 = vadd.f32 0.0, %v6168
        %v6170 = vpop.f32.mrb[0].mxu0
        %v6171 = vpop.f32.mrb[0].mxu0
        %v6172 = vadd.f32 0.0, %v6171
        %v6173 = vpop.f32.mrb[0].mxu0
        %6174 = vmatprep.mubr.bf16.mxu0 0
        %6175 = vmatmul.mubr.bf16.gmra.mrb[0].mxu0 %v5718
        %v6176 = vpop.f32.mrb[0].mxu0
        %v6177 = vadd.f32 0.0, %v6176
        %v6178 = vpop.f32.mrb[0].mxu0
        %v6179 = vpop.f32.mrb[0].mxu0
        %v6180 = vadd.f32 0.0, %v6179
        %v6181 = vpop.f32.mrb[0].mxu0
        %6182 = vmatprep.mubr.bf16.mxu0 0
        %6183 = vmatmul.mubr.bf16.gmra.mrb[0].mxu0 %v5719
        %v6184 = vpop.f32.mrb[0].mxu0
        %v6185 = vadd.f32 0.0, %v6184
        %v6186 = vpop.f32.mrb[0].mxu0
        %v6187 = vpop.f32.mrb[0].mxu0
        %v6188 = vadd.f32 0.0, %v6187
        %v6189 = vpop.f32.mrb[0].mxu0
        %6190 = vmatprep.mubr.bf16.mxu0 0
        %6191 = vmatmul.mubr.bf16.gmra.mrb[0].mxu0 %v5720
        %v6192 = vpop.f32.mrb[0].mxu0
        %v6193 = vadd.f32 0.0, %v6192
        %v6194 = vpop.f32.mrb[0].mxu0
        %v6195 = vpop.f32.mrb[0].mxu0
        %v6196 = vadd.f32 0.0, %v6195
        %v6197 = vpop.f32.mrb[0].mxu0
        %6198 = vmatprep.mubr.bf16.mxu0 0
        %6199 = vmatmul.mubr.bf16.gmra.mrb[0].mxu0 %v5721
        %v6200 = vpop.f32.mrb[0].mxu0
        %v6201 = vadd.f32 0.0, %v6200
        %v6202 = vpop.f32.mrb[0].mxu0
        %v6203 = vpop.f32.mrb[0].mxu0
        %v6204 = vadd.f32 0.0, %v6203
        %v6205 = vpop.f32.mrb[0].mxu0
        %6206 = vmatprep.mubr.bf16.mxu0 0
        %6207 = vmatmul.mubr.bf16.gmra.mrb[0].mxu0 %v5722
        %v6208 = vpop.f32.mrb[0].mxu0
        %v6209 = vadd.f32 0.0, %v6208
        %v6210 = vpop.f32.mrb[0].mxu0
        %v6211 = vpop.f32.mrb[0].mxu0
        %v6212 = vadd.f32 0.0, %v6211
        %v6213 = vpop.f32.mrb[0].mxu0
        %6214 = vmatprep.mubr.bf16.mxu0 0
        %6215 = vmatmul.mubr.bf16.gmra.mrb[0].mxu0 %v5723
        %v6216 = vpop.f32.mrb[0].mxu0
        %v6217 = vadd.f32 0.0, %v6216
        %v6218 = vpop.f32.mrb[0].mxu0
        %v6219 = vpop.f32.mrb[0].mxu0
        %v6220 = vadd.f32 0.0, %v6219
        %v6221 = vpop.f32.mrb[0].mxu0
        %6222 = vmatprep.mubr.bf16.mxu0 0
        %6223 = vmatmul.mubr.bf16.gmra.mrb[0].mxu0 %v5724
        %v6224 = vpop.f32.mrb[0].mxu0
        %v6225 = vadd.f32 0.0, %v6224
        %v6226 = vpop.f32.mrb[0].mxu0
        %v6227 = vpop.f32.mrb[0].mxu0
        %v6228 = vadd.f32 0.0, %v6227
        %v6229 = vpop.f32.mrb[0].mxu0
        %6230 = vmatprep.mubr.bf16.mxu0 0
        %6231 = vmatmul.mubr.bf16.gmra.mrb[0].mxu0 %v5725
        %v6232 = vpop.f32.mrb[0].mxu0
        %v6233 = vadd.f32 0.0, %v6232
        %v6234 = vpop.f32.mrb[0].mxu0
        %v6235 = vpop.f32.mrb[0].mxu0
        %v6236 = vadd.f32 0.0, %v6235
        %v6237 = vpop.f32.mrb[0].mxu0
        %6238 = vmatprep.mubr.bf16.mxu0 0
        %6239 = vmatmul.mubr.bf16.gmra.mrb[0].mxu0 %v5726
        %v6240 = vpop.f32.mrb[0].mxu0
        %v6241 = vadd.f32 0.0, %v6240
        %v6242 = vpop.f32.mrb[0].mxu0
        %v6243 = vpop.f32.mrb[0].mxu0
        %v6244 = vadd.f32 0.0, %v6243
        %v6245 = vpop.f32.mrb[0].mxu0
        %6246 = vmatprep.mubr.bf16.mxu0 0
        %6247 = vmatmul.mubr.bf16.gmra.mrb[0].mxu0 %v5727
        %v6248 = vpop.f32.mrb[0].mxu0
        %v6249 = vadd.f32 0.0, %v6248
        %v6250 = vpop.f32.mrb[0].mxu0
        %v6251 = vpop.f32.mrb[0].mxu0
        %v6252 = vadd.f32 0.0, %v6251
        %v6253 = vpop.f32.mrb[0].mxu0
        %6254 = vmatprep.mubr.bf16.mxu0 0
        %6255 = vmatmul.mubr.bf16.gmra.mrb[0].mxu0 %v5728
        %v6256 = vpop.f32.mrb[0].mxu0
        %v6257 = vadd.f32 0.0, %v6256
        %v6258 = vpop.f32.mrb[0].mxu0
        %v6259 = vpop.f32.mrb[0].mxu0
        %v6260 = vadd.f32 0.0, %v6259
        %v6261 = vpop.f32.mrb[0].mxu0
        %6262 = vdwg.mxu0
        %v6263 = vld [vmem:[#allocation2] sm:$0xff]
        %v6264 = vld [vmem:[#allocation2 + $0x8] sm:$0xff]
        %v6265 = vld [vmem:[#allocation2 + $0x10] sm:$0xff]
        %v6266 = vld [vmem:[#allocation2 + $0x18] sm:$0xff]
        %v6267 = vld [vmem:[#allocation2 + $0x20] sm:$0xff]
        %v6268 = vld [vmem:[#allocation2 + $0x28] sm:$0xff]
        %v6269 = vld [vmem:[#allocation2 + $0x30] sm:$0xff]
        %v6270 = vld [vmem:[#allocation2 + $0x38] sm:$0xff]
        %v6271 = vld [vmem:[#allocation2 + $0x40] sm:$0xff]
        %v6272 = vld [vmem:[#allocation2 + $0x48] sm:$0xff]
        %v6273 = vld [vmem:[#allocation2 + $0x50] sm:$0xff]
        %v6274 = vld [vmem:[#allocation2 + $0x58] sm:$0xff]
        %v6275 = vld [vmem:[#allocation2 + $0x60] sm:$0xff]
        %v6276 = vld [vmem:[#allocation2 + $0x68] sm:$0xff]
        %v6277 = vld [vmem:[#allocation2 + $0x70] sm:$0xff]
        %v6278 = vld [vmem:[#allocation2 + $0x78] sm:$0xff]
        %v6279 = vld [vmem:[#allocation2 + $0x80] sm:$0xff]
        %v6280 = vld [vmem:[#allocation2 + $0x88] sm:$0xff]
        %v6281 = vld [vmem:[#allocation2 + $0x90] sm:$0xff]
        %v6282 = vld [vmem:[#allocation2 + $0x98] sm:$0xff]
        %v6283 = vld [vmem:[#allocation2 + $0xa0] sm:$0xff]
        %v6284 = vld [vmem:[#allocation2 + $0xa8] sm:$0xff]
        %v6285 = vld [vmem:[#allocation2 + $0xb0] sm:$0xff]
        %v6286 = vld [vmem:[#allocation2 + $0xb8] sm:$0xff]
        %v6287 = vld [vmem:[#allocation2 + $0xc0] sm:$0xff]
        %v6288 = vld [vmem:[#allocation2 + $0xc8] sm:$0xff]
        %v6289 = vld [vmem:[#allocation2 + $0xd0] sm:$0xff]
        %v6290 = vld [vmem:[#allocation2 + $0xd8] sm:$0xff]
        %v6291 = vld [vmem:[#allocation2 + $0xe0] sm:$0xff]
        %v6292 = vld [vmem:[#allocation2 + $0xe8] sm:$0xff]
        %v6293 = vld [vmem:[#allocation2 + $0xf0] sm:$0xff]
        %v6294 = vld [vmem:[#allocation2 + $0xf8] sm:$0xff]
        %v6295 = vadd.f32 %v6263, %v6137
        %v6296 = vadd.f32 %v6264, %v6140
        %v6297 = vadd.f32 %v6265, %v6145
        %v6298 = vadd.f32 %v6266, %v6148
        %v6299 = vadd.f32 %v6267, %v6153
        %v6300 = vadd.f32 %v6268, %v6156
        %v6301 = vadd.f32 %v6269, %v6161
        %v6302 = vadd.f32 %v6270, %v6164
        %v6303 = vadd.f32 %v6271, %v6169
        %v6304 = vadd.f32 %v6272, %v6172
        %v6305 = vadd.f32 %v6273, %v6177
        %v6306 = vadd.f32 %v6274, %v6180
        %v6307 = vadd.f32 %v6275, %v6185
        %v6308 = vadd.f32 %v6276, %v6188
        %v6309 = vadd.f32 %v6277, %v6193
        %v6310 = vadd.f32 %v6278, %v6196
        %v6311 = vadd.f32 %v6279, %v6201
        %v6312 = vadd.f32 %v6280, %v6204
        %v6313 = vadd.f32 %v6281, %v6209
        %v6314 = vadd.f32 %v6282, %v6212
        %v6315 = vadd.f32 %v6283, %v6217
        %v6316 = vadd.f32 %v6284, %v6220
        %v6317 = vadd.f32 %v6285, %v6225
        %v6318 = vadd.f32 %v6286, %v6228
        %v6319 = vadd.f32 %v6287, %v6233
        %v6320 = vadd.f32 %v6288, %v6236
        %v6321 = vadd.f32 %v6289, %v6241
        %v6322 = vadd.f32 %v6290, %v6244
        %v6323 = vadd.f32 %v6291, %v6249
        %v6324 = vadd.f32 %v6292, %v6252
        %v6325 = vadd.f32 %v6293, %v6257
        %v6326 = vadd.f32 %v6294, %v6260
        %6327 = vst [vmem:[#allocation2] sm:$0xff] %v6295
        %6328 = vst [vmem:[#allocation2 + $0x8] sm:$0xff] %v6296
        %6329 = vst [vmem:[#allocation2 + $0x10] sm:$0xff] %v6297
        %6330 = vst [vmem:[#allocation2 + $0x18] sm:$0xff] %v6298
        %6331 = vst [vmem:[#allocation2 + $0x20] sm:$0xff] %v6299
        %6332 = vst [vmem:[#allocation2 + $0x28] sm:$0xff] %v6300
        %6333 = vst [vmem:[#allocation2 + $0x30] sm:$0xff] %v6301
        %6334 = vst [vmem:[#allocation2 + $0x38] sm:$0xff] %v6302
        %6335 = vst [vmem:[#allocation2 + $0x40] sm:$0xff] %v6303
        %6336 = vst [vmem:[#allocation2 + $0x48] sm:$0xff] %v6304
        %6337 = vst [vmem:[#allocation2 + $0x50] sm:$0xff] %v6305
        %6338 = vst [vmem:[#allocation2 + $0x58] sm:$0xff] %v6306
        %6339 = vst [vmem:[#allocation2 + $0x60] sm:$0xff] %v6307
        %6340 = vst [vmem:[#allocation2 + $0x68] sm:$0xff] %v6308
        %6341 = vst [vmem:[#allocation2 + $0x70] sm:$0xff] %v6309
        %6342 = vst [vmem:[#allocation2 + $0x78] sm:$0xff] %v6310
        %6343 = vst [vmem:[#allocation2 + $0x80] sm:$0xff] %v6311
        %6344 = vst [vmem:[#allocation2 + $0x88] sm:$0xff] %v6312
        %6345 = vst [vmem:[#allocation2 + $0x90] sm:$0xff] %v6313
        %6346 = vst [vmem:[#allocation2 + $0x98] sm:$0xff] %v6314
        %6347 = vst [vmem:[#allocation2 + $0xa0] sm:$0xff] %v6315
        %6348 = vst [vmem:[#allocation2 + $0xa8] sm:$0xff] %v6316
        %6349 = vst [vmem:[#allocation2 + $0xb0] sm:$0xff] %v6317
        %6350 = vst [vmem:[#allocation2 + $0xb8] sm:$0xff] %v6318
        %6351 = vst [vmem:[#allocation2 + $0xc0] sm:$0xff] %v6319
        %6352 = vst [vmem:[#allocation2 + $0xc8] sm:$0xff] %v6320
        %6353 = vst [vmem:[#allocation2 + $0xd0] sm:$0xff] %v6321
        %6354 = vst [vmem:[#allocation2 + $0xd8] sm:$0xff] %v6322
        %6355 = vst [vmem:[#allocation2 + $0xe0] sm:$0xff] %v6323
        %6356 = vst [vmem:[#allocation2 + $0xe8] sm:$0xff] %v6324
        %6357 = vst [vmem:[#allocation2 + $0xf0] sm:$0xff] %v6325
        %6358 = vst [vmem:[#allocation2 + $0xf8] sm:$0xff] %v6326
        %s6359 = scalar_lea.vmem [#allocation9], 512
        %v6360 = vld [vmem:[%s6359] sm:$0xf]
        %v6361 = vld [vmem:[%s6359 + $0x4] sm:$0xf]
        %v6362 = vld [vmem:[%s6359 + $0x8] sm:$0xf]
        %v6363 = vld [vmem:[%s6359 + $0xc] sm:$0xf]
        %v6364 = vld [vmem:[%s6359 + $0x10] sm:$0xf]
        %v6365 = vld [vmem:[%s6359 + $0x14] sm:$0xf]
        %v6366 = vld [vmem:[%s6359 + $0x18] sm:$0xf]
        %v6367 = vld [vmem:[%s6359 + $0x1c] sm:$0xf]
        %v6368 = vld [vmem:[%s6359 + $0x20] sm:$0xf]
        %v6369 = vld [vmem:[%s6359 + $0x24] sm:$0xf]
        %v6370 = vld [vmem:[%s6359 + $0x28] sm:$0xf]
        %v6371 = vld [vmem:[%s6359 + $0x2c] sm:$0xf]
        %v6372 = vld [vmem:[%s6359 + $0x30] sm:$0xf]
        %v6373 = vld [vmem:[%s6359 + $0x34] sm:$0xf]
        %v6374 = vld [vmem:[%s6359 + $0x38] sm:$0xf]
        %v6375 = vld [vmem:[%s6359 + $0x3c] sm:$0xf]
        %v6392 = vunpack.c.l.b16 %v6360
        %v6393 = vunpack.c.l.b16 %v6361
        %v6394 = vunpack.c.l.b16 %v6362
        %v6395 = vunpack.c.l.b16 %v6363
        %v6396 = vunpack.c.l.b16 %v6364
        %v6397 = vunpack.c.l.b16 %v6365
        %v6398 = vunpack.c.l.b16 %v6366
        %v6399 = vunpack.c.l.b16 %v6367
        %v6400 = vunpack.c.l.b16 %v6368
        %v6401 = vunpack.c.l.b16 %v6369
        %v6402 = vunpack.c.l.b16 %v6370
        %v6403 = vunpack.c.l.b16 %v6371
        %v6404 = vunpack.c.l.b16 %v6372
        %v6405 = vunpack.c.l.b16 %v6373
        %v6406 = vunpack.c.l.b16 %v6374
        %v6407 = vunpack.c.l.b16 %v6375
        %v6408 = vpack.c.b16 %v6393, %v6392
        %v6409 = vpack.c.b16 %v6395, %v6394
        %v6410 = vpack.c.b16 %v6397, %v6396
        %v6411 = vpack.c.b16 %v6399, %v6398
        %v6412 = vpack.c.b16 %v6401, %v6400
        %v6413 = vpack.c.b16 %v6403, %v6402
        %v6414 = vpack.c.b16 %v6405, %v6404
        %v6415 = vpack.c.b16 %v6407, %v6406
        %6424 = vmatprep.subr.bf16.mxu0 0
        %6425 = vmatpush1.bf16.msra.mxu0 %v6408
        %6426 = vmatprep.subr.bf16.mxu0 0
        %6427 = vmatpush1.bf16.msra.mxu0 %v6409
        %6428 = vmatprep.subr.bf16.mxu0 0
        %6429 = vmatpush1.bf16.msra.mxu0 %v6410
        %6430 = vmatprep.subr.bf16.mxu0 0
        %6431 = vmatpush1.bf16.msra.mxu0 %v6411
        %6432 = vmatprep.subr.bf16.mxu0 0
        %6433 = vmatpush1.bf16.msra.mxu0 %v6412
        %6434 = vmatprep.subr.bf16.mxu0 0
        %6435 = vmatpush1.bf16.msra.mxu0 %v6413
        %6436 = vmatprep.subr.bf16.mxu0 0
        %6437 = vmatpush1.bf16.msra.mxu0 %v6414
        %6438 = vmatprep.subr.bf16.mxu0 0
        %6439 = vmatpush1.bf16.msra.mxu0 %v6415
        %6440 = vmatprep.subr.bf16.mxu0 0
        %6441 = vmatpush1.bf16.msra.mxu0 0
        %6442 = vmatprep.subr.bf16.mxu0 0
        %6443 = vmatpush1.bf16.msra.mxu0 0
        %6444 = vmatprep.subr.bf16.mxu0 0
        %6445 = vmatpush1.bf16.msra.mxu0 0
        %6446 = vmatprep.subr.bf16.mxu0 0
        %6447 = vmatpush1.bf16.msra.mxu0 0
        %6448 = vmatprep.subr.bf16.mxu0 0
        %6449 = vmatpush1.bf16.msra.mxu0 0
        %6450 = vmatprep.subr.bf16.mxu0 0
        %6451 = vmatpush1.bf16.msra.mxu0 0
        %6452 = vmatprep.subr.bf16.mxu0 0
        %6453 = vmatpush1.bf16.msra.mxu0 0
        %6454 = vmatprep.subr.bf16.mxu0 0
        %6455 = vmatpush1.bf16.msra.mxu0 0
        %6456 = vmatprep.mubr.bf16.mxu0 0
        %6457 = vmatmul.mubr.bf16.gmra.mrb[0].mxu0 %v5714
        %v6458 = vpop.f32.mrb[0].mxu0
        %v6459 = vadd.f32 0.0, %v6458
        %v6460 = vpop.f32.mrb[0].mxu0
        %v6461 = vpop.f32.mrb[0].mxu0
        %v6462 = vadd.f32 0.0, %v6461
        %v6463 = vpop.f32.mrb[0].mxu0
        %6464 = vmatprep.mubr.bf16.mxu0 0
        %6465 = vmatmul.mubr.bf16.gmra.mrb[0].mxu0 %v5715
        %v6466 = vpop.f32.mrb[0].mxu0
        %v6467 = vadd.f32 0.0, %v6466
        %v6468 = vpop.f32.mrb[0].mxu0
        %v6469 = vpop.f32.mrb[0].mxu0
        %v6470 = vadd.f32 0.0, %v6469
        %v6471 = vpop.f32.mrb[0].mxu0
        %6472 = vmatprep.mubr.bf16.mxu0 0
        %6473 = vmatmul.mubr.bf16.gmra.mrb[0].mxu0 %v5716
        %v6474 = vpop.f32.mrb[0].mxu0
        %v6475 = vadd.f32 0.0, %v6474
        %v6476 = vpop.f32.mrb[0].mxu0
        %v6477 = vpop.f32.mrb[0].mxu0
        %v6478 = vadd.f32 0.0, %v6477
        %v6479 = vpop.f32.mrb[0].mxu0
        %6480 = vmatprep.mubr.bf16.mxu0 0
        %6481 = vmatmul.mubr.bf16.gmra.mrb[0].mxu0 %v5717
        %v6482 = vpop.f32.mrb[0].mxu0
        %v6483 = vadd.f32 0.0, %v6482
        %v6484 = vpop.f32.mrb[0].mxu0
        %v6485 = vpop.f32.mrb[0].mxu0
        %v6486 = vadd.f32 0.0, %v6485
        %v6487 = vpop.f32.mrb[0].mxu0
        %6488 = vmatprep.mubr.bf16.mxu0 0
        %6489 = vmatmul.mubr.bf16.gmra.mrb[0].mxu0 %v5718
        %v6490 = vpop.f32.mrb[0].mxu0
        %v6491 = vadd.f32 0.0, %v6490
        %v6492 = vpop.f32.mrb[0].mxu0
        %v6493 = vpop.f32.mrb[0].mxu0
        %v6494 = vadd.f32 0.0, %v6493
        %v6495 = vpop.f32.mrb[0].mxu0
        %6496 = vmatprep.mubr.bf16.mxu0 0
        %6497 = vmatmul.mubr.bf16.gmra.mrb[0].mxu0 %v5719
        %v6498 = vpop.f32.mrb[0].mxu0
        %v6499 = vadd.f32 0.0, %v6498
        %v6500 = vpop.f32.mrb[0].mxu0
        %v6501 = vpop.f32.mrb[0].mxu0
        %v6502 = vadd.f32 0.0, %v6501
        %v6503 = vpop.f32.mrb[0].mxu0
        %6504 = vmatprep.mubr.bf16.mxu0 0
        %6505 = vmatmul.mubr.bf16.gmra.mrb[0].mxu0 %v5720
        %v6506 = vpop.f32.mrb[0].mxu0
        %v6507 = vadd.f32 0.0, %v6506
        %v6508 = vpop.f32.mrb[0].mxu0
        %v6509 = vpop.f32.mrb[0].mxu0
        %v6510 = vadd.f32 0.0, %v6509
        %v6511 = vpop.f32.mrb[0].mxu0
        %6512 = vmatprep.mubr.bf16.mxu0 0
        %6513 = vmatmul.mubr.bf16.gmra.mrb[0].mxu0 %v5721
        %v6514 = vpop.f32.mrb[0].mxu0
        %v6515 = vadd.f32 0.0, %v6514
        %v6516 = vpop.f32.mrb[0].mxu0
        %v6517 = vpop.f32.mrb[0].mxu0
        %v6518 = vadd.f32 0.0, %v6517
        %v6519 = vpop.f32.mrb[0].mxu0
        %6520 = vmatprep.mubr.bf16.mxu0 0
        %6521 = vmatmul.mubr.bf16.gmra.mrb[0].mxu0 %v5722
        %v6522 = vpop.f32.mrb[0].mxu0
        %v6523 = vadd.f32 0.0, %v6522
        %v6524 = vpop.f32.mrb[0].mxu0
        %v6525 = vpop.f32.mrb[0].mxu0
        %v6526 = vadd.f32 0.0, %v6525
        %v6527 = vpop.f32.mrb[0].mxu0
        %6528 = vmatprep.mubr.bf16.mxu0 0
        %6529 = vmatmul.mubr.bf16.gmra.mrb[0].mxu0 %v5723
        %v6530 = vpop.f32.mrb[0].mxu0
        %v6531 = vadd.f32 0.0, %v6530
        %v6532 = vpop.f32.mrb[0].mxu0
        %v6533 = vpop.f32.mrb[0].mxu0
        %v6534 = vadd.f32 0.0, %v6533
        %v6535 = vpop.f32.mrb[0].mxu0
        %6536 = vmatprep.mubr.bf16.mxu0 0
        %6537 = vmatmul.mubr.bf16.gmra.mrb[0].mxu0 %v5724
        %v6538 = vpop.f32.mrb[0].mxu0
        %v6539 = vadd.f32 0.0, %v6538
        %v6540 = vpop.f32.mrb[0].mxu0
        %v6541 = vpop.f32.mrb[0].mxu0
        %v6542 = vadd.f32 0.0, %v6541
        %v6543 = vpop.f32.mrb[0].mxu0
        %6544 = vmatprep.mubr.bf16.mxu0 0
        %6545 = vmatmul.mubr.bf16.gmra.mrb[0].mxu0 %v5725
        %v6546 = vpop.f32.mrb[0].mxu0
        %v6547 = vadd.f32 0.0, %v6546
        %v6548 = vpop.f32.mrb[0].mxu0
        %v6549 = vpop.f32.mrb[0].mxu0
        %v6550 = vadd.f32 0.0, %v6549
        %v6551 = vpop.f32.mrb[0].mxu0
        %6552 = vmatprep.mubr.bf16.mxu0 0
        %6553 = vmatmul.mubr.bf16.gmra.mrb[0].mxu0 %v5726
        %v6554 = vpop.f32.mrb[0].mxu0
        %v6555 = vadd.f32 0.0, %v6554
        %v6556 = vpop.f32.mrb[0].mxu0
        %v6557 = vpop.f32.mrb[0].mxu0
        %v6558 = vadd.f32 0.0, %v6557
        %v6559 = vpop.f32.mrb[0].mxu0
        %6560 = vmatprep.mubr.bf16.mxu0 0
        %6561 = vmatmul.mubr.bf16.gmra.mrb[0].mxu0 %v5727
        %v6562 = vpop.f32.mrb[0].mxu0
        %v6563 = vadd.f32 0.0, %v6562
        %v6564 = vpop.f32.mrb[0].mxu0
        %v6565 = vpop.f32.mrb[0].mxu0
        %v6566 = vadd.f32 0.0, %v6565
        %v6567 = vpop.f32.mrb[0].mxu0
        %6568 = vmatprep.mubr.bf16.mxu0 0
        %6569 = vmatmul.mubr.bf16.gmra.mrb[0].mxu0 %v5728
        %v6570 = vpop.f32.mrb[0].mxu0
        %v6571 = vadd.f32 0.0, %v6570
        %v6572 = vpop.f32.mrb[0].mxu0
        %v6573 = vpop.f32.mrb[0].mxu0
        %v6574 = vadd.f32 0.0, %v6573
        %v6575 = vpop.f32.mrb[0].mxu0
        %6576 = vdwg.mxu0
        %v6577 = vld [vmem:[#allocation2] sm:$0xff]
        %v6578 = vld [vmem:[#allocation2 + $0x8] sm:$0xff]
        %v6579 = vld [vmem:[#allocation2 + $0x10] sm:$0xff]
        %v6580 = vld [vmem:[#allocation2 + $0x18] sm:$0xff]
        %v6581 = vld [vmem:[#allocation2 + $0x20] sm:$0xff]
        %v6582 = vld [vmem:[#allocation2 + $0x28] sm:$0xff]
        %v6583 = vld [vmem:[#allocation2 + $0x30] sm:$0xff]
        %v6584 = vld [vmem:[#allocation2 + $0x38] sm:$0xff]
        %v6585 = vld [vmem:[#allocation2 + $0x40] sm:$0xff]
        %v6586 = vld [vmem:[#allocation2 + $0x48] sm:$0xff]
        %v6587 = vld [vmem:[#allocation2 + $0x50] sm:$0xff]
        %v6588 = vld [vmem:[#allocation2 + $0x58] sm:$0xff]
        %v6589 = vld [vmem:[#allocation2 + $0x60] sm:$0xff]
        %v6590 = vld [vmem:[#allocation2 + $0x68] sm:$0xff]
        %v6591 = vld [vmem:[#allocation2 + $0x70] sm:$0xff]
        %v6592 = vld [vmem:[#allocation2 + $0x78] sm:$0xff]
        %v6593 = vld [vmem:[#allocation2 + $0x80] sm:$0xff]
        %v6594 = vld [vmem:[#allocation2 + $0x88] sm:$0xff]
        %v6595 = vld [vmem:[#allocation2 + $0x90] sm:$0xff]
        %v6596 = vld [vmem:[#allocation2 + $0x98] sm:$0xff]
        %v6597 = vld [vmem:[#allocation2 + $0xa0] sm:$0xff]
        %v6598 = vld [vmem:[#allocation2 + $0xa8] sm:$0xff]
        %v6599 = vld [vmem:[#allocation2 + $0xb0] sm:$0xff]
        %v6600 = vld [vmem:[#allocation2 + $0xb8] sm:$0xff]
        %v6601 = vld [vmem:[#allocation2 + $0xc0] sm:$0xff]
        %v6602 = vld [vmem:[#allocation2 + $0xc8] sm:$0xff]
        %v6603 = vld [vmem:[#allocation2 + $0xd0] sm:$0xff]
        %v6604 = vld [vmem:[#allocation2 + $0xd8] sm:$0xff]
        %v6605 = vld [vmem:[#allocation2 + $0xe0] sm:$0xff]
        %v6606 = vld [vmem:[#allocation2 + $0xe8] sm:$0xff]
        %v6607 = vadd.f32 %v6577, %v6459
        %v6608 = vadd.f32 %v6578, %v6462
        %v6609 = vadd.f32 %v6579, %v6467
        %v6610 = vadd.f32 %v6580, %v6470
        %v6611 = vadd.f32 %v6581, %v6475
        %v6612 = vadd.f32 %v6582, %v6478
        %v6613 = vadd.f32 %v6583, %v6483
        %v6614 = vadd.f32 %v6584, %v6486
        %v6615 = vadd.f32 %v6585, %v6491
        %v6616 = vadd.f32 %v6586, %v6494
        %v6617 = vadd.f32 %v6587, %v6499
        %v6618 = vadd.f32 %v6588, %v6502
        %v6619 = vadd.f32 %v6589, %v6507
        %v6620 = vadd.f32 %v6590, %v6510
        %v6621 = vadd.f32 %v6591, %v6515
        %v6622 = vadd.f32 %v6592, %v6518
        %v6623 = vadd.f32 %v6593, %v6523
        %v6624 = vadd.f32 %v6594, %v6526
        %v6625 = vadd.f32 %v6595, %v6531
        %v6626 = vadd.f32 %v6596, %v6534
        %v6627 = vadd.f32 %v6597, %v6539
        %v6628 = vadd.f32 %v6598, %v6542
        %v6629 = vadd.f32 %v6599, %v6547
        %v6630 = vadd.f32 %v6600, %v6550
        %v6631 = vadd.f32 %v6601, %v6555
        %v6632 = vadd.f32 %v6602, %v6558
        %v6633 = vadd.f32 %v6603, %v6563
        %v6634 = vadd.f32 %v6604, %v6566
        %v6635 = vadd.f32 %v6605, %v6571
        %v6636 = vadd.f32 %v6606, %v6574
        %6637 = vst [vmem:[#allocation2] sm:$0xff] %v6607
        %6638 = vst [vmem:[#allocation2 + $0x8] sm:$0xff] %v6608
        %6639 = vst [vmem:[#allocation2 + $0x10] sm:$0xff] %v6609
        %6640 = vst [vmem:[#allocation2 + $0x18] sm:$0xff] %v6610
        %6641 = vst [vmem:[#allocation2 + $0x20] sm:$0xff] %v6611
        %6642 = vst [vmem:[#allocation2 + $0x28] sm:$0xff] %v6612
        %6643 = vst [vmem:[#allocation2 + $0x30] sm:$0xff] %v6613
        %6644 = vst [vmem:[#allocation2 + $0x38] sm:$0xff] %v6614
        %6645 = vst [vmem:[#allocation2 + $0x40] sm:$0xff] %v6615
        %6646 = vst [vmem:[#allocation2 + $0x48] sm:$0xff] %v6616
        %6647 = vst [vmem:[#allocation2 + $0x50] sm:$0xff] %v6617
        %6648 = vst [vmem:[#allocation2 + $0x58] sm:$0xff] %v6618
        %6649 = vst [vmem:[#allocation2 + $0x60] sm:$0xff] %v6619
        %6650 = vst [vmem:[#allocation2 + $0x68] sm:$0xff] %v6620
        %6651 = vst [vmem:[#allocation2 + $0x70] sm:$0xff] %v6621
        %6652 = vst [vmem:[#allocation2 + $0x78] sm:$0xff] %v6622
        %6653 = vst [vmem:[#allocation2 + $0x80] sm:$0xff] %v6623
        %6654 = vst [vmem:[#allocation2 + $0x88] sm:$0xff] %v6624
        %6655 = vst [vmem:[#allocation2 + $0x90] sm:$0xff] %v6625
        %6656 = vst [vmem:[#allocation2 + $0x98] sm:$0xff] %v6626
        %6657 = vst [vmem:[#allocation2 + $0xa0] sm:$0xff] %v6627
        %6658 = vst [vmem:[#allocation2 + $0xa8] sm:$0xff] %v6628
        %6659 = vst [vmem:[#allocation2 + $0xb0] sm:$0xff] %v6629
        %6660 = vst [vmem:[#allocation2 + $0xb8] sm:$0xff] %v6630
        %6661 = vst [vmem:[#allocation2 + $0xc0] sm:$0xff] %v6631
        %6662 = vst [vmem:[#allocation2 + $0xc8] sm:$0xff] %v6632
        %6663 = vst [vmem:[#allocation2 + $0xd0] sm:$0xff] %v6633
        %6664 = vst [vmem:[#allocation2 + $0xd8] sm:$0xff] %v6634
        %6665 = vst [vmem:[#allocation2 + $0xe0] sm:$0xff] %v6635
        %6666 = vst [vmem:[#allocation2 + $0xe8] sm:$0xff] %v6636
        %v6667 = vunpack.c.l.bf16 %v300
        %v6668 = vunpack.c.l.bf16 %v301
        %v6669 = vunpack.c.l.bf16 %v302
        %v6670 = vunpack.c.l.bf16 %v303
        %v6671 = vunpack.c.l.bf16 %v304
        %v6672 = vunpack.c.l.bf16 %v305
        %v6673 = vunpack.c.l.bf16 %v306
        %v6674 = vunpack.c.l.bf16 %v307
        %v6675 = vunpack.c.l.bf16 %v308
        %v6676 = vunpack.c.l.bf16 %v309
        %v6677 = vunpack.c.l.bf16 %v310
        %v6678 = vunpack.c.l.bf16 %v311
        %v6679 = vunpack.c.l.bf16 %v312
        %v6680 = vunpack.c.l.bf16 %v313
        %v6681 = vunpack.c.l.bf16 %v314
        %v6682 = vunpack.c.l.bf16 %v315
        %v6683 = vunpack.c.l.bf16 %v316
        %v6684 = vunpack.c.l.bf16 %v317
        %v6685 = vunpack.c.l.bf16 %v318
        %v6686 = vunpack.c.l.bf16 %v319
        %v6687 = vunpack.c.l.bf16 %v320
        %v6688 = vunpack.c.l.bf16 %v321
        %v6689 = vunpack.c.l.bf16 %v322
        %v6690 = vunpack.c.l.bf16 %v323
        %v6691 = vunpack.c.l.bf16 %v324
        %v6692 = vunpack.c.l.bf16 %v325
        %v6693 = vunpack.c.l.bf16 %v326
        %v6694 = vunpack.c.l.bf16 %v327
        %v6695 = vunpack.c.l.bf16 %v328
        %v6696 = vunpack.c.l.bf16 %v329
        %v6697 = vunpack.c.l.bf16 %v330
        %v6698 = vunpack.c.l.bf16 %v331
        %v6699 = vld [vmem:[#allocation2] sm:$0xff]
        %v6700 = vld [vmem:[#allocation2 + $0x8] sm:$0xff]
        %v6701 = vld [vmem:[#allocation2 + $0x10] sm:$0xff]
        %v6702 = vld [vmem:[#allocation2 + $0x18] sm:$0xff]
        %v6703 = vld [vmem:[#allocation2 + $0x20] sm:$0xff]
        %v6704 = vld [vmem:[#allocation2 + $0x28] sm:$0xff]
        %v6705 = vld [vmem:[#allocation2 + $0x30] sm:$0xff]
        %v6706 = vld [vmem:[#allocation2 + $0x38] sm:$0xff]
        %v6707 = vld [vmem:[#allocation2 + $0x40] sm:$0xff]
        %v6708 = vld [vmem:[#allocation2 + $0x48] sm:$0xff]
        %v6709 = vld [vmem:[#allocation2 + $0x50] sm:$0xff]
        %v6710 = vld [vmem:[#allocation2 + $0x58] sm:$0xff]
        %v6711 = vld [vmem:[#allocation2 + $0x60] sm:$0xff]
        %v6712 = vld [vmem:[#allocation2 + $0x68] sm:$0xff]
        %v6713 = vld [vmem:[#allocation2 + $0x70] sm:$0xff]
        %v6714 = vld [vmem:[#allocation2 + $0x78] sm:$0xff]
        %v6715 = vld [vmem:[#allocation2 + $0x80] sm:$0xff]
        %v6716 = vld [vmem:[#allocation2 + $0x88] sm:$0xff]
        %v6717 = vld [vmem:[#allocation2 + $0x90] sm:$0xff]
        %v6718 = vld [vmem:[#allocation2 + $0x98] sm:$0xff]
        %v6719 = vld [vmem:[#allocation2 + $0xa0] sm:$0xff]
        %v6720 = vld [vmem:[#allocation2 + $0xa8] sm:$0xff]
        %v6721 = vld [vmem:[#allocation2 + $0xb0] sm:$0xff]
        %v6722 = vld [vmem:[#allocation2 + $0xb8] sm:$0xff]
        %v6723 = vld [vmem:[#allocation2 + $0xc0] sm:$0xff]
        %v6724 = vld [vmem:[#allocation2 + $0xc8] sm:$0xff]
        %v6725 = vld [vmem:[#allocation2 + $0xd0] sm:$0xff]
        %v6726 = vld [vmem:[#allocation2 + $0xd8] sm:$0xff]
        %v6727 = vld [vmem:[#allocation2 + $0xe0] sm:$0xff]
        %v6728 = vld [vmem:[#allocation2 + $0xe8] sm:$0xff]
        %v6729 = vld [vmem:[#allocation2 + $0xf0] sm:$0xff]
        %v6730 = vld [vmem:[#allocation2 + $0xf8] sm:$0xff]
        %v6731 = vadd.f32 %v6699, %v6667
        %v6732 = vadd.f32 %v6700, %v6668
        %v6733 = vadd.f32 %v6701, %v6669
        %v6734 = vadd.f32 %v6702, %v6670
        %v6735 = vadd.f32 %v6703, %v6671
        %v6736 = vadd.f32 %v6704, %v6672
        %v6737 = vadd.f32 %v6705, %v6673
        %v6738 = vadd.f32 %v6706, %v6674
        %v6739 = vadd.f32 %v6707, %v6675
        %v6740 = vadd.f32 %v6708, %v6676
        %v6741 = vadd.f32 %v6709, %v6677
        %v6742 = vadd.f32 %v6710, %v6678
        %v6743 = vadd.f32 %v6711, %v6679
        %v6744 = vadd.f32 %v6712, %v6680
        %v6745 = vadd.f32 %v6713, %v6681
        %v6746 = vadd.f32 %v6714, %v6682
        %v6747 = vadd.f32 %v6715, %v6683
        %v6748 = vadd.f32 %v6716, %v6684
        %v6749 = vadd.f32 %v6717, %v6685
        %v6750 = vadd.f32 %v6718, %v6686
        %v6751 = vadd.f32 %v6719, %v6687
        %v6752 = vadd.f32 %v6720, %v6688
        %v6753 = vadd.f32 %v6721, %v6689
        %v6754 = vadd.f32 %v6722, %v6690
        %v6755 = vadd.f32 %v6723, %v6691
        %v6756 = vadd.f32 %v6724, %v6692
        %v6757 = vadd.f32 %v6725, %v6693
        %v6758 = vadd.f32 %v6726, %v6694
        %v6759 = vadd.f32 %v6727, %v6695
        %v6760 = vadd.f32 %v6728, %v6696
        %v6761 = vadd.f32 %v6729, %v6697
        %v6762 = vadd.f32 %v6730, %v6698
        %v6763 = vmax.f32 %v6731, 0.0
        %v6764 = vmax.f32 %v6732, 0.0
        %v6765 = vmax.f32 %v6733, 0.0
        %v6766 = vmax.f32 %v6734, 0.0
        %v6767 = vmax.f32 %v6735, 0.0
        %v6768 = vmax.f32 %v6736, 0.0
        %v6769 = vmax.f32 %v6737, 0.0
        %v6770 = vmax.f32 %v6738, 0.0
        %v6771 = vmax.f32 %v6739, 0.0
        %v6772 = vmax.f32 %v6740, 0.0
        %v6773 = vmax.f32 %v6741, 0.0
        %v6774 = vmax.f32 %v6742, 0.0
        %v6775 = vmax.f32 %v6743, 0.0
        %v6776 = vmax.f32 %v6744, 0.0
        %v6777 = vmax.f32 %v6745, 0.0
        %v6778 = vmax.f32 %v6746, 0.0
        %v6779 = vmax.f32 %v6747, 0.0
        %v6780 = vmax.f32 %v6748, 0.0
        %v6781 = vmax.f32 %v6749, 0.0
        %v6782 = vmax.f32 %v6750, 0.0
        %v6783 = vmax.f32 %v6751, 0.0
        %v6784 = vmax.f32 %v6752, 0.0
        %v6785 = vmax.f32 %v6753, 0.0
        %v6786 = vmax.f32 %v6754, 0.0
        %v6787 = vmax.f32 %v6755, 0.0
        %v6788 = vmax.f32 %v6756, 0.0
        %v6789 = vmax.f32 %v6757, 0.0
        %v6790 = vmax.f32 %v6758, 0.0
        %v6791 = vmax.f32 %v6759, 0.0
        %v6792 = vmax.f32 %v6760, 0.0
        %v6793 = vmax.f32 %v6761, 0.0
        %v6794 = vmax.f32 %v6762, 0.0
        %v6795 = vpack.c.bf16 %v6764, %v6763
        %v6796 = vpack.c.bf16 %v6766, %v6765
        %v6797 = vpack.c.bf16 %v6768, %v6767
        %v6798 = vpack.c.bf16 %v6770, %v6769
        %v6799 = vpack.c.bf16 %v6772, %v6771
        %v6800 = vpack.c.bf16 %v6774, %v6773
        %v6801 = vpack.c.bf16 %v6776, %v6775
        %v6802 = vpack.c.bf16 %v6778, %v6777
        %v6803 = vpack.c.bf16 %v6780, %v6779
        %v6804 = vpack.c.bf16 %v6782, %v6781
        %v6805 = vpack.c.bf16 %v6784, %v6783
        %v6806 = vpack.c.bf16 %v6786, %v6785
        %v6807 = vpack.c.bf16 %v6788, %v6787
        %v6808 = vpack.c.bf16 %v6790, %v6789
        %v6809 = vpack.c.bf16 %v6792, %v6791
        %v6810 = vpack.c.bf16 %v6794, %v6793
        %v6827 = vunpack.c.l.b16 %v6795
        %v6828 = vunpack.c.h.b16 %v6795
        %v6829 = vunpack.c.l.b16 %v6796
        %v6830 = vunpack.c.h.b16 %v6796
        %v6831 = vunpack.c.l.b16 %v6797
        %v6832 = vunpack.c.h.b16 %v6797
        %v6833 = vunpack.c.l.b16 %v6798
        %v6834 = vunpack.c.h.b16 %v6798
        %v6835 = vunpack.c.l.b16 %v6799
        %v6836 = vunpack.c.h.b16 %v6799
        %v6837 = vunpack.c.l.b16 %v6800
        %v6838 = vunpack.c.h.b16 %v6800
        %v6839 = vunpack.c.l.b16 %v6801
        %v6840 = vunpack.c.h.b16 %v6801
        %v6841 = vunpack.c.l.b16 %v6802
        %v6842 = vunpack.c.h.b16 %v6802
        %v6843 = vunpack.c.l.b16 %v6803
        %v6844 = vunpack.c.h.b16 %v6803
        %v6845 = vunpack.c.l.b16 %v6804
        %v6846 = vunpack.c.h.b16 %v6804
        %v6847 = vunpack.c.l.b16 %v6805
        %v6848 = vunpack.c.h.b16 %v6805
        %v6849 = vunpack.c.l.b16 %v6806
        %v6850 = vunpack.c.h.b16 %v6806
        %v6851 = vunpack.c.l.b16 %v6807
        %v6852 = vunpack.c.h.b16 %v6807
        %v6853 = vunpack.c.l.b16 %v6808
        %v6854 = vunpack.c.h.b16 %v6808
        %v6855 = vunpack.c.l.b16 %v6809
        %v6856 = vunpack.c.h.b16 %v6809
        %v6857 = vunpack.c.l.b16 %v6810
        %v6858 = vunpack.c.h.b16 %v6810
        %v6859 = vpack.c.b16 %v6827, %v6827
        %v6860 = vpack.c.b16 %v6828, %v6828
        %v6861 = vpack.c.b16 %v6829, %v6829
        %v6862 = vpack.c.b16 %v6830, %v6830
        %v6863 = vpack.c.b16 %v6831, %v6831
        %v6864 = vpack.c.b16 %v6832, %v6832
        %v6865 = vpack.c.b16 %v6833, %v6833
        %v6866 = vpack.c.b16 %v6834, %v6834
        %v6867 = vpack.c.b16 %v6835, %v6835
        %v6868 = vpack.c.b16 %v6836, %v6836
        %v6869 = vpack.c.b16 %v6837, %v6837
        %v6870 = vpack.c.b16 %v6838, %v6838
        %v6871 = vpack.c.b16 %v6839, %v6839
        %v6872 = vpack.c.b16 %v6840, %v6840
        %v6873 = vpack.c.b16 %v6841, %v6841
        %v6874 = vpack.c.b16 %v6842, %v6842
        %v6875 = vpack.c.b16 %v6843, %v6843
        %v6876 = vpack.c.b16 %v6844, %v6844
        %v6877 = vpack.c.b16 %v6845, %v6845
        %v6878 = vpack.c.b16 %v6846, %v6846
        %v6879 = vpack.c.b16 %v6847, %v6847
        %v6880 = vpack.c.b16 %v6848, %v6848
        %v6881 = vpack.c.b16 %v6849, %v6849
        %v6882 = vpack.c.b16 %v6850, %v6850
        %v6883 = vpack.c.b16 %v6851, %v6851
        %v6884 = vpack.c.b16 %v6852, %v6852
        %v6885 = vpack.c.b16 %v6853, %v6853
        %v6886 = vpack.c.b16 %v6854, %v6854
        %v6887 = vpack.c.b16 %v6855, %v6855
        %v6888 = vpack.c.b16 %v6856, %v6856
        %v6889 = vpack.c.b16 %v6857, %v6857
        %v6890 = vpack.c.b16 %v6858, %v6858
        %6923 = vst [vmem:[%s296] sm:$0xf] %v6859
        %6924 = vst [vmem:[%s296 + $0x4] sm:$0xf] %v6860
        %6925 = vst [vmem:[%s296 + $0x8] sm:$0xf] %v6861
        %6926 = vst [vmem:[%s296 + $0xc] sm:$0xf] %v6862
        %6927 = vst [vmem:[%s296 + $0x10] sm:$0xf] %v6863
        %6928 = vst [vmem:[%s296 + $0x14] sm:$0xf] %v6864
        %6929 = vst [vmem:[%s296 + $0x18] sm:$0xf] %v6865
        %6930 = vst [vmem:[%s296 + $0x1c] sm:$0xf] %v6866
        %6931 = vst [vmem:[%s296 + $0x20] sm:$0xf] %v6867
        %6932 = vst [vmem:[%s296 + $0x24] sm:$0xf] %v6868
        %6933 = vst [vmem:[%s296 + $0x28] sm:$0xf] %v6869
        %6934 = vst [vmem:[%s296 + $0x2c] sm:$0xf] %v6870
        %6935 = vst [vmem:[%s296 + $0x30] sm:$0xf] %v6871
        %6936 = vst [vmem:[%s296 + $0x34] sm:$0xf] %v6872
        %6937 = vst [vmem:[%s296 + $0x38] sm:$0xf] %v6873
        %6938 = vst [vmem:[%s296 + $0x3c] sm:$0xf] %v6874
        %6939 = vst [vmem:[%s296 + $0x40] sm:$0xf] %v6875
        %6940 = vst [vmem:[%s296 + $0x44] sm:$0xf] %v6876
        %6941 = vst [vmem:[%s296 + $0x48] sm:$0xf] %v6877
        %6942 = vst [vmem:[%s296 + $0x4c] sm:$0xf] %v6878
        %6943 = vst [vmem:[%s296 + $0x50] sm:$0xf] %v6879
        %6944 = vst [vmem:[%s296 + $0x54] sm:$0xf] %v6880
        %6945 = vst [vmem:[%s296 + $0x58] sm:$0xf] %v6881
        %6946 = vst [vmem:[%s296 + $0x5c] sm:$0xf] %v6882
        %6947 = vst [vmem:[%s296 + $0x60] sm:$0xf] %v6883
        %6948 = vst [vmem:[%s296 + $0x64] sm:$0xf] %v6884
        %6949 = vst [vmem:[%s296 + $0x68] sm:$0xf] %v6885
        %6950 = vst [vmem:[%s296 + $0x6c] sm:$0xf] %v6886
        %6951 = vst [vmem:[%s296 + $0x70] sm:$0xf] %v6887
        %6952 = vst [vmem:[%s296 + $0x74] sm:$0xf] %v6888
        %6953 = vst [vmem:[%s296 + $0x78] sm:$0xf] %v6889
        %6954 = vst [vmem:[%s296 + $0x7c] sm:$0xf] %v6890
        %s6955 = sand.u32 %s142, 1
        %s6956 = scalar_lea.sflag [#allocation5], %s6955
        %s6957 = sand.u32 %s142, 1
        %s6958 = smul.addr %s6957, 128
        %s6959 = scalar_lea.vmem [#allocation12], %s6958
        // Predicated region
        $region61: #{tpu_custom_call.1} parent=39 // pred_check
          %p6960 = pneg %p152
        $region62: #{tpu_custom_call.1} parent=39 // pred_check_branch
          %6962 = sbr.rel (%p6960) target = $region64
        $region63: #{tpu_custom_call.1} parent=39 // pred_region
          %s6964 = ssub.s32 2048, 2048
          %6965 = vsyncadd %s6956, %s6964
          %s6966 = smul.addr %s24, 32
          %s6967 = smul.addr %s6966, 64
          %s6968 = scalar_lea.hbm %s5, %s6967
          %s6969 = sshll.u32 %s6959, 4
          %s6970 = int_to_ptr.vmem [resolvable:$true] %s6969
          %6975 = dma.vmem_to_hbm [thread:$0]  %s6970, 2048, %s6968, %s6956, 64, 64, 4
        $region64: #{tpu_custom_call.1} parent=39 // pred_fallthru
          _
      $region40: #{tpu_custom_call.1} parent=5 // pred_fallthru
        _
      %p6976 = scmp.le.s32.totalorder 2, %s19
      // Predicated region
      $region65: #{tpu_custom_call.1} parent=5 // pred_check
        %p6977 = pneg %p6976
      $region66: #{tpu_custom_call.1} parent=5 // pred_check_branch
        %6979 = sbr.rel (%p6977) target = $region68
      $region67: #{tpu_custom_call.1} parent=5 // pred_region
        %s6980 = ssub.s32 %s19, 2
        // Predicated region
        $region69: #{tpu_custom_call.1} parent=67 // pred_check
          %p6981 = pneg %p158
        $region70: #{tpu_custom_call.1} parent=67 // pred_check_branch
          %6983 = sbr.rel (%p6981) target = $region72
        $region71: #{tpu_custom_call.1} parent=67 // pred_region
          %s6984 = sand.u32 %s143, 1
          %s6985 = scalar_lea.sflag [#allocation5], %s6984
          %s6986 = sand.u32 %s143, 1
          %s6987 = smul.addr %s6986, 128
          %s6988 = scalar_lea.vmem [#allocation12], %s6987
          %6989 = dma.done %s6985, 2048
        $region72: #{tpu_custom_call.1} parent=67 // pred_fallthru
          _
      $region68: #{tpu_custom_call.1} parent=5 // pred_fallthru
        _
    $region6: #{tpu_custom_call.1} parent=1 // loop_footer
      %s23 = sadd.s32 1, %s19
    $region7: #{tpu_custom_call.1} parent=1 // loop_footer_branch
      %18 = sbr.rel target = $region3
    $region8: #{tpu_custom_call.1} parent=1 // loop_exit
      _
    %6990 = vsyncpa [#allocation4], 1
    %s6991 = scalar_lea.sflag [#allocation4], 1
    %6992 = vsyncpa %s6991, 1
    %6993 = vsyncpa [#allocation7], 1
    %6994 = vsyncpa [#allocation10], 1
    %6995 = vsyncpa [#allocation5], 1
    %s6996 = scalar_lea.sflag [#allocation5], 1
    %6997 = vsyncpa %s6996, 1

</llo_original>
